<compile_context>
chip_gen: v6e
topology: v6e:2x2x1
jax: 0.10.0
libtpu: 0.0.40
codegen_flags: <defaults>
</compile_context>

<pallas_src>
import numpy as np

import jax
import jax.numpy as jnp
from jax.experimental import pallas as pl

N_CLASSES = 192  # ffn output width (= 12 * 16)


def _needed_shifts(dilations):
    """Distinct non-zero time shifts used by the k=2 'same' convolutions."""
    vals = []
    for d in dilations:
        left = d // 2
        for s in (left, left - d):
            if s != 0 and s not in vals:
                vals.append(s)
    return tuple(vals)


def _shift_matrix(batch, seq_len, s):
    """Block-diagonal (B*L, B*L) matrix M with (M @ a)[b*L + t] = a[b*L + t - s]
    when 0 <= t - s < L, zero otherwise ('same' padding + batch isolation)."""
    bl = batch * seq_len
    m = np.zeros((bl, bl), np.float32)
    for b in range(batch):
        for t in range(seq_len):
            src = t - s
            if 0 <= src < seq_len:
                m[b * seq_len + t, b * seq_len + src] = 1.0
    return m


def make_tcnn_kernel(batch, seq_len, filters, dilations, num_blocks, shift_vals):
    """Fused TCNN forward kernel.  Activations are time-major: row r = b*L + t."""
    B, L, F = batch, seq_len, filters
    R = F // L                      # channels folded into each ffn sequence position
    d0, d1, d2 = dilations
    n_blk = 11 * num_blocks
    n_shift = len(shift_vals)

    def kernel(*refs):
        x_ref = refs[0]
        block_refs = refs[1:1 + n_blk]
        shift_refs = refs[1 + n_blk:1 + n_blk + n_shift]
        wft_refs = refs[1 + n_blk + n_shift:1 + n_blk + n_shift + R]
        bft_ref = refs[1 + n_blk + n_shift + R]
        o_ref = refs[-1]

        def shift_time(a, s):
            """(B*L, C) -> same, rows shifted by s within each batch (zeros outside)."""
            if s == 0:
                return a
            sm_ref = shift_refs[shift_vals.index(s)]
            return jnp.dot(sm_ref[...], a, preferred_element_type=jnp.float32)

        def dilated_conv(a, wa_ref, wb_ref, b_ref, d):
            left = d // 2                                   # PyTorch padding='same', k=2
            xa = shift_time(a, left)                        # x[t - left]
            xb = shift_time(a, left - d)                    # x[t - left + d]
            return (jnp.dot(xa, wa_ref[...], preferred_element_type=jnp.float32)
                    + jnp.dot(xb, wb_ref[...], preferred_element_type=jnp.float32)
                    + b_ref[...])

        # ---- 3 ResBlocks (dropout == identity at inference) ----
        a = x_ref[...]                                      # (B*L, 192)
        for k in range(num_blocks):
            (w00, w01, b0, w10, w11, b1,
             w20, w21, b2, wr, br) = block_refs[11 * k:11 * k + 11]
            h = jnp.maximum(dilated_conv(a, w00, w01, b0, d0), 0.0)
            h = jnp.maximum(dilated_conv(h, w10, w11, b1, d1), 0.0)
            h = jnp.maximum(dilated_conv(h, w20, w21, b2, d2), 0.0)
            recon = jnp.dot(a, wr[...], preferred_element_type=jnp.float32) + br[...]
            a = jnp.maximum(h + recon, 0.0)                 # residual + ReLU -> (B*L, F)

        # ---- fused FFN + softmax ----
        # PyTorch reshapes the channel-first tensor:  X[b, s, f] = a[b*L + f%L, s*R + f//L]
        # so  logits[b, s, o] = sum_{j<R, l<L} a[b*L + l, s*R + j] * Wffn[j*L + l, o].
        # Computed transposed (classes on the sublane axis) so everything stays a plain
        # matmul:  logits_T[b] = sum_j (Wffn_j^T @ a_b) @ Sel_j^T,
        # with Wffn_j^T = Wffn[j*L:(j+1)*L, :].T pre-built on the host and
        # Sel_j^T[c, s] = 1 iff c == s*R + j (compile-time iota constant).
        crow = jax.lax.broadcasted_iota(jnp.int32, (F, L), 0)   # channel index c
        ccol = jax.lax.broadcasted_iota(jnp.int32, (F, L), 1)   # sequence position s
        sels_t = [(crow == ccol * R + j).astype(jnp.float32) for j in range(R)]

        for b in range(B):
            a_b = a[b * L:(b + 1) * L, :]                   # (L, F): aligned static slice
            acc = None
            for j in range(R):
                t1 = jnp.dot(wft_refs[j][...], a_b,
                             preferred_element_type=jnp.float32)        # (192, F)
                t2 = jnp.dot(t1, sels_t[j],
                             preferred_element_type=jnp.float32)        # (192, L)
                acc = t2 if acc is None else acc + t2
            logits_t = acc + bft_ref[...]                   # (192, L): logits^T, batch b
            m = jnp.max(logits_t, axis=0, keepdims=True)
            e = jnp.exp(logits_t - m)
            inv = pl.reciprocal(jnp.sum(e, axis=0, keepdims=True), approx=True)
            o_ref[b, :, :] = e * inv                        # (192, L) probabilities^T

    return kernel


def tcnn_forward(x_ncl, params):
    """x_ncl: (B, 192, L) in PyTorch NCL layout -> (B, L, 12, 16)."""
    B, C, L = x_ncl.shape
    F = params["filters"]
    dil = tuple(params["dilations"])
    num_blocks = len(params["blocks"])
    assert F % L == 0, "fused ffn reindexing assumes filters % seq_len == 0"
    R = F // L
    shift_vals = _needed_shifts(dil)

    # Fold batch into the sublane axis (single grid step; weights DMA'd once).
    x_tm = jnp.transpose(x_ncl, (0, 2, 1)).reshape(B * L, C)          # row = b*L + t

    inputs = [x_tm]
    for bp in params["blocks"]:
        inputs += [bp["w00"], bp["w01"], bp["b0"],
                   bp["w10"], bp["w11"], bp["b1"],
                   bp["w20"], bp["w21"], bp["b2"],
                   bp["wr"], bp["br"]]
    inputs += [jnp.asarray(_shift_matrix(B, L, s)) for s in shift_vals]
    inputs += [jnp.transpose(params["ffn_w"][j * L:(j + 1) * L, :]) for j in range(R)]
    inputs += [jnp.reshape(params["ffn_b"], (N_CLASSES, 1))]

    kernel = make_tcnn_kernel(B, L, F, dil, num_blocks, shift_vals)
    probs_t = pl.pallas_call(
        kernel,
        out_shape=jax.ShapeDtypeStruct((B, N_CLASSES, L), jnp.float32),
    )(*inputs)

    # (B, 192, L) -> (B, L, 192) -> (B, L, 12, 16): pure layout ops on a tiny tensor.
    return jnp.transpose(probs_t, (0, 2, 1)).reshape(B, L, 12, 16)


def init_params(key, num_blocks=3, num_layers=3, dilations=None, filters=4):
    """Deterministic synthetic parameters. filters=4 -> internal width F = 4**2 = 16."""
    F = int(filters) ** 2
    dil = [2 ** i for i in range(int(num_layers))] if dilations is None else list(dilations)
    assert len(dil) == num_layers == 3
    scale = 0.1
    blocks = []
    for blk in range(num_blocks):
        start = 192 if blk == 0 else F      # first block consumes the 192-channel input
        key, *ks = jax.random.split(key, 12)
        cins = [start, F, F]
        p = {}
        for i, cin in enumerate(cins):
            p[f"w{i}0"] = scale * jax.random.normal(ks[3 * i + 0], (cin, F), jnp.float32)
            p[f"w{i}1"] = scale * jax.random.normal(ks[3 * i + 1], (cin, F), jnp.float32)
            p[f"b{i}"] = scale * jax.random.normal(ks[3 * i + 2], (1, F), jnp.float32)
        p["wr"] = scale * jax.random.normal(ks[9], (start, F), jnp.float32)
        p["br"] = scale * jax.random.normal(ks[10], (1, F), jnp.float32)
        blocks.append(p)
    key, k1, k2 = jax.random.split(key, 3)
    return {
        "blocks": blocks,
        "dilations": dil,
        "filters": F,
        "ffn_w": scale * jax.random.normal(k1, (F, N_CLASSES), jnp.float32),  # Linear(F,192)^T
        "ffn_b": scale * jax.random.normal(k2, (1, N_CLASSES), jnp.float32),
    }


def tcnn_reference(x_ncl, params):
    """Pure-JAX (non-Pallas) forward mirroring the PyTorch module, for validation."""
    hp = jax.lax.Precision.HIGHEST
    dil = params["dilations"]

    def conv_k2(x, wa, wb, bias, d):
        left = d // 2
        Lx = x.shape[-1]
        xp = jnp.pad(x, ((0, 0), (0, 0), (left, d - left)))
        x0 = xp[..., :Lx]                     # x[t - left]
        x1 = xp[..., d:d + Lx]                # x[t - left + d]
        y = (jnp.einsum("bcl,cf->bfl", x0, wa, precision=hp)
             + jnp.einsum("bcl,cf->bfl", x1, wb, precision=hp))
        return y + bias.reshape(1, -1, 1)

    h = x_ncl
    for p in params["blocks"]:
        inp = h
        z = jax.nn.relu(conv_k2(inp, p["w00"], p["w01"], p["b0"], dil[0]))
        z = jax.nn.relu(conv_k2(z, p["w10"], p["w11"], p["b1"], dil[1]))
        z = jax.nn.relu(conv_k2(z, p["w20"], p["w21"], p["b2"], dil[2]))
        rec = jnp.einsum("bcl,cf->bfl", inp, p["wr"], precision=hp) + p["br"].reshape(1, -1, 1)
        h = jax.nn.relu(z + rec)

    B = x_ncl.shape[0]
    F = params["filters"]
    h2 = h.reshape(B, -1, F)                                  # exact PyTorch reshape (channel-first)
    logits = (jnp.einsum("bsf,fo->bso", h2, params["ffn_w"], precision=hp)
              + params["ffn_b"].reshape(1, 1, -1))
    probs = jax.nn.softmax(logits, axis=-1)
    return probs.reshape(B, h2.shape[1], 12, 16)


if __name__ == "__main__":
    key = jax.random.PRNGKey(0)
    kx, kp = jax.random.split(key)
    B, L = 2, 8                                   # small shapes; input channels fixed at 192
    x = jax.random.normal(kx, (B, 192, L), dtype=jnp.float32)
    params = init_params(kp, num_blocks=3, num_layers=3, filters=4)

    out = jax.block_until_ready(tcnn_forward(x, params))
    assert out.shape == (B, L, 12, 16), out.shape

    # Validate against the pure-JAX reference of the PyTorch forward pass.
    ref = jax.block_until_ready(tcnn_reference(x, params))
    max_err = float(jnp.max(jnp.abs(out - ref)))
    assert max_err < 1e-3, f"mismatch vs reference: max abs err = {max_err}"

    # softmax (over the 192-wide logits) must sum to 1 per (batch, seq) position
    sums = jnp.sum(out, axis=(-2, -1))
    assert bool(jnp.all(jnp.abs(sums - 1.0) < 1e-2))
    print("KERNEL_OK")
</pallas_src>

<mosaic_0001>
module attributes {stable_mosaic.version = 11 : i64} {
  func.func @kernel(%arg0: memref<16x192xf32, #tpu.memory_space<vmem>>, %arg1: memref<192x16xf32, #tpu.memory_space<vmem>>, %arg2: memref<192x16xf32, #tpu.memory_space<vmem>>, %arg3: memref<1x16xf32, #tpu.memory_space<vmem>>, %arg4: memref<16x16xf32, #tpu.memory_space<vmem>>, %arg5: memref<16x16xf32, #tpu.memory_space<vmem>>, %arg6: memref<1x16xf32, #tpu.memory_space<vmem>>, %arg7: memref<16x16xf32, #tpu.memory_space<vmem>>, %arg8: memref<16x16xf32, #tpu.memory_space<vmem>>, %arg9: memref<1x16xf32, #tpu.memory_space<vmem>>, %arg10: memref<192x16xf32, #tpu.memory_space<vmem>>, %arg11: memref<1x16xf32, #tpu.memory_space<vmem>>, %arg12: memref<16x16xf32, #tpu.memory_space<vmem>>, %arg13: memref<16x16xf32, #tpu.memory_space<vmem>>, %arg14: memref<1x16xf32, #tpu.memory_space<vmem>>, %arg15: memref<16x16xf32, #tpu.memory_space<vmem>>, %arg16: memref<16x16xf32, #tpu.memory_space<vmem>>, %arg17: memref<1x16xf32, #tpu.memory_space<vmem>>, %arg18: memref<16x16xf32, #tpu.memory_space<vmem>>, %arg19: memref<16x16xf32, #tpu.memory_space<vmem>>, %arg20: memref<1x16xf32, #tpu.memory_space<vmem>>, %arg21: memref<16x16xf32, #tpu.memory_space<vmem>>, %arg22: memref<1x16xf32, #tpu.memory_space<vmem>>, %arg23: memref<16x16xf32, #tpu.memory_space<vmem>>, %arg24: memref<16x16xf32, #tpu.memory_space<vmem>>, %arg25: memref<1x16xf32, #tpu.memory_space<vmem>>, %arg26: memref<16x16xf32, #tpu.memory_space<vmem>>, %arg27: memref<16x16xf32, #tpu.memory_space<vmem>>, %arg28: memref<1x16xf32, #tpu.memory_space<vmem>>, %arg29: memref<16x16xf32, #tpu.memory_space<vmem>>, %arg30: memref<16x16xf32, #tpu.memory_space<vmem>>, %arg31: memref<1x16xf32, #tpu.memory_space<vmem>>, %arg32: memref<16x16xf32, #tpu.memory_space<vmem>>, %arg33: memref<1x16xf32, #tpu.memory_space<vmem>>, %arg34: memref<16x16xf32, #tpu.memory_space<vmem>>, %arg35: memref<16x16xf32, #tpu.memory_space<vmem>>, %arg36: memref<16x16xf32, #tpu.memory_space<vmem>>, %arg37: memref<16x16xf32, #tpu.memory_space<vmem>>, %arg38: memref<192x8xf32, #tpu.memory_space<vmem>>, %arg39: memref<192x8xf32, #tpu.memory_space<vmem>>, %arg40: memref<192x1xf32, #tpu.memory_space<vmem>>, %arg41: memref<2x192x8xf32, #tpu.memory_space<vmem>>) attributes {dimension_semantics = [], scalar_prefetch = 0 : i64, scratch_operands = 0 : i64, tpu.core_type = #tpu.core_type<tc>} {
    %c0 = arith.constant 0 : index
    %c0_0 = arith.constant 0 : index
    %0 = vector.load %arg0[%c0, %c0_0] : memref<16x192xf32, #tpu.memory_space<vmem>>, vector<16x192xf32>
    %c0_1 = arith.constant 0 : index
    %c0_2 = arith.constant 0 : index
    %1 = vector.load %arg34[%c0_1, %c0_2] : memref<16x16xf32, #tpu.memory_space<vmem>>, vector<16x16xf32>
    %cst = arith.constant dense<0.000000e+00> : vector<16x192xf32>
    %2 = tpu.matmul %1, %0, %cst {dimension_numbers = #tpu.dot_dimension_numbers<[1], [0], [0], [1], [0, 0, 1, 1], [], []>} : vector<16x16xf32>, vector<16x192xf32>, vector<16x192xf32> -> vector<16x192xf32>
    %c0_3 = arith.constant 0 : index
    %c0_4 = arith.constant 0 : index
    %3 = vector.load %arg1[%c0_3, %c0_4] : memref<192x16xf32, #tpu.memory_space<vmem>>, vector<192x16xf32>
    %cst_5 = arith.constant dense<0.000000e+00> : vector<16x16xf32>
    %4 = tpu.matmul %0, %3, %cst_5 {dimension_numbers = #tpu.dot_dimension_numbers<[1], [0], [0], [1], [0, 0, 1, 1], [], []>} : vector<16x192xf32>, vector<192x16xf32>, vector<16x16xf32> -> vector<16x16xf32>
    %c0_6 = arith.constant 0 : index
    %c0_7 = arith.constant 0 : index
    %5 = vector.load %arg2[%c0_6, %c0_7] : memref<192x16xf32, #tpu.memory_space<vmem>>, vector<192x16xf32>
    %cst_8 = arith.constant dense<0.000000e+00> : vector<16x16xf32>
    %6 = tpu.matmul %2, %5, %cst_8 {dimension_numbers = #tpu.dot_dimension_numbers<[1], [0], [0], [1], [0, 0, 1, 1], [], []>} : vector<16x192xf32>, vector<192x16xf32>, vector<16x16xf32> -> vector<16x16xf32>
    %7 = arith.addf %4, %6 : vector<16x16xf32>
    %c0_9 = arith.constant 0 : index
    %c0_10 = arith.constant 0 : index
    %8 = vector.load %arg3[%c0_9, %c0_10] : memref<1x16xf32, #tpu.memory_space<vmem>>, vector<1x16xf32>
    %9 = vector.broadcast %8 : vector<1x16xf32> to vector<16x16xf32>
    %10 = arith.addf %7, %9 : vector<16x16xf32>
    %cst_11 = arith.constant 0.000000e+00 : f32
    %11 = vector.broadcast %cst_11 : f32 to vector<16x16xf32>
    %12 = arith.maximumf %10, %11 : vector<16x16xf32>
    %c0_12 = arith.constant 0 : index
    %c0_13 = arith.constant 0 : index
    %13 = vector.load %arg35[%c0_12, %c0_13] : memref<16x16xf32, #tpu.memory_space<vmem>>, vector<16x16xf32>
    %cst_14 = arith.constant dense<0.000000e+00> : vector<16x16xf32>
    %14 = tpu.matmul %13, %12, %cst_14 {dimension_numbers = #tpu.dot_dimension_numbers<[1], [0], [0], [1], [0, 0, 1, 1], [], []>} : vector<16x16xf32>, vector<16x16xf32>, vector<16x16xf32> -> vector<16x16xf32>
    %c0_15 = arith.constant 0 : index
    %c0_16 = arith.constant 0 : index
    %15 = vector.load %arg34[%c0_15, %c0_16] : memref<16x16xf32, #tpu.memory_space<vmem>>, vector<16x16xf32>
    %cst_17 = arith.constant dense<0.000000e+00> : vector<16x16xf32>
    %16 = tpu.matmul %15, %12, %cst_17 {dimension_numbers = #tpu.dot_dimension_numbers<[1], [0], [0], [1], [0, 0, 1, 1], [], []>} : vector<16x16xf32>, vector<16x16xf32>, vector<16x16xf32> -> vector<16x16xf32>
    %c0_18 = arith.constant 0 : index
    %c0_19 = arith.constant 0 : index
    %17 = vector.load %arg4[%c0_18, %c0_19] : memref<16x16xf32, #tpu.memory_space<vmem>>, vector<16x16xf32>
    %cst_20 = arith.constant dense<0.000000e+00> : vector<16x16xf32>
    %18 = tpu.matmul %14, %17, %cst_20 {dimension_numbers = #tpu.dot_dimension_numbers<[1], [0], [0], [1], [0, 0, 1, 1], [], []>} : vector<16x16xf32>, vector<16x16xf32>, vector<16x16xf32> -> vector<16x16xf32>
    %c0_21 = arith.constant 0 : index
    %c0_22 = arith.constant 0 : index
    %19 = vector.load %arg5[%c0_21, %c0_22] : memref<16x16xf32, #tpu.memory_space<vmem>>, vector<16x16xf32>
    %cst_23 = arith.constant dense<0.000000e+00> : vector<16x16xf32>
    %20 = tpu.matmul %16, %19, %cst_23 {dimension_numbers = #tpu.dot_dimension_numbers<[1], [0], [0], [1], [0, 0, 1, 1], [], []>} : vector<16x16xf32>, vector<16x16xf32>, vector<16x16xf32> -> vector<16x16xf32>
    %21 = arith.addf %18, %20 : vector<16x16xf32>
    %c0_24 = arith.constant 0 : index
    %c0_25 = arith.constant 0 : index
    %22 = vector.load %arg6[%c0_24, %c0_25] : memref<1x16xf32, #tpu.memory_space<vmem>>, vector<1x16xf32>
    %23 = vector.broadcast %22 : vector<1x16xf32> to vector<16x16xf32>
    %24 = arith.addf %21, %23 : vector<16x16xf32>
    %cst_26 = arith.constant 0.000000e+00 : f32
    %25 = vector.broadcast %cst_26 : f32 to vector<16x16xf32>
    %26 = arith.maximumf %24, %25 : vector<16x16xf32>
    %c0_27 = arith.constant 0 : index
    %c0_28 = arith.constant 0 : index
    %27 = vector.load %arg36[%c0_27, %c0_28] : memref<16x16xf32, #tpu.memory_space<vmem>>, vector<16x16xf32>
    %cst_29 = arith.constant dense<0.000000e+00> : vector<16x16xf32>
    %28 = tpu.matmul %27, %26, %cst_29 {dimension_numbers = #tpu.dot_dimension_numbers<[1], [0], [0], [1], [0, 0, 1, 1], [], []>} : vector<16x16xf32>, vector<16x16xf32>, vector<16x16xf32> -> vector<16x16xf32>
    %c0_30 = arith.constant 0 : index
    %c0_31 = arith.constant 0 : index
    %29 = vector.load %arg37[%c0_30, %c0_31] : memref<16x16xf32, #tpu.memory_space<vmem>>, vector<16x16xf32>
    %cst_32 = arith.constant dense<0.000000e+00> : vector<16x16xf32>
    %30 = tpu.matmul %29, %26, %cst_32 {dimension_numbers = #tpu.dot_dimension_numbers<[1], [0], [0], [1], [0, 0, 1, 1], [], []>} : vector<16x16xf32>, vector<16x16xf32>, vector<16x16xf32> -> vector<16x16xf32>
    %c0_33 = arith.constant 0 : index
    %c0_34 = arith.constant 0 : index
    %31 = vector.load %arg7[%c0_33, %c0_34] : memref<16x16xf32, #tpu.memory_space<vmem>>, vector<16x16xf32>
    %cst_35 = arith.constant dense<0.000000e+00> : vector<16x16xf32>
    %32 = tpu.matmul %28, %31, %cst_35 {dimension_numbers = #tpu.dot_dimension_numbers<[1], [0], [0], [1], [0, 0, 1, 1], [], []>} : vector<16x16xf32>, vector<16x16xf32>, vector<16x16xf32> -> vector<16x16xf32>
    %c0_36 = arith.constant 0 : index
    %c0_37 = arith.constant 0 : index
    %33 = vector.load %arg8[%c0_36, %c0_37] : memref<16x16xf32, #tpu.memory_space<vmem>>, vector<16x16xf32>
    %cst_38 = arith.constant dense<0.000000e+00> : vector<16x16xf32>
    %34 = tpu.matmul %30, %33, %cst_38 {dimension_numbers = #tpu.dot_dimension_numbers<[1], [0], [0], [1], [0, 0, 1, 1], [], []>} : vector<16x16xf32>, vector<16x16xf32>, vector<16x16xf32> -> vector<16x16xf32>
    %35 = arith.addf %32, %34 : vector<16x16xf32>
    %c0_39 = arith.constant 0 : index
    %c0_40 = arith.constant 0 : index
    %36 = vector.load %arg9[%c0_39, %c0_40] : memref<1x16xf32, #tpu.memory_space<vmem>>, vector<1x16xf32>
    %37 = vector.broadcast %36 : vector<1x16xf32> to vector<16x16xf32>
    %38 = arith.addf %35, %37 : vector<16x16xf32>
    %cst_41 = arith.constant 0.000000e+00 : f32
    %39 = vector.broadcast %cst_41 : f32 to vector<16x16xf32>
    %40 = arith.maximumf %38, %39 : vector<16x16xf32>
    %c0_42 = arith.constant 0 : index
    %c0_43 = arith.constant 0 : index
    %41 = vector.load %arg10[%c0_42, %c0_43] : memref<192x16xf32, #tpu.memory_space<vmem>>, vector<192x16xf32>
    %cst_44 = arith.constant dense<0.000000e+00> : vector<16x16xf32>
    %42 = tpu.matmul %0, %41, %cst_44 {dimension_numbers = #tpu.dot_dimension_numbers<[1], [0], [0], [1], [0, 0, 1, 1], [], []>} : vector<16x192xf32>, vector<192x16xf32>, vector<16x16xf32> -> vector<16x16xf32>
    %c0_45 = arith.constant 0 : index
    %c0_46 = arith.constant 0 : index
    %43 = vector.load %arg11[%c0_45, %c0_46] : memref<1x16xf32, #tpu.memory_space<vmem>>, vector<1x16xf32>
    %44 = vector.broadcast %43 : vector<1x16xf32> to vector<16x16xf32>
    %45 = arith.addf %42, %44 : vector<16x16xf32>
    %46 = arith.addf %40, %45 : vector<16x16xf32>
    %cst_47 = arith.constant 0.000000e+00 : f32
    %47 = vector.broadcast %cst_47 : f32 to vector<16x16xf32>
    %48 = arith.maximumf %46, %47 : vector<16x16xf32>
    %c0_48 = arith.constant 0 : index
    %c0_49 = arith.constant 0 : index
    %49 = vector.load %arg34[%c0_48, %c0_49] : memref<16x16xf32, #tpu.memory_space<vmem>>, vector<16x16xf32>
    %cst_50 = arith.constant dense<0.000000e+00> : vector<16x16xf32>
    %50 = tpu.matmul %49, %48, %cst_50 {dimension_numbers = #tpu.dot_dimension_numbers<[1], [0], [0], [1], [0, 0, 1, 1], [], []>} : vector<16x16xf32>, vector<16x16xf32>, vector<16x16xf32> -> vector<16x16xf32>
    %c0_51 = arith.constant 0 : index
    %c0_52 = arith.constant 0 : index
    %51 = vector.load %arg12[%c0_51, %c0_52] : memref<16x16xf32, #tpu.memory_space<vmem>>, vector<16x16xf32>
    %cst_53 = arith.constant dense<0.000000e+00> : vector<16x16xf32>
    %52 = tpu.matmul %48, %51, %cst_53 {dimension_numbers = #tpu.dot_dimension_numbers<[1], [0], [0], [1], [0, 0, 1, 1], [], []>} : vector<16x16xf32>, vector<16x16xf32>, vector<16x16xf32> -> vector<16x16xf32>
    %c0_54 = arith.constant 0 : index
    %c0_55 = arith.constant 0 : index
    %53 = vector.load %arg13[%c0_54, %c0_55] : memref<16x16xf32, #tpu.memory_space<vmem>>, vector<16x16xf32>
    %cst_56 = arith.constant dense<0.000000e+00> : vector<16x16xf32>
    %54 = tpu.matmul %50, %53, %cst_56 {dimension_numbers = #tpu.dot_dimension_numbers<[1], [0], [0], [1], [0, 0, 1, 1], [], []>} : vector<16x16xf32>, vector<16x16xf32>, vector<16x16xf32> -> vector<16x16xf32>
    %55 = arith.addf %52, %54 : vector<16x16xf32>
    %c0_57 = arith.constant 0 : index
    %c0_58 = arith.constant 0 : index
    %56 = vector.load %arg14[%c0_57, %c0_58] : memref<1x16xf32, #tpu.memory_space<vmem>>, vector<1x16xf32>
    %57 = vector.broadcast %56 : vector<1x16xf32> to vector<16x16xf32>
    %58 = arith.addf %55, %57 : vector<16x16xf32>
    %cst_59 = arith.constant 0.000000e+00 : f32
    %59 = vector.broadcast %cst_59 : f32 to vector<16x16xf32>
    %60 = arith.maximumf %58, %59 : vector<16x16xf32>
    %c0_60 = arith.constant 0 : index
    %c0_61 = arith.constant 0 : index
    %61 = vector.load %arg35[%c0_60, %c0_61] : memref<16x16xf32, #tpu.memory_space<vmem>>, vector<16x16xf32>
    %cst_62 = arith.constant dense<0.000000e+00> : vector<16x16xf32>
    %62 = tpu.matmul %61, %60, %cst_62 {dimension_numbers = #tpu.dot_dimension_numbers<[1], [0], [0], [1], [0, 0, 1, 1], [], []>} : vector<16x16xf32>, vector<16x16xf32>, vector<16x16xf32> -> vector<16x16xf32>
    %c0_63 = arith.constant 0 : index
    %c0_64 = arith.constant 0 : index
    %63 = vector.load %arg34[%c0_63, %c0_64] : memref<16x16xf32, #tpu.memory_space<vmem>>, vector<16x16xf32>
    %cst_65 = arith.constant dense<0.000000e+00> : vector<16x16xf32>
    %64 = tpu.matmul %63, %60, %cst_65 {dimension_numbers = #tpu.dot_dimension_numbers<[1], [0], [0], [1], [0, 0, 1, 1], [], []>} : vector<16x16xf32>, vector<16x16xf32>, vector<16x16xf32> -> vector<16x16xf32>
    %c0_66 = arith.constant 0 : index
    %c0_67 = arith.constant 0 : index
    %65 = vector.load %arg15[%c0_66, %c0_67] : memref<16x16xf32, #tpu.memory_space<vmem>>, vector<16x16xf32>
    %cst_68 = arith.constant dense<0.000000e+00> : vector<16x16xf32>
    %66 = tpu.matmul %62, %65, %cst_68 {dimension_numbers = #tpu.dot_dimension_numbers<[1], [0], [0], [1], [0, 0, 1, 1], [], []>} : vector<16x16xf32>, vector<16x16xf32>, vector<16x16xf32> -> vector<16x16xf32>
    %c0_69 = arith.constant 0 : index
    %c0_70 = arith.constant 0 : index
    %67 = vector.load %arg16[%c0_69, %c0_70] : memref<16x16xf32, #tpu.memory_space<vmem>>, vector<16x16xf32>
    %cst_71 = arith.constant dense<0.000000e+00> : vector<16x16xf32>
    %68 = tpu.matmul %64, %67, %cst_71 {dimension_numbers = #tpu.dot_dimension_numbers<[1], [0], [0], [1], [0, 0, 1, 1], [], []>} : vector<16x16xf32>, vector<16x16xf32>, vector<16x16xf32> -> vector<16x16xf32>
    %69 = arith.addf %66, %68 : vector<16x16xf32>
    %c0_72 = arith.constant 0 : index
    %c0_73 = arith.constant 0 : index
    %70 = vector.load %arg17[%c0_72, %c0_73] : memref<1x16xf32, #tpu.memory_space<vmem>>, vector<1x16xf32>
    %71 = vector.broadcast %70 : vector<1x16xf32> to vector<16x16xf32>
    %72 = arith.addf %69, %71 : vector<16x16xf32>
    %cst_74 = arith.constant 0.000000e+00 : f32
    %73 = vector.broadcast %cst_74 : f32 to vector<16x16xf32>
    %74 = arith.maximumf %72, %73 : vector<16x16xf32>
    %c0_75 = arith.constant 0 : index
    %c0_76 = arith.constant 0 : index
    %75 = vector.load %arg36[%c0_75, %c0_76] : memref<16x16xf32, #tpu.memory_space<vmem>>, vector<16x16xf32>
    %cst_77 = arith.constant dense<0.000000e+00> : vector<16x16xf32>
    %76 = tpu.matmul %75, %74, %cst_77 {dimension_numbers = #tpu.dot_dimension_numbers<[1], [0], [0], [1], [0, 0, 1, 1], [], []>} : vector<16x16xf32>, vector<16x16xf32>, vector<16x16xf32> -> vector<16x16xf32>
    %c0_78 = arith.constant 0 : index
    %c0_79 = arith.constant 0 : index
    %77 = vector.load %arg37[%c0_78, %c0_79] : memref<16x16xf32, #tpu.memory_space<vmem>>, vector<16x16xf32>
    %cst_80 = arith.constant dense<0.000000e+00> : vector<16x16xf32>
    %78 = tpu.matmul %77, %74, %cst_80 {dimension_numbers = #tpu.dot_dimension_numbers<[1], [0], [0], [1], [0, 0, 1, 1], [], []>} : vector<16x16xf32>, vector<16x16xf32>, vector<16x16xf32> -> vector<16x16xf32>
    %c0_81 = arith.constant 0 : index
    %c0_82 = arith.constant 0 : index
    %79 = vector.load %arg18[%c0_81, %c0_82] : memref<16x16xf32, #tpu.memory_space<vmem>>, vector<16x16xf32>
    %cst_83 = arith.constant dense<0.000000e+00> : vector<16x16xf32>
    %80 = tpu.matmul %76, %79, %cst_83 {dimension_numbers = #tpu.dot_dimension_numbers<[1], [0], [0], [1], [0, 0, 1, 1], [], []>} : vector<16x16xf32>, vector<16x16xf32>, vector<16x16xf32> -> vector<16x16xf32>
    %c0_84 = arith.constant 0 : index
    %c0_85 = arith.constant 0 : index
    %81 = vector.load %arg19[%c0_84, %c0_85] : memref<16x16xf32, #tpu.memory_space<vmem>>, vector<16x16xf32>
    %cst_86 = arith.constant dense<0.000000e+00> : vector<16x16xf32>
    %82 = tpu.matmul %78, %81, %cst_86 {dimension_numbers = #tpu.dot_dimension_numbers<[1], [0], [0], [1], [0, 0, 1, 1], [], []>} : vector<16x16xf32>, vector<16x16xf32>, vector<16x16xf32> -> vector<16x16xf32>
    %83 = arith.addf %80, %82 : vector<16x16xf32>
    %c0_87 = arith.constant 0 : index
    %c0_88 = arith.constant 0 : index
    %84 = vector.load %arg20[%c0_87, %c0_88] : memref<1x16xf32, #tpu.memory_space<vmem>>, vector<1x16xf32>
    %85 = vector.broadcast %84 : vector<1x16xf32> to vector<16x16xf32>
    %86 = arith.addf %83, %85 : vector<16x16xf32>
    %cst_89 = arith.constant 0.000000e+00 : f32
    %87 = vector.broadcast %cst_89 : f32 to vector<16x16xf32>
    %88 = arith.maximumf %86, %87 : vector<16x16xf32>
    %c0_90 = arith.constant 0 : index
    %c0_91 = arith.constant 0 : index
    %89 = vector.load %arg21[%c0_90, %c0_91] : memref<16x16xf32, #tpu.memory_space<vmem>>, vector<16x16xf32>
    %cst_92 = arith.constant dense<0.000000e+00> : vector<16x16xf32>
    %90 = tpu.matmul %48, %89, %cst_92 {dimension_numbers = #tpu.dot_dimension_numbers<[1], [0], [0], [1], [0, 0, 1, 1], [], []>} : vector<16x16xf32>, vector<16x16xf32>, vector<16x16xf32> -> vector<16x16xf32>
    %c0_93 = arith.constant 0 : index
    %c0_94 = arith.constant 0 : index
    %91 = vector.load %arg22[%c0_93, %c0_94] : memref<1x16xf32, #tpu.memory_space<vmem>>, vector<1x16xf32>
    %92 = vector.broadcast %91 : vector<1x16xf32> to vector<16x16xf32>
    %93 = arith.addf %90, %92 : vector<16x16xf32>
    %94 = arith.addf %88, %93 : vector<16x16xf32>
    %cst_95 = arith.constant 0.000000e+00 : f32
    %95 = vector.broadcast %cst_95 : f32 to vector<16x16xf32>
    %96 = arith.maximumf %94, %95 : vector<16x16xf32>
    %c0_96 = arith.constant 0 : index
    %c0_97 = arith.constant 0 : index
    %97 = vector.load %arg34[%c0_96, %c0_97] : memref<16x16xf32, #tpu.memory_space<vmem>>, vector<16x16xf32>
    %cst_98 = arith.constant dense<0.000000e+00> : vector<16x16xf32>
    %98 = tpu.matmul %97, %96, %cst_98 {dimension_numbers = #tpu.dot_dimension_numbers<[1], [0], [0], [1], [0, 0, 1, 1], [], []>} : vector<16x16xf32>, vector<16x16xf32>, vector<16x16xf32> -> vector<16x16xf32>
    %c0_99 = arith.constant 0 : index
    %c0_100 = arith.constant 0 : index
    %99 = vector.load %arg23[%c0_99, %c0_100] : memref<16x16xf32, #tpu.memory_space<vmem>>, vector<16x16xf32>
    %cst_101 = arith.constant dense<0.000000e+00> : vector<16x16xf32>
    %100 = tpu.matmul %96, %99, %cst_101 {dimension_numbers = #tpu.dot_dimension_numbers<[1], [0], [0], [1], [0, 0, 1, 1], [], []>} : vector<16x16xf32>, vector<16x16xf32>, vector<16x16xf32> -> vector<16x16xf32>
    %c0_102 = arith.constant 0 : index
    %c0_103 = arith.constant 0 : index
    %101 = vector.load %arg24[%c0_102, %c0_103] : memref<16x16xf32, #tpu.memory_space<vmem>>, vector<16x16xf32>
    %cst_104 = arith.constant dense<0.000000e+00> : vector<16x16xf32>
    %102 = tpu.matmul %98, %101, %cst_104 {dimension_numbers = #tpu.dot_dimension_numbers<[1], [0], [0], [1], [0, 0, 1, 1], [], []>} : vector<16x16xf32>, vector<16x16xf32>, vector<16x16xf32> -> vector<16x16xf32>
    %103 = arith.addf %100, %102 : vector<16x16xf32>
    %c0_105 = arith.constant 0 : index
    %c0_106 = arith.constant 0 : index
    %104 = vector.load %arg25[%c0_105, %c0_106] : memref<1x16xf32, #tpu.memory_space<vmem>>, vector<1x16xf32>
    %105 = vector.broadcast %104 : vector<1x16xf32> to vector<16x16xf32>
    %106 = arith.addf %103, %105 : vector<16x16xf32>
    %cst_107 = arith.constant 0.000000e+00 : f32
    %107 = vector.broadcast %cst_107 : f32 to vector<16x16xf32>
    %108 = arith.maximumf %106, %107 : vector<16x16xf32>
    %c0_108 = arith.constant 0 : index
    %c0_109 = arith.constant 0 : index
    %109 = vector.load %arg35[%c0_108, %c0_109] : memref<16x16xf32, #tpu.memory_space<vmem>>, vector<16x16xf32>
    %cst_110 = arith.constant dense<0.000000e+00> : vector<16x16xf32>
    %110 = tpu.matmul %109, %108, %cst_110 {dimension_numbers = #tpu.dot_dimension_numbers<[1], [0], [0], [1], [0, 0, 1, 1], [], []>} : vector<16x16xf32>, vector<16x16xf32>, vector<16x16xf32> -> vector<16x16xf32>
    %c0_111 = arith.constant 0 : index
    %c0_112 = arith.constant 0 : index
    %111 = vector.load %arg34[%c0_111, %c0_112] : memref<16x16xf32, #tpu.memory_space<vmem>>, vector<16x16xf32>
    %cst_113 = arith.constant dense<0.000000e+00> : vector<16x16xf32>
    %112 = tpu.matmul %111, %108, %cst_113 {dimension_numbers = #tpu.dot_dimension_numbers<[1], [0], [0], [1], [0, 0, 1, 1], [], []>} : vector<16x16xf32>, vector<16x16xf32>, vector<16x16xf32> -> vector<16x16xf32>
    %c0_114 = arith.constant 0 : index
    %c0_115 = arith.constant 0 : index
    %113 = vector.load %arg26[%c0_114, %c0_115] : memref<16x16xf32, #tpu.memory_space<vmem>>, vector<16x16xf32>
    %cst_116 = arith.constant dense<0.000000e+00> : vector<16x16xf32>
    %114 = tpu.matmul %110, %113, %cst_116 {dimension_numbers = #tpu.dot_dimension_numbers<[1], [0], [0], [1], [0, 0, 1, 1], [], []>} : vector<16x16xf32>, vector<16x16xf32>, vector<16x16xf32> -> vector<16x16xf32>
    %c0_117 = arith.constant 0 : index
    %c0_118 = arith.constant 0 : index
    %115 = vector.load %arg27[%c0_117, %c0_118] : memref<16x16xf32, #tpu.memory_space<vmem>>, vector<16x16xf32>
    %cst_119 = arith.constant dense<0.000000e+00> : vector<16x16xf32>
    %116 = tpu.matmul %112, %115, %cst_119 {dimension_numbers = #tpu.dot_dimension_numbers<[1], [0], [0], [1], [0, 0, 1, 1], [], []>} : vector<16x16xf32>, vector<16x16xf32>, vector<16x16xf32> -> vector<16x16xf32>
    %117 = arith.addf %114, %116 : vector<16x16xf32>
    %c0_120 = arith.constant 0 : index
    %c0_121 = arith.constant 0 : index
    %118 = vector.load %arg28[%c0_120, %c0_121] : memref<1x16xf32, #tpu.memory_space<vmem>>, vector<1x16xf32>
    %119 = vector.broadcast %118 : vector<1x16xf32> to vector<16x16xf32>
    %120 = arith.addf %117, %119 : vector<16x16xf32>
    %cst_122 = arith.constant 0.000000e+00 : f32
    %121 = vector.broadcast %cst_122 : f32 to vector<16x16xf32>
    %122 = arith.maximumf %120, %121 : vector<16x16xf32>
    %c0_123 = arith.constant 0 : index
    %c0_124 = arith.constant 0 : index
    %123 = vector.load %arg36[%c0_123, %c0_124] : memref<16x16xf32, #tpu.memory_space<vmem>>, vector<16x16xf32>
    %cst_125 = arith.constant dense<0.000000e+00> : vector<16x16xf32>
    %124 = tpu.matmul %123, %122, %cst_125 {dimension_numbers = #tpu.dot_dimension_numbers<[1], [0], [0], [1], [0, 0, 1, 1], [], []>} : vector<16x16xf32>, vector<16x16xf32>, vector<16x16xf32> -> vector<16x16xf32>
    %c0_126 = arith.constant 0 : index
    %c0_127 = arith.constant 0 : index
    %125 = vector.load %arg37[%c0_126, %c0_127] : memref<16x16xf32, #tpu.memory_space<vmem>>, vector<16x16xf32>
    %cst_128 = arith.constant dense<0.000000e+00> : vector<16x16xf32>
    %126 = tpu.matmul %125, %122, %cst_128 {dimension_numbers = #tpu.dot_dimension_numbers<[1], [0], [0], [1], [0, 0, 1, 1], [], []>} : vector<16x16xf32>, vector<16x16xf32>, vector<16x16xf32> -> vector<16x16xf32>
    %c0_129 = arith.constant 0 : index
    %c0_130 = arith.constant 0 : index
    %127 = vector.load %arg29[%c0_129, %c0_130] : memref<16x16xf32, #tpu.memory_space<vmem>>, vector<16x16xf32>
    %cst_131 = arith.constant dense<0.000000e+00> : vector<16x16xf32>
    %128 = tpu.matmul %124, %127, %cst_131 {dimension_numbers = #tpu.dot_dimension_numbers<[1], [0], [0], [1], [0, 0, 1, 1], [], []>} : vector<16x16xf32>, vector<16x16xf32>, vector<16x16xf32> -> vector<16x16xf32>
    %c0_132 = arith.constant 0 : index
    %c0_133 = arith.constant 0 : index
    %129 = vector.load %arg30[%c0_132, %c0_133] : memref<16x16xf32, #tpu.memory_space<vmem>>, vector<16x16xf32>
    %cst_134 = arith.constant dense<0.000000e+00> : vector<16x16xf32>
    %130 = tpu.matmul %126, %129, %cst_134 {dimension_numbers = #tpu.dot_dimension_numbers<[1], [0], [0], [1], [0, 0, 1, 1], [], []>} : vector<16x16xf32>, vector<16x16xf32>, vector<16x16xf32> -> vector<16x16xf32>
    %131 = arith.addf %128, %130 : vector<16x16xf32>
    %c0_135 = arith.constant 0 : index
    %c0_136 = arith.constant 0 : index
    %132 = vector.load %arg31[%c0_135, %c0_136] : memref<1x16xf32, #tpu.memory_space<vmem>>, vector<1x16xf32>
    %133 = vector.broadcast %132 : vector<1x16xf32> to vector<16x16xf32>
    %134 = arith.addf %131, %133 : vector<16x16xf32>
    %cst_137 = arith.constant 0.000000e+00 : f32
    %135 = vector.broadcast %cst_137 : f32 to vector<16x16xf32>
    %136 = arith.maximumf %134, %135 : vector<16x16xf32>
    %c0_138 = arith.constant 0 : index
    %c0_139 = arith.constant 0 : index
    %137 = vector.load %arg32[%c0_138, %c0_139] : memref<16x16xf32, #tpu.memory_space<vmem>>, vector<16x16xf32>
    %cst_140 = arith.constant dense<0.000000e+00> : vector<16x16xf32>
    %138 = tpu.matmul %96, %137, %cst_140 {dimension_numbers = #tpu.dot_dimension_numbers<[1], [0], [0], [1], [0, 0, 1, 1], [], []>} : vector<16x16xf32>, vector<16x16xf32>, vector<16x16xf32> -> vector<16x16xf32>
    %c0_141 = arith.constant 0 : index
    %c0_142 = arith.constant 0 : index
    %139 = vector.load %arg33[%c0_141, %c0_142] : memref<1x16xf32, #tpu.memory_space<vmem>>, vector<1x16xf32>
    %140 = vector.broadcast %139 : vector<1x16xf32> to vector<16x16xf32>
    %141 = arith.addf %138, %140 : vector<16x16xf32>
    %142 = arith.addf %136, %141 : vector<16x16xf32>
    %cst_143 = arith.constant 0.000000e+00 : f32
    %143 = vector.broadcast %cst_143 : f32 to vector<16x16xf32>
    %144 = arith.maximumf %142, %143 : vector<16x16xf32>
    %145 = tpu.iota {dimensions = array<i32: 0>} : vector<16x8xi32>
    %146 = tpu.iota {dimensions = array<i32: 1>} : vector<16x8xi32>
    %c2_i32 = arith.constant 2 : i32
    %147 = vector.broadcast %c2_i32 : i32 to vector<16x8xi32>
    %148 = arith.muli %146, %147 : vector<16x8xi32>
    %c0_i32 = arith.constant 0 : i32
    %149 = vector.broadcast %c0_i32 : i32 to vector<16x8xi32>
    %150 = arith.addi %148, %149 : vector<16x8xi32>
    %151 = arith.cmpi eq, %145, %150 : vector<16x8xi32>
    %152 = arith.extui %151 : vector<16x8xi1> to vector<16x8xi32>
    %153 = arith.sitofp %152 : vector<16x8xi32> to vector<16x8xf32>
    %c2_i32_144 = arith.constant 2 : i32
    %154 = vector.broadcast %c2_i32_144 : i32 to vector<16x8xi32>
    %155 = arith.muli %146, %154 : vector<16x8xi32>
    %c1_i32 = arith.constant 1 : i32
    %156 = vector.broadcast %c1_i32 : i32 to vector<16x8xi32>
    %157 = arith.addi %155, %156 : vector<16x8xi32>
    %158 = arith.cmpi eq, %145, %157 : vector<16x8xi32>
    %159 = arith.extui %158 : vector<16x8xi1> to vector<16x8xi32>
    %160 = arith.sitofp %159 : vector<16x8xi32> to vector<16x8xf32>
    %161 = vector.extract_strided_slice %144 {offsets = [0, 0], sizes = [8, 16], strides = [1, 1]} : vector<16x16xf32> to vector<8x16xf32>
    %c0_145 = arith.constant 0 : index
    %c0_146 = arith.constant 0 : index
    %162 = vector.load %arg38[%c0_145, %c0_146] : memref<192x8xf32, #tpu.memory_space<vmem>>, vector<192x8xf32>
    %cst_147 = arith.constant dense<0.000000e+00> : vector<192x16xf32>
    %163 = tpu.matmul %162, %161, %cst_147 {dimension_numbers = #tpu.dot_dimension_numbers<[1], [0], [0], [1], [0, 0, 1, 1], [], []>} : vector<192x8xf32>, vector<8x16xf32>, vector<192x16xf32> -> vector<192x16xf32>
    %cst_148 = arith.constant dense<0.000000e+00> : vector<192x8xf32>
    %164 = tpu.matmul %163, %153, %cst_148 {dimension_numbers = #tpu.dot_dimension_numbers<[1], [0], [0], [1], [0, 0, 1, 1], [], []>} : vector<192x16xf32>, vector<16x8xf32>, vector<192x8xf32> -> vector<192x8xf32>
    %c0_149 = arith.constant 0 : index
    %c0_150 = arith.constant 0 : index
    %165 = vector.load %arg39[%c0_149, %c0_150] : memref<192x8xf32, #tpu.memory_space<vmem>>, vector<192x8xf32>
    %cst_151 = arith.constant dense<0.000000e+00> : vector<192x16xf32>
    %166 = tpu.matmul %165, %161, %cst_151 {dimension_numbers = #tpu.dot_dimension_numbers<[1], [0], [0], [1], [0, 0, 1, 1], [], []>} : vector<192x8xf32>, vector<8x16xf32>, vector<192x16xf32> -> vector<192x16xf32>
    %cst_152 = arith.constant dense<0.000000e+00> : vector<192x8xf32>
    %167 = tpu.matmul %166, %160, %cst_152 {dimension_numbers = #tpu.dot_dimension_numbers<[1], [0], [0], [1], [0, 0, 1, 1], [], []>} : vector<192x16xf32>, vector<16x8xf32>, vector<192x8xf32> -> vector<192x8xf32>
    %168 = arith.addf %164, %167 : vector<192x8xf32>
    %c0_153 = arith.constant 0 : index
    %c0_154 = arith.constant 0 : index
    %169 = vector.load %arg40[%c0_153, %c0_154] : memref<192x1xf32, #tpu.memory_space<vmem>>, vector<192x1xf32>
    %170 = vector.broadcast %169 : vector<192x1xf32> to vector<192x8xf32>
    %171 = arith.addf %168, %170 : vector<192x8xf32>
    %cst_155 = arith.constant dense<0xFF800000> : vector<8xf32>
    %172 = vector.multi_reduction <maximumf>, %171, %cst_155 [0] : vector<192x8xf32> to vector<8xf32>
    %173 = vector.shape_cast %172 : vector<8xf32> to vector<1x8xf32>
    %174 = vector.broadcast %173 : vector<1x8xf32> to vector<192x8xf32>
    %175 = arith.subf %171, %174 : vector<192x8xf32>
    %176 = math.exp %175 : vector<192x8xf32>
    %cst_156 = arith.constant dense<0.000000e+00> : vector<8xf32>
    %177 = vector.multi_reduction <add>, %176, %cst_156 [0] : vector<192x8xf32> to vector<8xf32>
    %178 = vector.shape_cast %177 : vector<8xf32> to vector<1x8xf32>
    %179 = tpu.reciprocal %178 {approx = true} : vector<1x8xf32> -> vector<1x8xf32>
    %180 = vector.broadcast %179 : vector<1x8xf32> to vector<192x8xf32>
    %181 = arith.mulf %176, %180 : vector<192x8xf32>
    %c0_157 = arith.constant 0 : index
    %c0_158 = arith.constant 0 : index
    %c0_159 = arith.constant 0 : index
    %182 = vector.load %arg41[%c0_157, %c0_158, %c0_159] : memref<2x192x8xf32, #tpu.memory_space<vmem>>, vector<1x192x8xf32>
    %183 = vector.shape_cast %182 : vector<1x192x8xf32> to vector<192x8xf32>
    %184 = vector.shape_cast %181 : vector<192x8xf32> to vector<1x192x8xf32>
    tpu.vector_store %arg41[%c0_157, %c0_158, %c0_159], %184 {strides = array<i32>} : memref<2x192x8xf32, #tpu.memory_space<vmem>>, vector<1x192x8xf32>,
    %185 = vector.extract_strided_slice %144 {offsets = [8, 0], sizes = [8, 16], strides = [1, 1]} : vector<16x16xf32> to vector<8x16xf32>
    %c0_160 = arith.constant 0 : index
    %c0_161 = arith.constant 0 : index
    %186 = vector.load %arg38[%c0_160, %c0_161] : memref<192x8xf32, #tpu.memory_space<vmem>>, vector<192x8xf32>
    %cst_162 = arith.constant dense<0.000000e+00> : vector<192x16xf32>
    %187 = tpu.matmul %186, %185, %cst_162 {dimension_numbers = #tpu.dot_dimension_numbers<[1], [0], [0], [1], [0, 0, 1, 1], [], []>} : vector<192x8xf32>, vector<8x16xf32>, vector<192x16xf32> -> vector<192x16xf32>
    %cst_163 = arith.constant dense<0.000000e+00> : vector<192x8xf32>
    %188 = tpu.matmul %187, %153, %cst_163 {dimension_numbers = #tpu.dot_dimension_numbers<[1], [0], [0], [1], [0, 0, 1, 1], [], []>} : vector<192x16xf32>, vector<16x8xf32>, vector<192x8xf32> -> vector<192x8xf32>
    %c0_164 = arith.constant 0 : index
    %c0_165 = arith.constant 0 : index
    %189 = vector.load %arg39[%c0_164, %c0_165] : memref<192x8xf32, #tpu.memory_space<vmem>>, vector<192x8xf32>
    %cst_166 = arith.constant dense<0.000000e+00> : vector<192x16xf32>
    %190 = tpu.matmul %189, %185, %cst_166 {dimension_numbers = #tpu.dot_dimension_numbers<[1], [0], [0], [1], [0, 0, 1, 1], [], []>} : vector<192x8xf32>, vector<8x16xf32>, vector<192x16xf32> -> vector<192x16xf32>
    %cst_167 = arith.constant dense<0.000000e+00> : vector<192x8xf32>
    %191 = tpu.matmul %190, %160, %cst_167 {dimension_numbers = #tpu.dot_dimension_numbers<[1], [0], [0], [1], [0, 0, 1, 1], [], []>} : vector<192x16xf32>, vector<16x8xf32>, vector<192x8xf32> -> vector<192x8xf32>
    %192 = arith.addf %188, %191 : vector<192x8xf32>
    %c0_168 = arith.constant 0 : index
    %c0_169 = arith.constant 0 : index
    %193 = vector.load %arg40[%c0_168, %c0_169] : memref<192x1xf32, #tpu.memory_space<vmem>>, vector<192x1xf32>
    %194 = vector.broadcast %193 : vector<192x1xf32> to vector<192x8xf32>
    %195 = arith.addf %192, %194 : vector<192x8xf32>
    %cst_170 = arith.constant dense<0xFF800000> : vector<8xf32>
    %196 = vector.multi_reduction <maximumf>, %195, %cst_170 [0] : vector<192x8xf32> to vector<8xf32>
    %197 = vector.shape_cast %196 : vector<8xf32> to vector<1x8xf32>
    %198 = vector.broadcast %197 : vector<1x8xf32> to vector<192x8xf32>
    %199 = arith.subf %195, %198 : vector<192x8xf32>
    %200 = math.exp %199 : vector<192x8xf32>
    %cst_171 = arith.constant dense<0.000000e+00> : vector<8xf32>
    %201 = vector.multi_reduction <add>, %200, %cst_171 [0] : vector<192x8xf32> to vector<8xf32>
    %202 = vector.shape_cast %201 : vector<8xf32> to vector<1x8xf32>
    %203 = tpu.reciprocal %202 {approx = true} : vector<1x8xf32> -> vector<1x8xf32>
    %204 = vector.broadcast %203 : vector<1x8xf32> to vector<192x8xf32>
    %205 = arith.mulf %200, %204 : vector<192x8xf32>
    %c1 = arith.constant 1 : index
    %c0_172 = arith.constant 0 : index
    %c0_173 = arith.constant 0 : index
    %206 = vector.load %arg41[%c1, %c0_172, %c0_173] : memref<2x192x8xf32, #tpu.memory_space<vmem>>, vector<1x192x8xf32>
    %207 = vector.shape_cast %206 : vector<1x192x8xf32> to vector<192x8xf32>
    %208 = vector.shape_cast %205 : vector<192x8xf32> to vector<1x192x8xf32>
    tpu.vector_store %arg41[%c1, %c0_172, %c0_173], %208 {strides = array<i32>} : memref<2x192x8xf32, #tpu.memory_space<vmem>>, vector<1x192x8xf32>,
    return
  }
}

</mosaic_0001>

<llo_original>
// kernel: tpu_custom_call.1
$region0: #{tpu_custom_call.1}
  #allocation0 [shape = 'u32[]', space=smem, size = 0x4, offset = 0x4, fixed_abs, tag = 'smem constant byte address 0x4 - core index']
  #allocation1 [shape = 'u32[144,128]{1,0:T(1,128)}', space=vmem, size = 0x12000, scoped, tag = 'internal scratch']
  %s0 = inlined_call_operand.smem [shape: u32[42], index: -1, kind: input, shape index: {}]
  %s1 = sld [smem:[%s0]]
  %s2 = scalar_lea.smem %s0, 1
  %s3 = sld [smem:[%s2]]
  %s4 = scalar_lea.smem %s0, 2
  %s5 = sld [smem:[%s4]]
  %s6 = scalar_lea.smem %s0, 3
  %s7 = sld [smem:[%s6]]
  %s8 = scalar_lea.smem %s0, 4
  %s9 = sld [smem:[%s8]]
  %s10 = scalar_lea.smem %s0, 5
  %s11 = sld [smem:[%s10]]
  %s12 = scalar_lea.smem %s0, 6
  %s13 = sld [smem:[%s12]]
  %s14 = scalar_lea.smem %s0, 7
  %s15 = sld [smem:[%s14]]
  %s16 = scalar_lea.smem %s0, 8
  %s17 = sld [smem:[%s16]]
  %s18 = scalar_lea.smem %s0, 9
  %s19 = sld [smem:[%s18]]
  %s20 = scalar_lea.smem %s0, 10
  %s21 = sld [smem:[%s20]]
  %s22 = scalar_lea.smem %s0, 11
  %s23 = sld [smem:[%s22]]
  %s24 = scalar_lea.smem %s0, 12
  %s25 = sld [smem:[%s24]]
  %s26 = scalar_lea.smem %s0, 13
  %s27 = sld [smem:[%s26]]
  %s28 = scalar_lea.smem %s0, 14
  %s29 = sld [smem:[%s28]]
  %s30 = scalar_lea.smem %s0, 15
  %s31 = sld [smem:[%s30]]
  %s32 = scalar_lea.smem %s0, 16
  %s33 = sld [smem:[%s32]]
  %s34 = scalar_lea.smem %s0, 17
  %s35 = sld [smem:[%s34]]
  %s36 = scalar_lea.smem %s0, 18
  %s37 = sld [smem:[%s36]]
  %s38 = scalar_lea.smem %s0, 19
  %s39 = sld [smem:[%s38]]
  %s40 = scalar_lea.smem %s0, 20
  %s41 = sld [smem:[%s40]]
  %s42 = scalar_lea.smem %s0, 21
  %s43 = sld [smem:[%s42]]
  %s44 = scalar_lea.smem %s0, 22
  %s45 = sld [smem:[%s44]]
  %s46 = scalar_lea.smem %s0, 23
  %s47 = sld [smem:[%s46]]
  %s48 = scalar_lea.smem %s0, 24
  %s49 = sld [smem:[%s48]]
  %s50 = scalar_lea.smem %s0, 25
  %s51 = sld [smem:[%s50]]
  %s52 = scalar_lea.smem %s0, 26
  %s53 = sld [smem:[%s52]]
  %s54 = scalar_lea.smem %s0, 27
  %s55 = sld [smem:[%s54]]
  %s56 = scalar_lea.smem %s0, 28
  %s57 = sld [smem:[%s56]]
  %s58 = scalar_lea.smem %s0, 29
  %s59 = sld [smem:[%s58]]
  %s60 = scalar_lea.smem %s0, 30
  %s61 = sld [smem:[%s60]]
  %s62 = scalar_lea.smem %s0, 31
  %s63 = sld [smem:[%s62]]
  %s64 = scalar_lea.smem %s0, 32
  %s65 = sld [smem:[%s64]]
  %s66 = scalar_lea.smem %s0, 33
  %s67 = sld [smem:[%s66]]
  %s68 = scalar_lea.smem %s0, 34
  %s69 = sld [smem:[%s68]]
  %s70 = scalar_lea.smem %s0, 35
  %s71 = sld [smem:[%s70]]
  %s72 = scalar_lea.smem %s0, 36
  %s73 = sld [smem:[%s72]]
  %s74 = scalar_lea.smem %s0, 37
  %s75 = sld [smem:[%s74]]
  %s76 = scalar_lea.smem %s0, 38
  %s77 = sld [smem:[%s76]]
  %s78 = scalar_lea.smem %s0, 39
  %s79 = sld [smem:[%s78]]
  %s80 = scalar_lea.smem %s0, 40
  %s81 = sld [smem:[%s80]]
  %s82 = scalar_lea.smem %s0, 41
  %s83 = sld [smem:[%s82]]
  %s84 = sld [smem:[#allocation0]]
  $region174: #{tpu_custom_call.1} parent=0
    _
  %s86 = ssub.s32 1, %s84
  %s87 = scalar_select 0, %s86, %s84
  // Predicated region
  $region2: #{tpu_custom_call.1} parent=0 // pred_check
    _
  $region3: #{tpu_custom_call.1} parent=0 // pred_check_branch
    %89 = sbr.rel (0) target = $region5
  $region4: #{tpu_custom_call.1} parent=0 // pred_region
    _
  $region5: #{tpu_custom_call.1} parent=0 // pred_fallthru
    _
  // Predicated region
  $region6: #{tpu_custom_call.1} parent=0 // pred_check
    _
  $region7: #{tpu_custom_call.1} parent=0 // pred_check_branch
    %91 = sbr.rel (0) target = $region9
  $region8: #{tpu_custom_call.1} parent=0 // pred_region
    _
  $region9: #{tpu_custom_call.1} parent=0 // pred_fallthru
    _
  // Predicated region
  $region10: #{tpu_custom_call.1} parent=0 // pred_check
    _
  $region11: #{tpu_custom_call.1} parent=0 // pred_check_branch
    %93 = sbr.rel (0) target = $region13
  $region12: #{tpu_custom_call.1} parent=0 // pred_region
    _
  $region13: #{tpu_custom_call.1} parent=0 // pred_fallthru
    _
  // Predicated region
  $region14: #{tpu_custom_call.1} parent=0 // pred_check
    _
  $region15: #{tpu_custom_call.1} parent=0 // pred_check_branch
    %95 = sbr.rel (0) target = $region17
  $region16: #{tpu_custom_call.1} parent=0 // pred_region
    _
  $region17: #{tpu_custom_call.1} parent=0 // pred_fallthru
    _
  // Predicated region
  $region18: #{tpu_custom_call.1} parent=0 // pred_check
    _
  $region19: #{tpu_custom_call.1} parent=0 // pred_check_branch
    %97 = sbr.rel (0) target = $region21
  $region20: #{tpu_custom_call.1} parent=0 // pred_region
    _
  $region21: #{tpu_custom_call.1} parent=0 // pred_fallthru
    _
  // Predicated region
  $region22: #{tpu_custom_call.1} parent=0 // pred_check
    _
  $region23: #{tpu_custom_call.1} parent=0 // pred_check_branch
    %99 = sbr.rel (0) target = $region25
  $region24: #{tpu_custom_call.1} parent=0 // pred_region
    _
  $region25: #{tpu_custom_call.1} parent=0 // pred_fallthru
    _
  // Predicated region
  $region26: #{tpu_custom_call.1} parent=0 // pred_check
    _
  $region27: #{tpu_custom_call.1} parent=0 // pred_check_branch
    %101 = sbr.rel (0) target = $region29
  $region28: #{tpu_custom_call.1} parent=0 // pred_region
    _
  $region29: #{tpu_custom_call.1} parent=0 // pred_fallthru
    _
  // Predicated region
  $region30: #{tpu_custom_call.1} parent=0 // pred_check
    _
  $region31: #{tpu_custom_call.1} parent=0 // pred_check_branch
    %103 = sbr.rel (0) target = $region33
  $region32: #{tpu_custom_call.1} parent=0 // pred_region
    _
  $region33: #{tpu_custom_call.1} parent=0 // pred_fallthru
    _
  // Predicated region
  $region34: #{tpu_custom_call.1} parent=0 // pred_check
    _
  $region35: #{tpu_custom_call.1} parent=0 // pred_check_branch
    %105 = sbr.rel (0) target = $region37
  $region36: #{tpu_custom_call.1} parent=0 // pred_region
    _
  $region37: #{tpu_custom_call.1} parent=0 // pred_fallthru
    _
  // Predicated region
  $region38: #{tpu_custom_call.1} parent=0 // pred_check
    _
  $region39: #{tpu_custom_call.1} parent=0 // pred_check_branch
    %107 = sbr.rel (0) target = $region41
  $region40: #{tpu_custom_call.1} parent=0 // pred_region
    _
  $region41: #{tpu_custom_call.1} parent=0 // pred_fallthru
    _
  // Predicated region
  $region42: #{tpu_custom_call.1} parent=0 // pred_check
    _
  $region43: #{tpu_custom_call.1} parent=0 // pred_check_branch
    %109 = sbr.rel (0) target = $region45
  $region44: #{tpu_custom_call.1} parent=0 // pred_region
    _
  $region45: #{tpu_custom_call.1} parent=0 // pred_fallthru
    _
  // Predicated region
  $region46: #{tpu_custom_call.1} parent=0 // pred_check
    _
  $region47: #{tpu_custom_call.1} parent=0 // pred_check_branch
    %111 = sbr.rel (0) target = $region49
  $region48: #{tpu_custom_call.1} parent=0 // pred_region
    _
  $region49: #{tpu_custom_call.1} parent=0 // pred_fallthru
    _
  // Predicated region
  $region50: #{tpu_custom_call.1} parent=0 // pred_check
    _
  $region51: #{tpu_custom_call.1} parent=0 // pred_check_branch
    %113 = sbr.rel (0) target = $region53
  $region52: #{tpu_custom_call.1} parent=0 // pred_region
    _
  $region53: #{tpu_custom_call.1} parent=0 // pred_fallthru
    _
  // Predicated region
  $region54: #{tpu_custom_call.1} parent=0 // pred_check
    _
  $region55: #{tpu_custom_call.1} parent=0 // pred_check_branch
    %115 = sbr.rel (0) target = $region57
  $region56: #{tpu_custom_call.1} parent=0 // pred_region
    _
  $region57: #{tpu_custom_call.1} parent=0 // pred_fallthru
    _
  // Predicated region
  $region58: #{tpu_custom_call.1} parent=0 // pred_check
    _
  $region59: #{tpu_custom_call.1} parent=0 // pred_check_branch
    %117 = sbr.rel (0) target = $region61
  $region60: #{tpu_custom_call.1} parent=0 // pred_region
    _
  $region61: #{tpu_custom_call.1} parent=0 // pred_fallthru
    _
  // Predicated region
  $region62: #{tpu_custom_call.1} parent=0 // pred_check
    _
  $region63: #{tpu_custom_call.1} parent=0 // pred_check_branch
    %119 = sbr.rel (0) target = $region65
  $region64: #{tpu_custom_call.1} parent=0 // pred_region
    _
  $region65: #{tpu_custom_call.1} parent=0 // pred_fallthru
    _
  // Predicated region
  $region66: #{tpu_custom_call.1} parent=0 // pred_check
    _
  $region67: #{tpu_custom_call.1} parent=0 // pred_check_branch
    %121 = sbr.rel (0) target = $region69
  $region68: #{tpu_custom_call.1} parent=0 // pred_region
    _
  $region69: #{tpu_custom_call.1} parent=0 // pred_fallthru
    _
  // Predicated region
  $region70: #{tpu_custom_call.1} parent=0 // pred_check
    _
  $region71: #{tpu_custom_call.1} parent=0 // pred_check_branch
    %123 = sbr.rel (0) target = $region73
  $region72: #{tpu_custom_call.1} parent=0 // pred_region
    _
  $region73: #{tpu_custom_call.1} parent=0 // pred_fallthru
    _
  // Predicated region
  $region74: #{tpu_custom_call.1} parent=0 // pred_check
    _
  $region75: #{tpu_custom_call.1} parent=0 // pred_check_branch
    %125 = sbr.rel (0) target = $region77
  $region76: #{tpu_custom_call.1} parent=0 // pred_region
    _
  $region77: #{tpu_custom_call.1} parent=0 // pred_fallthru
    _
  // Predicated region
  $region78: #{tpu_custom_call.1} parent=0 // pred_check
    _
  $region79: #{tpu_custom_call.1} parent=0 // pred_check_branch
    %127 = sbr.rel (0) target = $region81
  $region80: #{tpu_custom_call.1} parent=0 // pred_region
    _
  $region81: #{tpu_custom_call.1} parent=0 // pred_fallthru
    _
  // Predicated region
  $region82: #{tpu_custom_call.1} parent=0 // pred_check
    _
  $region83: #{tpu_custom_call.1} parent=0 // pred_check_branch
    %129 = sbr.rel (0) target = $region85
  $region84: #{tpu_custom_call.1} parent=0 // pred_region
    _
  $region85: #{tpu_custom_call.1} parent=0 // pred_fallthru
    _
  // Predicated region
  $region86: #{tpu_custom_call.1} parent=0 // pred_check
    _
  $region87: #{tpu_custom_call.1} parent=0 // pred_check_branch
    %131 = sbr.rel (0) target = $region89
  $region88: #{tpu_custom_call.1} parent=0 // pred_region
    _
  $region89: #{tpu_custom_call.1} parent=0 // pred_fallthru
    _
  // Predicated region
  $region90: #{tpu_custom_call.1} parent=0 // pred_check
    _
  $region91: #{tpu_custom_call.1} parent=0 // pred_check_branch
    %133 = sbr.rel (0) target = $region93
  $region92: #{tpu_custom_call.1} parent=0 // pred_region
    _
  $region93: #{tpu_custom_call.1} parent=0 // pred_fallthru
    _
  // Predicated region
  $region94: #{tpu_custom_call.1} parent=0 // pred_check
    _
  $region95: #{tpu_custom_call.1} parent=0 // pred_check_branch
    %135 = sbr.rel (0) target = $region97
  $region96: #{tpu_custom_call.1} parent=0 // pred_region
    _
  $region97: #{tpu_custom_call.1} parent=0 // pred_fallthru
    _
  // Predicated region
  $region98: #{tpu_custom_call.1} parent=0 // pred_check
    _
  $region99: #{tpu_custom_call.1} parent=0 // pred_check_branch
    %137 = sbr.rel (0) target = $region101
  $region100: #{tpu_custom_call.1} parent=0 // pred_region
    _
  $region101: #{tpu_custom_call.1} parent=0 // pred_fallthru
    _
  // Predicated region
  $region102: #{tpu_custom_call.1} parent=0 // pred_check
    _
  $region103: #{tpu_custom_call.1} parent=0 // pred_check_branch
    %139 = sbr.rel (0) target = $region105
  $region104: #{tpu_custom_call.1} parent=0 // pred_region
    _
  $region105: #{tpu_custom_call.1} parent=0 // pred_fallthru
    _
  // Predicated region
  $region106: #{tpu_custom_call.1} parent=0 // pred_check
    _
  $region107: #{tpu_custom_call.1} parent=0 // pred_check_branch
    %141 = sbr.rel (0) target = $region109
  $region108: #{tpu_custom_call.1} parent=0 // pred_region
    _
  $region109: #{tpu_custom_call.1} parent=0 // pred_fallthru
    _
  // Predicated region
  $region110: #{tpu_custom_call.1} parent=0 // pred_check
    _
  $region111: #{tpu_custom_call.1} parent=0 // pred_check_branch
    %143 = sbr.rel (0) target = $region113
  $region112: #{tpu_custom_call.1} parent=0 // pred_region
    _
  $region113: #{tpu_custom_call.1} parent=0 // pred_fallthru
    _
  // Predicated region
  $region114: #{tpu_custom_call.1} parent=0 // pred_check
    _
  $region115: #{tpu_custom_call.1} parent=0 // pred_check_branch
    %145 = sbr.rel (0) target = $region117
  $region116: #{tpu_custom_call.1} parent=0 // pred_region
    _
  $region117: #{tpu_custom_call.1} parent=0 // pred_fallthru
    _
  // Predicated region
  $region118: #{tpu_custom_call.1} parent=0 // pred_check
    _
  $region119: #{tpu_custom_call.1} parent=0 // pred_check_branch
    %147 = sbr.rel (0) target = $region121
  $region120: #{tpu_custom_call.1} parent=0 // pred_region
    _
  $region121: #{tpu_custom_call.1} parent=0 // pred_fallthru
    _
  // Predicated region
  $region122: #{tpu_custom_call.1} parent=0 // pred_check
    _
  $region123: #{tpu_custom_call.1} parent=0 // pred_check_branch
    %149 = sbr.rel (0) target = $region125
  $region124: #{tpu_custom_call.1} parent=0 // pred_region
    _
  $region125: #{tpu_custom_call.1} parent=0 // pred_fallthru
    _
  // Predicated region
  $region126: #{tpu_custom_call.1} parent=0 // pred_check
    _
  $region127: #{tpu_custom_call.1} parent=0 // pred_check_branch
    %151 = sbr.rel (0) target = $region129
  $region128: #{tpu_custom_call.1} parent=0 // pred_region
    _
  $region129: #{tpu_custom_call.1} parent=0 // pred_fallthru
    _
  // Predicated region
  $region130: #{tpu_custom_call.1} parent=0 // pred_check
    _
  $region131: #{tpu_custom_call.1} parent=0 // pred_check_branch
    %153 = sbr.rel (0) target = $region133
  $region132: #{tpu_custom_call.1} parent=0 // pred_region
    _
  $region133: #{tpu_custom_call.1} parent=0 // pred_fallthru
    _
  // Predicated region
  $region134: #{tpu_custom_call.1} parent=0 // pred_check
    _
  $region135: #{tpu_custom_call.1} parent=0 // pred_check_branch
    %155 = sbr.rel (0) target = $region137
  $region136: #{tpu_custom_call.1} parent=0 // pred_region
    _
  $region137: #{tpu_custom_call.1} parent=0 // pred_fallthru
    _
  // Predicated region
  $region138: #{tpu_custom_call.1} parent=0 // pred_check
    _
  $region139: #{tpu_custom_call.1} parent=0 // pred_check_branch
    %157 = sbr.rel (0) target = $region141
  $region140: #{tpu_custom_call.1} parent=0 // pred_region
    _
  $region141: #{tpu_custom_call.1} parent=0 // pred_fallthru
    _
  // Predicated region
  $region142: #{tpu_custom_call.1} parent=0 // pred_check
    _
  $region143: #{tpu_custom_call.1} parent=0 // pred_check_branch
    %159 = sbr.rel (0) target = $region145
  $region144: #{tpu_custom_call.1} parent=0 // pred_region
    _
  $region145: #{tpu_custom_call.1} parent=0 // pred_fallthru
    _
  // Predicated region
  $region146: #{tpu_custom_call.1} parent=0 // pred_check
    _
  $region147: #{tpu_custom_call.1} parent=0 // pred_check_branch
    %161 = sbr.rel (0) target = $region149
  $region148: #{tpu_custom_call.1} parent=0 // pred_region
    _
  $region149: #{tpu_custom_call.1} parent=0 // pred_fallthru
    _
  // Predicated region
  $region150: #{tpu_custom_call.1} parent=0 // pred_check
    _
  $region151: #{tpu_custom_call.1} parent=0 // pred_check_branch
    %163 = sbr.rel (0) target = $region153
  $region152: #{tpu_custom_call.1} parent=0 // pred_region
    _
  $region153: #{tpu_custom_call.1} parent=0 // pred_fallthru
    _
  // Predicated region
  $region154: #{tpu_custom_call.1} parent=0 // pred_check
    _
  $region155: #{tpu_custom_call.1} parent=0 // pred_check_branch
    %165 = sbr.rel (0) target = $region157
  $region156: #{tpu_custom_call.1} parent=0 // pred_region
    _
  $region157: #{tpu_custom_call.1} parent=0 // pred_fallthru
    _
  // Predicated region
  $region158: #{tpu_custom_call.1} parent=0 // pred_check
    _
  $region159: #{tpu_custom_call.1} parent=0 // pred_check_branch
    %167 = sbr.rel (0) target = $region161
  $region160: #{tpu_custom_call.1} parent=0 // pred_region
    _
  $region161: #{tpu_custom_call.1} parent=0 // pred_fallthru
    _
  // Predicated region
  $region162: #{tpu_custom_call.1} parent=0 // pred_check
    _
  $region163: #{tpu_custom_call.1} parent=0 // pred_check_branch
    %169 = sbr.rel (0) target = $region165
  $region164: #{tpu_custom_call.1} parent=0 // pred_region
    _
  $region165: #{tpu_custom_call.1} parent=0 // pred_fallthru
    _
  %v170 = vld [vmem:[%s1] sm:$0xff]
  %v171 = vld [vmem:[%s1 + $0x8] sm:$0xff]
  %v172 = vld [vmem:[%s1 + $0x10] sm:$0xff]
  %v173 = vld [vmem:[%s1 + $0x18] sm:$0xff]
  %v174 = vld [vmem:[%s69] sm:$0xff]
  %v175 = vld [vmem:[%s69 + $0x8] sm:$0xff]
  %vm176 = vcmask 130048
  %v178 = vsel %vm176, %v174, 0
  %v181 = vsel %vm176, %v175, 0
  %183 = vmatprep.subr.mxu0 0.0
  %184 = vmatpush1.msra.mxu0 0.0
  %185 = vmatprep.subr.mxu0 0.0
  %186 = vmatpush1.msra.mxu0 0.0
  %187 = vmatprep.subr.mxu0 0.0
  %188 = vmatpush1.msra.mxu0 0.0
  %189 = vmatprep.subr.mxu0 0.0
  %190 = vmatpush1.msra.mxu0 0.0
  %191 = vmatprep.subr.mxu0 0.0
  %192 = vmatpush1.msra.mxu0 0.0
  %193 = vmatprep.subr.mxu0 0.0
  %194 = vmatpush1.msra.mxu0 0.0
  %195 = vmatprep.subr.mxu0 0.0
  %196 = vmatpush1.msra.mxu0 0.0
  %197 = vmatprep.subr.mxu0 0.0
  %198 = vmatpush1.msra.mxu0 0.0
  %199 = vmatprep.subr.mxu0 0.0
  %200 = vmatpush1.msra.mxu0 0.0
  %201 = vmatprep.subr.mxu0 0.0
  %202 = vmatpush1.msra.mxu0 0.0
  %203 = vmatprep.subr.mxu0 0.0
  %204 = vmatpush1.msra.mxu0 0.0
  %205 = vmatprep.subr.mxu0 0.0
  %206 = vmatpush1.msra.mxu0 0.0
  %207 = vmatprep.subr.mxu0 0.0
  %208 = vmatpush1.msra.mxu0 0.0
  %209 = vmatprep.subr.mxu0 0.0
  %210 = vmatpush1.msra.mxu0 0.0
  %211 = vmatprep.subr.mxu0 %v173
  %212 = vmatpush1.msra.mxu0 %v172
  %213 = vmatprep.subr.mxu0 %v171
  %214 = vmatpush1.msra.mxu0 %v170
  %215 = vmatprep.subr.mxu0 0.0
  %216 = vmatpush2.msra.mxu0 0.0
  %217 = vmatprep.subr.mxu0 0.0
  %218 = vmatpush2.msra.mxu0 0.0
  %219 = vmatprep.subr.mxu0 0.0
  %220 = vmatpush2.msra.mxu0 0.0
  %221 = vmatprep.subr.mxu0 0.0
  %222 = vmatpush2.msra.mxu0 0.0
  %223 = vmatprep.subr.mxu0 0.0
  %224 = vmatpush2.msra.mxu0 0.0
  %225 = vmatprep.subr.mxu0 0.0
  %226 = vmatpush2.msra.mxu0 0.0
  %227 = vmatprep.subr.mxu0 0.0
  %228 = vmatpush2.msra.mxu0 0.0
  %229 = vmatprep.subr.mxu0 0.0
  %230 = vmatpush2.msra.mxu0 0.0
  %231 = vmatprep.subr.mxu0 0.0
  %232 = vmatpush2.msra.mxu0 0.0
  %233 = vmatprep.subr.mxu0 0.0
  %234 = vmatpush2.msra.mxu0 0.0
  %235 = vmatprep.subr.mxu0 0.0
  %236 = vmatpush2.msra.mxu0 0.0
  %237 = vmatprep.subr.mxu0 0.0
  %238 = vmatpush2.msra.mxu0 0.0
  %239 = vmatprep.subr.mxu0 0.0
  %240 = vmatpush2.msra.mxu0 0.0
  %241 = vmatprep.subr.mxu0 0.0
  %242 = vmatpush2.msra.mxu0 0.0
  %243 = vmatprep.subr.mxu0 0.0
  %244 = vmatpush2.msra.mxu0 0.0
  %245 = vmatprep.subr.mxu0 0.0
  %246 = vmatpush2.msra.mxu0 0.0
  %247 = vmatprep.mubr.f32.mxu0 0.0
  %248 = vmatmul.mubr.f32.gmra.mxu0 %v178
  %v249 = vpop.f32.mrf.mxu0
  %v250 = vadd.f32 0.0, %v249
  %v251 = vpop.f32.mrf.mxu0
  %v252 = vadd.f32 0.0, %v251
  %253 = vmatprep.mubr.f32.mxu0 0.0
  %254 = vmatmul.mubr.f32.gmra.mxu0 %v181
  %v255 = vpop.f32.mrf.mxu0
  %v256 = vadd.f32 0.0, %v255
  %v257 = vpop.f32.mrf.mxu0
  %v258 = vadd.f32 0.0, %v257
  %259 = vdwg.mxu0
  %v260 = vld [vmem:[%s3] sm:$0xff]
  %v261 = vld [vmem:[%s3 + $0x8] sm:$0xff]
  %v262 = vld [vmem:[%s3 + $0x10] sm:$0xff]
  %v263 = vld [vmem:[%s3 + $0x18] sm:$0xff]
  %v264 = vld [vmem:[%s3 + $0x20] sm:$0xff]
  %v265 = vld [vmem:[%s3 + $0x28] sm:$0xff]
  %v266 = vld [vmem:[%s3 + $0x30] sm:$0xff]
  %v267 = vld [vmem:[%s3 + $0x38] sm:$0xff]
  %v268 = vld [vmem:[%s3 + $0x40] sm:$0xff]
  %v269 = vld [vmem:[%s3 + $0x48] sm:$0xff]
  %v270 = vld [vmem:[%s3 + $0x50] sm:$0xff]
  %v271 = vld [vmem:[%s3 + $0x58] sm:$0xff]
  %v272 = vld [vmem:[%s3 + $0x60] sm:$0xff]
  %v273 = vld [vmem:[%s3 + $0x68] sm:$0xff]
  %v274 = vld [vmem:[%s3 + $0x70] sm:$0xff]
  %v275 = vld [vmem:[%s3 + $0x78] sm:$0xff]
  %v276 = vld [vmem:[%s3 + $0x80] sm:$0xff]
  %v277 = vld [vmem:[%s3 + $0x88] sm:$0xff]
  %v278 = vld [vmem:[%s3 + $0x90] sm:$0xff]
  %v279 = vld [vmem:[%s3 + $0x98] sm:$0xff]
  %v280 = vld [vmem:[%s3 + $0xa0] sm:$0xff]
  %v281 = vld [vmem:[%s3 + $0xa8] sm:$0xff]
  %v282 = vld [vmem:[%s3 + $0xb0] sm:$0xff]
  %v283 = vld [vmem:[%s3 + $0xb8] sm:$0xff]
  %v284 = vld [vmem:[%s5] sm:$0xff]
  %v285 = vld [vmem:[%s5 + $0x8] sm:$0xff]
  %v286 = vld [vmem:[%s5 + $0x10] sm:$0xff]
  %v287 = vld [vmem:[%s5 + $0x18] sm:$0xff]
  %v288 = vld [vmem:[%s5 + $0x20] sm:$0xff]
  %v289 = vld [vmem:[%s5 + $0x28] sm:$0xff]
  %v290 = vld [vmem:[%s5 + $0x30] sm:$0xff]
  %v291 = vld [vmem:[%s5 + $0x38] sm:$0xff]
  %v292 = vld [vmem:[%s5 + $0x40] sm:$0xff]
  %v293 = vld [vmem:[%s5 + $0x48] sm:$0xff]
  %v294 = vld [vmem:[%s5 + $0x50] sm:$0xff]
  %v295 = vld [vmem:[%s5 + $0x58] sm:$0xff]
  %v296 = vld [vmem:[%s5 + $0x60] sm:$0xff]
  %v297 = vld [vmem:[%s5 + $0x68] sm:$0xff]
  %v298 = vld [vmem:[%s5 + $0x70] sm:$0xff]
  %v299 = vld [vmem:[%s5 + $0x78] sm:$0xff]
  %v300 = vld [vmem:[%s5 + $0x80] sm:$0xff]
  %v301 = vld [vmem:[%s5 + $0x88] sm:$0xff]
  %v302 = vld [vmem:[%s5 + $0x90] sm:$0xff]
  %v303 = vld [vmem:[%s5 + $0x98] sm:$0xff]
  %v304 = vld [vmem:[%s5 + $0xa0] sm:$0xff]
  %v305 = vld [vmem:[%s5 + $0xa8] sm:$0xff]
  %v306 = vld [vmem:[%s5 + $0xb0] sm:$0xff]
  %v307 = vld [vmem:[%s5 + $0xb8] sm:$0xff]
  %vm308 = vcmask 523264
  %v310 = vsel %vm308, %v252, 0
  %v313 = vsel %vm308, %v258, 0
  %315 = vmatprep.subr.mxu0 0.0
  %316 = vmatpush1.msra.mxu0 %v299
  %317 = vmatprep.subr.mxu0 0.0
  %318 = vmatpush1.msra.mxu0 %v298
  %319 = vmatprep.subr.mxu0 0.0
  %320 = vmatpush1.msra.mxu0 %v297
  %321 = vmatprep.subr.mxu0 0.0
  %322 = vmatpush1.msra.mxu0 %v296
  %323 = vmatprep.subr.mxu0 0.0
  %324 = vmatpush1.msra.mxu0 %v295
  %325 = vmatprep.subr.mxu0 0.0
  %326 = vmatpush1.msra.mxu0 %v294
  %327 = vmatprep.subr.mxu0 0.0
  %328 = vmatpush1.msra.mxu0 %v293
  %329 = vmatprep.subr.mxu0 0.0
  %330 = vmatpush1.msra.mxu0 %v292
  %331 = vmatprep.subr.mxu0 0.0
  %332 = vmatpush1.msra.mxu0 %v291
  %333 = vmatprep.subr.mxu0 0.0
  %334 = vmatpush1.msra.mxu0 %v290
  %335 = vmatprep.subr.mxu0 0.0
  %336 = vmatpush1.msra.mxu0 %v289
  %337 = vmatprep.subr.mxu0 0.0
  %338 = vmatpush1.msra.mxu0 %v288
  %339 = vmatprep.subr.mxu0 0.0
  %340 = vmatpush1.msra.mxu0 %v287
  %341 = vmatprep.subr.mxu0 0.0
  %342 = vmatpush1.msra.mxu0 %v286
  %343 = vmatprep.subr.mxu0 0.0
  %344 = vmatpush1.msra.mxu0 %v285
  %345 = vmatprep.subr.mxu0 0.0
  %346 = vmatpush1.msra.mxu0 %v284
  %347 = vmatprep.subr.mxu0 0.0
  %348 = vmatpush2.msra.mxu0 0.0
  %349 = vmatprep.subr.mxu0 0.0
  %350 = vmatpush2.msra.mxu0 0.0
  %351 = vmatprep.subr.mxu0 0.0
  %352 = vmatpush2.msra.mxu0 0.0
  %353 = vmatprep.subr.mxu0 0.0
  %354 = vmatpush2.msra.mxu0 0.0
  %355 = vmatprep.subr.mxu0 0.0
  %356 = vmatpush2.msra.mxu0 0.0
  %357 = vmatprep.subr.mxu0 0.0
  %358 = vmatpush2.msra.mxu0 0.0
  %359 = vmatprep.subr.mxu0 0.0
  %360 = vmatpush2.msra.mxu0 0.0
  %361 = vmatprep.subr.mxu0 0.0
  %362 = vmatpush2.msra.mxu0 0.0
  %363 = vmatprep.subr.mxu0 0.0
  %364 = vmatpush2.msra.mxu0 %v307
  %365 = vmatprep.subr.mxu0 0.0
  %366 = vmatpush2.msra.mxu0 %v306
  %367 = vmatprep.subr.mxu0 0.0
  %368 = vmatpush2.msra.mxu0 %v305
  %369 = vmatprep.subr.mxu0 0.0
  %370 = vmatpush2.msra.mxu0 %v304
  %371 = vmatprep.subr.mxu0 0.0
  %372 = vmatpush2.msra.mxu0 %v303
  %373 = vmatprep.subr.mxu0 0.0
  %374 = vmatpush2.msra.mxu0 %v302
  %375 = vmatprep.subr.mxu0 0.0
  %376 = vmatpush2.msra.mxu0 %v301
  %377 = vmatprep.subr.mxu0 0.0
  %378 = vmatpush2.msra.mxu0 %v300
  %379 = vmatprep.mubr.f32.mxu0 %v310
  %380 = vmatmul.mubr.f32.gmra.mxu0 %v250
  %v381 = vpop.f32.mrf.mxu0
  %v382 = vadd.f32 0.0, %v381
  %v383 = vpop.f32.mrf.mxu0
  %384 = vmatprep.mubr.f32.mxu0 %v313
  %385 = vmatmul.mubr.f32.gmra.mxu0 %v256
  %v386 = vpop.f32.mrf.mxu0
  %v387 = vadd.f32 0.0, %v386
  %v388 = vpop.f32.mrf.mxu0
  %389 = vdwg.mxu0
  %v391 = vsel %vm308, %v171, 0
  %v394 = vsel %vm308, %v173, 0
  %396 = vmatprep.subr.mxu0 0.0
  %397 = vmatpush1.msra.mxu0 %v275
  %398 = vmatprep.subr.mxu0 0.0
  %399 = vmatpush1.msra.mxu0 %v274
  %400 = vmatprep.subr.mxu0 0.0
  %401 = vmatpush1.msra.mxu0 %v273
  %402 = vmatprep.subr.mxu0 0.0
  %403 = vmatpush1.msra.mxu0 %v272
  %404 = vmatprep.subr.mxu0 0.0
  %405 = vmatpush1.msra.mxu0 %v271
  %406 = vmatprep.subr.mxu0 0.0
  %407 = vmatpush1.msra.mxu0 %v270
  %408 = vmatprep.subr.mxu0 0.0
  %409 = vmatpush1.msra.mxu0 %v269
  %410 = vmatprep.subr.mxu0 0.0
  %411 = vmatpush1.msra.mxu0 %v268
  %412 = vmatprep.subr.mxu0 0.0
  %413 = vmatpush1.msra.mxu0 %v267
  %414 = vmatprep.subr.mxu0 0.0
  %415 = vmatpush1.msra.mxu0 %v266
  %416 = vmatprep.subr.mxu0 0.0
  %417 = vmatpush1.msra.mxu0 %v265
  %418 = vmatprep.subr.mxu0 0.0
  %419 = vmatpush1.msra.mxu0 %v264
  %420 = vmatprep.subr.mxu0 0.0
  %421 = vmatpush1.msra.mxu0 %v263
  %422 = vmatprep.subr.mxu0 0.0
  %423 = vmatpush1.msra.mxu0 %v262
  %424 = vmatprep.subr.mxu0 0.0
  %425 = vmatpush1.msra.mxu0 %v261
  %426 = vmatprep.subr.mxu0 0.0
  %427 = vmatpush1.msra.mxu0 %v260
  %428 = vmatprep.subr.mxu0 0.0
  %429 = vmatpush2.msra.mxu0 0.0
  %430 = vmatprep.subr.mxu0 0.0
  %431 = vmatpush2.msra.mxu0 0.0
  %432 = vmatprep.subr.mxu0 0.0
  %433 = vmatpush2.msra.mxu0 0.0
  %434 = vmatprep.subr.mxu0 0.0
  %435 = vmatpush2.msra.mxu0 0.0
  %436 = vmatprep.subr.mxu0 0.0
  %437 = vmatpush2.msra.mxu0 0.0
  %438 = vmatprep.subr.mxu0 0.0
  %439 = vmatpush2.msra.mxu0 0.0
  %440 = vmatprep.subr.mxu0 0.0
  %441 = vmatpush2.msra.mxu0 0.0
  %442 = vmatprep.subr.mxu0 0.0
  %443 = vmatpush2.msra.mxu0 0.0
  %444 = vmatprep.subr.mxu0 0.0
  %445 = vmatpush2.msra.mxu0 %v283
  %446 = vmatprep.subr.mxu0 0.0
  %447 = vmatpush2.msra.mxu0 %v282
  %448 = vmatprep.subr.mxu0 0.0
  %449 = vmatpush2.msra.mxu0 %v281
  %450 = vmatprep.subr.mxu0 0.0
  %451 = vmatpush2.msra.mxu0 %v280
  %452 = vmatprep.subr.mxu0 0.0
  %453 = vmatpush2.msra.mxu0 %v279
  %454 = vmatprep.subr.mxu0 0.0
  %455 = vmatpush2.msra.mxu0 %v278
  %456 = vmatprep.subr.mxu0 0.0
  %457 = vmatpush2.msra.mxu0 %v277
  %458 = vmatprep.subr.mxu0 0.0
  %459 = vmatpush2.msra.mxu0 %v276
  %460 = vmatprep.mubr.f32.mxu0 %v391
  %461 = vmatmul.mubr.f32.gmra.mxu0 %v170
  %v462 = vpop.f32.mrf.mxu0
  %v463 = vadd.f32 %v382, %v462
  %v464 = vpop.f32.mrf.mxu0
  %465 = vmatprep.mubr.f32.mxu0 %v394
  %466 = vmatmul.mubr.f32.gmra.mxu0 %v172
  %v467 = vpop.f32.mrf.mxu0
  %v468 = vadd.f32 %v387, %v467
  %v469 = vpop.f32.mrf.mxu0
  %470 = vdwg.mxu0
  %v471 = vld [vmem:[%s7] sm:$0x1]
  %v473 = vlaneseq
  %v474 = vshrl.u32 %v473, 7
  %v475 = vsub.s32 0, %v474
  %v476 = vrot.slane %v471, %v475
  %v478 = vadd.f32 %v463, %v476
  %v479 = vadd.f32 %v468, %v476
  %v480 = vmax.f32 %v478, 0.0
  %v481 = vmax.f32 %v479, 0.0
  %v482 = vld [vmem:[%s71] sm:$0xff]
  %v483 = vld [vmem:[%s71 + $0x8] sm:$0xff]
  %v485 = vsel %vm176, %v482, 0
  %v488 = vsel %vm176, %v483, 0
  %490 = vmatprep.subr.mxu0 0.0
  %491 = vmatpush1.msra.mxu0 0.0
  %492 = vmatprep.subr.mxu0 0.0
  %493 = vmatpush1.msra.mxu0 0.0
  %494 = vmatprep.subr.mxu0 0.0
  %495 = vmatpush1.msra.mxu0 0.0
  %496 = vmatprep.subr.mxu0 0.0
  %497 = vmatpush1.msra.mxu0 0.0
  %498 = vmatprep.subr.mxu0 0.0
  %499 = vmatpush1.msra.mxu0 0.0
  %500 = vmatprep.subr.mxu0 0.0
  %501 = vmatpush1.msra.mxu0 0.0
  %502 = vmatprep.subr.mxu0 0.0
  %503 = vmatpush1.msra.mxu0 0.0
  %504 = vmatprep.subr.mxu0 0.0
  %505 = vmatpush1.msra.mxu0 0.0
  %506 = vmatprep.subr.mxu0 0.0
  %507 = vmatpush1.msra.mxu0 0.0
  %508 = vmatprep.subr.mxu0 0.0
  %509 = vmatpush1.msra.mxu0 0.0
  %510 = vmatprep.subr.mxu0 0.0
  %511 = vmatpush1.msra.mxu0 0.0
  %512 = vmatprep.subr.mxu0 0.0
  %513 = vmatpush1.msra.mxu0 0.0
  %514 = vmatprep.subr.mxu0 0.0
  %515 = vmatpush1.msra.mxu0 0.0
  %516 = vmatprep.subr.mxu0 0.0
  %517 = vmatpush1.msra.mxu0 0.0
  %518 = vmatprep.subr.mxu0 0.0
  %519 = vmatpush1.msra.mxu0 %v481
  %520 = vmatprep.subr.mxu0 0.0
  %521 = vmatpush1.msra.mxu0 %v480
  %522 = vmatprep.subr.mxu0 0.0
  %523 = vmatpush2.msra.mxu0 0.0
  %524 = vmatprep.subr.mxu0 0.0
  %525 = vmatpush2.msra.mxu0 0.0
  %526 = vmatprep.subr.mxu0 0.0
  %527 = vmatpush2.msra.mxu0 0.0
  %528 = vmatprep.subr.mxu0 0.0
  %529 = vmatpush2.msra.mxu0 0.0
  %530 = vmatprep.subr.mxu0 0.0
  %531 = vmatpush2.msra.mxu0 0.0
  %532 = vmatprep.subr.mxu0 0.0
  %533 = vmatpush2.msra.mxu0 0.0
  %534 = vmatprep.subr.mxu0 0.0
  %535 = vmatpush2.msra.mxu0 0.0
  %536 = vmatprep.subr.mxu0 0.0
  %537 = vmatpush2.msra.mxu0 0.0
  %538 = vmatprep.subr.mxu0 0.0
  %539 = vmatpush2.msra.mxu0 0.0
  %540 = vmatprep.subr.mxu0 0.0
  %541 = vmatpush2.msra.mxu0 0.0
  %542 = vmatprep.subr.mxu0 0.0
  %543 = vmatpush2.msra.mxu0 0.0
  %544 = vmatprep.subr.mxu0 0.0
  %545 = vmatpush2.msra.mxu0 0.0
  %546 = vmatprep.subr.mxu0 0.0
  %547 = vmatpush2.msra.mxu0 0.0
  %548 = vmatprep.subr.mxu0 0.0
  %549 = vmatpush2.msra.mxu0 0.0
  %550 = vmatprep.subr.mxu0 0.0
  %551 = vmatpush2.msra.mxu0 0.0
  %552 = vmatprep.subr.mxu0 0.0
  %553 = vmatpush2.msra.mxu0 0.0
  %554 = vmatprep.mubr.f32.mxu0 0.0
  %555 = vmatmul.mubr.f32.gmra.mxu0 %v485
  %v556 = vpop.f32.mrf.mxu0
  %v557 = vadd.f32 0.0, %v556
  %v558 = vpop.f32.mrf.mxu0
  %559 = vmatprep.mubr.f32.mxu0 0.0
  %560 = vmatmul.mubr.f32.gmra.mxu0 %v488
  %v561 = vpop.f32.mrf.mxu0
  %v562 = vadd.f32 0.0, %v561
  %v563 = vpop.f32.mrf.mxu0
  %564 = vdwg.mxu0
  %565 = vmatprep.subr.mxu0 0.0
  %566 = vmatpush1.msra.mxu0 0.0
  %567 = vmatprep.subr.mxu0 0.0
  %568 = vmatpush1.msra.mxu0 0.0
  %569 = vmatprep.subr.mxu0 0.0
  %570 = vmatpush1.msra.mxu0 0.0
  %571 = vmatprep.subr.mxu0 0.0
  %572 = vmatpush1.msra.mxu0 0.0
  %573 = vmatprep.subr.mxu0 0.0
  %574 = vmatpush1.msra.mxu0 0.0
  %575 = vmatprep.subr.mxu0 0.0
  %576 = vmatpush1.msra.mxu0 0.0
  %577 = vmatprep.subr.mxu0 0.0
  %578 = vmatpush1.msra.mxu0 0.0
  %579 = vmatprep.subr.mxu0 0.0
  %580 = vmatpush1.msra.mxu0 0.0
  %581 = vmatprep.subr.mxu0 0.0
  %582 = vmatpush1.msra.mxu0 0.0
  %583 = vmatprep.subr.mxu0 0.0
  %584 = vmatpush1.msra.mxu0 0.0
  %585 = vmatprep.subr.mxu0 0.0
  %586 = vmatpush1.msra.mxu0 0.0
  %587 = vmatprep.subr.mxu0 0.0
  %588 = vmatpush1.msra.mxu0 0.0
  %589 = vmatprep.subr.mxu0 0.0
  %590 = vmatpush1.msra.mxu0 0.0
  %591 = vmatprep.subr.mxu0 0.0
  %592 = vmatpush1.msra.mxu0 0.0
  %593 = vmatprep.subr.mxu0 0.0
  %594 = vmatpush1.msra.mxu0 %v481
  %595 = vmatprep.subr.mxu0 0.0
  %596 = vmatpush1.msra.mxu0 %v480
  %597 = vmatprep.subr.mxu0 0.0
  %598 = vmatpush2.msra.mxu0 0.0
  %599 = vmatprep.subr.mxu0 0.0
  %600 = vmatpush2.msra.mxu0 0.0
  %601 = vmatprep.subr.mxu0 0.0
  %602 = vmatpush2.msra.mxu0 0.0
  %603 = vmatprep.subr.mxu0 0.0
  %604 = vmatpush2.msra.mxu0 0.0
  %605 = vmatprep.subr.mxu0 0.0
  %606 = vmatpush2.msra.mxu0 0.0
  %607 = vmatprep.subr.mxu0 0.0
  %608 = vmatpush2.msra.mxu0 0.0
  %609 = vmatprep.subr.mxu0 0.0
  %610 = vmatpush2.msra.mxu0 0.0
  %611 = vmatprep.subr.mxu0 0.0
  %612 = vmatpush2.msra.mxu0 0.0
  %613 = vmatprep.subr.mxu0 0.0
  %614 = vmatpush2.msra.mxu0 0.0
  %615 = vmatprep.subr.mxu0 0.0
  %616 = vmatpush2.msra.mxu0 0.0
  %617 = vmatprep.subr.mxu0 0.0
  %618 = vmatpush2.msra.mxu0 0.0
  %619 = vmatprep.subr.mxu0 0.0
  %620 = vmatpush2.msra.mxu0 0.0
  %621 = vmatprep.subr.mxu0 0.0
  %622 = vmatpush2.msra.mxu0 0.0
  %623 = vmatprep.subr.mxu0 0.0
  %624 = vmatpush2.msra.mxu0 0.0
  %625 = vmatprep.subr.mxu0 0.0
  %626 = vmatpush2.msra.mxu0 0.0
  %627 = vmatprep.subr.mxu0 0.0
  %628 = vmatpush2.msra.mxu0 0.0
  %629 = vmatprep.mubr.f32.mxu0 0.0
  %630 = vmatmul.mubr.f32.gmra.mxu0 %v178
  %v631 = vpop.f32.mrf.mxu0
  %v632 = vadd.f32 0.0, %v631
  %v633 = vpop.f32.mrf.mxu0
  %634 = vmatprep.mubr.f32.mxu0 0.0
  %635 = vmatmul.mubr.f32.gmra.mxu0 %v181
  %v636 = vpop.f32.mrf.mxu0
  %v637 = vadd.f32 0.0, %v636
  %v638 = vpop.f32.mrf.mxu0
  %639 = vdwg.mxu0
  %v640 = vld [vmem:[%s9] sm:$0xff]
  %v641 = vld [vmem:[%s9 + $0x8] sm:$0xff]
  %v642 = vld [vmem:[%s11] sm:$0xff]
  %v643 = vld [vmem:[%s11 + $0x8] sm:$0xff]
  %v645 = vsel %vm176, %v632, 0
  %v648 = vsel %vm176, %v637, 0
  %650 = vmatprep.subr.mxu0 0.0
  %651 = vmatpush1.msra.mxu0 0.0
  %652 = vmatprep.subr.mxu0 0.0
  %653 = vmatpush1.msra.mxu0 0.0
  %654 = vmatprep.subr.mxu0 0.0
  %655 = vmatpush1.msra.mxu0 0.0
  %656 = vmatprep.subr.mxu0 0.0
  %657 = vmatpush1.msra.mxu0 0.0
  %658 = vmatprep.subr.mxu0 0.0
  %659 = vmatpush1.msra.mxu0 0.0
  %660 = vmatprep.subr.mxu0 0.0
  %661 = vmatpush1.msra.mxu0 0.0
  %662 = vmatprep.subr.mxu0 0.0
  %663 = vmatpush1.msra.mxu0 0.0
  %664 = vmatprep.subr.mxu0 0.0
  %665 = vmatpush1.msra.mxu0 0.0
  %666 = vmatprep.subr.mxu0 0.0
  %667 = vmatpush1.msra.mxu0 0.0
  %668 = vmatprep.subr.mxu0 0.0
  %669 = vmatpush1.msra.mxu0 0.0
  %670 = vmatprep.subr.mxu0 0.0
  %671 = vmatpush1.msra.mxu0 0.0
  %672 = vmatprep.subr.mxu0 0.0
  %673 = vmatpush1.msra.mxu0 0.0
  %674 = vmatprep.subr.mxu0 0.0
  %675 = vmatpush1.msra.mxu0 0.0
  %676 = vmatprep.subr.mxu0 0.0
  %677 = vmatpush1.msra.mxu0 0.0
  %678 = vmatprep.subr.mxu0 0.0
  %679 = vmatpush1.msra.mxu0 %v643
  %680 = vmatprep.subr.mxu0 0.0
  %681 = vmatpush1.msra.mxu0 %v642
  %682 = vmatprep.subr.mxu0 0.0
  %683 = vmatpush2.msra.mxu0 0.0
  %684 = vmatprep.subr.mxu0 0.0
  %685 = vmatpush2.msra.mxu0 0.0
  %686 = vmatprep.subr.mxu0 0.0
  %687 = vmatpush2.msra.mxu0 0.0
  %688 = vmatprep.subr.mxu0 0.0
  %689 = vmatpush2.msra.mxu0 0.0
  %690 = vmatprep.subr.mxu0 0.0
  %691 = vmatpush2.msra.mxu0 0.0
  %692 = vmatprep.subr.mxu0 0.0
  %693 = vmatpush2.msra.mxu0 0.0
  %694 = vmatprep.subr.mxu0 0.0
  %695 = vmatpush2.msra.mxu0 0.0
  %696 = vmatprep.subr.mxu0 0.0
  %697 = vmatpush2.msra.mxu0 0.0
  %698 = vmatprep.subr.mxu0 0.0
  %699 = vmatpush2.msra.mxu0 0.0
  %700 = vmatprep.subr.mxu0 0.0
  %701 = vmatpush2.msra.mxu0 0.0
  %702 = vmatprep.subr.mxu0 0.0
  %703 = vmatpush2.msra.mxu0 0.0
  %704 = vmatprep.subr.mxu0 0.0
  %705 = vmatpush2.msra.mxu0 0.0
  %706 = vmatprep.subr.mxu0 0.0
  %707 = vmatpush2.msra.mxu0 0.0
  %708 = vmatprep.subr.mxu0 0.0
  %709 = vmatpush2.msra.mxu0 0.0
  %710 = vmatprep.subr.mxu0 0.0
  %711 = vmatpush2.msra.mxu0 0.0
  %712 = vmatprep.subr.mxu0 0.0
  %713 = vmatpush2.msra.mxu0 0.0
  %714 = vmatprep.mubr.f32.mxu0 0.0
  %715 = vmatmul.mubr.f32.gmra.mxu0 %v645
  %v716 = vpop.f32.mrf.mxu0
  %v717 = vadd.f32 0.0, %v716
  %v718 = vpop.f32.mrf.mxu0
  %719 = vmatprep.mubr.f32.mxu0 0.0
  %720 = vmatmul.mubr.f32.gmra.mxu0 %v648
  %v721 = vpop.f32.mrf.mxu0
  %v722 = vadd.f32 0.0, %v721
  %v723 = vpop.f32.mrf.mxu0
  %724 = vdwg.mxu0
  %v726 = vsel %vm176, %v557, 0
  %v729 = vsel %vm176, %v562, 0
  %731 = vmatprep.subr.mxu0 0.0
  %732 = vmatpush1.msra.mxu0 0.0
  %733 = vmatprep.subr.mxu0 0.0
  %734 = vmatpush1.msra.mxu0 0.0
  %735 = vmatprep.subr.mxu0 0.0
  %736 = vmatpush1.msra.mxu0 0.0
  %737 = vmatprep.subr.mxu0 0.0
  %738 = vmatpush1.msra.mxu0 0.0
  %739 = vmatprep.subr.mxu0 0.0
  %740 = vmatpush1.msra.mxu0 0.0
  %741 = vmatprep.subr.mxu0 0.0
  %742 = vmatpush1.msra.mxu0 0.0
  %743 = vmatprep.subr.mxu0 0.0
  %744 = vmatpush1.msra.mxu0 0.0
  %745 = vmatprep.subr.mxu0 0.0
  %746 = vmatpush1.msra.mxu0 0.0
  %747 = vmatprep.subr.mxu0 0.0
  %748 = vmatpush1.msra.mxu0 0.0
  %749 = vmatprep.subr.mxu0 0.0
  %750 = vmatpush1.msra.mxu0 0.0
  %751 = vmatprep.subr.mxu0 0.0
  %752 = vmatpush1.msra.mxu0 0.0
  %753 = vmatprep.subr.mxu0 0.0
  %754 = vmatpush1.msra.mxu0 0.0
  %755 = vmatprep.subr.mxu0 0.0
  %756 = vmatpush1.msra.mxu0 0.0
  %757 = vmatprep.subr.mxu0 0.0
  %758 = vmatpush1.msra.mxu0 0.0
  %759 = vmatprep.subr.mxu0 0.0
  %760 = vmatpush1.msra.mxu0 %v641
  %761 = vmatprep.subr.mxu0 0.0
  %762 = vmatpush1.msra.mxu0 %v640
  %763 = vmatprep.subr.mxu0 0.0
  %764 = vmatpush2.msra.mxu0 0.0
  %765 = vmatprep.subr.mxu0 0.0
  %766 = vmatpush2.msra.mxu0 0.0
  %767 = vmatprep.subr.mxu0 0.0
  %768 = vmatpush2.msra.mxu0 0.0
  %769 = vmatprep.subr.mxu0 0.0
  %770 = vmatpush2.msra.mxu0 0.0
  %771 = vmatprep.subr.mxu0 0.0
  %772 = vmatpush2.msra.mxu0 0.0
  %773 = vmatprep.subr.mxu0 0.0
  %774 = vmatpush2.msra.mxu0 0.0
  %775 = vmatprep.subr.mxu0 0.0
  %776 = vmatpush2.msra.mxu0 0.0
  %777 = vmatprep.subr.mxu0 0.0
  %778 = vmatpush2.msra.mxu0 0.0
  %779 = vmatprep.subr.mxu0 0.0
  %780 = vmatpush2.msra.mxu0 0.0
  %781 = vmatprep.subr.mxu0 0.0
  %782 = vmatpush2.msra.mxu0 0.0
  %783 = vmatprep.subr.mxu0 0.0
  %784 = vmatpush2.msra.mxu0 0.0
  %785 = vmatprep.subr.mxu0 0.0
  %786 = vmatpush2.msra.mxu0 0.0
  %787 = vmatprep.subr.mxu0 0.0
  %788 = vmatpush2.msra.mxu0 0.0
  %789 = vmatprep.subr.mxu0 0.0
  %790 = vmatpush2.msra.mxu0 0.0
  %791 = vmatprep.subr.mxu0 0.0
  %792 = vmatpush2.msra.mxu0 0.0
  %793 = vmatprep.subr.mxu0 0.0
  %794 = vmatpush2.msra.mxu0 0.0
  %795 = vmatprep.mubr.f32.mxu0 0.0
  %796 = vmatmul.mubr.f32.gmra.mxu0 %v726
  %v797 = vpop.f32.mrf.mxu0
  %v798 = vadd.f32 %v717, %v797
  %v799 = vpop.f32.mrf.mxu0
  %800 = vmatprep.mubr.f32.mxu0 0.0
  %801 = vmatmul.mubr.f32.gmra.mxu0 %v729
  %v802 = vpop.f32.mrf.mxu0
  %v803 = vadd.f32 %v722, %v802
  %v804 = vpop.f32.mrf.mxu0
  %805 = vdwg.mxu0
  %v806 = vld [vmem:[%s13] sm:$0x1]
  %v808 = vlaneseq
  %v809 = vshrl.u32 %v808, 7
  %v810 = vsub.s32 0, %v809
  %v811 = vrot.slane %v806, %v810
  %v813 = vadd.f32 %v798, %v811
  %v814 = vadd.f32 %v803, %v811
  %v815 = vmax.f32 %v813, 0.0
  %v816 = vmax.f32 %v814, 0.0
  %v817 = vld [vmem:[%s73] sm:$0xff]
  %v818 = vld [vmem:[%s73 + $0x8] sm:$0xff]
  %v820 = vsel %vm176, %v817, 0
  %v823 = vsel %vm176, %v818, 0
  %825 = vmatprep.subr.mxu0 0.0
  %826 = vmatpush1.msra.mxu0 0.0
  %827 = vmatprep.subr.mxu0 0.0
  %828 = vmatpush1.msra.mxu0 0.0
  %829 = vmatprep.subr.mxu0 0.0
  %830 = vmatpush1.msra.mxu0 0.0
  %831 = vmatprep.subr.mxu0 0.0
  %832 = vmatpush1.msra.mxu0 0.0
  %833 = vmatprep.subr.mxu0 0.0
  %834 = vmatpush1.msra.mxu0 0.0
  %835 = vmatprep.subr.mxu0 0.0
  %836 = vmatpush1.msra.mxu0 0.0
  %837 = vmatprep.subr.mxu0 0.0
  %838 = vmatpush1.msra.mxu0 0.0
  %839 = vmatprep.subr.mxu0 0.0
  %840 = vmatpush1.msra.mxu0 0.0
  %841 = vmatprep.subr.mxu0 0.0
  %842 = vmatpush1.msra.mxu0 0.0
  %843 = vmatprep.subr.mxu0 0.0
  %844 = vmatpush1.msra.mxu0 0.0
  %845 = vmatprep.subr.mxu0 0.0
  %846 = vmatpush1.msra.mxu0 0.0
  %847 = vmatprep.subr.mxu0 0.0
  %848 = vmatpush1.msra.mxu0 0.0
  %849 = vmatprep.subr.mxu0 0.0
  %850 = vmatpush1.msra.mxu0 0.0
  %851 = vmatprep.subr.mxu0 0.0
  %852 = vmatpush1.msra.mxu0 0.0
  %853 = vmatprep.subr.mxu0 0.0
  %854 = vmatpush1.msra.mxu0 %v816
  %855 = vmatprep.subr.mxu0 0.0
  %856 = vmatpush1.msra.mxu0 %v815
  %857 = vmatprep.subr.mxu0 0.0
  %858 = vmatpush2.msra.mxu0 0.0
  %859 = vmatprep.subr.mxu0 0.0
  %860 = vmatpush2.msra.mxu0 0.0
  %861 = vmatprep.subr.mxu0 0.0
  %862 = vmatpush2.msra.mxu0 0.0
  %863 = vmatprep.subr.mxu0 0.0
  %864 = vmatpush2.msra.mxu0 0.0
  %865 = vmatprep.subr.mxu0 0.0
  %866 = vmatpush2.msra.mxu0 0.0
  %867 = vmatprep.subr.mxu0 0.0
  %868 = vmatpush2.msra.mxu0 0.0
  %869 = vmatprep.subr.mxu0 0.0
  %870 = vmatpush2.msra.mxu0 0.0
  %871 = vmatprep.subr.mxu0 0.0
  %872 = vmatpush2.msra.mxu0 0.0
  %873 = vmatprep.subr.mxu0 0.0
  %874 = vmatpush2.msra.mxu0 0.0
  %875 = vmatprep.subr.mxu0 0.0
  %876 = vmatpush2.msra.mxu0 0.0
  %877 = vmatprep.subr.mxu0 0.0
  %878 = vmatpush2.msra.mxu0 0.0
  %879 = vmatprep.subr.mxu0 0.0
  %880 = vmatpush2.msra.mxu0 0.0
  %881 = vmatprep.subr.mxu0 0.0
  %882 = vmatpush2.msra.mxu0 0.0
  %883 = vmatprep.subr.mxu0 0.0
  %884 = vmatpush2.msra.mxu0 0.0
  %885 = vmatprep.subr.mxu0 0.0
  %886 = vmatpush2.msra.mxu0 0.0
  %887 = vmatprep.subr.mxu0 0.0
  %888 = vmatpush2.msra.mxu0 0.0
  %889 = vmatprep.mubr.f32.mxu0 0.0
  %890 = vmatmul.mubr.f32.gmra.mxu0 %v820
  %v891 = vpop.f32.mrf.mxu0
  %v892 = vadd.f32 0.0, %v891
  %v893 = vpop.f32.mrf.mxu0
  %894 = vmatprep.mubr.f32.mxu0 0.0
  %895 = vmatmul.mubr.f32.gmra.mxu0 %v823
  %v896 = vpop.f32.mrf.mxu0
  %v897 = vadd.f32 0.0, %v896
  %v898 = vpop.f32.mrf.mxu0
  %899 = vdwg.mxu0
  %v900 = vld [vmem:[%s75] sm:$0xff]
  %v901 = vld [vmem:[%s75 + $0x8] sm:$0xff]
  %v903 = vsel %vm176, %v900, 0
  %v906 = vsel %vm176, %v901, 0
  %908 = vmatprep.subr.mxu0 0.0
  %909 = vmatpush1.msra.mxu0 0.0
  %910 = vmatprep.subr.mxu0 0.0
  %911 = vmatpush1.msra.mxu0 0.0
  %912 = vmatprep.subr.mxu0 0.0
  %913 = vmatpush1.msra.mxu0 0.0
  %914 = vmatprep.subr.mxu0 0.0
  %915 = vmatpush1.msra.mxu0 0.0
  %916 = vmatprep.subr.mxu0 0.0
  %917 = vmatpush1.msra.mxu0 0.0
  %918 = vmatprep.subr.mxu0 0.0
  %919 = vmatpush1.msra.mxu0 0.0
  %920 = vmatprep.subr.mxu0 0.0
  %921 = vmatpush1.msra.mxu0 0.0
  %922 = vmatprep.subr.mxu0 0.0
  %923 = vmatpush1.msra.mxu0 0.0
  %924 = vmatprep.subr.mxu0 0.0
  %925 = vmatpush1.msra.mxu0 0.0
  %926 = vmatprep.subr.mxu0 0.0
  %927 = vmatpush1.msra.mxu0 0.0
  %928 = vmatprep.subr.mxu0 0.0
  %929 = vmatpush1.msra.mxu0 0.0
  %930 = vmatprep.subr.mxu0 0.0
  %931 = vmatpush1.msra.mxu0 0.0
  %932 = vmatprep.subr.mxu0 0.0
  %933 = vmatpush1.msra.mxu0 0.0
  %934 = vmatprep.subr.mxu0 0.0
  %935 = vmatpush1.msra.mxu0 0.0
  %936 = vmatprep.subr.mxu0 0.0
  %937 = vmatpush1.msra.mxu0 %v816
  %938 = vmatprep.subr.mxu0 0.0
  %939 = vmatpush1.msra.mxu0 %v815
  %940 = vmatprep.subr.mxu0 0.0
  %941 = vmatpush2.msra.mxu0 0.0
  %942 = vmatprep.subr.mxu0 0.0
  %943 = vmatpush2.msra.mxu0 0.0
  %944 = vmatprep.subr.mxu0 0.0
  %945 = vmatpush2.msra.mxu0 0.0
  %946 = vmatprep.subr.mxu0 0.0
  %947 = vmatpush2.msra.mxu0 0.0
  %948 = vmatprep.subr.mxu0 0.0
  %949 = vmatpush2.msra.mxu0 0.0
  %950 = vmatprep.subr.mxu0 0.0
  %951 = vmatpush2.msra.mxu0 0.0
  %952 = vmatprep.subr.mxu0 0.0
  %953 = vmatpush2.msra.mxu0 0.0
  %954 = vmatprep.subr.mxu0 0.0
  %955 = vmatpush2.msra.mxu0 0.0
  %956 = vmatprep.subr.mxu0 0.0
  %957 = vmatpush2.msra.mxu0 0.0
  %958 = vmatprep.subr.mxu0 0.0
  %959 = vmatpush2.msra.mxu0 0.0
  %960 = vmatprep.subr.mxu0 0.0
  %961 = vmatpush2.msra.mxu0 0.0
  %962 = vmatprep.subr.mxu0 0.0
  %963 = vmatpush2.msra.mxu0 0.0
  %964 = vmatprep.subr.mxu0 0.0
  %965 = vmatpush2.msra.mxu0 0.0
  %966 = vmatprep.subr.mxu0 0.0
  %967 = vmatpush2.msra.mxu0 0.0
  %968 = vmatprep.subr.mxu0 0.0
  %969 = vmatpush2.msra.mxu0 0.0
  %970 = vmatprep.subr.mxu0 0.0
  %971 = vmatpush2.msra.mxu0 0.0
  %972 = vmatprep.mubr.f32.mxu0 0.0
  %973 = vmatmul.mubr.f32.gmra.mxu0 %v903
  %v974 = vpop.f32.mrf.mxu0
  %v975 = vadd.f32 0.0, %v974
  %v976 = vpop.f32.mrf.mxu0
  %977 = vmatprep.mubr.f32.mxu0 0.0
  %978 = vmatmul.mubr.f32.gmra.mxu0 %v906
  %v979 = vpop.f32.mrf.mxu0
  %v980 = vadd.f32 0.0, %v979
  %v981 = vpop.f32.mrf.mxu0
  %982 = vdwg.mxu0
  %v983 = vld [vmem:[%s15] sm:$0xff]
  %v984 = vld [vmem:[%s15 + $0x8] sm:$0xff]
  %v985 = vld [vmem:[%s17] sm:$0xff]
  %v986 = vld [vmem:[%s17 + $0x8] sm:$0xff]
  %v988 = vsel %vm176, %v975, 0
  %v991 = vsel %vm176, %v980, 0
  %993 = vmatprep.subr.mxu0 0.0
  %994 = vmatpush1.msra.mxu0 0.0
  %995 = vmatprep.subr.mxu0 0.0
  %996 = vmatpush1.msra.mxu0 0.0
  %997 = vmatprep.subr.mxu0 0.0
  %998 = vmatpush1.msra.mxu0 0.0
  %999 = vmatprep.subr.mxu0 0.0
  %1000 = vmatpush1.msra.mxu0 0.0
  %1001 = vmatprep.subr.mxu0 0.0
  %1002 = vmatpush1.msra.mxu0 0.0
  %1003 = vmatprep.subr.mxu0 0.0
  %1004 = vmatpush1.msra.mxu0 0.0
  %1005 = vmatprep.subr.mxu0 0.0
  %1006 = vmatpush1.msra.mxu0 0.0
  %1007 = vmatprep.subr.mxu0 0.0
  %1008 = vmatpush1.msra.mxu0 0.0
  %1009 = vmatprep.subr.mxu0 0.0
  %1010 = vmatpush1.msra.mxu0 0.0
  %1011 = vmatprep.subr.mxu0 0.0
  %1012 = vmatpush1.msra.mxu0 0.0
  %1013 = vmatprep.subr.mxu0 0.0
  %1014 = vmatpush1.msra.mxu0 0.0
  %1015 = vmatprep.subr.mxu0 0.0
  %1016 = vmatpush1.msra.mxu0 0.0
  %1017 = vmatprep.subr.mxu0 0.0
  %1018 = vmatpush1.msra.mxu0 0.0
  %1019 = vmatprep.subr.mxu0 0.0
  %1020 = vmatpush1.msra.mxu0 0.0
  %1021 = vmatprep.subr.mxu0 0.0
  %1022 = vmatpush1.msra.mxu0 %v986
  %1023 = vmatprep.subr.mxu0 0.0
  %1024 = vmatpush1.msra.mxu0 %v985
  %1025 = vmatprep.subr.mxu0 0.0
  %1026 = vmatpush2.msra.mxu0 0.0
  %1027 = vmatprep.subr.mxu0 0.0
  %1028 = vmatpush2.msra.mxu0 0.0
  %1029 = vmatprep.subr.mxu0 0.0
  %1030 = vmatpush2.msra.mxu0 0.0
  %1031 = vmatprep.subr.mxu0 0.0
  %1032 = vmatpush2.msra.mxu0 0.0
  %1033 = vmatprep.subr.mxu0 0.0
  %1034 = vmatpush2.msra.mxu0 0.0
  %1035 = vmatprep.subr.mxu0 0.0
  %1036 = vmatpush2.msra.mxu0 0.0
  %1037 = vmatprep.subr.mxu0 0.0
  %1038 = vmatpush2.msra.mxu0 0.0
  %1039 = vmatprep.subr.mxu0 0.0
  %1040 = vmatpush2.msra.mxu0 0.0
  %1041 = vmatprep.subr.mxu0 0.0
  %1042 = vmatpush2.msra.mxu0 0.0
  %1043 = vmatprep.subr.mxu0 0.0
  %1044 = vmatpush2.msra.mxu0 0.0
  %1045 = vmatprep.subr.mxu0 0.0
  %1046 = vmatpush2.msra.mxu0 0.0
  %1047 = vmatprep.subr.mxu0 0.0
  %1048 = vmatpush2.msra.mxu0 0.0
  %1049 = vmatprep.subr.mxu0 0.0
  %1050 = vmatpush2.msra.mxu0 0.0
  %1051 = vmatprep.subr.mxu0 0.0
  %1052 = vmatpush2.msra.mxu0 0.0
  %1053 = vmatprep.subr.mxu0 0.0
  %1054 = vmatpush2.msra.mxu0 0.0
  %1055 = vmatprep.subr.mxu0 0.0
  %1056 = vmatpush2.msra.mxu0 0.0
  %1057 = vmatprep.mubr.f32.mxu0 0.0
  %1058 = vmatmul.mubr.f32.gmra.mxu0 %v988
  %v1059 = vpop.f32.mrf.mxu0
  %v1060 = vadd.f32 0.0, %v1059
  %v1061 = vpop.f32.mrf.mxu0
  %1062 = vmatprep.mubr.f32.mxu0 0.0
  %1063 = vmatmul.mubr.f32.gmra.mxu0 %v991
  %v1064 = vpop.f32.mrf.mxu0
  %v1065 = vadd.f32 0.0, %v1064
  %v1066 = vpop.f32.mrf.mxu0
  %1067 = vdwg.mxu0
  %v1069 = vsel %vm176, %v892, 0
  %v1072 = vsel %vm176, %v897, 0
  %1074 = vmatprep.subr.mxu0 0.0
  %1075 = vmatpush1.msra.mxu0 0.0
  %1076 = vmatprep.subr.mxu0 0.0
  %1077 = vmatpush1.msra.mxu0 0.0
  %1078 = vmatprep.subr.mxu0 0.0
  %1079 = vmatpush1.msra.mxu0 0.0
  %1080 = vmatprep.subr.mxu0 0.0
  %1081 = vmatpush1.msra.mxu0 0.0
  %1082 = vmatprep.subr.mxu0 0.0
  %1083 = vmatpush1.msra.mxu0 0.0
  %1084 = vmatprep.subr.mxu0 0.0
  %1085 = vmatpush1.msra.mxu0 0.0
  %1086 = vmatprep.subr.mxu0 0.0
  %1087 = vmatpush1.msra.mxu0 0.0
  %1088 = vmatprep.subr.mxu0 0.0
  %1089 = vmatpush1.msra.mxu0 0.0
  %1090 = vmatprep.subr.mxu0 0.0
  %1091 = vmatpush1.msra.mxu0 0.0
  %1092 = vmatprep.subr.mxu0 0.0
  %1093 = vmatpush1.msra.mxu0 0.0
  %1094 = vmatprep.subr.mxu0 0.0
  %1095 = vmatpush1.msra.mxu0 0.0
  %1096 = vmatprep.subr.mxu0 0.0
  %1097 = vmatpush1.msra.mxu0 0.0
  %1098 = vmatprep.subr.mxu0 0.0
  %1099 = vmatpush1.msra.mxu0 0.0
  %1100 = vmatprep.subr.mxu0 0.0
  %1101 = vmatpush1.msra.mxu0 0.0
  %1102 = vmatprep.subr.mxu0 0.0
  %1103 = vmatpush1.msra.mxu0 %v984
  %1104 = vmatprep.subr.mxu0 0.0
  %1105 = vmatpush1.msra.mxu0 %v983
  %1106 = vmatprep.subr.mxu0 0.0
  %1107 = vmatpush2.msra.mxu0 0.0
  %1108 = vmatprep.subr.mxu0 0.0
  %1109 = vmatpush2.msra.mxu0 0.0
  %1110 = vmatprep.subr.mxu0 0.0
  %1111 = vmatpush2.msra.mxu0 0.0
  %1112 = vmatprep.subr.mxu0 0.0
  %1113 = vmatpush2.msra.mxu0 0.0
  %1114 = vmatprep.subr.mxu0 0.0
  %1115 = vmatpush2.msra.mxu0 0.0
  %1116 = vmatprep.subr.mxu0 0.0
  %1117 = vmatpush2.msra.mxu0 0.0
  %1118 = vmatprep.subr.mxu0 0.0
  %1119 = vmatpush2.msra.mxu0 0.0
  %1120 = vmatprep.subr.mxu0 0.0
  %1121 = vmatpush2.msra.mxu0 0.0
  %1122 = vmatprep.subr.mxu0 0.0
  %1123 = vmatpush2.msra.mxu0 0.0
  %1124 = vmatprep.subr.mxu0 0.0
  %1125 = vmatpush2.msra.mxu0 0.0
  %1126 = vmatprep.subr.mxu0 0.0
  %1127 = vmatpush2.msra.mxu0 0.0
  %1128 = vmatprep.subr.mxu0 0.0
  %1129 = vmatpush2.msra.mxu0 0.0
  %1130 = vmatprep.subr.mxu0 0.0
  %1131 = vmatpush2.msra.mxu0 0.0
  %1132 = vmatprep.subr.mxu0 0.0
  %1133 = vmatpush2.msra.mxu0 0.0
  %1134 = vmatprep.subr.mxu0 0.0
  %1135 = vmatpush2.msra.mxu0 0.0
  %1136 = vmatprep.subr.mxu0 0.0
  %1137 = vmatpush2.msra.mxu0 0.0
  %1138 = vmatprep.mubr.f32.mxu0 0.0
  %1139 = vmatmul.mubr.f32.gmra.mxu0 %v1069
  %v1140 = vpop.f32.mrf.mxu0
  %v1141 = vadd.f32 %v1060, %v1140
  %v1142 = vpop.f32.mrf.mxu0
  %1143 = vmatprep.mubr.f32.mxu0 0.0
  %1144 = vmatmul.mubr.f32.gmra.mxu0 %v1072
  %v1145 = vpop.f32.mrf.mxu0
  %v1146 = vadd.f32 %v1065, %v1145
  %v1147 = vpop.f32.mrf.mxu0
  %1148 = vdwg.mxu0
  %v1149 = vld [vmem:[%s19] sm:$0x1]
  %v1151 = vlaneseq
  %v1152 = vshrl.u32 %v1151, 7
  %v1153 = vsub.s32 0, %v1152
  %v1154 = vrot.slane %v1149, %v1153
  %v1156 = vadd.f32 %v1141, %v1154
  %v1157 = vadd.f32 %v1146, %v1154
  %v1158 = vmax.f32 %v1156, 0.0
  %v1159 = vmax.f32 %v1157, 0.0
  %v1160 = vld [vmem:[%s21] sm:$0xff]
  %v1161 = vld [vmem:[%s21 + $0x8] sm:$0xff]
  %v1162 = vld [vmem:[%s21 + $0x10] sm:$0xff]
  %v1163 = vld [vmem:[%s21 + $0x18] sm:$0xff]
  %v1164 = vld [vmem:[%s21 + $0x20] sm:$0xff]
  %v1165 = vld [vmem:[%s21 + $0x28] sm:$0xff]
  %v1166 = vld [vmem:[%s21 + $0x30] sm:$0xff]
  %v1167 = vld [vmem:[%s21 + $0x38] sm:$0xff]
  %v1168 = vld [vmem:[%s21 + $0x40] sm:$0xff]
  %v1169 = vld [vmem:[%s21 + $0x48] sm:$0xff]
  %v1170 = vld [vmem:[%s21 + $0x50] sm:$0xff]
  %v1171 = vld [vmem:[%s21 + $0x58] sm:$0xff]
  %v1172 = vld [vmem:[%s21 + $0x60] sm:$0xff]
  %v1173 = vld [vmem:[%s21 + $0x68] sm:$0xff]
  %v1174 = vld [vmem:[%s21 + $0x70] sm:$0xff]
  %v1175 = vld [vmem:[%s21 + $0x78] sm:$0xff]
  %v1176 = vld [vmem:[%s21 + $0x80] sm:$0xff]
  %v1177 = vld [vmem:[%s21 + $0x88] sm:$0xff]
  %v1178 = vld [vmem:[%s21 + $0x90] sm:$0xff]
  %v1179 = vld [vmem:[%s21 + $0x98] sm:$0xff]
  %v1180 = vld [vmem:[%s21 + $0xa0] sm:$0xff]
  %v1181 = vld [vmem:[%s21 + $0xa8] sm:$0xff]
  %v1182 = vld [vmem:[%s21 + $0xb0] sm:$0xff]
  %v1183 = vld [vmem:[%s21 + $0xb8] sm:$0xff]
  %v1184 = vld [vmem:[%s23] sm:$0x1]
  %v1186 = vlaneseq
  %v1187 = vshrl.u32 %v1186, 7
  %v1188 = vsub.s32 0, %v1187
  %v1189 = vrot.slane %v1184, %v1188
  %1191 = vmatprep.subr.mxu0 0.0
  %1192 = vmatpush1.msra.mxu0 %v1175
  %1193 = vmatprep.subr.mxu0 0.0
  %1194 = vmatpush1.msra.mxu0 %v1174
  %1195 = vmatprep.subr.mxu0 0.0
  %1196 = vmatpush1.msra.mxu0 %v1173
  %1197 = vmatprep.subr.mxu0 0.0
  %1198 = vmatpush1.msra.mxu0 %v1172
  %1199 = vmatprep.subr.mxu0 0.0
  %1200 = vmatpush1.msra.mxu0 %v1171
  %1201 = vmatprep.subr.mxu0 0.0
  %1202 = vmatpush1.msra.mxu0 %v1170
  %1203 = vmatprep.subr.mxu0 0.0
  %1204 = vmatpush1.msra.mxu0 %v1169
  %1205 = vmatprep.subr.mxu0 0.0
  %1206 = vmatpush1.msra.mxu0 %v1168
  %1207 = vmatprep.subr.mxu0 0.0
  %1208 = vmatpush1.msra.mxu0 %v1167
  %1209 = vmatprep.subr.mxu0 0.0
  %1210 = vmatpush1.msra.mxu0 %v1166
  %1211 = vmatprep.subr.mxu0 0.0
  %1212 = vmatpush1.msra.mxu0 %v1165
  %1213 = vmatprep.subr.mxu0 0.0
  %1214 = vmatpush1.msra.mxu0 %v1164
  %1215 = vmatprep.subr.mxu0 0.0
  %1216 = vmatpush1.msra.mxu0 %v1163
  %1217 = vmatprep.subr.mxu0 0.0
  %1218 = vmatpush1.msra.mxu0 %v1162
  %1219 = vmatprep.subr.mxu0 0.0
  %1220 = vmatpush1.msra.mxu0 %v1161
  %1221 = vmatprep.subr.mxu0 0.0
  %1222 = vmatpush1.msra.mxu0 %v1160
  %1223 = vmatprep.subr.mxu0 0.0
  %1224 = vmatpush2.msra.mxu0 0.0
  %1225 = vmatprep.subr.mxu0 0.0
  %1226 = vmatpush2.msra.mxu0 0.0
  %1227 = vmatprep.subr.mxu0 0.0
  %1228 = vmatpush2.msra.mxu0 0.0
  %1229 = vmatprep.subr.mxu0 0.0
  %1230 = vmatpush2.msra.mxu0 0.0
  %1231 = vmatprep.subr.mxu0 0.0
  %1232 = vmatpush2.msra.mxu0 0.0
  %1233 = vmatprep.subr.mxu0 0.0
  %1234 = vmatpush2.msra.mxu0 0.0
  %1235 = vmatprep.subr.mxu0 0.0
  %1236 = vmatpush2.msra.mxu0 0.0
  %1237 = vmatprep.subr.mxu0 0.0
  %1238 = vmatpush2.msra.mxu0 0.0
  %1239 = vmatprep.subr.mxu0 0.0
  %1240 = vmatpush2.msra.mxu0 %v1183
  %1241 = vmatprep.subr.mxu0 0.0
  %1242 = vmatpush2.msra.mxu0 %v1182
  %1243 = vmatprep.subr.mxu0 0.0
  %1244 = vmatpush2.msra.mxu0 %v1181
  %1245 = vmatprep.subr.mxu0 0.0
  %1246 = vmatpush2.msra.mxu0 %v1180
  %1247 = vmatprep.subr.mxu0 0.0
  %1248 = vmatpush2.msra.mxu0 %v1179
  %1249 = vmatprep.subr.mxu0 0.0
  %1250 = vmatpush2.msra.mxu0 %v1178
  %1251 = vmatprep.subr.mxu0 0.0
  %1252 = vmatpush2.msra.mxu0 %v1177
  %1253 = vmatprep.subr.mxu0 0.0
  %1254 = vmatpush2.msra.mxu0 %v1176
  %1255 = vmatprep.mubr.f32.mxu0 %v391
  %1256 = vmatmul.mubr.f32.gmra.mxu0 %v170
  %v1257 = vpop.f32.mrf.mxu0
  %v1258 = vadd.f32 %v1189, %v1257
  %v1259 = vpop.f32.mrf.mxu0
  %1260 = vmatprep.mubr.f32.mxu0 %v394
  %1261 = vmatmul.mubr.f32.gmra.mxu0 %v172
  %v1262 = vpop.f32.mrf.mxu0
  %v1263 = vadd.f32 %v1189, %v1262
  %v1264 = vpop.f32.mrf.mxu0
  %1265 = vdwg.mxu0
  %v1266 = vadd.f32 %v1158, %v1258
  %v1267 = vadd.f32 %v1159, %v1263
  %v1268 = vmax.f32 %v1266, 0.0
  %v1269 = vmax.f32 %v1267, 0.0
  %1270 = vmatprep.subr.mxu0 0.0
  %1271 = vmatpush1.msra.mxu0 0.0
  %1272 = vmatprep.subr.mxu0 0.0
  %1273 = vmatpush1.msra.mxu0 0.0
  %1274 = vmatprep.subr.mxu0 0.0
  %1275 = vmatpush1.msra.mxu0 0.0
  %1276 = vmatprep.subr.mxu0 0.0
  %1277 = vmatpush1.msra.mxu0 0.0
  %1278 = vmatprep.subr.mxu0 0.0
  %1279 = vmatpush1.msra.mxu0 0.0
  %1280 = vmatprep.subr.mxu0 0.0
  %1281 = vmatpush1.msra.mxu0 0.0
  %1282 = vmatprep.subr.mxu0 0.0
  %1283 = vmatpush1.msra.mxu0 0.0
  %1284 = vmatprep.subr.mxu0 0.0
  %1285 = vmatpush1.msra.mxu0 0.0
  %1286 = vmatprep.subr.mxu0 0.0
  %1287 = vmatpush1.msra.mxu0 0.0
  %1288 = vmatprep.subr.mxu0 0.0
  %1289 = vmatpush1.msra.mxu0 0.0
  %1290 = vmatprep.subr.mxu0 0.0
  %1291 = vmatpush1.msra.mxu0 0.0
  %1292 = vmatprep.subr.mxu0 0.0
  %1293 = vmatpush1.msra.mxu0 0.0
  %1294 = vmatprep.subr.mxu0 0.0
  %1295 = vmatpush1.msra.mxu0 0.0
  %1296 = vmatprep.subr.mxu0 0.0
  %1297 = vmatpush1.msra.mxu0 0.0
  %1298 = vmatprep.subr.mxu0 0.0
  %1299 = vmatpush1.msra.mxu0 %v1269
  %1300 = vmatprep.subr.mxu0 0.0
  %1301 = vmatpush1.msra.mxu0 %v1268
  %1302 = vmatprep.subr.mxu0 0.0
  %1303 = vmatpush2.msra.mxu0 0.0
  %1304 = vmatprep.subr.mxu0 0.0
  %1305 = vmatpush2.msra.mxu0 0.0
  %1306 = vmatprep.subr.mxu0 0.0
  %1307 = vmatpush2.msra.mxu0 0.0
  %1308 = vmatprep.subr.mxu0 0.0
  %1309 = vmatpush2.msra.mxu0 0.0
  %1310 = vmatprep.subr.mxu0 0.0
  %1311 = vmatpush2.msra.mxu0 0.0
  %1312 = vmatprep.subr.mxu0 0.0
  %1313 = vmatpush2.msra.mxu0 0.0
  %1314 = vmatprep.subr.mxu0 0.0
  %1315 = vmatpush2.msra.mxu0 0.0
  %1316 = vmatprep.subr.mxu0 0.0
  %1317 = vmatpush2.msra.mxu0 0.0
  %1318 = vmatprep.subr.mxu0 0.0
  %1319 = vmatpush2.msra.mxu0 0.0
  %1320 = vmatprep.subr.mxu0 0.0
  %1321 = vmatpush2.msra.mxu0 0.0
  %1322 = vmatprep.subr.mxu0 0.0
  %1323 = vmatpush2.msra.mxu0 0.0
  %1324 = vmatprep.subr.mxu0 0.0
  %1325 = vmatpush2.msra.mxu0 0.0
  %1326 = vmatprep.subr.mxu0 0.0
  %1327 = vmatpush2.msra.mxu0 0.0
  %1328 = vmatprep.subr.mxu0 0.0
  %1329 = vmatpush2.msra.mxu0 0.0
  %1330 = vmatprep.subr.mxu0 0.0
  %1331 = vmatpush2.msra.mxu0 0.0
  %1332 = vmatprep.subr.mxu0 0.0
  %1333 = vmatpush2.msra.mxu0 0.0
  %1334 = vmatprep.mubr.f32.mxu0 0.0
  %1335 = vmatmul.mubr.f32.gmra.mxu0 %v178
  %v1336 = vpop.f32.mrf.mxu0
  %v1337 = vadd.f32 0.0, %v1336
  %v1338 = vpop.f32.mrf.mxu0
  %1339 = vmatprep.mubr.f32.mxu0 0.0
  %1340 = vmatmul.mubr.f32.gmra.mxu0 %v181
  %v1341 = vpop.f32.mrf.mxu0
  %v1342 = vadd.f32 0.0, %v1341
  %v1343 = vpop.f32.mrf.mxu0
  %1344 = vdwg.mxu0
  %v1345 = vld [vmem:[%s25] sm:$0xff]
  %v1346 = vld [vmem:[%s25 + $0x8] sm:$0xff]
  %v1347 = vld [vmem:[%s27] sm:$0xff]
  %v1348 = vld [vmem:[%s27 + $0x8] sm:$0xff]
  %v1350 = vsel %vm176, %v1337, 0
  %v1353 = vsel %vm176, %v1342, 0
  %1355 = vmatprep.subr.mxu0 0.0
  %1356 = vmatpush1.msra.mxu0 0.0
  %1357 = vmatprep.subr.mxu0 0.0
  %1358 = vmatpush1.msra.mxu0 0.0
  %1359 = vmatprep.subr.mxu0 0.0
  %1360 = vmatpush1.msra.mxu0 0.0
  %1361 = vmatprep.subr.mxu0 0.0
  %1362 = vmatpush1.msra.mxu0 0.0
  %1363 = vmatprep.subr.mxu0 0.0
  %1364 = vmatpush1.msra.mxu0 0.0
  %1365 = vmatprep.subr.mxu0 0.0
  %1366 = vmatpush1.msra.mxu0 0.0
  %1367 = vmatprep.subr.mxu0 0.0
  %1368 = vmatpush1.msra.mxu0 0.0
  %1369 = vmatprep.subr.mxu0 0.0
  %1370 = vmatpush1.msra.mxu0 0.0
  %1371 = vmatprep.subr.mxu0 0.0
  %1372 = vmatpush1.msra.mxu0 0.0
  %1373 = vmatprep.subr.mxu0 0.0
  %1374 = vmatpush1.msra.mxu0 0.0
  %1375 = vmatprep.subr.mxu0 0.0
  %1376 = vmatpush1.msra.mxu0 0.0
  %1377 = vmatprep.subr.mxu0 0.0
  %1378 = vmatpush1.msra.mxu0 0.0
  %1379 = vmatprep.subr.mxu0 0.0
  %1380 = vmatpush1.msra.mxu0 0.0
  %1381 = vmatprep.subr.mxu0 0.0
  %1382 = vmatpush1.msra.mxu0 0.0
  %1383 = vmatprep.subr.mxu0 0.0
  %1384 = vmatpush1.msra.mxu0 %v1348
  %1385 = vmatprep.subr.mxu0 0.0
  %1386 = vmatpush1.msra.mxu0 %v1347
  %1387 = vmatprep.subr.mxu0 0.0
  %1388 = vmatpush2.msra.mxu0 0.0
  %1389 = vmatprep.subr.mxu0 0.0
  %1390 = vmatpush2.msra.mxu0 0.0
  %1391 = vmatprep.subr.mxu0 0.0
  %1392 = vmatpush2.msra.mxu0 0.0
  %1393 = vmatprep.subr.mxu0 0.0
  %1394 = vmatpush2.msra.mxu0 0.0
  %1395 = vmatprep.subr.mxu0 0.0
  %1396 = vmatpush2.msra.mxu0 0.0
  %1397 = vmatprep.subr.mxu0 0.0
  %1398 = vmatpush2.msra.mxu0 0.0
  %1399 = vmatprep.subr.mxu0 0.0
  %1400 = vmatpush2.msra.mxu0 0.0
  %1401 = vmatprep.subr.mxu0 0.0
  %1402 = vmatpush2.msra.mxu0 0.0
  %1403 = vmatprep.subr.mxu0 0.0
  %1404 = vmatpush2.msra.mxu0 0.0
  %1405 = vmatprep.subr.mxu0 0.0
  %1406 = vmatpush2.msra.mxu0 0.0
  %1407 = vmatprep.subr.mxu0 0.0
  %1408 = vmatpush2.msra.mxu0 0.0
  %1409 = vmatprep.subr.mxu0 0.0
  %1410 = vmatpush2.msra.mxu0 0.0
  %1411 = vmatprep.subr.mxu0 0.0
  %1412 = vmatpush2.msra.mxu0 0.0
  %1413 = vmatprep.subr.mxu0 0.0
  %1414 = vmatpush2.msra.mxu0 0.0
  %1415 = vmatprep.subr.mxu0 0.0
  %1416 = vmatpush2.msra.mxu0 0.0
  %1417 = vmatprep.subr.mxu0 0.0
  %1418 = vmatpush2.msra.mxu0 0.0
  %1419 = vmatprep.mubr.f32.mxu0 0.0
  %1420 = vmatmul.mubr.f32.gmra.mxu0 %v1350
  %v1421 = vpop.f32.mrf.mxu0
  %v1422 = vadd.f32 0.0, %v1421
  %v1423 = vpop.f32.mrf.mxu0
  %1424 = vmatprep.mubr.f32.mxu0 0.0
  %1425 = vmatmul.mubr.f32.gmra.mxu0 %v1353
  %v1426 = vpop.f32.mrf.mxu0
  %v1427 = vadd.f32 0.0, %v1426
  %v1428 = vpop.f32.mrf.mxu0
  %1429 = vdwg.mxu0
  %v1431 = vsel %vm176, %v1268, 0
  %v1434 = vsel %vm176, %v1269, 0
  %1436 = vmatprep.subr.mxu0 0.0
  %1437 = vmatpush1.msra.mxu0 0.0
  %1438 = vmatprep.subr.mxu0 0.0
  %1439 = vmatpush1.msra.mxu0 0.0
  %1440 = vmatprep.subr.mxu0 0.0
  %1441 = vmatpush1.msra.mxu0 0.0
  %1442 = vmatprep.subr.mxu0 0.0
  %1443 = vmatpush1.msra.mxu0 0.0
  %1444 = vmatprep.subr.mxu0 0.0
  %1445 = vmatpush1.msra.mxu0 0.0
  %1446 = vmatprep.subr.mxu0 0.0
  %1447 = vmatpush1.msra.mxu0 0.0
  %1448 = vmatprep.subr.mxu0 0.0
  %1449 = vmatpush1.msra.mxu0 0.0
  %1450 = vmatprep.subr.mxu0 0.0
  %1451 = vmatpush1.msra.mxu0 0.0
  %1452 = vmatprep.subr.mxu0 0.0
  %1453 = vmatpush1.msra.mxu0 0.0
  %1454 = vmatprep.subr.mxu0 0.0
  %1455 = vmatpush1.msra.mxu0 0.0
  %1456 = vmatprep.subr.mxu0 0.0
  %1457 = vmatpush1.msra.mxu0 0.0
  %1458 = vmatprep.subr.mxu0 0.0
  %1459 = vmatpush1.msra.mxu0 0.0
  %1460 = vmatprep.subr.mxu0 0.0
  %1461 = vmatpush1.msra.mxu0 0.0
  %1462 = vmatprep.subr.mxu0 0.0
  %1463 = vmatpush1.msra.mxu0 0.0
  %1464 = vmatprep.subr.mxu0 0.0
  %1465 = vmatpush1.msra.mxu0 %v1346
  %1466 = vmatprep.subr.mxu0 0.0
  %1467 = vmatpush1.msra.mxu0 %v1345
  %1468 = vmatprep.subr.mxu0 0.0
  %1469 = vmatpush2.msra.mxu0 0.0
  %1470 = vmatprep.subr.mxu0 0.0
  %1471 = vmatpush2.msra.mxu0 0.0
  %1472 = vmatprep.subr.mxu0 0.0
  %1473 = vmatpush2.msra.mxu0 0.0
  %1474 = vmatprep.subr.mxu0 0.0
  %1475 = vmatpush2.msra.mxu0 0.0
  %1476 = vmatprep.subr.mxu0 0.0
  %1477 = vmatpush2.msra.mxu0 0.0
  %1478 = vmatprep.subr.mxu0 0.0
  %1479 = vmatpush2.msra.mxu0 0.0
  %1480 = vmatprep.subr.mxu0 0.0
  %1481 = vmatpush2.msra.mxu0 0.0
  %1482 = vmatprep.subr.mxu0 0.0
  %1483 = vmatpush2.msra.mxu0 0.0
  %1484 = vmatprep.subr.mxu0 0.0
  %1485 = vmatpush2.msra.mxu0 0.0
  %1486 = vmatprep.subr.mxu0 0.0
  %1487 = vmatpush2.msra.mxu0 0.0
  %1488 = vmatprep.subr.mxu0 0.0
  %1489 = vmatpush2.msra.mxu0 0.0
  %1490 = vmatprep.subr.mxu0 0.0
  %1491 = vmatpush2.msra.mxu0 0.0
  %1492 = vmatprep.subr.mxu0 0.0
  %1493 = vmatpush2.msra.mxu0 0.0
  %1494 = vmatprep.subr.mxu0 0.0
  %1495 = vmatpush2.msra.mxu0 0.0
  %1496 = vmatprep.subr.mxu0 0.0
  %1497 = vmatpush2.msra.mxu0 0.0
  %1498 = vmatprep.subr.mxu0 0.0
  %1499 = vmatpush2.msra.mxu0 0.0
  %1500 = vmatprep.mubr.f32.mxu0 0.0
  %1501 = vmatmul.mubr.f32.gmra.mxu0 %v1431
  %v1502 = vpop.f32.mrf.mxu0
  %v1503 = vadd.f32 %v1422, %v1502
  %v1504 = vpop.f32.mrf.mxu0
  %1505 = vmatprep.mubr.f32.mxu0 0.0
  %1506 = vmatmul.mubr.f32.gmra.mxu0 %v1434
  %v1507 = vpop.f32.mrf.mxu0
  %v1508 = vadd.f32 %v1427, %v1507
  %v1509 = vpop.f32.mrf.mxu0
  %1510 = vdwg.mxu0
  %v1511 = vld [vmem:[%s29] sm:$0x1]
  %v1513 = vlaneseq
  %v1514 = vshrl.u32 %v1513, 7
  %v1515 = vsub.s32 0, %v1514
  %v1516 = vrot.slane %v1511, %v1515
  %v1518 = vadd.f32 %v1503, %v1516
  %v1519 = vadd.f32 %v1508, %v1516
  %v1520 = vmax.f32 %v1518, 0.0
  %v1521 = vmax.f32 %v1519, 0.0
  %1522 = vmatprep.subr.mxu0 0.0
  %1523 = vmatpush1.msra.mxu0 0.0
  %1524 = vmatprep.subr.mxu0 0.0
  %1525 = vmatpush1.msra.mxu0 0.0
  %1526 = vmatprep.subr.mxu0 0.0
  %1527 = vmatpush1.msra.mxu0 0.0
  %1528 = vmatprep.subr.mxu0 0.0
  %1529 = vmatpush1.msra.mxu0 0.0
  %1530 = vmatprep.subr.mxu0 0.0
  %1531 = vmatpush1.msra.mxu0 0.0
  %1532 = vmatprep.subr.mxu0 0.0
  %1533 = vmatpush1.msra.mxu0 0.0
  %1534 = vmatprep.subr.mxu0 0.0
  %1535 = vmatpush1.msra.mxu0 0.0
  %1536 = vmatprep.subr.mxu0 0.0
  %1537 = vmatpush1.msra.mxu0 0.0
  %1538 = vmatprep.subr.mxu0 0.0
  %1539 = vmatpush1.msra.mxu0 0.0
  %1540 = vmatprep.subr.mxu0 0.0
  %1541 = vmatpush1.msra.mxu0 0.0
  %1542 = vmatprep.subr.mxu0 0.0
  %1543 = vmatpush1.msra.mxu0 0.0
  %1544 = vmatprep.subr.mxu0 0.0
  %1545 = vmatpush1.msra.mxu0 0.0
  %1546 = vmatprep.subr.mxu0 0.0
  %1547 = vmatpush1.msra.mxu0 0.0
  %1548 = vmatprep.subr.mxu0 0.0
  %1549 = vmatpush1.msra.mxu0 0.0
  %1550 = vmatprep.subr.mxu0 0.0
  %1551 = vmatpush1.msra.mxu0 %v1521
  %1552 = vmatprep.subr.mxu0 0.0
  %1553 = vmatpush1.msra.mxu0 %v1520
  %1554 = vmatprep.subr.mxu0 0.0
  %1555 = vmatpush2.msra.mxu0 0.0
  %1556 = vmatprep.subr.mxu0 0.0
  %1557 = vmatpush2.msra.mxu0 0.0
  %1558 = vmatprep.subr.mxu0 0.0
  %1559 = vmatpush2.msra.mxu0 0.0
  %1560 = vmatprep.subr.mxu0 0.0
  %1561 = vmatpush2.msra.mxu0 0.0
  %1562 = vmatprep.subr.mxu0 0.0
  %1563 = vmatpush2.msra.mxu0 0.0
  %1564 = vmatprep.subr.mxu0 0.0
  %1565 = vmatpush2.msra.mxu0 0.0
  %1566 = vmatprep.subr.mxu0 0.0
  %1567 = vmatpush2.msra.mxu0 0.0
  %1568 = vmatprep.subr.mxu0 0.0
  %1569 = vmatpush2.msra.mxu0 0.0
  %1570 = vmatprep.subr.mxu0 0.0
  %1571 = vmatpush2.msra.mxu0 0.0
  %1572 = vmatprep.subr.mxu0 0.0
  %1573 = vmatpush2.msra.mxu0 0.0
  %1574 = vmatprep.subr.mxu0 0.0
  %1575 = vmatpush2.msra.mxu0 0.0
  %1576 = vmatprep.subr.mxu0 0.0
  %1577 = vmatpush2.msra.mxu0 0.0
  %1578 = vmatprep.subr.mxu0 0.0
  %1579 = vmatpush2.msra.mxu0 0.0
  %1580 = vmatprep.subr.mxu0 0.0
  %1581 = vmatpush2.msra.mxu0 0.0
  %1582 = vmatprep.subr.mxu0 0.0
  %1583 = vmatpush2.msra.mxu0 0.0
  %1584 = vmatprep.subr.mxu0 0.0
  %1585 = vmatpush2.msra.mxu0 0.0
  %1586 = vmatprep.mubr.f32.mxu0 0.0
  %1587 = vmatmul.mubr.f32.gmra.mxu0 %v485
  %v1588 = vpop.f32.mrf.mxu0
  %v1589 = vadd.f32 0.0, %v1588
  %v1590 = vpop.f32.mrf.mxu0
  %1591 = vmatprep.mubr.f32.mxu0 0.0
  %1592 = vmatmul.mubr.f32.gmra.mxu0 %v488
  %v1593 = vpop.f32.mrf.mxu0
  %v1594 = vadd.f32 0.0, %v1593
  %v1595 = vpop.f32.mrf.mxu0
  %1596 = vdwg.mxu0
  %1597 = vmatprep.subr.mxu0 0.0
  %1598 = vmatpush1.msra.mxu0 0.0
  %1599 = vmatprep.subr.mxu0 0.0
  %1600 = vmatpush1.msra.mxu0 0.0
  %1601 = vmatprep.subr.mxu0 0.0
  %1602 = vmatpush1.msra.mxu0 0.0
  %1603 = vmatprep.subr.mxu0 0.0
  %1604 = vmatpush1.msra.mxu0 0.0
  %1605 = vmatprep.subr.mxu0 0.0
  %1606 = vmatpush1.msra.mxu0 0.0
  %1607 = vmatprep.subr.mxu0 0.0
  %1608 = vmatpush1.msra.mxu0 0.0
  %1609 = vmatprep.subr.mxu0 0.0
  %1610 = vmatpush1.msra.mxu0 0.0
  %1611 = vmatprep.subr.mxu0 0.0
  %1612 = vmatpush1.msra.mxu0 0.0
  %1613 = vmatprep.subr.mxu0 0.0
  %1614 = vmatpush1.msra.mxu0 0.0
  %1615 = vmatprep.subr.mxu0 0.0
  %1616 = vmatpush1.msra.mxu0 0.0
  %1617 = vmatprep.subr.mxu0 0.0
  %1618 = vmatpush1.msra.mxu0 0.0
  %1619 = vmatprep.subr.mxu0 0.0
  %1620 = vmatpush1.msra.mxu0 0.0
  %1621 = vmatprep.subr.mxu0 0.0
  %1622 = vmatpush1.msra.mxu0 0.0
  %1623 = vmatprep.subr.mxu0 0.0
  %1624 = vmatpush1.msra.mxu0 0.0
  %1625 = vmatprep.subr.mxu0 0.0
  %1626 = vmatpush1.msra.mxu0 %v1521
  %1627 = vmatprep.subr.mxu0 0.0
  %1628 = vmatpush1.msra.mxu0 %v1520
  %1629 = vmatprep.subr.mxu0 0.0
  %1630 = vmatpush2.msra.mxu0 0.0
  %1631 = vmatprep.subr.mxu0 0.0
  %1632 = vmatpush2.msra.mxu0 0.0
  %1633 = vmatprep.subr.mxu0 0.0
  %1634 = vmatpush2.msra.mxu0 0.0
  %1635 = vmatprep.subr.mxu0 0.0
  %1636 = vmatpush2.msra.mxu0 0.0
  %1637 = vmatprep.subr.mxu0 0.0
  %1638 = vmatpush2.msra.mxu0 0.0
  %1639 = vmatprep.subr.mxu0 0.0
  %1640 = vmatpush2.msra.mxu0 0.0
  %1641 = vmatprep.subr.mxu0 0.0
  %1642 = vmatpush2.msra.mxu0 0.0
  %1643 = vmatprep.subr.mxu0 0.0
  %1644 = vmatpush2.msra.mxu0 0.0
  %1645 = vmatprep.subr.mxu0 0.0
  %1646 = vmatpush2.msra.mxu0 0.0
  %1647 = vmatprep.subr.mxu0 0.0
  %1648 = vmatpush2.msra.mxu0 0.0
  %1649 = vmatprep.subr.mxu0 0.0
  %1650 = vmatpush2.msra.mxu0 0.0
  %1651 = vmatprep.subr.mxu0 0.0
  %1652 = vmatpush2.msra.mxu0 0.0
  %1653 = vmatprep.subr.mxu0 0.0
  %1654 = vmatpush2.msra.mxu0 0.0
  %1655 = vmatprep.subr.mxu0 0.0
  %1656 = vmatpush2.msra.mxu0 0.0
  %1657 = vmatprep.subr.mxu0 0.0
  %1658 = vmatpush2.msra.mxu0 0.0
  %1659 = vmatprep.subr.mxu0 0.0
  %1660 = vmatpush2.msra.mxu0 0.0
  %1661 = vmatprep.mubr.f32.mxu0 0.0
  %1662 = vmatmul.mubr.f32.gmra.mxu0 %v178
  %v1663 = vpop.f32.mrf.mxu0
  %v1664 = vadd.f32 0.0, %v1663
  %v1665 = vpop.f32.mrf.mxu0
  %1666 = vmatprep.mubr.f32.mxu0 0.0
  %1667 = vmatmul.mubr.f32.gmra.mxu0 %v181
  %v1668 = vpop.f32.mrf.mxu0
  %v1669 = vadd.f32 0.0, %v1668
  %v1670 = vpop.f32.mrf.mxu0
  %1671 = vdwg.mxu0
  %v1672 = vld [vmem:[%s31] sm:$0xff]
  %v1673 = vld [vmem:[%s31 + $0x8] sm:$0xff]
  %v1674 = vld [vmem:[%s33] sm:$0xff]
  %v1675 = vld [vmem:[%s33 + $0x8] sm:$0xff]
  %v1677 = vsel %vm176, %v1664, 0
  %v1680 = vsel %vm176, %v1669, 0
  %1682 = vmatprep.subr.mxu0 0.0
  %1683 = vmatpush1.msra.mxu0 0.0
  %1684 = vmatprep.subr.mxu0 0.0
  %1685 = vmatpush1.msra.mxu0 0.0
  %1686 = vmatprep.subr.mxu0 0.0
  %1687 = vmatpush1.msra.mxu0 0.0
  %1688 = vmatprep.subr.mxu0 0.0
  %1689 = vmatpush1.msra.mxu0 0.0
  %1690 = vmatprep.subr.mxu0 0.0
  %1691 = vmatpush1.msra.mxu0 0.0
  %1692 = vmatprep.subr.mxu0 0.0
  %1693 = vmatpush1.msra.mxu0 0.0
  %1694 = vmatprep.subr.mxu0 0.0
  %1695 = vmatpush1.msra.mxu0 0.0
  %1696 = vmatprep.subr.mxu0 0.0
  %1697 = vmatpush1.msra.mxu0 0.0
  %1698 = vmatprep.subr.mxu0 0.0
  %1699 = vmatpush1.msra.mxu0 0.0
  %1700 = vmatprep.subr.mxu0 0.0
  %1701 = vmatpush1.msra.mxu0 0.0
  %1702 = vmatprep.subr.mxu0 0.0
  %1703 = vmatpush1.msra.mxu0 0.0
  %1704 = vmatprep.subr.mxu0 0.0
  %1705 = vmatpush1.msra.mxu0 0.0
  %1706 = vmatprep.subr.mxu0 0.0
  %1707 = vmatpush1.msra.mxu0 0.0
  %1708 = vmatprep.subr.mxu0 0.0
  %1709 = vmatpush1.msra.mxu0 0.0
  %1710 = vmatprep.subr.mxu0 0.0
  %1711 = vmatpush1.msra.mxu0 %v1675
  %1712 = vmatprep.subr.mxu0 0.0
  %1713 = vmatpush1.msra.mxu0 %v1674
  %1714 = vmatprep.subr.mxu0 0.0
  %1715 = vmatpush2.msra.mxu0 0.0
  %1716 = vmatprep.subr.mxu0 0.0
  %1717 = vmatpush2.msra.mxu0 0.0
  %1718 = vmatprep.subr.mxu0 0.0
  %1719 = vmatpush2.msra.mxu0 0.0
  %1720 = vmatprep.subr.mxu0 0.0
  %1721 = vmatpush2.msra.mxu0 0.0
  %1722 = vmatprep.subr.mxu0 0.0
  %1723 = vmatpush2.msra.mxu0 0.0
  %1724 = vmatprep.subr.mxu0 0.0
  %1725 = vmatpush2.msra.mxu0 0.0
  %1726 = vmatprep.subr.mxu0 0.0
  %1727 = vmatpush2.msra.mxu0 0.0
  %1728 = vmatprep.subr.mxu0 0.0
  %1729 = vmatpush2.msra.mxu0 0.0
  %1730 = vmatprep.subr.mxu0 0.0
  %1731 = vmatpush2.msra.mxu0 0.0
  %1732 = vmatprep.subr.mxu0 0.0
  %1733 = vmatpush2.msra.mxu0 0.0
  %1734 = vmatprep.subr.mxu0 0.0
  %1735 = vmatpush2.msra.mxu0 0.0
  %1736 = vmatprep.subr.mxu0 0.0
  %1737 = vmatpush2.msra.mxu0 0.0
  %1738 = vmatprep.subr.mxu0 0.0
  %1739 = vmatpush2.msra.mxu0 0.0
  %1740 = vmatprep.subr.mxu0 0.0
  %1741 = vmatpush2.msra.mxu0 0.0
  %1742 = vmatprep.subr.mxu0 0.0
  %1743 = vmatpush2.msra.mxu0 0.0
  %1744 = vmatprep.subr.mxu0 0.0
  %1745 = vmatpush2.msra.mxu0 0.0
  %1746 = vmatprep.mubr.f32.mxu0 0.0
  %1747 = vmatmul.mubr.f32.gmra.mxu0 %v1677
  %v1748 = vpop.f32.mrf.mxu0
  %v1749 = vadd.f32 0.0, %v1748
  %v1750 = vpop.f32.mrf.mxu0
  %1751 = vmatprep.mubr.f32.mxu0 0.0
  %1752 = vmatmul.mubr.f32.gmra.mxu0 %v1680
  %v1753 = vpop.f32.mrf.mxu0
  %v1754 = vadd.f32 0.0, %v1753
  %v1755 = vpop.f32.mrf.mxu0
  %1756 = vdwg.mxu0
  %v1758 = vsel %vm176, %v1589, 0
  %v1761 = vsel %vm176, %v1594, 0
  %1763 = vmatprep.subr.mxu0 0.0
  %1764 = vmatpush1.msra.mxu0 0.0
  %1765 = vmatprep.subr.mxu0 0.0
  %1766 = vmatpush1.msra.mxu0 0.0
  %1767 = vmatprep.subr.mxu0 0.0
  %1768 = vmatpush1.msra.mxu0 0.0
  %1769 = vmatprep.subr.mxu0 0.0
  %1770 = vmatpush1.msra.mxu0 0.0
  %1771 = vmatprep.subr.mxu0 0.0
  %1772 = vmatpush1.msra.mxu0 0.0
  %1773 = vmatprep.subr.mxu0 0.0
  %1774 = vmatpush1.msra.mxu0 0.0
  %1775 = vmatprep.subr.mxu0 0.0
  %1776 = vmatpush1.msra.mxu0 0.0
  %1777 = vmatprep.subr.mxu0 0.0
  %1778 = vmatpush1.msra.mxu0 0.0
  %1779 = vmatprep.subr.mxu0 0.0
  %1780 = vmatpush1.msra.mxu0 0.0
  %1781 = vmatprep.subr.mxu0 0.0
  %1782 = vmatpush1.msra.mxu0 0.0
  %1783 = vmatprep.subr.mxu0 0.0
  %1784 = vmatpush1.msra.mxu0 0.0
  %1785 = vmatprep.subr.mxu0 0.0
  %1786 = vmatpush1.msra.mxu0 0.0
  %1787 = vmatprep.subr.mxu0 0.0
  %1788 = vmatpush1.msra.mxu0 0.0
  %1789 = vmatprep.subr.mxu0 0.0
  %1790 = vmatpush1.msra.mxu0 0.0
  %1791 = vmatprep.subr.mxu0 0.0
  %1792 = vmatpush1.msra.mxu0 %v1673
  %1793 = vmatprep.subr.mxu0 0.0
  %1794 = vmatpush1.msra.mxu0 %v1672
  %1795 = vmatprep.subr.mxu0 0.0
  %1796 = vmatpush2.msra.mxu0 0.0
  %1797 = vmatprep.subr.mxu0 0.0
  %1798 = vmatpush2.msra.mxu0 0.0
  %1799 = vmatprep.subr.mxu0 0.0
  %1800 = vmatpush2.msra.mxu0 0.0
  %1801 = vmatprep.subr.mxu0 0.0
  %1802 = vmatpush2.msra.mxu0 0.0
  %1803 = vmatprep.subr.mxu0 0.0
  %1804 = vmatpush2.msra.mxu0 0.0
  %1805 = vmatprep.subr.mxu0 0.0
  %1806 = vmatpush2.msra.mxu0 0.0
  %1807 = vmatprep.subr.mxu0 0.0
  %1808 = vmatpush2.msra.mxu0 0.0
  %1809 = vmatprep.subr.mxu0 0.0
  %1810 = vmatpush2.msra.mxu0 0.0
  %1811 = vmatprep.subr.mxu0 0.0
  %1812 = vmatpush2.msra.mxu0 0.0
  %1813 = vmatprep.subr.mxu0 0.0
  %1814 = vmatpush2.msra.mxu0 0.0
  %1815 = vmatprep.subr.mxu0 0.0
  %1816 = vmatpush2.msra.mxu0 0.0
  %1817 = vmatprep.subr.mxu0 0.0
  %1818 = vmatpush2.msra.mxu0 0.0
  %1819 = vmatprep.subr.mxu0 0.0
  %1820 = vmatpush2.msra.mxu0 0.0
  %1821 = vmatprep.subr.mxu0 0.0
  %1822 = vmatpush2.msra.mxu0 0.0
  %1823 = vmatprep.subr.mxu0 0.0
  %1824 = vmatpush2.msra.mxu0 0.0
  %1825 = vmatprep.subr.mxu0 0.0
  %1826 = vmatpush2.msra.mxu0 0.0
  %1827 = vmatprep.mubr.f32.mxu0 0.0
  %1828 = vmatmul.mubr.f32.gmra.mxu0 %v1758
  %v1829 = vpop.f32.mrf.mxu0
  %v1830 = vadd.f32 %v1749, %v1829
  %v1831 = vpop.f32.mrf.mxu0
  %1832 = vmatprep.mubr.f32.mxu0 0.0
  %1833 = vmatmul.mubr.f32.gmra.mxu0 %v1761
  %v1834 = vpop.f32.mrf.mxu0
  %v1835 = vadd.f32 %v1754, %v1834
  %v1836 = vpop.f32.mrf.mxu0
  %1837 = vdwg.mxu0
  %v1838 = vld [vmem:[%s35] sm:$0x1]
  %v1840 = vlaneseq
  %v1841 = vshrl.u32 %v1840, 7
  %v1842 = vsub.s32 0, %v1841
  %v1843 = vrot.slane %v1838, %v1842
  %v1845 = vadd.f32 %v1830, %v1843
  %v1846 = vadd.f32 %v1835, %v1843
  %v1847 = vmax.f32 %v1845, 0.0
  %v1848 = vmax.f32 %v1846, 0.0
  %1849 = vmatprep.subr.mxu0 0.0
  %1850 = vmatpush1.msra.mxu0 0.0
  %1851 = vmatprep.subr.mxu0 0.0
  %1852 = vmatpush1.msra.mxu0 0.0
  %1853 = vmatprep.subr.mxu0 0.0
  %1854 = vmatpush1.msra.mxu0 0.0
  %1855 = vmatprep.subr.mxu0 0.0
  %1856 = vmatpush1.msra.mxu0 0.0
  %1857 = vmatprep.subr.mxu0 0.0
  %1858 = vmatpush1.msra.mxu0 0.0
  %1859 = vmatprep.subr.mxu0 0.0
  %1860 = vmatpush1.msra.mxu0 0.0
  %1861 = vmatprep.subr.mxu0 0.0
  %1862 = vmatpush1.msra.mxu0 0.0
  %1863 = vmatprep.subr.mxu0 0.0
  %1864 = vmatpush1.msra.mxu0 0.0
  %1865 = vmatprep.subr.mxu0 0.0
  %1866 = vmatpush1.msra.mxu0 0.0
  %1867 = vmatprep.subr.mxu0 0.0
  %1868 = vmatpush1.msra.mxu0 0.0
  %1869 = vmatprep.subr.mxu0 0.0
  %1870 = vmatpush1.msra.mxu0 0.0
  %1871 = vmatprep.subr.mxu0 0.0
  %1872 = vmatpush1.msra.mxu0 0.0
  %1873 = vmatprep.subr.mxu0 0.0
  %1874 = vmatpush1.msra.mxu0 0.0
  %1875 = vmatprep.subr.mxu0 0.0
  %1876 = vmatpush1.msra.mxu0 0.0
  %1877 = vmatprep.subr.mxu0 0.0
  %1878 = vmatpush1.msra.mxu0 %v1848
  %1879 = vmatprep.subr.mxu0 0.0
  %1880 = vmatpush1.msra.mxu0 %v1847
  %1881 = vmatprep.subr.mxu0 0.0
  %1882 = vmatpush2.msra.mxu0 0.0
  %1883 = vmatprep.subr.mxu0 0.0
  %1884 = vmatpush2.msra.mxu0 0.0
  %1885 = vmatprep.subr.mxu0 0.0
  %1886 = vmatpush2.msra.mxu0 0.0
  %1887 = vmatprep.subr.mxu0 0.0
  %1888 = vmatpush2.msra.mxu0 0.0
  %1889 = vmatprep.subr.mxu0 0.0
  %1890 = vmatpush2.msra.mxu0 0.0
  %1891 = vmatprep.subr.mxu0 0.0
  %1892 = vmatpush2.msra.mxu0 0.0
  %1893 = vmatprep.subr.mxu0 0.0
  %1894 = vmatpush2.msra.mxu0 0.0
  %1895 = vmatprep.subr.mxu0 0.0
  %1896 = vmatpush2.msra.mxu0 0.0
  %1897 = vmatprep.subr.mxu0 0.0
  %1898 = vmatpush2.msra.mxu0 0.0
  %1899 = vmatprep.subr.mxu0 0.0
  %1900 = vmatpush2.msra.mxu0 0.0
  %1901 = vmatprep.subr.mxu0 0.0
  %1902 = vmatpush2.msra.mxu0 0.0
  %1903 = vmatprep.subr.mxu0 0.0
  %1904 = vmatpush2.msra.mxu0 0.0
  %1905 = vmatprep.subr.mxu0 0.0
  %1906 = vmatpush2.msra.mxu0 0.0
  %1907 = vmatprep.subr.mxu0 0.0
  %1908 = vmatpush2.msra.mxu0 0.0
  %1909 = vmatprep.subr.mxu0 0.0
  %1910 = vmatpush2.msra.mxu0 0.0
  %1911 = vmatprep.subr.mxu0 0.0
  %1912 = vmatpush2.msra.mxu0 0.0
  %1913 = vmatprep.mubr.f32.mxu0 0.0
  %1914 = vmatmul.mubr.f32.gmra.mxu0 %v820
  %v1915 = vpop.f32.mrf.mxu0
  %v1916 = vadd.f32 0.0, %v1915
  %v1917 = vpop.f32.mrf.mxu0
  %1918 = vmatprep.mubr.f32.mxu0 0.0
  %1919 = vmatmul.mubr.f32.gmra.mxu0 %v823
  %v1920 = vpop.f32.mrf.mxu0
  %v1921 = vadd.f32 0.0, %v1920
  %v1922 = vpop.f32.mrf.mxu0
  %1923 = vdwg.mxu0
  %1924 = vmatprep.subr.mxu0 0.0
  %1925 = vmatpush1.msra.mxu0 0.0
  %1926 = vmatprep.subr.mxu0 0.0
  %1927 = vmatpush1.msra.mxu0 0.0
  %1928 = vmatprep.subr.mxu0 0.0
  %1929 = vmatpush1.msra.mxu0 0.0
  %1930 = vmatprep.subr.mxu0 0.0
  %1931 = vmatpush1.msra.mxu0 0.0
  %1932 = vmatprep.subr.mxu0 0.0
  %1933 = vmatpush1.msra.mxu0 0.0
  %1934 = vmatprep.subr.mxu0 0.0
  %1935 = vmatpush1.msra.mxu0 0.0
  %1936 = vmatprep.subr.mxu0 0.0
  %1937 = vmatpush1.msra.mxu0 0.0
  %1938 = vmatprep.subr.mxu0 0.0
  %1939 = vmatpush1.msra.mxu0 0.0
  %1940 = vmatprep.subr.mxu0 0.0
  %1941 = vmatpush1.msra.mxu0 0.0
  %1942 = vmatprep.subr.mxu0 0.0
  %1943 = vmatpush1.msra.mxu0 0.0
  %1944 = vmatprep.subr.mxu0 0.0
  %1945 = vmatpush1.msra.mxu0 0.0
  %1946 = vmatprep.subr.mxu0 0.0
  %1947 = vmatpush1.msra.mxu0 0.0
  %1948 = vmatprep.subr.mxu0 0.0
  %1949 = vmatpush1.msra.mxu0 0.0
  %1950 = vmatprep.subr.mxu0 0.0
  %1951 = vmatpush1.msra.mxu0 0.0
  %1952 = vmatprep.subr.mxu0 0.0
  %1953 = vmatpush1.msra.mxu0 %v1848
  %1954 = vmatprep.subr.mxu0 0.0
  %1955 = vmatpush1.msra.mxu0 %v1847
  %1956 = vmatprep.subr.mxu0 0.0
  %1957 = vmatpush2.msra.mxu0 0.0
  %1958 = vmatprep.subr.mxu0 0.0
  %1959 = vmatpush2.msra.mxu0 0.0
  %1960 = vmatprep.subr.mxu0 0.0
  %1961 = vmatpush2.msra.mxu0 0.0
  %1962 = vmatprep.subr.mxu0 0.0
  %1963 = vmatpush2.msra.mxu0 0.0
  %1964 = vmatprep.subr.mxu0 0.0
  %1965 = vmatpush2.msra.mxu0 0.0
  %1966 = vmatprep.subr.mxu0 0.0
  %1967 = vmatpush2.msra.mxu0 0.0
  %1968 = vmatprep.subr.mxu0 0.0
  %1969 = vmatpush2.msra.mxu0 0.0
  %1970 = vmatprep.subr.mxu0 0.0
  %1971 = vmatpush2.msra.mxu0 0.0
  %1972 = vmatprep.subr.mxu0 0.0
  %1973 = vmatpush2.msra.mxu0 0.0
  %1974 = vmatprep.subr.mxu0 0.0
  %1975 = vmatpush2.msra.mxu0 0.0
  %1976 = vmatprep.subr.mxu0 0.0
  %1977 = vmatpush2.msra.mxu0 0.0
  %1978 = vmatprep.subr.mxu0 0.0
  %1979 = vmatpush2.msra.mxu0 0.0
  %1980 = vmatprep.subr.mxu0 0.0
  %1981 = vmatpush2.msra.mxu0 0.0
  %1982 = vmatprep.subr.mxu0 0.0
  %1983 = vmatpush2.msra.mxu0 0.0
  %1984 = vmatprep.subr.mxu0 0.0
  %1985 = vmatpush2.msra.mxu0 0.0
  %1986 = vmatprep.subr.mxu0 0.0
  %1987 = vmatpush2.msra.mxu0 0.0
  %1988 = vmatprep.mubr.f32.mxu0 0.0
  %1989 = vmatmul.mubr.f32.gmra.mxu0 %v903
  %v1990 = vpop.f32.mrf.mxu0
  %v1991 = vadd.f32 0.0, %v1990
  %v1992 = vpop.f32.mrf.mxu0
  %1993 = vmatprep.mubr.f32.mxu0 0.0
  %1994 = vmatmul.mubr.f32.gmra.mxu0 %v906
  %v1995 = vpop.f32.mrf.mxu0
  %v1996 = vadd.f32 0.0, %v1995
  %v1997 = vpop.f32.mrf.mxu0
  %1998 = vdwg.mxu0
  %v1999 = vld [vmem:[%s37] sm:$0xff]
  %v2000 = vld [vmem:[%s37 + $0x8] sm:$0xff]
  %v2001 = vld [vmem:[%s39] sm:$0xff]
  %v2002 = vld [vmem:[%s39 + $0x8] sm:$0xff]
  %v2004 = vsel %vm176, %v1991, 0
  %v2007 = vsel %vm176, %v1996, 0
  %2009 = vmatprep.subr.mxu0 0.0
  %2010 = vmatpush1.msra.mxu0 0.0
  %2011 = vmatprep.subr.mxu0 0.0
  %2012 = vmatpush1.msra.mxu0 0.0
  %2013 = vmatprep.subr.mxu0 0.0
  %2014 = vmatpush1.msra.mxu0 0.0
  %2015 = vmatprep.subr.mxu0 0.0
  %2016 = vmatpush1.msra.mxu0 0.0
  %2017 = vmatprep.subr.mxu0 0.0
  %2018 = vmatpush1.msra.mxu0 0.0
  %2019 = vmatprep.subr.mxu0 0.0
  %2020 = vmatpush1.msra.mxu0 0.0
  %2021 = vmatprep.subr.mxu0 0.0
  %2022 = vmatpush1.msra.mxu0 0.0
  %2023 = vmatprep.subr.mxu0 0.0
  %2024 = vmatpush1.msra.mxu0 0.0
  %2025 = vmatprep.subr.mxu0 0.0
  %2026 = vmatpush1.msra.mxu0 0.0
  %2027 = vmatprep.subr.mxu0 0.0
  %2028 = vmatpush1.msra.mxu0 0.0
  %2029 = vmatprep.subr.mxu0 0.0
  %2030 = vmatpush1.msra.mxu0 0.0
  %2031 = vmatprep.subr.mxu0 0.0
  %2032 = vmatpush1.msra.mxu0 0.0
  %2033 = vmatprep.subr.mxu0 0.0
  %2034 = vmatpush1.msra.mxu0 0.0
  %2035 = vmatprep.subr.mxu0 0.0
  %2036 = vmatpush1.msra.mxu0 0.0
  %2037 = vmatprep.subr.mxu0 0.0
  %2038 = vmatpush1.msra.mxu0 %v2002
  %2039 = vmatprep.subr.mxu0 0.0
  %2040 = vmatpush1.msra.mxu0 %v2001
  %2041 = vmatprep.subr.mxu0 0.0
  %2042 = vmatpush2.msra.mxu0 0.0
  %2043 = vmatprep.subr.mxu0 0.0
  %2044 = vmatpush2.msra.mxu0 0.0
  %2045 = vmatprep.subr.mxu0 0.0
  %2046 = vmatpush2.msra.mxu0 0.0
  %2047 = vmatprep.subr.mxu0 0.0
  %2048 = vmatpush2.msra.mxu0 0.0
  %2049 = vmatprep.subr.mxu0 0.0
  %2050 = vmatpush2.msra.mxu0 0.0
  %2051 = vmatprep.subr.mxu0 0.0
  %2052 = vmatpush2.msra.mxu0 0.0
  %2053 = vmatprep.subr.mxu0 0.0
  %2054 = vmatpush2.msra.mxu0 0.0
  %2055 = vmatprep.subr.mxu0 0.0
  %2056 = vmatpush2.msra.mxu0 0.0
  %2057 = vmatprep.subr.mxu0 0.0
  %2058 = vmatpush2.msra.mxu0 0.0
  %2059 = vmatprep.subr.mxu0 0.0
  %2060 = vmatpush2.msra.mxu0 0.0
  %2061 = vmatprep.subr.mxu0 0.0
  %2062 = vmatpush2.msra.mxu0 0.0
  %2063 = vmatprep.subr.mxu0 0.0
  %2064 = vmatpush2.msra.mxu0 0.0
  %2065 = vmatprep.subr.mxu0 0.0
  %2066 = vmatpush2.msra.mxu0 0.0
  %2067 = vmatprep.subr.mxu0 0.0
  %2068 = vmatpush2.msra.mxu0 0.0
  %2069 = vmatprep.subr.mxu0 0.0
  %2070 = vmatpush2.msra.mxu0 0.0
  %2071 = vmatprep.subr.mxu0 0.0
  %2072 = vmatpush2.msra.mxu0 0.0
  %2073 = vmatprep.mubr.f32.mxu0 0.0
  %2074 = vmatmul.mubr.f32.gmra.mxu0 %v2004
  %v2075 = vpop.f32.mrf.mxu0
  %v2076 = vadd.f32 0.0, %v2075
  %v2077 = vpop.f32.mrf.mxu0
  %2078 = vmatprep.mubr.f32.mxu0 0.0
  %2079 = vmatmul.mubr.f32.gmra.mxu0 %v2007
  %v2080 = vpop.f32.mrf.mxu0
  %v2081 = vadd.f32 0.0, %v2080
  %v2082 = vpop.f32.mrf.mxu0
  %2083 = vdwg.mxu0
  %v2085 = vsel %vm176, %v1916, 0
  %v2088 = vsel %vm176, %v1921, 0
  %2090 = vmatprep.subr.mxu0 0.0
  %2091 = vmatpush1.msra.mxu0 0.0
  %2092 = vmatprep.subr.mxu0 0.0
  %2093 = vmatpush1.msra.mxu0 0.0
  %2094 = vmatprep.subr.mxu0 0.0
  %2095 = vmatpush1.msra.mxu0 0.0
  %2096 = vmatprep.subr.mxu0 0.0
  %2097 = vmatpush1.msra.mxu0 0.0
  %2098 = vmatprep.subr.mxu0 0.0
  %2099 = vmatpush1.msra.mxu0 0.0
  %2100 = vmatprep.subr.mxu0 0.0
  %2101 = vmatpush1.msra.mxu0 0.0
  %2102 = vmatprep.subr.mxu0 0.0
  %2103 = vmatpush1.msra.mxu0 0.0
  %2104 = vmatprep.subr.mxu0 0.0
  %2105 = vmatpush1.msra.mxu0 0.0
  %2106 = vmatprep.subr.mxu0 0.0
  %2107 = vmatpush1.msra.mxu0 0.0
  %2108 = vmatprep.subr.mxu0 0.0
  %2109 = vmatpush1.msra.mxu0 0.0
  %2110 = vmatprep.subr.mxu0 0.0
  %2111 = vmatpush1.msra.mxu0 0.0
  %2112 = vmatprep.subr.mxu0 0.0
  %2113 = vmatpush1.msra.mxu0 0.0
  %2114 = vmatprep.subr.mxu0 0.0
  %2115 = vmatpush1.msra.mxu0 0.0
  %2116 = vmatprep.subr.mxu0 0.0
  %2117 = vmatpush1.msra.mxu0 0.0
  %2118 = vmatprep.subr.mxu0 0.0
  %2119 = vmatpush1.msra.mxu0 %v2000
  %2120 = vmatprep.subr.mxu0 0.0
  %2121 = vmatpush1.msra.mxu0 %v1999
  %2122 = vmatprep.subr.mxu0 0.0
  %2123 = vmatpush2.msra.mxu0 0.0
  %2124 = vmatprep.subr.mxu0 0.0
  %2125 = vmatpush2.msra.mxu0 0.0
  %2126 = vmatprep.subr.mxu0 0.0
  %2127 = vmatpush2.msra.mxu0 0.0
  %2128 = vmatprep.subr.mxu0 0.0
  %2129 = vmatpush2.msra.mxu0 0.0
  %2130 = vmatprep.subr.mxu0 0.0
  %2131 = vmatpush2.msra.mxu0 0.0
  %2132 = vmatprep.subr.mxu0 0.0
  %2133 = vmatpush2.msra.mxu0 0.0
  %2134 = vmatprep.subr.mxu0 0.0
  %2135 = vmatpush2.msra.mxu0 0.0
  %2136 = vmatprep.subr.mxu0 0.0
  %2137 = vmatpush2.msra.mxu0 0.0
  %2138 = vmatprep.subr.mxu0 0.0
  %2139 = vmatpush2.msra.mxu0 0.0
  %2140 = vmatprep.subr.mxu0 0.0
  %2141 = vmatpush2.msra.mxu0 0.0
  %2142 = vmatprep.subr.mxu0 0.0
  %2143 = vmatpush2.msra.mxu0 0.0
  %2144 = vmatprep.subr.mxu0 0.0
  %2145 = vmatpush2.msra.mxu0 0.0
  %2146 = vmatprep.subr.mxu0 0.0
  %2147 = vmatpush2.msra.mxu0 0.0
  %2148 = vmatprep.subr.mxu0 0.0
  %2149 = vmatpush2.msra.mxu0 0.0
  %2150 = vmatprep.subr.mxu0 0.0
  %2151 = vmatpush2.msra.mxu0 0.0
  %2152 = vmatprep.subr.mxu0 0.0
  %2153 = vmatpush2.msra.mxu0 0.0
  %2154 = vmatprep.mubr.f32.mxu0 0.0
  %2155 = vmatmul.mubr.f32.gmra.mxu0 %v2085
  %v2156 = vpop.f32.mrf.mxu0
  %v2157 = vadd.f32 %v2076, %v2156
  %v2158 = vpop.f32.mrf.mxu0
  %2159 = vmatprep.mubr.f32.mxu0 0.0
  %2160 = vmatmul.mubr.f32.gmra.mxu0 %v2088
  %v2161 = vpop.f32.mrf.mxu0
  %v2162 = vadd.f32 %v2081, %v2161
  %v2163 = vpop.f32.mrf.mxu0
  %2164 = vdwg.mxu0
  %v2165 = vld [vmem:[%s41] sm:$0x1]
  %v2167 = vlaneseq
  %v2168 = vshrl.u32 %v2167, 7
  %v2169 = vsub.s32 0, %v2168
  %v2170 = vrot.slane %v2165, %v2169
  %v2172 = vadd.f32 %v2157, %v2170
  %v2173 = vadd.f32 %v2162, %v2170
  %v2174 = vmax.f32 %v2172, 0.0
  %v2175 = vmax.f32 %v2173, 0.0
  %v2176 = vld [vmem:[%s43] sm:$0xff]
  %v2177 = vld [vmem:[%s43 + $0x8] sm:$0xff]
  %v2178 = vld [vmem:[%s45] sm:$0x1]
  %v2180 = vlaneseq
  %v2181 = vshrl.u32 %v2180, 7
  %v2182 = vsub.s32 0, %v2181
  %v2183 = vrot.slane %v2178, %v2182
  %2185 = vmatprep.subr.mxu0 0.0
  %2186 = vmatpush1.msra.mxu0 0.0
  %2187 = vmatprep.subr.mxu0 0.0
  %2188 = vmatpush1.msra.mxu0 0.0
  %2189 = vmatprep.subr.mxu0 0.0
  %2190 = vmatpush1.msra.mxu0 0.0
  %2191 = vmatprep.subr.mxu0 0.0
  %2192 = vmatpush1.msra.mxu0 0.0
  %2193 = vmatprep.subr.mxu0 0.0
  %2194 = vmatpush1.msra.mxu0 0.0
  %2195 = vmatprep.subr.mxu0 0.0
  %2196 = vmatpush1.msra.mxu0 0.0
  %2197 = vmatprep.subr.mxu0 0.0
  %2198 = vmatpush1.msra.mxu0 0.0
  %2199 = vmatprep.subr.mxu0 0.0
  %2200 = vmatpush1.msra.mxu0 0.0
  %2201 = vmatprep.subr.mxu0 0.0
  %2202 = vmatpush1.msra.mxu0 0.0
  %2203 = vmatprep.subr.mxu0 0.0
  %2204 = vmatpush1.msra.mxu0 0.0
  %2205 = vmatprep.subr.mxu0 0.0
  %2206 = vmatpush1.msra.mxu0 0.0
  %2207 = vmatprep.subr.mxu0 0.0
  %2208 = vmatpush1.msra.mxu0 0.0
  %2209 = vmatprep.subr.mxu0 0.0
  %2210 = vmatpush1.msra.mxu0 0.0
  %2211 = vmatprep.subr.mxu0 0.0
  %2212 = vmatpush1.msra.mxu0 0.0
  %2213 = vmatprep.subr.mxu0 0.0
  %2214 = vmatpush1.msra.mxu0 %v2177
  %2215 = vmatprep.subr.mxu0 0.0
  %2216 = vmatpush1.msra.mxu0 %v2176
  %2217 = vmatprep.subr.mxu0 0.0
  %2218 = vmatpush2.msra.mxu0 0.0
  %2219 = vmatprep.subr.mxu0 0.0
  %2220 = vmatpush2.msra.mxu0 0.0
  %2221 = vmatprep.subr.mxu0 0.0
  %2222 = vmatpush2.msra.mxu0 0.0
  %2223 = vmatprep.subr.mxu0 0.0
  %2224 = vmatpush2.msra.mxu0 0.0
  %2225 = vmatprep.subr.mxu0 0.0
  %2226 = vmatpush2.msra.mxu0 0.0
  %2227 = vmatprep.subr.mxu0 0.0
  %2228 = vmatpush2.msra.mxu0 0.0
  %2229 = vmatprep.subr.mxu0 0.0
  %2230 = vmatpush2.msra.mxu0 0.0
  %2231 = vmatprep.subr.mxu0 0.0
  %2232 = vmatpush2.msra.mxu0 0.0
  %2233 = vmatprep.subr.mxu0 0.0
  %2234 = vmatpush2.msra.mxu0 0.0
  %2235 = vmatprep.subr.mxu0 0.0
  %2236 = vmatpush2.msra.mxu0 0.0
  %2237 = vmatprep.subr.mxu0 0.0
  %2238 = vmatpush2.msra.mxu0 0.0
  %2239 = vmatprep.subr.mxu0 0.0
  %2240 = vmatpush2.msra.mxu0 0.0
  %2241 = vmatprep.subr.mxu0 0.0
  %2242 = vmatpush2.msra.mxu0 0.0
  %2243 = vmatprep.subr.mxu0 0.0
  %2244 = vmatpush2.msra.mxu0 0.0
  %2245 = vmatprep.subr.mxu0 0.0
  %2246 = vmatpush2.msra.mxu0 0.0
  %2247 = vmatprep.subr.mxu0 0.0
  %2248 = vmatpush2.msra.mxu0 0.0
  %2249 = vmatprep.mubr.f32.mxu0 0.0
  %2250 = vmatmul.mubr.f32.gmra.mxu0 %v1431
  %v2251 = vpop.f32.mrf.mxu0
  %v2252 = vadd.f32 %v2183, %v2251
  %v2253 = vpop.f32.mrf.mxu0
  %2254 = vmatprep.mubr.f32.mxu0 0.0
  %2255 = vmatmul.mubr.f32.gmra.mxu0 %v1434
  %v2256 = vpop.f32.mrf.mxu0
  %v2257 = vadd.f32 %v2183, %v2256
  %v2258 = vpop.f32.mrf.mxu0
  %2259 = vdwg.mxu0
  %v2260 = vadd.f32 %v2174, %v2252
  %v2261 = vadd.f32 %v2175, %v2257
  %v2262 = vmax.f32 %v2260, 0.0
  %v2263 = vmax.f32 %v2261, 0.0
  %2264 = vmatprep.subr.mxu0 0.0
  %2265 = vmatpush1.msra.mxu0 0.0
  %2266 = vmatprep.subr.mxu0 0.0
  %2267 = vmatpush1.msra.mxu0 0.0
  %2268 = vmatprep.subr.mxu0 0.0
  %2269 = vmatpush1.msra.mxu0 0.0
  %2270 = vmatprep.subr.mxu0 0.0
  %2271 = vmatpush1.msra.mxu0 0.0
  %2272 = vmatprep.subr.mxu0 0.0
  %2273 = vmatpush1.msra.mxu0 0.0
  %2274 = vmatprep.subr.mxu0 0.0
  %2275 = vmatpush1.msra.mxu0 0.0
  %2276 = vmatprep.subr.mxu0 0.0
  %2277 = vmatpush1.msra.mxu0 0.0
  %2278 = vmatprep.subr.mxu0 0.0
  %2279 = vmatpush1.msra.mxu0 0.0
  %2280 = vmatprep.subr.mxu0 0.0
  %2281 = vmatpush1.msra.mxu0 0.0
  %2282 = vmatprep.subr.mxu0 0.0
  %2283 = vmatpush1.msra.mxu0 0.0
  %2284 = vmatprep.subr.mxu0 0.0
  %2285 = vmatpush1.msra.mxu0 0.0
  %2286 = vmatprep.subr.mxu0 0.0
  %2287 = vmatpush1.msra.mxu0 0.0
  %2288 = vmatprep.subr.mxu0 0.0
  %2289 = vmatpush1.msra.mxu0 0.0
  %2290 = vmatprep.subr.mxu0 0.0
  %2291 = vmatpush1.msra.mxu0 0.0
  %2292 = vmatprep.subr.mxu0 0.0
  %2293 = vmatpush1.msra.mxu0 %v2263
  %2294 = vmatprep.subr.mxu0 0.0
  %2295 = vmatpush1.msra.mxu0 %v2262
  %2296 = vmatprep.subr.mxu0 0.0
  %2297 = vmatpush2.msra.mxu0 0.0
  %2298 = vmatprep.subr.mxu0 0.0
  %2299 = vmatpush2.msra.mxu0 0.0
  %2300 = vmatprep.subr.mxu0 0.0
  %2301 = vmatpush2.msra.mxu0 0.0
  %2302 = vmatprep.subr.mxu0 0.0
  %2303 = vmatpush2.msra.mxu0 0.0
  %2304 = vmatprep.subr.mxu0 0.0
  %2305 = vmatpush2.msra.mxu0 0.0
  %2306 = vmatprep.subr.mxu0 0.0
  %2307 = vmatpush2.msra.mxu0 0.0
  %2308 = vmatprep.subr.mxu0 0.0
  %2309 = vmatpush2.msra.mxu0 0.0
  %2310 = vmatprep.subr.mxu0 0.0
  %2311 = vmatpush2.msra.mxu0 0.0
  %2312 = vmatprep.subr.mxu0 0.0
  %2313 = vmatpush2.msra.mxu0 0.0
  %2314 = vmatprep.subr.mxu0 0.0
  %2315 = vmatpush2.msra.mxu0 0.0
  %2316 = vmatprep.subr.mxu0 0.0
  %2317 = vmatpush2.msra.mxu0 0.0
  %2318 = vmatprep.subr.mxu0 0.0
  %2319 = vmatpush2.msra.mxu0 0.0
  %2320 = vmatprep.subr.mxu0 0.0
  %2321 = vmatpush2.msra.mxu0 0.0
  %2322 = vmatprep.subr.mxu0 0.0
  %2323 = vmatpush2.msra.mxu0 0.0
  %2324 = vmatprep.subr.mxu0 0.0
  %2325 = vmatpush2.msra.mxu0 0.0
  %2326 = vmatprep.subr.mxu0 0.0
  %2327 = vmatpush2.msra.mxu0 0.0
  %2328 = vmatprep.mubr.f32.mxu0 0.0
  %2329 = vmatmul.mubr.f32.gmra.mxu0 %v178
  %v2330 = vpop.f32.mrf.mxu0
  %v2331 = vadd.f32 0.0, %v2330
  %v2332 = vpop.f32.mrf.mxu0
  %2333 = vmatprep.mubr.f32.mxu0 0.0
  %2334 = vmatmul.mubr.f32.gmra.mxu0 %v181
  %v2335 = vpop.f32.mrf.mxu0
  %v2336 = vadd.f32 0.0, %v2335
  %v2337 = vpop.f32.mrf.mxu0
  %2338 = vdwg.mxu0
  %v2339 = vld [vmem:[%s47] sm:$0xff]
  %v2340 = vld [vmem:[%s47 + $0x8] sm:$0xff]
  %v2341 = vld [vmem:[%s49] sm:$0xff]
  %v2342 = vld [vmem:[%s49 + $0x8] sm:$0xff]
  %v2344 = vsel %vm176, %v2331, 0
  %v2347 = vsel %vm176, %v2336, 0
  %2349 = vmatprep.subr.mxu0 0.0
  %2350 = vmatpush1.msra.mxu0 0.0
  %2351 = vmatprep.subr.mxu0 0.0
  %2352 = vmatpush1.msra.mxu0 0.0
  %2353 = vmatprep.subr.mxu0 0.0
  %2354 = vmatpush1.msra.mxu0 0.0
  %2355 = vmatprep.subr.mxu0 0.0
  %2356 = vmatpush1.msra.mxu0 0.0
  %2357 = vmatprep.subr.mxu0 0.0
  %2358 = vmatpush1.msra.mxu0 0.0
  %2359 = vmatprep.subr.mxu0 0.0
  %2360 = vmatpush1.msra.mxu0 0.0
  %2361 = vmatprep.subr.mxu0 0.0
  %2362 = vmatpush1.msra.mxu0 0.0
  %2363 = vmatprep.subr.mxu0 0.0
  %2364 = vmatpush1.msra.mxu0 0.0
  %2365 = vmatprep.subr.mxu0 0.0
  %2366 = vmatpush1.msra.mxu0 0.0
  %2367 = vmatprep.subr.mxu0 0.0
  %2368 = vmatpush1.msra.mxu0 0.0
  %2369 = vmatprep.subr.mxu0 0.0
  %2370 = vmatpush1.msra.mxu0 0.0
  %2371 = vmatprep.subr.mxu0 0.0
  %2372 = vmatpush1.msra.mxu0 0.0
  %2373 = vmatprep.subr.mxu0 0.0
  %2374 = vmatpush1.msra.mxu0 0.0
  %2375 = vmatprep.subr.mxu0 0.0
  %2376 = vmatpush1.msra.mxu0 0.0
  %2377 = vmatprep.subr.mxu0 0.0
  %2378 = vmatpush1.msra.mxu0 %v2342
  %2379 = vmatprep.subr.mxu0 0.0
  %2380 = vmatpush1.msra.mxu0 %v2341
  %2381 = vmatprep.subr.mxu0 0.0
  %2382 = vmatpush2.msra.mxu0 0.0
  %2383 = vmatprep.subr.mxu0 0.0
  %2384 = vmatpush2.msra.mxu0 0.0
  %2385 = vmatprep.subr.mxu0 0.0
  %2386 = vmatpush2.msra.mxu0 0.0
  %2387 = vmatprep.subr.mxu0 0.0
  %2388 = vmatpush2.msra.mxu0 0.0
  %2389 = vmatprep.subr.mxu0 0.0
  %2390 = vmatpush2.msra.mxu0 0.0
  %2391 = vmatprep.subr.mxu0 0.0
  %2392 = vmatpush2.msra.mxu0 0.0
  %2393 = vmatprep.subr.mxu0 0.0
  %2394 = vmatpush2.msra.mxu0 0.0
  %2395 = vmatprep.subr.mxu0 0.0
  %2396 = vmatpush2.msra.mxu0 0.0
  %2397 = vmatprep.subr.mxu0 0.0
  %2398 = vmatpush2.msra.mxu0 0.0
  %2399 = vmatprep.subr.mxu0 0.0
  %2400 = vmatpush2.msra.mxu0 0.0
  %2401 = vmatprep.subr.mxu0 0.0
  %2402 = vmatpush2.msra.mxu0 0.0
  %2403 = vmatprep.subr.mxu0 0.0
  %2404 = vmatpush2.msra.mxu0 0.0
  %2405 = vmatprep.subr.mxu0 0.0
  %2406 = vmatpush2.msra.mxu0 0.0
  %2407 = vmatprep.subr.mxu0 0.0
  %2408 = vmatpush2.msra.mxu0 0.0
  %2409 = vmatprep.subr.mxu0 0.0
  %2410 = vmatpush2.msra.mxu0 0.0
  %2411 = vmatprep.subr.mxu0 0.0
  %2412 = vmatpush2.msra.mxu0 0.0
  %2413 = vmatprep.mubr.f32.mxu0 0.0
  %2414 = vmatmul.mubr.f32.gmra.mxu0 %v2344
  %v2415 = vpop.f32.mrf.mxu0
  %v2416 = vadd.f32 0.0, %v2415
  %v2417 = vpop.f32.mrf.mxu0
  %2418 = vmatprep.mubr.f32.mxu0 0.0
  %2419 = vmatmul.mubr.f32.gmra.mxu0 %v2347
  %v2420 = vpop.f32.mrf.mxu0
  %v2421 = vadd.f32 0.0, %v2420
  %v2422 = vpop.f32.mrf.mxu0
  %2423 = vdwg.mxu0
  %v2425 = vsel %vm176, %v2262, 0
  %v2428 = vsel %vm176, %v2263, 0
  %2430 = vmatprep.subr.mxu0 0.0
  %2431 = vmatpush1.msra.mxu0 0.0
  %2432 = vmatprep.subr.mxu0 0.0
  %2433 = vmatpush1.msra.mxu0 0.0
  %2434 = vmatprep.subr.mxu0 0.0
  %2435 = vmatpush1.msra.mxu0 0.0
  %2436 = vmatprep.subr.mxu0 0.0
  %2437 = vmatpush1.msra.mxu0 0.0
  %2438 = vmatprep.subr.mxu0 0.0
  %2439 = vmatpush1.msra.mxu0 0.0
  %2440 = vmatprep.subr.mxu0 0.0
  %2441 = vmatpush1.msra.mxu0 0.0
  %2442 = vmatprep.subr.mxu0 0.0
  %2443 = vmatpush1.msra.mxu0 0.0
  %2444 = vmatprep.subr.mxu0 0.0
  %2445 = vmatpush1.msra.mxu0 0.0
  %2446 = vmatprep.subr.mxu0 0.0
  %2447 = vmatpush1.msra.mxu0 0.0
  %2448 = vmatprep.subr.mxu0 0.0
  %2449 = vmatpush1.msra.mxu0 0.0
  %2450 = vmatprep.subr.mxu0 0.0
  %2451 = vmatpush1.msra.mxu0 0.0
  %2452 = vmatprep.subr.mxu0 0.0
  %2453 = vmatpush1.msra.mxu0 0.0
  %2454 = vmatprep.subr.mxu0 0.0
  %2455 = vmatpush1.msra.mxu0 0.0
  %2456 = vmatprep.subr.mxu0 0.0
  %2457 = vmatpush1.msra.mxu0 0.0
  %2458 = vmatprep.subr.mxu0 0.0
  %2459 = vmatpush1.msra.mxu0 %v2340
  %2460 = vmatprep.subr.mxu0 0.0
  %2461 = vmatpush1.msra.mxu0 %v2339
  %2462 = vmatprep.subr.mxu0 0.0
  %2463 = vmatpush2.msra.mxu0 0.0
  %2464 = vmatprep.subr.mxu0 0.0
  %2465 = vmatpush2.msra.mxu0 0.0
  %2466 = vmatprep.subr.mxu0 0.0
  %2467 = vmatpush2.msra.mxu0 0.0
  %2468 = vmatprep.subr.mxu0 0.0
  %2469 = vmatpush2.msra.mxu0 0.0
  %2470 = vmatprep.subr.mxu0 0.0
  %2471 = vmatpush2.msra.mxu0 0.0
  %2472 = vmatprep.subr.mxu0 0.0
  %2473 = vmatpush2.msra.mxu0 0.0
  %2474 = vmatprep.subr.mxu0 0.0
  %2475 = vmatpush2.msra.mxu0 0.0
  %2476 = vmatprep.subr.mxu0 0.0
  %2477 = vmatpush2.msra.mxu0 0.0
  %2478 = vmatprep.subr.mxu0 0.0
  %2479 = vmatpush2.msra.mxu0 0.0
  %2480 = vmatprep.subr.mxu0 0.0
  %2481 = vmatpush2.msra.mxu0 0.0
  %2482 = vmatprep.subr.mxu0 0.0
  %2483 = vmatpush2.msra.mxu0 0.0
  %2484 = vmatprep.subr.mxu0 0.0
  %2485 = vmatpush2.msra.mxu0 0.0
  %2486 = vmatprep.subr.mxu0 0.0
  %2487 = vmatpush2.msra.mxu0 0.0
  %2488 = vmatprep.subr.mxu0 0.0
  %2489 = vmatpush2.msra.mxu0 0.0
  %2490 = vmatprep.subr.mxu0 0.0
  %2491 = vmatpush2.msra.mxu0 0.0
  %2492 = vmatprep.subr.mxu0 0.0
  %2493 = vmatpush2.msra.mxu0 0.0
  %2494 = vmatprep.mubr.f32.mxu0 0.0
  %2495 = vmatmul.mubr.f32.gmra.mxu0 %v2425
  %v2496 = vpop.f32.mrf.mxu0
  %v2497 = vadd.f32 %v2416, %v2496
  %v2498 = vpop.f32.mrf.mxu0
  %2499 = vmatprep.mubr.f32.mxu0 0.0
  %2500 = vmatmul.mubr.f32.gmra.mxu0 %v2428
  %v2501 = vpop.f32.mrf.mxu0
  %v2502 = vadd.f32 %v2421, %v2501
  %v2503 = vpop.f32.mrf.mxu0
  %2504 = vdwg.mxu0
  %v2505 = vld [vmem:[%s51] sm:$0x1]
  %v2507 = vlaneseq
  %v2508 = vshrl.u32 %v2507, 7
  %v2509 = vsub.s32 0, %v2508
  %v2510 = vrot.slane %v2505, %v2509
  %v2512 = vadd.f32 %v2497, %v2510
  %v2513 = vadd.f32 %v2502, %v2510
  %v2514 = vmax.f32 %v2512, 0.0
  %v2515 = vmax.f32 %v2513, 0.0
  %2516 = vmatprep.subr.mxu0 0.0
  %2517 = vmatpush1.msra.mxu0 0.0
  %2518 = vmatprep.subr.mxu0 0.0
  %2519 = vmatpush1.msra.mxu0 0.0
  %2520 = vmatprep.subr.mxu0 0.0
  %2521 = vmatpush1.msra.mxu0 0.0
  %2522 = vmatprep.subr.mxu0 0.0
  %2523 = vmatpush1.msra.mxu0 0.0
  %2524 = vmatprep.subr.mxu0 0.0
  %2525 = vmatpush1.msra.mxu0 0.0
  %2526 = vmatprep.subr.mxu0 0.0
  %2527 = vmatpush1.msra.mxu0 0.0
  %2528 = vmatprep.subr.mxu0 0.0
  %2529 = vmatpush1.msra.mxu0 0.0
  %2530 = vmatprep.subr.mxu0 0.0
  %2531 = vmatpush1.msra.mxu0 0.0
  %2532 = vmatprep.subr.mxu0 0.0
  %2533 = vmatpush1.msra.mxu0 0.0
  %2534 = vmatprep.subr.mxu0 0.0
  %2535 = vmatpush1.msra.mxu0 0.0
  %2536 = vmatprep.subr.mxu0 0.0
  %2537 = vmatpush1.msra.mxu0 0.0
  %2538 = vmatprep.subr.mxu0 0.0
  %2539 = vmatpush1.msra.mxu0 0.0
  %2540 = vmatprep.subr.mxu0 0.0
  %2541 = vmatpush1.msra.mxu0 0.0
  %2542 = vmatprep.subr.mxu0 0.0
  %2543 = vmatpush1.msra.mxu0 0.0
  %2544 = vmatprep.subr.mxu0 0.0
  %2545 = vmatpush1.msra.mxu0 %v2515
  %2546 = vmatprep.subr.mxu0 0.0
  %2547 = vmatpush1.msra.mxu0 %v2514
  %2548 = vmatprep.subr.mxu0 0.0
  %2549 = vmatpush2.msra.mxu0 0.0
  %2550 = vmatprep.subr.mxu0 0.0
  %2551 = vmatpush2.msra.mxu0 0.0
  %2552 = vmatprep.subr.mxu0 0.0
  %2553 = vmatpush2.msra.mxu0 0.0
  %2554 = vmatprep.subr.mxu0 0.0
  %2555 = vmatpush2.msra.mxu0 0.0
  %2556 = vmatprep.subr.mxu0 0.0
  %2557 = vmatpush2.msra.mxu0 0.0
  %2558 = vmatprep.subr.mxu0 0.0
  %2559 = vmatpush2.msra.mxu0 0.0
  %2560 = vmatprep.subr.mxu0 0.0
  %2561 = vmatpush2.msra.mxu0 0.0
  %2562 = vmatprep.subr.mxu0 0.0
  %2563 = vmatpush2.msra.mxu0 0.0
  %2564 = vmatprep.subr.mxu0 0.0
  %2565 = vmatpush2.msra.mxu0 0.0
  %2566 = vmatprep.subr.mxu0 0.0
  %2567 = vmatpush2.msra.mxu0 0.0
  %2568 = vmatprep.subr.mxu0 0.0
  %2569 = vmatpush2.msra.mxu0 0.0
  %2570 = vmatprep.subr.mxu0 0.0
  %2571 = vmatpush2.msra.mxu0 0.0
  %2572 = vmatprep.subr.mxu0 0.0
  %2573 = vmatpush2.msra.mxu0 0.0
  %2574 = vmatprep.subr.mxu0 0.0
  %2575 = vmatpush2.msra.mxu0 0.0
  %2576 = vmatprep.subr.mxu0 0.0
  %2577 = vmatpush2.msra.mxu0 0.0
  %2578 = vmatprep.subr.mxu0 0.0
  %2579 = vmatpush2.msra.mxu0 0.0
  %2580 = vmatprep.mubr.f32.mxu0 0.0
  %2581 = vmatmul.mubr.f32.gmra.mxu0 %v485
  %v2582 = vpop.f32.mrf.mxu0
  %v2583 = vadd.f32 0.0, %v2582
  %v2584 = vpop.f32.mrf.mxu0
  %2585 = vmatprep.mubr.f32.mxu0 0.0
  %2586 = vmatmul.mubr.f32.gmra.mxu0 %v488
  %v2587 = vpop.f32.mrf.mxu0
  %v2588 = vadd.f32 0.0, %v2587
  %v2589 = vpop.f32.mrf.mxu0
  %2590 = vdwg.mxu0
  %2591 = vmatprep.subr.mxu0 0.0
  %2592 = vmatpush1.msra.mxu0 0.0
  %2593 = vmatprep.subr.mxu0 0.0
  %2594 = vmatpush1.msra.mxu0 0.0
  %2595 = vmatprep.subr.mxu0 0.0
  %2596 = vmatpush1.msra.mxu0 0.0
  %2597 = vmatprep.subr.mxu0 0.0
  %2598 = vmatpush1.msra.mxu0 0.0
  %2599 = vmatprep.subr.mxu0 0.0
  %2600 = vmatpush1.msra.mxu0 0.0
  %2601 = vmatprep.subr.mxu0 0.0
  %2602 = vmatpush1.msra.mxu0 0.0
  %2603 = vmatprep.subr.mxu0 0.0
  %2604 = vmatpush1.msra.mxu0 0.0
  %2605 = vmatprep.subr.mxu0 0.0
  %2606 = vmatpush1.msra.mxu0 0.0
  %2607 = vmatprep.subr.mxu0 0.0
  %2608 = vmatpush1.msra.mxu0 0.0
  %2609 = vmatprep.subr.mxu0 0.0
  %2610 = vmatpush1.msra.mxu0 0.0
  %2611 = vmatprep.subr.mxu0 0.0
  %2612 = vmatpush1.msra.mxu0 0.0
  %2613 = vmatprep.subr.mxu0 0.0
  %2614 = vmatpush1.msra.mxu0 0.0
  %2615 = vmatprep.subr.mxu0 0.0
  %2616 = vmatpush1.msra.mxu0 0.0
  %2617 = vmatprep.subr.mxu0 0.0
  %2618 = vmatpush1.msra.mxu0 0.0
  %2619 = vmatprep.subr.mxu0 0.0
  %2620 = vmatpush1.msra.mxu0 %v2515
  %2621 = vmatprep.subr.mxu0 0.0
  %2622 = vmatpush1.msra.mxu0 %v2514
  %2623 = vmatprep.subr.mxu0 0.0
  %2624 = vmatpush2.msra.mxu0 0.0
  %2625 = vmatprep.subr.mxu0 0.0
  %2626 = vmatpush2.msra.mxu0 0.0
  %2627 = vmatprep.subr.mxu0 0.0
  %2628 = vmatpush2.msra.mxu0 0.0
  %2629 = vmatprep.subr.mxu0 0.0
  %2630 = vmatpush2.msra.mxu0 0.0
  %2631 = vmatprep.subr.mxu0 0.0
  %2632 = vmatpush2.msra.mxu0 0.0
  %2633 = vmatprep.subr.mxu0 0.0
  %2634 = vmatpush2.msra.mxu0 0.0
  %2635 = vmatprep.subr.mxu0 0.0
  %2636 = vmatpush2.msra.mxu0 0.0
  %2637 = vmatprep.subr.mxu0 0.0
  %2638 = vmatpush2.msra.mxu0 0.0
  %2639 = vmatprep.subr.mxu0 0.0
  %2640 = vmatpush2.msra.mxu0 0.0
  %2641 = vmatprep.subr.mxu0 0.0
  %2642 = vmatpush2.msra.mxu0 0.0
  %2643 = vmatprep.subr.mxu0 0.0
  %2644 = vmatpush2.msra.mxu0 0.0
  %2645 = vmatprep.subr.mxu0 0.0
  %2646 = vmatpush2.msra.mxu0 0.0
  %2647 = vmatprep.subr.mxu0 0.0
  %2648 = vmatpush2.msra.mxu0 0.0
  %2649 = vmatprep.subr.mxu0 0.0
  %2650 = vmatpush2.msra.mxu0 0.0
  %2651 = vmatprep.subr.mxu0 0.0
  %2652 = vmatpush2.msra.mxu0 0.0
  %2653 = vmatprep.subr.mxu0 0.0
  %2654 = vmatpush2.msra.mxu0 0.0
  %2655 = vmatprep.mubr.f32.mxu0 0.0
  %2656 = vmatmul.mubr.f32.gmra.mxu0 %v178
  %v2657 = vpop.f32.mrf.mxu0
  %v2658 = vadd.f32 0.0, %v2657
  %v2659 = vpop.f32.mrf.mxu0
  %2660 = vmatprep.mubr.f32.mxu0 0.0
  %2661 = vmatmul.mubr.f32.gmra.mxu0 %v181
  %v2662 = vpop.f32.mrf.mxu0
  %v2663 = vadd.f32 0.0, %v2662
  %v2664 = vpop.f32.mrf.mxu0
  %2665 = vdwg.mxu0
  %v2666 = vld [vmem:[%s53] sm:$0xff]
  %v2667 = vld [vmem:[%s53 + $0x8] sm:$0xff]
  %v2668 = vld [vmem:[%s55] sm:$0xff]
  %v2669 = vld [vmem:[%s55 + $0x8] sm:$0xff]
  %v2671 = vsel %vm176, %v2658, 0
  %v2674 = vsel %vm176, %v2663, 0
  %2676 = vmatprep.subr.mxu0 0.0
  %2677 = vmatpush1.msra.mxu0 0.0
  %2678 = vmatprep.subr.mxu0 0.0
  %2679 = vmatpush1.msra.mxu0 0.0
  %2680 = vmatprep.subr.mxu0 0.0
  %2681 = vmatpush1.msra.mxu0 0.0
  %2682 = vmatprep.subr.mxu0 0.0
  %2683 = vmatpush1.msra.mxu0 0.0
  %2684 = vmatprep.subr.mxu0 0.0
  %2685 = vmatpush1.msra.mxu0 0.0
  %2686 = vmatprep.subr.mxu0 0.0
  %2687 = vmatpush1.msra.mxu0 0.0
  %2688 = vmatprep.subr.mxu0 0.0
  %2689 = vmatpush1.msra.mxu0 0.0
  %2690 = vmatprep.subr.mxu0 0.0
  %2691 = vmatpush1.msra.mxu0 0.0
  %2692 = vmatprep.subr.mxu0 0.0
  %2693 = vmatpush1.msra.mxu0 0.0
  %2694 = vmatprep.subr.mxu0 0.0
  %2695 = vmatpush1.msra.mxu0 0.0
  %2696 = vmatprep.subr.mxu0 0.0
  %2697 = vmatpush1.msra.mxu0 0.0
  %2698 = vmatprep.subr.mxu0 0.0
  %2699 = vmatpush1.msra.mxu0 0.0
  %2700 = vmatprep.subr.mxu0 0.0
  %2701 = vmatpush1.msra.mxu0 0.0
  %2702 = vmatprep.subr.mxu0 0.0
  %2703 = vmatpush1.msra.mxu0 0.0
  %2704 = vmatprep.subr.mxu0 0.0
  %2705 = vmatpush1.msra.mxu0 %v2669
  %2706 = vmatprep.subr.mxu0 0.0
  %2707 = vmatpush1.msra.mxu0 %v2668
  %2708 = vmatprep.subr.mxu0 0.0
  %2709 = vmatpush2.msra.mxu0 0.0
  %2710 = vmatprep.subr.mxu0 0.0
  %2711 = vmatpush2.msra.mxu0 0.0
  %2712 = vmatprep.subr.mxu0 0.0
  %2713 = vmatpush2.msra.mxu0 0.0
  %2714 = vmatprep.subr.mxu0 0.0
  %2715 = vmatpush2.msra.mxu0 0.0
  %2716 = vmatprep.subr.mxu0 0.0
  %2717 = vmatpush2.msra.mxu0 0.0
  %2718 = vmatprep.subr.mxu0 0.0
  %2719 = vmatpush2.msra.mxu0 0.0
  %2720 = vmatprep.subr.mxu0 0.0
  %2721 = vmatpush2.msra.mxu0 0.0
  %2722 = vmatprep.subr.mxu0 0.0
  %2723 = vmatpush2.msra.mxu0 0.0
  %2724 = vmatprep.subr.mxu0 0.0
  %2725 = vmatpush2.msra.mxu0 0.0
  %2726 = vmatprep.subr.mxu0 0.0
  %2727 = vmatpush2.msra.mxu0 0.0
  %2728 = vmatprep.subr.mxu0 0.0
  %2729 = vmatpush2.msra.mxu0 0.0
  %2730 = vmatprep.subr.mxu0 0.0
  %2731 = vmatpush2.msra.mxu0 0.0
  %2732 = vmatprep.subr.mxu0 0.0
  %2733 = vmatpush2.msra.mxu0 0.0
  %2734 = vmatprep.subr.mxu0 0.0
  %2735 = vmatpush2.msra.mxu0 0.0
  %2736 = vmatprep.subr.mxu0 0.0
  %2737 = vmatpush2.msra.mxu0 0.0
  %2738 = vmatprep.subr.mxu0 0.0
  %2739 = vmatpush2.msra.mxu0 0.0
  %2740 = vmatprep.mubr.f32.mxu0 0.0
  %2741 = vmatmul.mubr.f32.gmra.mxu0 %v2671
  %v2742 = vpop.f32.mrf.mxu0
  %v2743 = vadd.f32 0.0, %v2742
  %v2744 = vpop.f32.mrf.mxu0
  %2745 = vmatprep.mubr.f32.mxu0 0.0
  %2746 = vmatmul.mubr.f32.gmra.mxu0 %v2674
  %v2747 = vpop.f32.mrf.mxu0
  %v2748 = vadd.f32 0.0, %v2747
  %v2749 = vpop.f32.mrf.mxu0
  %2750 = vdwg.mxu0
  %v2752 = vsel %vm176, %v2583, 0
  %v2755 = vsel %vm176, %v2588, 0
  %2757 = vmatprep.subr.mxu0 0.0
  %2758 = vmatpush1.msra.mxu0 0.0
  %2759 = vmatprep.subr.mxu0 0.0
  %2760 = vmatpush1.msra.mxu0 0.0
  %2761 = vmatprep.subr.mxu0 0.0
  %2762 = vmatpush1.msra.mxu0 0.0
  %2763 = vmatprep.subr.mxu0 0.0
  %2764 = vmatpush1.msra.mxu0 0.0
  %2765 = vmatprep.subr.mxu0 0.0
  %2766 = vmatpush1.msra.mxu0 0.0
  %2767 = vmatprep.subr.mxu0 0.0
  %2768 = vmatpush1.msra.mxu0 0.0
  %2769 = vmatprep.subr.mxu0 0.0
  %2770 = vmatpush1.msra.mxu0 0.0
  %2771 = vmatprep.subr.mxu0 0.0
  %2772 = vmatpush1.msra.mxu0 0.0
  %2773 = vmatprep.subr.mxu0 0.0
  %2774 = vmatpush1.msra.mxu0 0.0
  %2775 = vmatprep.subr.mxu0 0.0
  %2776 = vmatpush1.msra.mxu0 0.0
  %2777 = vmatprep.subr.mxu0 0.0
  %2778 = vmatpush1.msra.mxu0 0.0
  %2779 = vmatprep.subr.mxu0 0.0
  %2780 = vmatpush1.msra.mxu0 0.0
  %2781 = vmatprep.subr.mxu0 0.0
  %2782 = vmatpush1.msra.mxu0 0.0
  %2783 = vmatprep.subr.mxu0 0.0
  %2784 = vmatpush1.msra.mxu0 0.0
  %2785 = vmatprep.subr.mxu0 0.0
  %2786 = vmatpush1.msra.mxu0 %v2667
  %2787 = vmatprep.subr.mxu0 0.0
  %2788 = vmatpush1.msra.mxu0 %v2666
  %2789 = vmatprep.subr.mxu0 0.0
  %2790 = vmatpush2.msra.mxu0 0.0
  %2791 = vmatprep.subr.mxu0 0.0
  %2792 = vmatpush2.msra.mxu0 0.0
  %2793 = vmatprep.subr.mxu0 0.0
  %2794 = vmatpush2.msra.mxu0 0.0
  %2795 = vmatprep.subr.mxu0 0.0
  %2796 = vmatpush2.msra.mxu0 0.0
  %2797 = vmatprep.subr.mxu0 0.0
  %2798 = vmatpush2.msra.mxu0 0.0
  %2799 = vmatprep.subr.mxu0 0.0
  %2800 = vmatpush2.msra.mxu0 0.0
  %2801 = vmatprep.subr.mxu0 0.0
  %2802 = vmatpush2.msra.mxu0 0.0
  %2803 = vmatprep.subr.mxu0 0.0
  %2804 = vmatpush2.msra.mxu0 0.0
  %2805 = vmatprep.subr.mxu0 0.0
  %2806 = vmatpush2.msra.mxu0 0.0
  %2807 = vmatprep.subr.mxu0 0.0
  %2808 = vmatpush2.msra.mxu0 0.0
  %2809 = vmatprep.subr.mxu0 0.0
  %2810 = vmatpush2.msra.mxu0 0.0
  %2811 = vmatprep.subr.mxu0 0.0
  %2812 = vmatpush2.msra.mxu0 0.0
  %2813 = vmatprep.subr.mxu0 0.0
  %2814 = vmatpush2.msra.mxu0 0.0
  %2815 = vmatprep.subr.mxu0 0.0
  %2816 = vmatpush2.msra.mxu0 0.0
  %2817 = vmatprep.subr.mxu0 0.0
  %2818 = vmatpush2.msra.mxu0 0.0
  %2819 = vmatprep.subr.mxu0 0.0
  %2820 = vmatpush2.msra.mxu0 0.0
  %2821 = vmatprep.mubr.f32.mxu0 0.0
  %2822 = vmatmul.mubr.f32.gmra.mxu0 %v2752
  %v2823 = vpop.f32.mrf.mxu0
  %v2824 = vadd.f32 %v2743, %v2823
  %v2825 = vpop.f32.mrf.mxu0
  %2826 = vmatprep.mubr.f32.mxu0 0.0
  %2827 = vmatmul.mubr.f32.gmra.mxu0 %v2755
  %v2828 = vpop.f32.mrf.mxu0
  %v2829 = vadd.f32 %v2748, %v2828
  %v2830 = vpop.f32.mrf.mxu0
  %2831 = vdwg.mxu0
  %v2832 = vld [vmem:[%s57] sm:$0x1]
  %v2834 = vlaneseq
  %v2835 = vshrl.u32 %v2834, 7
  %v2836 = vsub.s32 0, %v2835
  %v2837 = vrot.slane %v2832, %v2836
  %v2839 = vadd.f32 %v2824, %v2837
  %v2840 = vadd.f32 %v2829, %v2837
  %v2841 = vmax.f32 %v2839, 0.0
  %v2842 = vmax.f32 %v2840, 0.0
  %2843 = vmatprep.subr.mxu0 0.0
  %2844 = vmatpush1.msra.mxu0 0.0
  %2845 = vmatprep.subr.mxu0 0.0
  %2846 = vmatpush1.msra.mxu0 0.0
  %2847 = vmatprep.subr.mxu0 0.0
  %2848 = vmatpush1.msra.mxu0 0.0
  %2849 = vmatprep.subr.mxu0 0.0
  %2850 = vmatpush1.msra.mxu0 0.0
  %2851 = vmatprep.subr.mxu0 0.0
  %2852 = vmatpush1.msra.mxu0 0.0
  %2853 = vmatprep.subr.mxu0 0.0
  %2854 = vmatpush1.msra.mxu0 0.0
  %2855 = vmatprep.subr.mxu0 0.0
  %2856 = vmatpush1.msra.mxu0 0.0
  %2857 = vmatprep.subr.mxu0 0.0
  %2858 = vmatpush1.msra.mxu0 0.0
  %2859 = vmatprep.subr.mxu0 0.0
  %2860 = vmatpush1.msra.mxu0 0.0
  %2861 = vmatprep.subr.mxu0 0.0
  %2862 = vmatpush1.msra.mxu0 0.0
  %2863 = vmatprep.subr.mxu0 0.0
  %2864 = vmatpush1.msra.mxu0 0.0
  %2865 = vmatprep.subr.mxu0 0.0
  %2866 = vmatpush1.msra.mxu0 0.0
  %2867 = vmatprep.subr.mxu0 0.0
  %2868 = vmatpush1.msra.mxu0 0.0
  %2869 = vmatprep.subr.mxu0 0.0
  %2870 = vmatpush1.msra.mxu0 0.0
  %2871 = vmatprep.subr.mxu0 0.0
  %2872 = vmatpush1.msra.mxu0 %v2842
  %2873 = vmatprep.subr.mxu0 0.0
  %2874 = vmatpush1.msra.mxu0 %v2841
  %2875 = vmatprep.subr.mxu0 0.0
  %2876 = vmatpush2.msra.mxu0 0.0
  %2877 = vmatprep.subr.mxu0 0.0
  %2878 = vmatpush2.msra.mxu0 0.0
  %2879 = vmatprep.subr.mxu0 0.0
  %2880 = vmatpush2.msra.mxu0 0.0
  %2881 = vmatprep.subr.mxu0 0.0
  %2882 = vmatpush2.msra.mxu0 0.0
  %2883 = vmatprep.subr.mxu0 0.0
  %2884 = vmatpush2.msra.mxu0 0.0
  %2885 = vmatprep.subr.mxu0 0.0
  %2886 = vmatpush2.msra.mxu0 0.0
  %2887 = vmatprep.subr.mxu0 0.0
  %2888 = vmatpush2.msra.mxu0 0.0
  %2889 = vmatprep.subr.mxu0 0.0
  %2890 = vmatpush2.msra.mxu0 0.0
  %2891 = vmatprep.subr.mxu0 0.0
  %2892 = vmatpush2.msra.mxu0 0.0
  %2893 = vmatprep.subr.mxu0 0.0
  %2894 = vmatpush2.msra.mxu0 0.0
  %2895 = vmatprep.subr.mxu0 0.0
  %2896 = vmatpush2.msra.mxu0 0.0
  %2897 = vmatprep.subr.mxu0 0.0
  %2898 = vmatpush2.msra.mxu0 0.0
  %2899 = vmatprep.subr.mxu0 0.0
  %2900 = vmatpush2.msra.mxu0 0.0
  %2901 = vmatprep.subr.mxu0 0.0
  %2902 = vmatpush2.msra.mxu0 0.0
  %2903 = vmatprep.subr.mxu0 0.0
  %2904 = vmatpush2.msra.mxu0 0.0
  %2905 = vmatprep.subr.mxu0 0.0
  %2906 = vmatpush2.msra.mxu0 0.0
  %2907 = vmatprep.mubr.f32.mxu0 0.0
  %2908 = vmatmul.mubr.f32.gmra.mxu0 %v820
  %v2909 = vpop.f32.mrf.mxu0
  %v2910 = vadd.f32 0.0, %v2909
  %v2911 = vpop.f32.mrf.mxu0
  %2912 = vmatprep.mubr.f32.mxu0 0.0
  %2913 = vmatmul.mubr.f32.gmra.mxu0 %v823
  %v2914 = vpop.f32.mrf.mxu0
  %v2915 = vadd.f32 0.0, %v2914
  %v2916 = vpop.f32.mrf.mxu0
  %2917 = vdwg.mxu0
  %2918 = vmatprep.subr.mxu0 0.0
  %2919 = vmatpush1.msra.mxu0 0.0
  %2920 = vmatprep.subr.mxu0 0.0
  %2921 = vmatpush1.msra.mxu0 0.0
  %2922 = vmatprep.subr.mxu0 0.0
  %2923 = vmatpush1.msra.mxu0 0.0
  %2924 = vmatprep.subr.mxu0 0.0
  %2925 = vmatpush1.msra.mxu0 0.0
  %2926 = vmatprep.subr.mxu0 0.0
  %2927 = vmatpush1.msra.mxu0 0.0
  %2928 = vmatprep.subr.mxu0 0.0
  %2929 = vmatpush1.msra.mxu0 0.0
  %2930 = vmatprep.subr.mxu0 0.0
  %2931 = vmatpush1.msra.mxu0 0.0
  %2932 = vmatprep.subr.mxu0 0.0
  %2933 = vmatpush1.msra.mxu0 0.0
  %2934 = vmatprep.subr.mxu0 0.0
  %2935 = vmatpush1.msra.mxu0 0.0
  %2936 = vmatprep.subr.mxu0 0.0
  %2937 = vmatpush1.msra.mxu0 0.0
  %2938 = vmatprep.subr.mxu0 0.0
  %2939 = vmatpush1.msra.mxu0 0.0
  %2940 = vmatprep.subr.mxu0 0.0
  %2941 = vmatpush1.msra.mxu0 0.0
  %2942 = vmatprep.subr.mxu0 0.0
  %2943 = vmatpush1.msra.mxu0 0.0
  %2944 = vmatprep.subr.mxu0 0.0
  %2945 = vmatpush1.msra.mxu0 0.0
  %2946 = vmatprep.subr.mxu0 0.0
  %2947 = vmatpush1.msra.mxu0 %v2842
  %2948 = vmatprep.subr.mxu0 0.0
  %2949 = vmatpush1.msra.mxu0 %v2841
  %2950 = vmatprep.subr.mxu0 0.0
  %2951 = vmatpush2.msra.mxu0 0.0
  %2952 = vmatprep.subr.mxu0 0.0
  %2953 = vmatpush2.msra.mxu0 0.0
  %2954 = vmatprep.subr.mxu0 0.0
  %2955 = vmatpush2.msra.mxu0 0.0
  %2956 = vmatprep.subr.mxu0 0.0
  %2957 = vmatpush2.msra.mxu0 0.0
  %2958 = vmatprep.subr.mxu0 0.0
  %2959 = vmatpush2.msra.mxu0 0.0
  %2960 = vmatprep.subr.mxu0 0.0
  %2961 = vmatpush2.msra.mxu0 0.0
  %2962 = vmatprep.subr.mxu0 0.0
  %2963 = vmatpush2.msra.mxu0 0.0
  %2964 = vmatprep.subr.mxu0 0.0
  %2965 = vmatpush2.msra.mxu0 0.0
  %2966 = vmatprep.subr.mxu0 0.0
  %2967 = vmatpush2.msra.mxu0 0.0
  %2968 = vmatprep.subr.mxu0 0.0
  %2969 = vmatpush2.msra.mxu0 0.0
  %2970 = vmatprep.subr.mxu0 0.0
  %2971 = vmatpush2.msra.mxu0 0.0
  %2972 = vmatprep.subr.mxu0 0.0
  %2973 = vmatpush2.msra.mxu0 0.0
  %2974 = vmatprep.subr.mxu0 0.0
  %2975 = vmatpush2.msra.mxu0 0.0
  %2976 = vmatprep.subr.mxu0 0.0
  %2977 = vmatpush2.msra.mxu0 0.0
  %2978 = vmatprep.subr.mxu0 0.0
  %2979 = vmatpush2.msra.mxu0 0.0
  %2980 = vmatprep.subr.mxu0 0.0
  %2981 = vmatpush2.msra.mxu0 0.0
  %2982 = vmatprep.mubr.f32.mxu0 0.0
  %2983 = vmatmul.mubr.f32.gmra.mxu0 %v903
  %v2984 = vpop.f32.mrf.mxu0
  %v2985 = vadd.f32 0.0, %v2984
  %v2986 = vpop.f32.mrf.mxu0
  %2987 = vmatprep.mubr.f32.mxu0 0.0
  %2988 = vmatmul.mubr.f32.gmra.mxu0 %v906
  %v2989 = vpop.f32.mrf.mxu0
  %v2990 = vadd.f32 0.0, %v2989
  %v2991 = vpop.f32.mrf.mxu0
  %2992 = vdwg.mxu0
  %v2993 = vld [vmem:[%s59] sm:$0xff]
  %v2994 = vld [vmem:[%s59 + $0x8] sm:$0xff]
  %v2995 = vld [vmem:[%s61] sm:$0xff]
  %v2996 = vld [vmem:[%s61 + $0x8] sm:$0xff]
  %v2998 = vsel %vm176, %v2985, 0
  %v3001 = vsel %vm176, %v2990, 0
  %3003 = vmatprep.subr.mxu0 0.0
  %3004 = vmatpush1.msra.mxu0 0.0
  %3005 = vmatprep.subr.mxu0 0.0
  %3006 = vmatpush1.msra.mxu0 0.0
  %3007 = vmatprep.subr.mxu0 0.0
  %3008 = vmatpush1.msra.mxu0 0.0
  %3009 = vmatprep.subr.mxu0 0.0
  %3010 = vmatpush1.msra.mxu0 0.0
  %3011 = vmatprep.subr.mxu0 0.0
  %3012 = vmatpush1.msra.mxu0 0.0
  %3013 = vmatprep.subr.mxu0 0.0
  %3014 = vmatpush1.msra.mxu0 0.0
  %3015 = vmatprep.subr.mxu0 0.0
  %3016 = vmatpush1.msra.mxu0 0.0
  %3017 = vmatprep.subr.mxu0 0.0
  %3018 = vmatpush1.msra.mxu0 0.0
  %3019 = vmatprep.subr.mxu0 0.0
  %3020 = vmatpush1.msra.mxu0 0.0
  %3021 = vmatprep.subr.mxu0 0.0
  %3022 = vmatpush1.msra.mxu0 0.0
  %3023 = vmatprep.subr.mxu0 0.0
  %3024 = vmatpush1.msra.mxu0 0.0
  %3025 = vmatprep.subr.mxu0 0.0
  %3026 = vmatpush1.msra.mxu0 0.0
  %3027 = vmatprep.subr.mxu0 0.0
  %3028 = vmatpush1.msra.mxu0 0.0
  %3029 = vmatprep.subr.mxu0 0.0
  %3030 = vmatpush1.msra.mxu0 0.0
  %3031 = vmatprep.subr.mxu0 0.0
  %3032 = vmatpush1.msra.mxu0 %v2996
  %3033 = vmatprep.subr.mxu0 0.0
  %3034 = vmatpush1.msra.mxu0 %v2995
  %3035 = vmatprep.subr.mxu0 0.0
  %3036 = vmatpush2.msra.mxu0 0.0
  %3037 = vmatprep.subr.mxu0 0.0
  %3038 = vmatpush2.msra.mxu0 0.0
  %3039 = vmatprep.subr.mxu0 0.0
  %3040 = vmatpush2.msra.mxu0 0.0
  %3041 = vmatprep.subr.mxu0 0.0
  %3042 = vmatpush2.msra.mxu0 0.0
  %3043 = vmatprep.subr.mxu0 0.0
  %3044 = vmatpush2.msra.mxu0 0.0
  %3045 = vmatprep.subr.mxu0 0.0
  %3046 = vmatpush2.msra.mxu0 0.0
  %3047 = vmatprep.subr.mxu0 0.0
  %3048 = vmatpush2.msra.mxu0 0.0
  %3049 = vmatprep.subr.mxu0 0.0
  %3050 = vmatpush2.msra.mxu0 0.0
  %3051 = vmatprep.subr.mxu0 0.0
  %3052 = vmatpush2.msra.mxu0 0.0
  %3053 = vmatprep.subr.mxu0 0.0
  %3054 = vmatpush2.msra.mxu0 0.0
  %3055 = vmatprep.subr.mxu0 0.0
  %3056 = vmatpush2.msra.mxu0 0.0
  %3057 = vmatprep.subr.mxu0 0.0
  %3058 = vmatpush2.msra.mxu0 0.0
  %3059 = vmatprep.subr.mxu0 0.0
  %3060 = vmatpush2.msra.mxu0 0.0
  %3061 = vmatprep.subr.mxu0 0.0
  %3062 = vmatpush2.msra.mxu0 0.0
  %3063 = vmatprep.subr.mxu0 0.0
  %3064 = vmatpush2.msra.mxu0 0.0
  %3065 = vmatprep.subr.mxu0 0.0
  %3066 = vmatpush2.msra.mxu0 0.0
  %3067 = vmatprep.mubr.f32.mxu0 0.0
  %3068 = vmatmul.mubr.f32.gmra.mxu0 %v2998
  %v3069 = vpop.f32.mrf.mxu0
  %v3070 = vadd.f32 0.0, %v3069
  %v3071 = vpop.f32.mrf.mxu0
  %3072 = vmatprep.mubr.f32.mxu0 0.0
  %3073 = vmatmul.mubr.f32.gmra.mxu0 %v3001
  %v3074 = vpop.f32.mrf.mxu0
  %v3075 = vadd.f32 0.0, %v3074
  %v3076 = vpop.f32.mrf.mxu0
  %3077 = vdwg.mxu0
  %v3079 = vsel %vm176, %v2910, 0
  %v3082 = vsel %vm176, %v2915, 0
  %3084 = vmatprep.subr.mxu0 0.0
  %3085 = vmatpush1.msra.mxu0 0.0
  %3086 = vmatprep.subr.mxu0 0.0
  %3087 = vmatpush1.msra.mxu0 0.0
  %3088 = vmatprep.subr.mxu0 0.0
  %3089 = vmatpush1.msra.mxu0 0.0
  %3090 = vmatprep.subr.mxu0 0.0
  %3091 = vmatpush1.msra.mxu0 0.0
  %3092 = vmatprep.subr.mxu0 0.0
  %3093 = vmatpush1.msra.mxu0 0.0
  %3094 = vmatprep.subr.mxu0 0.0
  %3095 = vmatpush1.msra.mxu0 0.0
  %3096 = vmatprep.subr.mxu0 0.0
  %3097 = vmatpush1.msra.mxu0 0.0
  %3098 = vmatprep.subr.mxu0 0.0
  %3099 = vmatpush1.msra.mxu0 0.0
  %3100 = vmatprep.subr.mxu0 0.0
  %3101 = vmatpush1.msra.mxu0 0.0
  %3102 = vmatprep.subr.mxu0 0.0
  %3103 = vmatpush1.msra.mxu0 0.0
  %3104 = vmatprep.subr.mxu0 0.0
  %3105 = vmatpush1.msra.mxu0 0.0
  %3106 = vmatprep.subr.mxu0 0.0
  %3107 = vmatpush1.msra.mxu0 0.0
  %3108 = vmatprep.subr.mxu0 0.0
  %3109 = vmatpush1.msra.mxu0 0.0
  %3110 = vmatprep.subr.mxu0 0.0
  %3111 = vmatpush1.msra.mxu0 0.0
  %3112 = vmatprep.subr.mxu0 0.0
  %3113 = vmatpush1.msra.mxu0 %v2994
  %3114 = vmatprep.subr.mxu0 0.0
  %3115 = vmatpush1.msra.mxu0 %v2993
  %3116 = vmatprep.subr.mxu0 0.0
  %3117 = vmatpush2.msra.mxu0 0.0
  %3118 = vmatprep.subr.mxu0 0.0
  %3119 = vmatpush2.msra.mxu0 0.0
  %3120 = vmatprep.subr.mxu0 0.0
  %3121 = vmatpush2.msra.mxu0 0.0
  %3122 = vmatprep.subr.mxu0 0.0
  %3123 = vmatpush2.msra.mxu0 0.0
  %3124 = vmatprep.subr.mxu0 0.0
  %3125 = vmatpush2.msra.mxu0 0.0
  %3126 = vmatprep.subr.mxu0 0.0
  %3127 = vmatpush2.msra.mxu0 0.0
  %3128 = vmatprep.subr.mxu0 0.0
  %3129 = vmatpush2.msra.mxu0 0.0
  %3130 = vmatprep.subr.mxu0 0.0
  %3131 = vmatpush2.msra.mxu0 0.0
  %3132 = vmatprep.subr.mxu0 0.0
  %3133 = vmatpush2.msra.mxu0 0.0
  %3134 = vmatprep.subr.mxu0 0.0
  %3135 = vmatpush2.msra.mxu0 0.0
  %3136 = vmatprep.subr.mxu0 0.0
  %3137 = vmatpush2.msra.mxu0 0.0
  %3138 = vmatprep.subr.mxu0 0.0
  %3139 = vmatpush2.msra.mxu0 0.0
  %3140 = vmatprep.subr.mxu0 0.0
  %3141 = vmatpush2.msra.mxu0 0.0
  %3142 = vmatprep.subr.mxu0 0.0
  %3143 = vmatpush2.msra.mxu0 0.0
  %3144 = vmatprep.subr.mxu0 0.0
  %3145 = vmatpush2.msra.mxu0 0.0
  %3146 = vmatprep.subr.mxu0 0.0
  %3147 = vmatpush2.msra.mxu0 0.0
  %3148 = vmatprep.mubr.f32.mxu0 0.0
  %3149 = vmatmul.mubr.f32.gmra.mxu0 %v3079
  %v3150 = vpop.f32.mrf.mxu0
  %v3151 = vadd.f32 %v3070, %v3150
  %v3152 = vpop.f32.mrf.mxu0
  %3153 = vmatprep.mubr.f32.mxu0 0.0
  %3154 = vmatmul.mubr.f32.gmra.mxu0 %v3082
  %v3155 = vpop.f32.mrf.mxu0
  %v3156 = vadd.f32 %v3075, %v3155
  %v3157 = vpop.f32.mrf.mxu0
  %3158 = vdwg.mxu0
  %v3159 = vld [vmem:[%s63] sm:$0x1]
  %v3161 = vlaneseq
  %v3162 = vshrl.u32 %v3161, 7
  %v3163 = vsub.s32 0, %v3162
  %v3164 = vrot.slane %v3159, %v3163
  %v3166 = vadd.f32 %v3151, %v3164
  %v3167 = vadd.f32 %v3156, %v3164
  %v3168 = vmax.f32 %v3166, 0.0
  %v3169 = vmax.f32 %v3167, 0.0
  %v3170 = vld [vmem:[%s65] sm:$0xff]
  %v3171 = vld [vmem:[%s65 + $0x8] sm:$0xff]
  %v3172 = vld [vmem:[%s67] sm:$0x1]
  %v3174 = vlaneseq
  %v3175 = vshrl.u32 %v3174, 7
  %v3176 = vsub.s32 0, %v3175
  %v3177 = vrot.slane %v3172, %v3176
  %3179 = vmatprep.subr.mxu0 0.0
  %3180 = vmatpush1.msra.mxu0 0.0
  %3181 = vmatprep.subr.mxu0 0.0
  %3182 = vmatpush1.msra.mxu0 0.0
  %3183 = vmatprep.subr.mxu0 0.0
  %3184 = vmatpush1.msra.mxu0 0.0
  %3185 = vmatprep.subr.mxu0 0.0
  %3186 = vmatpush1.msra.mxu0 0.0
  %3187 = vmatprep.subr.mxu0 0.0
  %3188 = vmatpush1.msra.mxu0 0.0
  %3189 = vmatprep.subr.mxu0 0.0
  %3190 = vmatpush1.msra.mxu0 0.0
  %3191 = vmatprep.subr.mxu0 0.0
  %3192 = vmatpush1.msra.mxu0 0.0
  %3193 = vmatprep.subr.mxu0 0.0
  %3194 = vmatpush1.msra.mxu0 0.0
  %3195 = vmatprep.subr.mxu0 0.0
  %3196 = vmatpush1.msra.mxu0 0.0
  %3197 = vmatprep.subr.mxu0 0.0
  %3198 = vmatpush1.msra.mxu0 0.0
  %3199 = vmatprep.subr.mxu0 0.0
  %3200 = vmatpush1.msra.mxu0 0.0
  %3201 = vmatprep.subr.mxu0 0.0
  %3202 = vmatpush1.msra.mxu0 0.0
  %3203 = vmatprep.subr.mxu0 0.0
  %3204 = vmatpush1.msra.mxu0 0.0
  %3205 = vmatprep.subr.mxu0 0.0
  %3206 = vmatpush1.msra.mxu0 0.0
  %3207 = vmatprep.subr.mxu0 0.0
  %3208 = vmatpush1.msra.mxu0 %v3171
  %3209 = vmatprep.subr.mxu0 0.0
  %3210 = vmatpush1.msra.mxu0 %v3170
  %3211 = vmatprep.subr.mxu0 0.0
  %3212 = vmatpush2.msra.mxu0 0.0
  %3213 = vmatprep.subr.mxu0 0.0
  %3214 = vmatpush2.msra.mxu0 0.0
  %3215 = vmatprep.subr.mxu0 0.0
  %3216 = vmatpush2.msra.mxu0 0.0
  %3217 = vmatprep.subr.mxu0 0.0
  %3218 = vmatpush2.msra.mxu0 0.0
  %3219 = vmatprep.subr.mxu0 0.0
  %3220 = vmatpush2.msra.mxu0 0.0
  %3221 = vmatprep.subr.mxu0 0.0
  %3222 = vmatpush2.msra.mxu0 0.0
  %3223 = vmatprep.subr.mxu0 0.0
  %3224 = vmatpush2.msra.mxu0 0.0
  %3225 = vmatprep.subr.mxu0 0.0
  %3226 = vmatpush2.msra.mxu0 0.0
  %3227 = vmatprep.subr.mxu0 0.0
  %3228 = vmatpush2.msra.mxu0 0.0
  %3229 = vmatprep.subr.mxu0 0.0
  %3230 = vmatpush2.msra.mxu0 0.0
  %3231 = vmatprep.subr.mxu0 0.0
  %3232 = vmatpush2.msra.mxu0 0.0
  %3233 = vmatprep.subr.mxu0 0.0
  %3234 = vmatpush2.msra.mxu0 0.0
  %3235 = vmatprep.subr.mxu0 0.0
  %3236 = vmatpush2.msra.mxu0 0.0
  %3237 = vmatprep.subr.mxu0 0.0
  %3238 = vmatpush2.msra.mxu0 0.0
  %3239 = vmatprep.subr.mxu0 0.0
  %3240 = vmatpush2.msra.mxu0 0.0
  %3241 = vmatprep.subr.mxu0 0.0
  %3242 = vmatpush2.msra.mxu0 0.0
  %3243 = vmatprep.mubr.f32.mxu0 0.0
  %3244 = vmatmul.mubr.f32.gmra.mxu0 %v2425
  %v3245 = vpop.f32.mrf.mxu0
  %v3246 = vadd.f32 %v3177, %v3245
  %v3247 = vpop.f32.mrf.mxu0
  %3248 = vmatprep.mubr.f32.mxu0 0.0
  %3249 = vmatmul.mubr.f32.gmra.mxu0 %v2428
  %v3250 = vpop.f32.mrf.mxu0
  %v3251 = vadd.f32 %v3177, %v3250
  %v3252 = vpop.f32.mrf.mxu0
  %3253 = vdwg.mxu0
  %v3254 = vadd.f32 %v3168, %v3246
  %v3255 = vadd.f32 %v3169, %v3251
  %v3256 = vmax.f32 %v3254, 0.0
  %v3257 = vmax.f32 %v3255, 0.0
  %v3258 = vlaneseq
  %v3259 = vshrl.u32 %v3258, 7
  %v3260 = vadd.s32 %v3259, 8
  %v3261 = vlaneseq
  %v3262 = vand.u32 %v3261, 127
  %v3263 = vmul.u32 %v3262, 2
  %vm3264 = vcmp.eq.s32.totalorder %v3259, %v3263
  %vm3265 = vcmp.eq.s32.totalorder %v3260, %v3263
  %v3266 = vsel %vm3264, 1, 0
  %v3267 = vsel %vm3265, 1, 0
  %v3268 = vcvt.s32.f32 %v3266
  %v3269 = vcvt.s32.f32 %v3267
  %v3270 = vadd.s32 %v3263, 1
  %vm3271 = vcmp.eq.s32.totalorder %v3259, %v3270
  %vm3272 = vcmp.eq.s32.totalorder %v3260, %v3270
  %v3273 = vsel %vm3271, 1, 0
  %v3274 = vsel %vm3272, 1, 0
  %v3275 = vcvt.s32.f32 %v3273
  %v3276 = vcvt.s32.f32 %v3274
  %v3277 = vld [vmem:[%s77] sm:$0xff]
  %v3278 = vld [vmem:[%s77 + $0x8] sm:$0xff]
  %v3279 = vld [vmem:[%s77 + $0x10] sm:$0xff]
  %v3280 = vld [vmem:[%s77 + $0x18] sm:$0xff]
  %v3281 = vld [vmem:[%s77 + $0x20] sm:$0xff]
  %v3282 = vld [vmem:[%s77 + $0x28] sm:$0xff]
  %v3283 = vld [vmem:[%s77 + $0x30] sm:$0xff]
  %v3284 = vld [vmem:[%s77 + $0x38] sm:$0xff]
  %v3285 = vld [vmem:[%s77 + $0x40] sm:$0xff]
  %v3286 = vld [vmem:[%s77 + $0x48] sm:$0xff]
  %v3287 = vld [vmem:[%s77 + $0x50] sm:$0xff]
  %v3288 = vld [vmem:[%s77 + $0x58] sm:$0xff]
  %v3289 = vld [vmem:[%s77 + $0x60] sm:$0xff]
  %v3290 = vld [vmem:[%s77 + $0x68] sm:$0xff]
  %v3291 = vld [vmem:[%s77 + $0x70] sm:$0xff]
  %v3292 = vld [vmem:[%s77 + $0x78] sm:$0xff]
  %v3293 = vld [vmem:[%s77 + $0x80] sm:$0xff]
  %v3294 = vld [vmem:[%s77 + $0x88] sm:$0xff]
  %v3295 = vld [vmem:[%s77 + $0x90] sm:$0xff]
  %v3296 = vld [vmem:[%s77 + $0x98] sm:$0xff]
  %v3297 = vld [vmem:[%s77 + $0xa0] sm:$0xff]
  %v3298 = vld [vmem:[%s77 + $0xa8] sm:$0xff]
  %v3299 = vld [vmem:[%s77 + $0xb0] sm:$0xff]
  %v3300 = vld [vmem:[%s77 + $0xb8] sm:$0xff]
  %vm3301 = vcmask 64512
  %v3303 = vsel %vm3301, %v3277, 0
  %v3306 = vsel %vm3301, %v3278, 0
  %v3309 = vsel %vm3301, %v3279, 0
  %v3312 = vsel %vm3301, %v3280, 0
  %v3315 = vsel %vm3301, %v3281, 0
  %v3318 = vsel %vm3301, %v3282, 0
  %v3321 = vsel %vm3301, %v3283, 0
  %v3324 = vsel %vm3301, %v3284, 0
  %v3327 = vsel %vm3301, %v3285, 0
  %v3330 = vsel %vm3301, %v3286, 0
  %v3333 = vsel %vm3301, %v3287, 0
  %v3336 = vsel %vm3301, %v3288, 0
  %v3339 = vsel %vm3301, %v3289, 0
  %v3342 = vsel %vm3301, %v3290, 0
  %v3345 = vsel %vm3301, %v3291, 0
  %v3348 = vsel %vm3301, %v3292, 0
  %v3351 = vsel %vm3301, %v3293, 0
  %v3354 = vsel %vm3301, %v3294, 0
  %v3357 = vsel %vm3301, %v3295, 0
  %v3360 = vsel %vm3301, %v3296, 0
  %v3363 = vsel %vm3301, %v3297, 0
  %v3366 = vsel %vm3301, %v3298, 0
  %v3369 = vsel %vm3301, %v3299, 0
  %v3372 = vsel %vm3301, %v3300, 0
  %3374 = vmatprep.subr.mxu0 0.0
  %3375 = vmatpush1.msra.mxu0 0.0
  %3376 = vmatprep.subr.mxu0 0.0
  %3377 = vmatpush1.msra.mxu0 0.0
  %3378 = vmatprep.subr.mxu0 0.0
  %3379 = vmatpush1.msra.mxu0 0.0
  %3380 = vmatprep.subr.mxu0 0.0
  %3381 = vmatpush1.msra.mxu0 0.0
  %3382 = vmatprep.subr.mxu0 0.0
  %3383 = vmatpush1.msra.mxu0 0.0
  %3384 = vmatprep.subr.mxu0 0.0
  %3385 = vmatpush1.msra.mxu0 0.0
  %3386 = vmatprep.subr.mxu0 0.0
  %3387 = vmatpush1.msra.mxu0 0.0
  %3388 = vmatprep.subr.mxu0 0.0
  %3389 = vmatpush1.msra.mxu0 0.0
  %3390 = vmatprep.subr.mxu0 0.0
  %3391 = vmatpush1.msra.mxu0 0.0
  %3392 = vmatprep.subr.mxu0 0.0
  %3393 = vmatpush1.msra.mxu0 0.0
  %3394 = vmatprep.subr.mxu0 0.0
  %3395 = vmatpush1.msra.mxu0 0.0
  %3396 = vmatprep.subr.mxu0 0.0
  %3397 = vmatpush1.msra.mxu0 0.0
  %3398 = vmatprep.subr.mxu0 0.0
  %3399 = vmatpush1.msra.mxu0 0.0
  %3400 = vmatprep.subr.mxu0 0.0
  %3401 = vmatpush1.msra.mxu0 0.0
  %3402 = vmatprep.subr.mxu0 0.0
  %3403 = vmatpush1.msra.mxu0 0.0
  %3404 = vmatprep.subr.mxu0 0.0
  %3405 = vmatpush1.msra.mxu0 %v3256
  %3406 = vmatprep.subr.mxu0 0.0
  %3407 = vmatpush2.msra.mxu0 0.0
  %3408 = vmatprep.subr.mxu0 0.0
  %3409 = vmatpush2.msra.mxu0 0.0
  %3410 = vmatprep.subr.mxu0 0.0
  %3411 = vmatpush2.msra.mxu0 0.0
  %3412 = vmatprep.subr.mxu0 0.0
  %3413 = vmatpush2.msra.mxu0 0.0
  %3414 = vmatprep.subr.mxu0 0.0
  %3415 = vmatpush2.msra.mxu0 0.0
  %3416 = vmatprep.subr.mxu0 0.0
  %3417 = vmatpush2.msra.mxu0 0.0
  %3418 = vmatprep.subr.mxu0 0.0
  %3419 = vmatpush2.msra.mxu0 0.0
  %3420 = vmatprep.subr.mxu0 0.0
  %3421 = vmatpush2.msra.mxu0 0.0
  %3422 = vmatprep.subr.mxu0 0.0
  %3423 = vmatpush2.msra.mxu0 0.0
  %3424 = vmatprep.subr.mxu0 0.0
  %3425 = vmatpush2.msra.mxu0 0.0
  %3426 = vmatprep.subr.mxu0 0.0
  %3427 = vmatpush2.msra.mxu0 0.0
  %3428 = vmatprep.subr.mxu0 0.0
  %3429 = vmatpush2.msra.mxu0 0.0
  %3430 = vmatprep.subr.mxu0 0.0
  %3431 = vmatpush2.msra.mxu0 0.0
  %3432 = vmatprep.subr.mxu0 0.0
  %3433 = vmatpush2.msra.mxu0 0.0
  %3434 = vmatprep.subr.mxu0 0.0
  %3435 = vmatpush2.msra.mxu0 0.0
  %3436 = vmatprep.subr.mxu0 0.0
  %3437 = vmatpush2.msra.mxu0 0.0
  %3438 = vmatprep.mubr.f32.mxu0 0.0
  %3439 = vmatmul.mubr.f32.gmra.mxu0 %v3303
  %v3440 = vpop.f32.mrf.mxu0
  %v3441 = vadd.f32 0.0, %v3440
  %v3442 = vpop.f32.mrf.mxu0
  %3443 = vmatprep.mubr.f32.mxu0 0.0
  %3444 = vmatmul.mubr.f32.gmra.mxu0 %v3306
  %v3445 = vpop.f32.mrf.mxu0
  %v3446 = vadd.f32 0.0, %v3445
  %v3447 = vpop.f32.mrf.mxu0
  %3448 = vmatprep.mubr.f32.mxu0 0.0
  %3449 = vmatmul.mubr.f32.gmra.mxu0 %v3309
  %v3450 = vpop.f32.mrf.mxu0
  %v3451 = vadd.f32 0.0, %v3450
  %v3452 = vpop.f32.mrf.mxu0
  %3453 = vmatprep.mubr.f32.mxu0 0.0
  %3454 = vmatmul.mubr.f32.gmra.mxu0 %v3312
  %v3455 = vpop.f32.mrf.mxu0
  %v3456 = vadd.f32 0.0, %v3455
  %v3457 = vpop.f32.mrf.mxu0
  %3458 = vmatprep.mubr.f32.mxu0 0.0
  %3459 = vmatmul.mubr.f32.gmra.mxu0 %v3315
  %v3460 = vpop.f32.mrf.mxu0
  %v3461 = vadd.f32 0.0, %v3460
  %v3462 = vpop.f32.mrf.mxu0
  %3463 = vmatprep.mubr.f32.mxu0 0.0
  %3464 = vmatmul.mubr.f32.gmra.mxu0 %v3318
  %v3465 = vpop.f32.mrf.mxu0
  %v3466 = vadd.f32 0.0, %v3465
  %v3467 = vpop.f32.mrf.mxu0
  %3468 = vmatprep.mubr.f32.mxu0 0.0
  %3469 = vmatmul.mubr.f32.gmra.mxu0 %v3321
  %v3470 = vpop.f32.mrf.mxu0
  %v3471 = vadd.f32 0.0, %v3470
  %v3472 = vpop.f32.mrf.mxu0
  %3473 = vmatprep.mubr.f32.mxu0 0.0
  %3474 = vmatmul.mubr.f32.gmra.mxu0 %v3324
  %v3475 = vpop.f32.mrf.mxu0
  %v3476 = vadd.f32 0.0, %v3475
  %v3477 = vpop.f32.mrf.mxu0
  %3478 = vmatprep.mubr.f32.mxu0 0.0
  %3479 = vmatmul.mubr.f32.gmra.mxu0 %v3327
  %v3480 = vpop.f32.mrf.mxu0
  %v3481 = vadd.f32 0.0, %v3480
  %v3482 = vpop.f32.mrf.mxu0
  %3483 = vmatprep.mubr.f32.mxu0 0.0
  %3484 = vmatmul.mubr.f32.gmra.mxu0 %v3330
  %v3485 = vpop.f32.mrf.mxu0
  %v3486 = vadd.f32 0.0, %v3485
  %v3487 = vpop.f32.mrf.mxu0
  %3488 = vmatprep.mubr.f32.mxu0 0.0
  %3489 = vmatmul.mubr.f32.gmra.mxu0 %v3333
  %v3490 = vpop.f32.mrf.mxu0
  %v3491 = vadd.f32 0.0, %v3490
  %v3492 = vpop.f32.mrf.mxu0
  %3493 = vmatprep.mubr.f32.mxu0 0.0
  %3494 = vmatmul.mubr.f32.gmra.mxu0 %v3336
  %v3495 = vpop.f32.mrf.mxu0
  %v3496 = vadd.f32 0.0, %v3495
  %v3497 = vpop.f32.mrf.mxu0
  %3498 = vmatprep.mubr.f32.mxu0 0.0
  %3499 = vmatmul.mubr.f32.gmra.mxu0 %v3339
  %v3500 = vpop.f32.mrf.mxu0
  %v3501 = vadd.f32 0.0, %v3500
  %v3502 = vpop.f32.mrf.mxu0
  %3503 = vmatprep.mubr.f32.mxu0 0.0
  %3504 = vmatmul.mubr.f32.gmra.mxu0 %v3342
  %v3505 = vpop.f32.mrf.mxu0
  %v3506 = vadd.f32 0.0, %v3505
  %v3507 = vpop.f32.mrf.mxu0
  %3508 = vmatprep.mubr.f32.mxu0 0.0
  %3509 = vmatmul.mubr.f32.gmra.mxu0 %v3345
  %v3510 = vpop.f32.mrf.mxu0
  %v3511 = vadd.f32 0.0, %v3510
  %v3512 = vpop.f32.mrf.mxu0
  %3513 = vmatprep.mubr.f32.mxu0 0.0
  %3514 = vmatmul.mubr.f32.gmra.mxu0 %v3348
  %v3515 = vpop.f32.mrf.mxu0
  %v3516 = vadd.f32 0.0, %v3515
  %v3517 = vpop.f32.mrf.mxu0
  %3518 = vmatprep.mubr.f32.mxu0 0.0
  %3519 = vmatmul.mubr.f32.gmra.mxu0 %v3351
  %v3520 = vpop.f32.mrf.mxu0
  %v3521 = vadd.f32 0.0, %v3520
  %v3522 = vpop.f32.mrf.mxu0
  %3523 = vmatprep.mubr.f32.mxu0 0.0
  %3524 = vmatmul.mubr.f32.gmra.mxu0 %v3354
  %v3525 = vpop.f32.mrf.mxu0
  %v3526 = vadd.f32 0.0, %v3525
  %v3527 = vpop.f32.mrf.mxu0
  %3528 = vmatprep.mubr.f32.mxu0 0.0
  %3529 = vmatmul.mubr.f32.gmra.mxu0 %v3357
  %v3530 = vpop.f32.mrf.mxu0
  %v3531 = vadd.f32 0.0, %v3530
  %v3532 = vpop.f32.mrf.mxu0
  %3533 = vmatprep.mubr.f32.mxu0 0.0
  %3534 = vmatmul.mubr.f32.gmra.mxu0 %v3360
  %v3535 = vpop.f32.mrf.mxu0
  %v3536 = vadd.f32 0.0, %v3535
  %v3537 = vpop.f32.mrf.mxu0
  %3538 = vmatprep.mubr.f32.mxu0 0.0
  %3539 = vmatmul.mubr.f32.gmra.mxu0 %v3363
  %v3540 = vpop.f32.mrf.mxu0
  %v3541 = vadd.f32 0.0, %v3540
  %v3542 = vpop.f32.mrf.mxu0
  %3543 = vmatprep.mubr.f32.mxu0 0.0
  %3544 = vmatmul.mubr.f32.gmra.mxu0 %v3366
  %v3545 = vpop.f32.mrf.mxu0
  %v3546 = vadd.f32 0.0, %v3545
  %v3547 = vpop.f32.mrf.mxu0
  %3548 = vmatprep.mubr.f32.mxu0 0.0
  %3549 = vmatmul.mubr.f32.gmra.mxu0 %v3369
  %v3550 = vpop.f32.mrf.mxu0
  %v3551 = vadd.f32 0.0, %v3550
  %v3552 = vpop.f32.mrf.mxu0
  %3553 = vmatprep.mubr.f32.mxu0 0.0
  %3554 = vmatmul.mubr.f32.gmra.mxu0 %v3372
  %v3555 = vpop.f32.mrf.mxu0
  %v3556 = vadd.f32 0.0, %v3555
  %v3557 = vpop.f32.mrf.mxu0
  %3558 = vdwg.mxu0
  %v3559 = vld [vmem:[%s79] sm:$0xff]
  %v3560 = vld [vmem:[%s79 + $0x8] sm:$0xff]
  %v3561 = vld [vmem:[%s79 + $0x10] sm:$0xff]
  %v3562 = vld [vmem:[%s79 + $0x18] sm:$0xff]
  %v3563 = vld [vmem:[%s79 + $0x20] sm:$0xff]
  %v3564 = vld [vmem:[%s79 + $0x28] sm:$0xff]
  %v3565 = vld [vmem:[%s79 + $0x30] sm:$0xff]
  %v3566 = vld [vmem:[%s79 + $0x38] sm:$0xff]
  %v3567 = vld [vmem:[%s79 + $0x40] sm:$0xff]
  %v3568 = vld [vmem:[%s79 + $0x48] sm:$0xff]
  %v3569 = vld [vmem:[%s79 + $0x50] sm:$0xff]
  %v3570 = vld [vmem:[%s79 + $0x58] sm:$0xff]
  %v3571 = vld [vmem:[%s79 + $0x60] sm:$0xff]
  %v3572 = vld [vmem:[%s79 + $0x68] sm:$0xff]
  %v3573 = vld [vmem:[%s79 + $0x70] sm:$0xff]
  %v3574 = vld [vmem:[%s79 + $0x78] sm:$0xff]
  %v3575 = vld [vmem:[%s79 + $0x80] sm:$0xff]
  %v3576 = vld [vmem:[%s79 + $0x88] sm:$0xff]
  %v3577 = vld [vmem:[%s79 + $0x90] sm:$0xff]
  %v3578 = vld [vmem:[%s79 + $0x98] sm:$0xff]
  %v3579 = vld [vmem:[%s79 + $0xa0] sm:$0xff]
  %v3580 = vld [vmem:[%s79 + $0xa8] sm:$0xff]
  %v3581 = vld [vmem:[%s79 + $0xb0] sm:$0xff]
  %v3582 = vld [vmem:[%s79 + $0xb8] sm:$0xff]
  %v3584 = vsel %vm3301, %v3559, 0
  %v3587 = vsel %vm3301, %v3560, 0
  %v3590 = vsel %vm3301, %v3561, 0
  %v3593 = vsel %vm3301, %v3562, 0
  %v3596 = vsel %vm3301, %v3563, 0
  %v3599 = vsel %vm3301, %v3564, 0
  %v3602 = vsel %vm3301, %v3565, 0
  %v3605 = vsel %vm3301, %v3566, 0
  %v3608 = vsel %vm3301, %v3567, 0
  %v3611 = vsel %vm3301, %v3568, 0
  %v3614 = vsel %vm3301, %v3569, 0
  %v3617 = vsel %vm3301, %v3570, 0
  %v3620 = vsel %vm3301, %v3571, 0
  %v3623 = vsel %vm3301, %v3572, 0
  %v3626 = vsel %vm3301, %v3573, 0
  %v3629 = vsel %vm3301, %v3574, 0
  %v3632 = vsel %vm3301, %v3575, 0
  %v3635 = vsel %vm3301, %v3576, 0
  %v3638 = vsel %vm3301, %v3577, 0
  %v3641 = vsel %vm3301, %v3578, 0
  %v3644 = vsel %vm3301, %v3579, 0
  %v3647 = vsel %vm3301, %v3580, 0
  %v3650 = vsel %vm3301, %v3581, 0
  %v3653 = vsel %vm3301, %v3582, 0
  %3655 = vmatprep.subr.mxu0 0.0
  %3656 = vmatpush1.msra.mxu0 0.0
  %3657 = vmatprep.subr.mxu0 0.0
  %3658 = vmatpush1.msra.mxu0 0.0
  %3659 = vmatprep.subr.mxu0 0.0
  %3660 = vmatpush1.msra.mxu0 0.0
  %3661 = vmatprep.subr.mxu0 0.0
  %3662 = vmatpush1.msra.mxu0 0.0
  %3663 = vmatprep.subr.mxu0 0.0
  %3664 = vmatpush1.msra.mxu0 0.0
  %3665 = vmatprep.subr.mxu0 0.0
  %3666 = vmatpush1.msra.mxu0 0.0
  %3667 = vmatprep.subr.mxu0 0.0
  %3668 = vmatpush1.msra.mxu0 0.0
  %3669 = vmatprep.subr.mxu0 0.0
  %3670 = vmatpush1.msra.mxu0 0.0
  %3671 = vmatprep.subr.mxu0 0.0
  %3672 = vmatpush1.msra.mxu0 0.0
  %3673 = vmatprep.subr.mxu0 0.0
  %3674 = vmatpush1.msra.mxu0 0.0
  %3675 = vmatprep.subr.mxu0 0.0
  %3676 = vmatpush1.msra.mxu0 0.0
  %3677 = vmatprep.subr.mxu0 0.0
  %3678 = vmatpush1.msra.mxu0 0.0
  %3679 = vmatprep.subr.mxu0 0.0
  %3680 = vmatpush1.msra.mxu0 0.0
  %3681 = vmatprep.subr.mxu0 0.0
  %3682 = vmatpush1.msra.mxu0 0.0
  %3683 = vmatprep.subr.mxu0 0.0
  %3684 = vmatpush1.msra.mxu0 0.0
  %3685 = vmatprep.subr.mxu0 0.0
  %3686 = vmatpush1.msra.mxu0 %v3256
  %3687 = vmatprep.subr.mxu0 0.0
  %3688 = vmatpush2.msra.mxu0 0.0
  %3689 = vmatprep.subr.mxu0 0.0
  %3690 = vmatpush2.msra.mxu0 0.0
  %3691 = vmatprep.subr.mxu0 0.0
  %3692 = vmatpush2.msra.mxu0 0.0
  %3693 = vmatprep.subr.mxu0 0.0
  %3694 = vmatpush2.msra.mxu0 0.0
  %3695 = vmatprep.subr.mxu0 0.0
  %3696 = vmatpush2.msra.mxu0 0.0
  %3697 = vmatprep.subr.mxu0 0.0
  %3698 = vmatpush2.msra.mxu0 0.0
  %3699 = vmatprep.subr.mxu0 0.0
  %3700 = vmatpush2.msra.mxu0 0.0
  %3701 = vmatprep.subr.mxu0 0.0
  %3702 = vmatpush2.msra.mxu0 0.0
  %3703 = vmatprep.subr.mxu0 0.0
  %3704 = vmatpush2.msra.mxu0 0.0
  %3705 = vmatprep.subr.mxu0 0.0
  %3706 = vmatpush2.msra.mxu0 0.0
  %3707 = vmatprep.subr.mxu0 0.0
  %3708 = vmatpush2.msra.mxu0 0.0
  %3709 = vmatprep.subr.mxu0 0.0
  %3710 = vmatpush2.msra.mxu0 0.0
  %3711 = vmatprep.subr.mxu0 0.0
  %3712 = vmatpush2.msra.mxu0 0.0
  %3713 = vmatprep.subr.mxu0 0.0
  %3714 = vmatpush2.msra.mxu0 0.0
  %3715 = vmatprep.subr.mxu0 0.0
  %3716 = vmatpush2.msra.mxu0 0.0
  %3717 = vmatprep.subr.mxu0 0.0
  %3718 = vmatpush2.msra.mxu0 0.0
  %3719 = vmatprep.mubr.f32.mxu0 0.0
  %3720 = vmatmul.mubr.f32.gmra.mxu0 %v3584
  %v3721 = vpop.f32.mrf.mxu0
  %v3722 = vadd.f32 0.0, %v3721
  %v3723 = vpop.f32.mrf.mxu0
  %3724 = vmatprep.mubr.f32.mxu0 0.0
  %3725 = vmatmul.mubr.f32.gmra.mxu0 %v3587
  %v3726 = vpop.f32.mrf.mxu0
  %v3727 = vadd.f32 0.0, %v3726
  %v3728 = vpop.f32.mrf.mxu0
  %3729 = vmatprep.mubr.f32.mxu0 0.0
  %3730 = vmatmul.mubr.f32.gmra.mxu0 %v3590
  %v3731 = vpop.f32.mrf.mxu0
  %v3732 = vadd.f32 0.0, %v3731
  %v3733 = vpop.f32.mrf.mxu0
  %3734 = vmatprep.mubr.f32.mxu0 0.0
  %3735 = vmatmul.mubr.f32.gmra.mxu0 %v3593
  %v3736 = vpop.f32.mrf.mxu0
  %v3737 = vadd.f32 0.0, %v3736
  %v3738 = vpop.f32.mrf.mxu0
  %3739 = vmatprep.mubr.f32.mxu0 0.0
  %3740 = vmatmul.mubr.f32.gmra.mxu0 %v3596
  %v3741 = vpop.f32.mrf.mxu0
  %v3742 = vadd.f32 0.0, %v3741
  %v3743 = vpop.f32.mrf.mxu0
  %3744 = vmatprep.mubr.f32.mxu0 0.0
  %3745 = vmatmul.mubr.f32.gmra.mxu0 %v3599
  %v3746 = vpop.f32.mrf.mxu0
  %v3747 = vadd.f32 0.0, %v3746
  %v3748 = vpop.f32.mrf.mxu0
  %3749 = vmatprep.mubr.f32.mxu0 0.0
  %3750 = vmatmul.mubr.f32.gmra.mxu0 %v3602
  %v3751 = vpop.f32.mrf.mxu0
  %v3752 = vadd.f32 0.0, %v3751
  %v3753 = vpop.f32.mrf.mxu0
  %3754 = vmatprep.mubr.f32.mxu0 0.0
  %3755 = vmatmul.mubr.f32.gmra.mxu0 %v3605
  %v3756 = vpop.f32.mrf.mxu0
  %v3757 = vadd.f32 0.0, %v3756
  %v3758 = vpop.f32.mrf.mxu0
  %3759 = vmatprep.mubr.f32.mxu0 0.0
  %3760 = vmatmul.mubr.f32.gmra.mxu0 %v3608
  %v3761 = vpop.f32.mrf.mxu0
  %v3762 = vadd.f32 0.0, %v3761
  %v3763 = vpop.f32.mrf.mxu0
  %3764 = vmatprep.mubr.f32.mxu0 0.0
  %3765 = vmatmul.mubr.f32.gmra.mxu0 %v3611
  %v3766 = vpop.f32.mrf.mxu0
  %v3767 = vadd.f32 0.0, %v3766
  %v3768 = vpop.f32.mrf.mxu0
  %3769 = vmatprep.mubr.f32.mxu0 0.0
  %3770 = vmatmul.mubr.f32.gmra.mxu0 %v3614
  %v3771 = vpop.f32.mrf.mxu0
  %v3772 = vadd.f32 0.0, %v3771
  %v3773 = vpop.f32.mrf.mxu0
  %3774 = vmatprep.mubr.f32.mxu0 0.0
  %3775 = vmatmul.mubr.f32.gmra.mxu0 %v3617
  %v3776 = vpop.f32.mrf.mxu0
  %v3777 = vadd.f32 0.0, %v3776
  %v3778 = vpop.f32.mrf.mxu0
  %3779 = vmatprep.mubr.f32.mxu0 0.0
  %3780 = vmatmul.mubr.f32.gmra.mxu0 %v3620
  %v3781 = vpop.f32.mrf.mxu0
  %v3782 = vadd.f32 0.0, %v3781
  %v3783 = vpop.f32.mrf.mxu0
  %3784 = vmatprep.mubr.f32.mxu0 0.0
  %3785 = vmatmul.mubr.f32.gmra.mxu0 %v3623
  %v3786 = vpop.f32.mrf.mxu0
  %v3787 = vadd.f32 0.0, %v3786
  %v3788 = vpop.f32.mrf.mxu0
  %3789 = vmatprep.mubr.f32.mxu0 0.0
  %3790 = vmatmul.mubr.f32.gmra.mxu0 %v3626
  %v3791 = vpop.f32.mrf.mxu0
  %v3792 = vadd.f32 0.0, %v3791
  %v3793 = vpop.f32.mrf.mxu0
  %3794 = vmatprep.mubr.f32.mxu0 0.0
  %3795 = vmatmul.mubr.f32.gmra.mxu0 %v3629
  %v3796 = vpop.f32.mrf.mxu0
  %v3797 = vadd.f32 0.0, %v3796
  %v3798 = vpop.f32.mrf.mxu0
  %3799 = vmatprep.mubr.f32.mxu0 0.0
  %3800 = vmatmul.mubr.f32.gmra.mxu0 %v3632
  %v3801 = vpop.f32.mrf.mxu0
  %v3802 = vadd.f32 0.0, %v3801
  %v3803 = vpop.f32.mrf.mxu0
  %3804 = vmatprep.mubr.f32.mxu0 0.0
  %3805 = vmatmul.mubr.f32.gmra.mxu0 %v3635
  %v3806 = vpop.f32.mrf.mxu0
  %v3807 = vadd.f32 0.0, %v3806
  %v3808 = vpop.f32.mrf.mxu0
  %3809 = vmatprep.mubr.f32.mxu0 0.0
  %3810 = vmatmul.mubr.f32.gmra.mxu0 %v3638
  %v3811 = vpop.f32.mrf.mxu0
  %v3812 = vadd.f32 0.0, %v3811
  %v3813 = vpop.f32.mrf.mxu0
  %3814 = vmatprep.mubr.f32.mxu0 0.0
  %3815 = vmatmul.mubr.f32.gmra.mxu0 %v3641
  %v3816 = vpop.f32.mrf.mxu0
  %v3817 = vadd.f32 0.0, %v3816
  %v3818 = vpop.f32.mrf.mxu0
  %3819 = vmatprep.mubr.f32.mxu0 0.0
  %3820 = vmatmul.mubr.f32.gmra.mxu0 %v3644
  %v3821 = vpop.f32.mrf.mxu0
  %v3822 = vadd.f32 0.0, %v3821
  %v3823 = vpop.f32.mrf.mxu0
  %3824 = vmatprep.mubr.f32.mxu0 0.0
  %3825 = vmatmul.mubr.f32.gmra.mxu0 %v3647
  %v3826 = vpop.f32.mrf.mxu0
  %v3827 = vadd.f32 0.0, %v3826
  %v3828 = vpop.f32.mrf.mxu0
  %3829 = vmatprep.mubr.f32.mxu0 0.0
  %3830 = vmatmul.mubr.f32.gmra.mxu0 %v3650
  %v3831 = vpop.f32.mrf.mxu0
  %v3832 = vadd.f32 0.0, %v3831
  %v3833 = vpop.f32.mrf.mxu0
  %3834 = vmatprep.mubr.f32.mxu0 0.0
  %3835 = vmatmul.mubr.f32.gmra.mxu0 %v3653
  %v3836 = vpop.f32.mrf.mxu0
  %v3837 = vadd.f32 0.0, %v3836
  %v3838 = vpop.f32.mrf.mxu0
  %3839 = vdwg.mxu0
  %v3841 = vsel %vm176, %v3722, 0
  %v3844 = vsel %vm176, %v3727, 0
  %v3847 = vsel %vm176, %v3732, 0
  %v3850 = vsel %vm176, %v3737, 0
  %v3853 = vsel %vm176, %v3742, 0
  %v3856 = vsel %vm176, %v3747, 0
  %v3859 = vsel %vm176, %v3752, 0
  %v3862 = vsel %vm176, %v3757, 0
  %v3865 = vsel %vm176, %v3762, 0
  %v3868 = vsel %vm176, %v3767, 0
  %v3871 = vsel %vm176, %v3772, 0
  %v3874 = vsel %vm176, %v3777, 0
  %v3877 = vsel %vm176, %v3782, 0
  %v3880 = vsel %vm176, %v3787, 0
  %v3883 = vsel %vm176, %v3792, 0
  %v3886 = vsel %vm176, %v3797, 0
  %v3889 = vsel %vm176, %v3802, 0
  %v3892 = vsel %vm176, %v3807, 0
  %v3895 = vsel %vm176, %v3812, 0
  %v3898 = vsel %vm176, %v3817, 0
  %v3901 = vsel %vm176, %v3822, 0
  %v3904 = vsel %vm176, %v3827, 0
  %v3907 = vsel %vm176, %v3832, 0
  %v3910 = vsel %vm176, %v3837, 0
  %3912 = vmatprep.subr.mxu0 0.0
  %3913 = vmatpush1.msra.mxu0 0.0
  %3914 = vmatprep.subr.mxu0 0.0
  %3915 = vmatpush1.msra.mxu0 0.0
  %3916 = vmatprep.subr.mxu0 0.0
  %3917 = vmatpush1.msra.mxu0 0.0
  %3918 = vmatprep.subr.mxu0 0.0
  %3919 = vmatpush1.msra.mxu0 0.0
  %3920 = vmatprep.subr.mxu0 0.0
  %3921 = vmatpush1.msra.mxu0 0.0
  %3922 = vmatprep.subr.mxu0 0.0
  %3923 = vmatpush1.msra.mxu0 0.0
  %3924 = vmatprep.subr.mxu0 0.0
  %3925 = vmatpush1.msra.mxu0 0.0
  %3926 = vmatprep.subr.mxu0 0.0
  %3927 = vmatpush1.msra.mxu0 0.0
  %3928 = vmatprep.subr.mxu0 0.0
  %3929 = vmatpush1.msra.mxu0 0.0
  %3930 = vmatprep.subr.mxu0 0.0
  %3931 = vmatpush1.msra.mxu0 0.0
  %3932 = vmatprep.subr.mxu0 0.0
  %3933 = vmatpush1.msra.mxu0 0.0
  %3934 = vmatprep.subr.mxu0 0.0
  %3935 = vmatpush1.msra.mxu0 0.0
  %3936 = vmatprep.subr.mxu0 0.0
  %3937 = vmatpush1.msra.mxu0 0.0
  %3938 = vmatprep.subr.mxu0 0.0
  %3939 = vmatpush1.msra.mxu0 0.0
  %3940 = vmatprep.subr.mxu0 0.0
  %3941 = vmatpush1.msra.mxu0 %v3276
  %3942 = vmatprep.subr.mxu0 0.0
  %3943 = vmatpush1.msra.mxu0 %v3275
  %3944 = vmatprep.subr.mxu0 0.0
  %3945 = vmatpush2.msra.mxu0 0.0
  %3946 = vmatprep.subr.mxu0 0.0
  %3947 = vmatpush2.msra.mxu0 0.0
  %3948 = vmatprep.subr.mxu0 0.0
  %3949 = vmatpush2.msra.mxu0 0.0
  %3950 = vmatprep.subr.mxu0 0.0
  %3951 = vmatpush2.msra.mxu0 0.0
  %3952 = vmatprep.subr.mxu0 0.0
  %3953 = vmatpush2.msra.mxu0 0.0
  %3954 = vmatprep.subr.mxu0 0.0
  %3955 = vmatpush2.msra.mxu0 0.0
  %3956 = vmatprep.subr.mxu0 0.0
  %3957 = vmatpush2.msra.mxu0 0.0
  %3958 = vmatprep.subr.mxu0 0.0
  %3959 = vmatpush2.msra.mxu0 0.0
  %3960 = vmatprep.subr.mxu0 0.0
  %3961 = vmatpush2.msra.mxu0 0.0
  %3962 = vmatprep.subr.mxu0 0.0
  %3963 = vmatpush2.msra.mxu0 0.0
  %3964 = vmatprep.subr.mxu0 0.0
  %3965 = vmatpush2.msra.mxu0 0.0
  %3966 = vmatprep.subr.mxu0 0.0
  %3967 = vmatpush2.msra.mxu0 0.0
  %3968 = vmatprep.subr.mxu0 0.0
  %3969 = vmatpush2.msra.mxu0 0.0
  %3970 = vmatprep.subr.mxu0 0.0
  %3971 = vmatpush2.msra.mxu0 0.0
  %3972 = vmatprep.subr.mxu0 0.0
  %3973 = vmatpush2.msra.mxu0 0.0
  %3974 = vmatprep.subr.mxu0 0.0
  %3975 = vmatpush2.msra.mxu0 0.0
  %3976 = vmatprep.mubr.f32.mxu0 0.0
  %3977 = vmatmul.mubr.f32.gmra.mxu0 %v3841
  %v3978 = vpop.f32.mrf.mxu0
  %v3979 = vadd.f32 0.0, %v3978
  %v3980 = vpop.f32.mrf.mxu0
  %3981 = vmatprep.mubr.f32.mxu0 0.0
  %3982 = vmatmul.mubr.f32.gmra.mxu0 %v3844
  %v3983 = vpop.f32.mrf.mxu0
  %v3984 = vadd.f32 0.0, %v3983
  %v3985 = vpop.f32.mrf.mxu0
  %3986 = vmatprep.mubr.f32.mxu0 0.0
  %3987 = vmatmul.mubr.f32.gmra.mxu0 %v3847
  %v3988 = vpop.f32.mrf.mxu0
  %v3989 = vadd.f32 0.0, %v3988
  %v3990 = vpop.f32.mrf.mxu0
  %3991 = vmatprep.mubr.f32.mxu0 0.0
  %3992 = vmatmul.mubr.f32.gmra.mxu0 %v3850
  %v3993 = vpop.f32.mrf.mxu0
  %v3994 = vadd.f32 0.0, %v3993
  %v3995 = vpop.f32.mrf.mxu0
  %3996 = vmatprep.mubr.f32.mxu0 0.0
  %3997 = vmatmul.mubr.f32.gmra.mxu0 %v3853
  %v3998 = vpop.f32.mrf.mxu0
  %v3999 = vadd.f32 0.0, %v3998
  %v4000 = vpop.f32.mrf.mxu0
  %4001 = vmatprep.mubr.f32.mxu0 0.0
  %4002 = vmatmul.mubr.f32.gmra.mxu0 %v3856
  %v4003 = vpop.f32.mrf.mxu0
  %v4004 = vadd.f32 0.0, %v4003
  %v4005 = vpop.f32.mrf.mxu0
  %4006 = vmatprep.mubr.f32.mxu0 0.0
  %4007 = vmatmul.mubr.f32.gmra.mxu0 %v3859
  %v4008 = vpop.f32.mrf.mxu0
  %v4009 = vadd.f32 0.0, %v4008
  %v4010 = vpop.f32.mrf.mxu0
  %4011 = vmatprep.mubr.f32.mxu0 0.0
  %4012 = vmatmul.mubr.f32.gmra.mxu0 %v3862
  %v4013 = vpop.f32.mrf.mxu0
  %v4014 = vadd.f32 0.0, %v4013
  %v4015 = vpop.f32.mrf.mxu0
  %4016 = vmatprep.mubr.f32.mxu0 0.0
  %4017 = vmatmul.mubr.f32.gmra.mxu0 %v3865
  %v4018 = vpop.f32.mrf.mxu0
  %v4019 = vadd.f32 0.0, %v4018
  %v4020 = vpop.f32.mrf.mxu0
  %4021 = vmatprep.mubr.f32.mxu0 0.0
  %4022 = vmatmul.mubr.f32.gmra.mxu0 %v3868
  %v4023 = vpop.f32.mrf.mxu0
  %v4024 = vadd.f32 0.0, %v4023
  %v4025 = vpop.f32.mrf.mxu0
  %4026 = vmatprep.mubr.f32.mxu0 0.0
  %4027 = vmatmul.mubr.f32.gmra.mxu0 %v3871
  %v4028 = vpop.f32.mrf.mxu0
  %v4029 = vadd.f32 0.0, %v4028
  %v4030 = vpop.f32.mrf.mxu0
  %4031 = vmatprep.mubr.f32.mxu0 0.0
  %4032 = vmatmul.mubr.f32.gmra.mxu0 %v3874
  %v4033 = vpop.f32.mrf.mxu0
  %v4034 = vadd.f32 0.0, %v4033
  %v4035 = vpop.f32.mrf.mxu0
  %4036 = vmatprep.mubr.f32.mxu0 0.0
  %4037 = vmatmul.mubr.f32.gmra.mxu0 %v3877
  %v4038 = vpop.f32.mrf.mxu0
  %v4039 = vadd.f32 0.0, %v4038
  %v4040 = vpop.f32.mrf.mxu0
  %4041 = vmatprep.mubr.f32.mxu0 0.0
  %4042 = vmatmul.mubr.f32.gmra.mxu0 %v3880
  %v4043 = vpop.f32.mrf.mxu0
  %v4044 = vadd.f32 0.0, %v4043
  %v4045 = vpop.f32.mrf.mxu0
  %4046 = vmatprep.mubr.f32.mxu0 0.0
  %4047 = vmatmul.mubr.f32.gmra.mxu0 %v3883
  %v4048 = vpop.f32.mrf.mxu0
  %v4049 = vadd.f32 0.0, %v4048
  %v4050 = vpop.f32.mrf.mxu0
  %4051 = vmatprep.mubr.f32.mxu0 0.0
  %4052 = vmatmul.mubr.f32.gmra.mxu0 %v3886
  %v4053 = vpop.f32.mrf.mxu0
  %v4054 = vadd.f32 0.0, %v4053
  %v4055 = vpop.f32.mrf.mxu0
  %4056 = vmatprep.mubr.f32.mxu0 0.0
  %4057 = vmatmul.mubr.f32.gmra.mxu0 %v3889
  %v4058 = vpop.f32.mrf.mxu0
  %v4059 = vadd.f32 0.0, %v4058
  %v4060 = vpop.f32.mrf.mxu0
  %4061 = vmatprep.mubr.f32.mxu0 0.0
  %4062 = vmatmul.mubr.f32.gmra.mxu0 %v3892
  %v4063 = vpop.f32.mrf.mxu0
  %v4064 = vadd.f32 0.0, %v4063
  %v4065 = vpop.f32.mrf.mxu0
  %4066 = vmatprep.mubr.f32.mxu0 0.0
  %4067 = vmatmul.mubr.f32.gmra.mxu0 %v3895
  %v4068 = vpop.f32.mrf.mxu0
  %v4069 = vadd.f32 0.0, %v4068
  %v4070 = vpop.f32.mrf.mxu0
  %4071 = vmatprep.mubr.f32.mxu0 0.0
  %4072 = vmatmul.mubr.f32.gmra.mxu0 %v3898
  %v4073 = vpop.f32.mrf.mxu0
  %v4074 = vadd.f32 0.0, %v4073
  %v4075 = vpop.f32.mrf.mxu0
  %4076 = vmatprep.mubr.f32.mxu0 0.0
  %4077 = vmatmul.mubr.f32.gmra.mxu0 %v3901
  %v4078 = vpop.f32.mrf.mxu0
  %v4079 = vadd.f32 0.0, %v4078
  %v4080 = vpop.f32.mrf.mxu0
  %4081 = vmatprep.mubr.f32.mxu0 0.0
  %4082 = vmatmul.mubr.f32.gmra.mxu0 %v3904
  %v4083 = vpop.f32.mrf.mxu0
  %v4084 = vadd.f32 0.0, %v4083
  %v4085 = vpop.f32.mrf.mxu0
  %4086 = vmatprep.mubr.f32.mxu0 0.0
  %4087 = vmatmul.mubr.f32.gmra.mxu0 %v3907
  %v4088 = vpop.f32.mrf.mxu0
  %v4089 = vadd.f32 0.0, %v4088
  %v4090 = vpop.f32.mrf.mxu0
  %4091 = vmatprep.mubr.f32.mxu0 0.0
  %4092 = vmatmul.mubr.f32.gmra.mxu0 %v3910
  %v4093 = vpop.f32.mrf.mxu0
  %v4094 = vadd.f32 0.0, %v4093
  %v4095 = vpop.f32.mrf.mxu0
  %4096 = vdwg.mxu0
  %v4098 = vsel %vm176, %v3441, 0
  %v4101 = vsel %vm176, %v3446, 0
  %v4104 = vsel %vm176, %v3451, 0
  %v4107 = vsel %vm176, %v3456, 0
  %v4110 = vsel %vm176, %v3461, 0
  %v4113 = vsel %vm176, %v3466, 0
  %v4116 = vsel %vm176, %v3471, 0
  %v4119 = vsel %vm176, %v3476, 0
  %v4122 = vsel %vm176, %v3481, 0
  %v4125 = vsel %vm176, %v3486, 0
  %v4128 = vsel %vm176, %v3491, 0
  %v4131 = vsel %vm176, %v3496, 0
  %v4134 = vsel %vm176, %v3501, 0
  %v4137 = vsel %vm176, %v3506, 0
  %v4140 = vsel %vm176, %v3511, 0
  %v4143 = vsel %vm176, %v3516, 0
  %v4146 = vsel %vm176, %v3521, 0
  %v4149 = vsel %vm176, %v3526, 0
  %v4152 = vsel %vm176, %v3531, 0
  %v4155 = vsel %vm176, %v3536, 0
  %v4158 = vsel %vm176, %v3541, 0
  %v4161 = vsel %vm176, %v3546, 0
  %v4164 = vsel %vm176, %v3551, 0
  %v4167 = vsel %vm176, %v3556, 0
  %4169 = vmatprep.subr.mxu0 0.0
  %4170 = vmatpush1.msra.mxu0 0.0
  %4171 = vmatprep.subr.mxu0 0.0
  %4172 = vmatpush1.msra.mxu0 0.0
  %4173 = vmatprep.subr.mxu0 0.0
  %4174 = vmatpush1.msra.mxu0 0.0
  %4175 = vmatprep.subr.mxu0 0.0
  %4176 = vmatpush1.msra.mxu0 0.0
  %4177 = vmatprep.subr.mxu0 0.0
  %4178 = vmatpush1.msra.mxu0 0.0
  %4179 = vmatprep.subr.mxu0 0.0
  %4180 = vmatpush1.msra.mxu0 0.0
  %4181 = vmatprep.subr.mxu0 0.0
  %4182 = vmatpush1.msra.mxu0 0.0
  %4183 = vmatprep.subr.mxu0 0.0
  %4184 = vmatpush1.msra.mxu0 0.0
  %4185 = vmatprep.subr.mxu0 0.0
  %4186 = vmatpush1.msra.mxu0 0.0
  %4187 = vmatprep.subr.mxu0 0.0
  %4188 = vmatpush1.msra.mxu0 0.0
  %4189 = vmatprep.subr.mxu0 0.0
  %4190 = vmatpush1.msra.mxu0 0.0
  %4191 = vmatprep.subr.mxu0 0.0
  %4192 = vmatpush1.msra.mxu0 0.0
  %4193 = vmatprep.subr.mxu0 0.0
  %4194 = vmatpush1.msra.mxu0 0.0
  %4195 = vmatprep.subr.mxu0 0.0
  %4196 = vmatpush1.msra.mxu0 0.0
  %4197 = vmatprep.subr.mxu0 0.0
  %4198 = vmatpush1.msra.mxu0 %v3269
  %4199 = vmatprep.subr.mxu0 0.0
  %4200 = vmatpush1.msra.mxu0 %v3268
  %4201 = vmatprep.subr.mxu0 0.0
  %4202 = vmatpush2.msra.mxu0 0.0
  %4203 = vmatprep.subr.mxu0 0.0
  %4204 = vmatpush2.msra.mxu0 0.0
  %4205 = vmatprep.subr.mxu0 0.0
  %4206 = vmatpush2.msra.mxu0 0.0
  %4207 = vmatprep.subr.mxu0 0.0
  %4208 = vmatpush2.msra.mxu0 0.0
  %4209 = vmatprep.subr.mxu0 0.0
  %4210 = vmatpush2.msra.mxu0 0.0
  %4211 = vmatprep.subr.mxu0 0.0
  %4212 = vmatpush2.msra.mxu0 0.0
  %4213 = vmatprep.subr.mxu0 0.0
  %4214 = vmatpush2.msra.mxu0 0.0
  %4215 = vmatprep.subr.mxu0 0.0
  %4216 = vmatpush2.msra.mxu0 0.0
  %4217 = vmatprep.subr.mxu0 0.0
  %4218 = vmatpush2.msra.mxu0 0.0
  %4219 = vmatprep.subr.mxu0 0.0
  %4220 = vmatpush2.msra.mxu0 0.0
  %4221 = vmatprep.subr.mxu0 0.0
  %4222 = vmatpush2.msra.mxu0 0.0
  %4223 = vmatprep.subr.mxu0 0.0
  %4224 = vmatpush2.msra.mxu0 0.0
  %4225 = vmatprep.subr.mxu0 0.0
  %4226 = vmatpush2.msra.mxu0 0.0
  %4227 = vmatprep.subr.mxu0 0.0
  %4228 = vmatpush2.msra.mxu0 0.0
  %4229 = vmatprep.subr.mxu0 0.0
  %4230 = vmatpush2.msra.mxu0 0.0
  %4231 = vmatprep.subr.mxu0 0.0
  %4232 = vmatpush2.msra.mxu0 0.0
  %4233 = vmatprep.mubr.f32.mxu0 0.0
  %4234 = vmatmul.mubr.f32.gmra.mxu0 %v4098
  %v4235 = vpop.f32.mrf.mxu0
  %v4236 = vadd.f32 %v3979, %v4235
  %v4237 = vpop.f32.mrf.mxu0
  %4238 = vmatprep.mubr.f32.mxu0 0.0
  %4239 = vmatmul.mubr.f32.gmra.mxu0 %v4101
  %v4240 = vpop.f32.mrf.mxu0
  %v4241 = vadd.f32 %v3984, %v4240
  %v4242 = vpop.f32.mrf.mxu0
  %4243 = vmatprep.mubr.f32.mxu0 0.0
  %4244 = vmatmul.mubr.f32.gmra.mxu0 %v4104
  %v4245 = vpop.f32.mrf.mxu0
  %v4246 = vadd.f32 %v3989, %v4245
  %v4247 = vpop.f32.mrf.mxu0
  %4248 = vmatprep.mubr.f32.mxu0 0.0
  %4249 = vmatmul.mubr.f32.gmra.mxu0 %v4107
  %v4250 = vpop.f32.mrf.mxu0
  %v4251 = vadd.f32 %v3994, %v4250
  %v4252 = vpop.f32.mrf.mxu0
  %4253 = vmatprep.mubr.f32.mxu0 0.0
  %4254 = vmatmul.mubr.f32.gmra.mxu0 %v4110
  %v4255 = vpop.f32.mrf.mxu0
  %v4256 = vadd.f32 %v3999, %v4255
  %v4257 = vpop.f32.mrf.mxu0
  %4258 = vmatprep.mubr.f32.mxu0 0.0
  %4259 = vmatmul.mubr.f32.gmra.mxu0 %v4113
  %v4260 = vpop.f32.mrf.mxu0
  %v4261 = vadd.f32 %v4004, %v4260
  %v4262 = vpop.f32.mrf.mxu0
  %4263 = vmatprep.mubr.f32.mxu0 0.0
  %4264 = vmatmul.mubr.f32.gmra.mxu0 %v4116
  %v4265 = vpop.f32.mrf.mxu0
  %v4266 = vadd.f32 %v4009, %v4265
  %v4267 = vpop.f32.mrf.mxu0
  %4268 = vmatprep.mubr.f32.mxu0 0.0
  %4269 = vmatmul.mubr.f32.gmra.mxu0 %v4119
  %v4270 = vpop.f32.mrf.mxu0
  %v4271 = vadd.f32 %v4014, %v4270
  %v4272 = vpop.f32.mrf.mxu0
  %4273 = vmatprep.mubr.f32.mxu0 0.0
  %4274 = vmatmul.mubr.f32.gmra.mxu0 %v4122
  %v4275 = vpop.f32.mrf.mxu0
  %v4276 = vadd.f32 %v4019, %v4275
  %v4277 = vpop.f32.mrf.mxu0
  %4278 = vmatprep.mubr.f32.mxu0 0.0
  %4279 = vmatmul.mubr.f32.gmra.mxu0 %v4125
  %v4280 = vpop.f32.mrf.mxu0
  %v4281 = vadd.f32 %v4024, %v4280
  %v4282 = vpop.f32.mrf.mxu0
  %4283 = vmatprep.mubr.f32.mxu0 0.0
  %4284 = vmatmul.mubr.f32.gmra.mxu0 %v4128
  %v4285 = vpop.f32.mrf.mxu0
  %v4286 = vadd.f32 %v4029, %v4285
  %v4287 = vpop.f32.mrf.mxu0
  %4288 = vmatprep.mubr.f32.mxu0 0.0
  %4289 = vmatmul.mubr.f32.gmra.mxu0 %v4131
  %v4290 = vpop.f32.mrf.mxu0
  %v4291 = vadd.f32 %v4034, %v4290
  %v4292 = vpop.f32.mrf.mxu0
  %4293 = vmatprep.mubr.f32.mxu0 0.0
  %4294 = vmatmul.mubr.f32.gmra.mxu0 %v4134
  %v4295 = vpop.f32.mrf.mxu0
  %v4296 = vadd.f32 %v4039, %v4295
  %v4297 = vpop.f32.mrf.mxu0
  %4298 = vmatprep.mubr.f32.mxu0 0.0
  %4299 = vmatmul.mubr.f32.gmra.mxu0 %v4137
  %v4300 = vpop.f32.mrf.mxu0
  %v4301 = vadd.f32 %v4044, %v4300
  %v4302 = vpop.f32.mrf.mxu0
  %4303 = vmatprep.mubr.f32.mxu0 0.0
  %4304 = vmatmul.mubr.f32.gmra.mxu0 %v4140
  %v4305 = vpop.f32.mrf.mxu0
  %v4306 = vadd.f32 %v4049, %v4305
  %v4307 = vpop.f32.mrf.mxu0
  %4308 = vmatprep.mubr.f32.mxu0 0.0
  %4309 = vmatmul.mubr.f32.gmra.mxu0 %v4143
  %v4310 = vpop.f32.mrf.mxu0
  %v4311 = vadd.f32 %v4054, %v4310
  %v4312 = vpop.f32.mrf.mxu0
  %4313 = vmatprep.mubr.f32.mxu0 0.0
  %4314 = vmatmul.mubr.f32.gmra.mxu0 %v4146
  %v4315 = vpop.f32.mrf.mxu0
  %v4316 = vadd.f32 %v4059, %v4315
  %v4317 = vpop.f32.mrf.mxu0
  %4318 = vmatprep.mubr.f32.mxu0 0.0
  %4319 = vmatmul.mubr.f32.gmra.mxu0 %v4149
  %v4320 = vpop.f32.mrf.mxu0
  %v4321 = vadd.f32 %v4064, %v4320
  %v4322 = vpop.f32.mrf.mxu0
  %4323 = vmatprep.mubr.f32.mxu0 0.0
  %4324 = vmatmul.mubr.f32.gmra.mxu0 %v4152
  %v4325 = vpop.f32.mrf.mxu0
  %v4326 = vadd.f32 %v4069, %v4325
  %v4327 = vpop.f32.mrf.mxu0
  %4328 = vmatprep.mubr.f32.mxu0 0.0
  %4329 = vmatmul.mubr.f32.gmra.mxu0 %v4155
  %v4330 = vpop.f32.mrf.mxu0
  %v4331 = vadd.f32 %v4074, %v4330
  %v4332 = vpop.f32.mrf.mxu0
  %4333 = vmatprep.mubr.f32.mxu0 0.0
  %4334 = vmatmul.mubr.f32.gmra.mxu0 %v4158
  %v4335 = vpop.f32.mrf.mxu0
  %v4336 = vadd.f32 %v4079, %v4335
  %v4337 = vpop.f32.mrf.mxu0
  %4338 = vmatprep.mubr.f32.mxu0 0.0
  %4339 = vmatmul.mubr.f32.gmra.mxu0 %v4161
  %v4340 = vpop.f32.mrf.mxu0
  %v4341 = vadd.f32 %v4084, %v4340
  %v4342 = vpop.f32.mrf.mxu0
  %4343 = vmatprep.mubr.f32.mxu0 0.0
  %4344 = vmatmul.mubr.f32.gmra.mxu0 %v4164
  %v4345 = vpop.f32.mrf.mxu0
  %v4346 = vadd.f32 %v4089, %v4345
  %v4347 = vpop.f32.mrf.mxu0
  %4348 = vmatprep.mubr.f32.mxu0 0.0
  %4349 = vmatmul.mubr.f32.gmra.mxu0 %v4167
  %v4350 = vpop.f32.mrf.mxu0
  %v4351 = vadd.f32 %v4094, %v4350
  %v4352 = vpop.f32.mrf.mxu0
  %4353 = vdwg.mxu0
  %v4354 = vld [vmem:[%s81] sm:$0xff]
  %v4355 = vld [vmem:[%s81 + $0x8] sm:$0xff]
  %v4356 = vld [vmem:[%s81 + $0x10] sm:$0xff]
  %v4357 = vld [vmem:[%s81 + $0x18] sm:$0xff]
  %v4358 = vld [vmem:[%s81 + $0x20] sm:$0xff]
  %v4359 = vld [vmem:[%s81 + $0x28] sm:$0xff]
  %v4360 = vld [vmem:[%s81 + $0x30] sm:$0xff]
  %v4361 = vld [vmem:[%s81 + $0x38] sm:$0xff]
  %v4362 = vld [vmem:[%s81 + $0x40] sm:$0xff]
  %v4363 = vld [vmem:[%s81 + $0x48] sm:$0xff]
  %v4364 = vld [vmem:[%s81 + $0x50] sm:$0xff]
  %v4365 = vld [vmem:[%s81 + $0x58] sm:$0xff]
  %v4366 = vld [vmem:[%s81 + $0x60] sm:$0xff]
  %v4367 = vld [vmem:[%s81 + $0x68] sm:$0xff]
  %v4368 = vld [vmem:[%s81 + $0x70] sm:$0xff]
  %v4369 = vld [vmem:[%s81 + $0x78] sm:$0xff]
  %v4370 = vld [vmem:[%s81 + $0x80] sm:$0xff]
  %v4371 = vld [vmem:[%s81 + $0x88] sm:$0xff]
  %v4372 = vld [vmem:[%s81 + $0x90] sm:$0xff]
  %v4373 = vld [vmem:[%s81 + $0x98] sm:$0xff]
  %v4374 = vld [vmem:[%s81 + $0xa0] sm:$0xff]
  %v4375 = vld [vmem:[%s81 + $0xa8] sm:$0xff]
  %v4376 = vld [vmem:[%s81 + $0xb0] sm:$0xff]
  %v4377 = vld [vmem:[%s81 + $0xb8] sm:$0xff]
  %4379 = vset.pattern.permute.xlu0 0
  %4380 = vperm.xlu0 %4379, %v4354
  %v4381 = vpop.permute.xlu0 %4380
  %4384 = vset.pattern.permute.xlu0 0
  %4385 = vperm.xlu0 %4384, %v4355
  %v4386 = vpop.permute.xlu0 %4385
  %4389 = vset.pattern.permute.xlu0 0
  %4390 = vperm.xlu0 %4389, %v4356
  %v4391 = vpop.permute.xlu0 %4390
  %4394 = vset.pattern.permute.xlu0 0
  %4395 = vperm.xlu0 %4394, %v4357
  %v4396 = vpop.permute.xlu0 %4395
  %4399 = vset.pattern.permute.xlu0 0
  %4400 = vperm.xlu0 %4399, %v4358
  %v4401 = vpop.permute.xlu0 %4400
  %4404 = vset.pattern.permute.xlu0 0
  %4405 = vperm.xlu0 %4404, %v4359
  %v4406 = vpop.permute.xlu0 %4405
  %4409 = vset.pattern.permute.xlu0 0
  %4410 = vperm.xlu0 %4409, %v4360
  %v4411 = vpop.permute.xlu0 %4410
  %4414 = vset.pattern.permute.xlu0 0
  %4415 = vperm.xlu0 %4414, %v4361
  %v4416 = vpop.permute.xlu0 %4415
  %4419 = vset.pattern.permute.xlu0 0
  %4420 = vperm.xlu0 %4419, %v4362
  %v4421 = vpop.permute.xlu0 %4420
  %4424 = vset.pattern.permute.xlu0 0
  %4425 = vperm.xlu0 %4424, %v4363
  %v4426 = vpop.permute.xlu0 %4425
  %4429 = vset.pattern.permute.xlu0 0
  %4430 = vperm.xlu0 %4429, %v4364
  %v4431 = vpop.permute.xlu0 %4430
  %4434 = vset.pattern.permute.xlu0 0
  %4435 = vperm.xlu0 %4434, %v4365
  %v4436 = vpop.permute.xlu0 %4435
  %4439 = vset.pattern.permute.xlu0 0
  %4440 = vperm.xlu0 %4439, %v4366
  %v4441 = vpop.permute.xlu0 %4440
  %4444 = vset.pattern.permute.xlu0 0
  %4445 = vperm.xlu0 %4444, %v4367
  %v4446 = vpop.permute.xlu0 %4445
  %4449 = vset.pattern.permute.xlu0 0
  %4450 = vperm.xlu0 %4449, %v4368
  %v4451 = vpop.permute.xlu0 %4450
  %4454 = vset.pattern.permute.xlu0 0
  %4455 = vperm.xlu0 %4454, %v4369
  %v4456 = vpop.permute.xlu0 %4455
  %4459 = vset.pattern.permute.xlu0 0
  %4460 = vperm.xlu0 %4459, %v4370
  %v4461 = vpop.permute.xlu0 %4460
  %4464 = vset.pattern.permute.xlu0 0
  %4465 = vperm.xlu0 %4464, %v4371
  %v4466 = vpop.permute.xlu0 %4465
  %4469 = vset.pattern.permute.xlu0 0
  %4470 = vperm.xlu0 %4469, %v4372
  %v4471 = vpop.permute.xlu0 %4470
  %4474 = vset.pattern.permute.xlu0 0
  %4475 = vperm.xlu0 %4474, %v4373
  %v4476 = vpop.permute.xlu0 %4475
  %4479 = vset.pattern.permute.xlu0 0
  %4480 = vperm.xlu0 %4479, %v4374
  %v4481 = vpop.permute.xlu0 %4480
  %4484 = vset.pattern.permute.xlu0 0
  %4485 = vperm.xlu0 %4484, %v4375
  %v4486 = vpop.permute.xlu0 %4485
  %4489 = vset.pattern.permute.xlu0 0
  %4490 = vperm.xlu0 %4489, %v4376
  %v4491 = vpop.permute.xlu0 %4490
  %4494 = vset.pattern.permute.xlu0 0
  %4495 = vperm.xlu0 %4494, %v4377
  %v4496 = vpop.permute.xlu0 %4495
  %v4498 = vadd.f32 %v4236, %v4381
  %v4499 = vadd.f32 %v4241, %v4386
  %v4500 = vadd.f32 %v4246, %v4391
  %v4501 = vadd.f32 %v4251, %v4396
  %v4502 = vadd.f32 %v4256, %v4401
  %v4503 = vadd.f32 %v4261, %v4406
  %v4504 = vadd.f32 %v4266, %v4411
  %v4505 = vadd.f32 %v4271, %v4416
  %v4506 = vadd.f32 %v4276, %v4421
  %v4507 = vadd.f32 %v4281, %v4426
  %v4508 = vadd.f32 %v4286, %v4431
  %v4509 = vadd.f32 %v4291, %v4436
  %v4510 = vadd.f32 %v4296, %v4441
  %v4511 = vadd.f32 %v4301, %v4446
  %v4512 = vadd.f32 %v4306, %v4451
  %v4513 = vadd.f32 %v4311, %v4456
  %v4514 = vadd.f32 %v4316, %v4461
  %v4515 = vadd.f32 %v4321, %v4466
  %v4516 = vadd.f32 %v4326, %v4471
  %v4517 = vadd.f32 %v4331, %v4476
  %v4518 = vadd.f32 %v4336, %v4481
  %v4519 = vadd.f32 %v4341, %v4486
  %v4520 = vadd.f32 %v4346, %v4491
  %v4521 = vadd.f32 %v4351, %v4496
  %v4522 = vsel %vm3301, %v4498, -inf
  %v4523 = vsel %vm3301, %v4499, -inf
  %v4524 = vsel %vm3301, %v4500, -inf
  %v4525 = vsel %vm3301, %v4501, -inf
  %v4526 = vsel %vm3301, %v4502, -inf
  %v4527 = vmax.f32 %v4522, %v4526
  %v4528 = vsel %vm3301, %v4503, -inf
  %v4529 = vmax.f32 %v4523, %v4528
  %v4530 = vsel %vm3301, %v4504, -inf
  %v4531 = vmax.f32 %v4524, %v4530
  %v4532 = vsel %vm3301, %v4505, -inf
  %v4533 = vmax.f32 %v4525, %v4532
  %v4534 = vsel %vm3301, %v4506, -inf
  %v4535 = vmax.f32 %v4527, %v4534
  %v4536 = vsel %vm3301, %v4507, -inf
  %v4537 = vmax.f32 %v4529, %v4536
  %v4538 = vsel %vm3301, %v4508, -inf
  %v4539 = vmax.f32 %v4531, %v4538
  %v4540 = vsel %vm3301, %v4509, -inf
  %v4541 = vmax.f32 %v4533, %v4540
  %v4542 = vsel %vm3301, %v4510, -inf
  %v4543 = vmax.f32 %v4535, %v4542
  %v4544 = vsel %vm3301, %v4511, -inf
  %v4545 = vmax.f32 %v4537, %v4544
  %v4546 = vsel %vm3301, %v4512, -inf
  %v4547 = vmax.f32 %v4539, %v4546
  %v4548 = vsel %vm3301, %v4513, -inf
  %v4549 = vmax.f32 %v4541, %v4548
  %v4550 = vsel %vm3301, %v4514, -inf
  %v4551 = vmax.f32 %v4543, %v4550
  %v4552 = vsel %vm3301, %v4515, -inf
  %v4553 = vmax.f32 %v4545, %v4552
  %v4554 = vsel %vm3301, %v4516, -inf
  %v4555 = vmax.f32 %v4547, %v4554
  %v4556 = vsel %vm3301, %v4517, -inf
  %v4557 = vmax.f32 %v4549, %v4556
  %v4558 = vsel %vm3301, %v4518, -inf
  %v4559 = vmax.f32 %v4551, %v4558
  %v4560 = vsel %vm3301, %v4519, -inf
  %v4561 = vmax.f32 %v4553, %v4560
  %v4562 = vsel %vm3301, %v4520, -inf
  %v4563 = vmax.f32 %v4555, %v4562
  %v4564 = vsel %vm3301, %v4521, -inf
  %v4565 = vmax.f32 %v4557, %v4564
  %v4566 = vmax.f32 %v4559, %v4561
  %v4567 = vmax.f32 %v4563, %v4565
  %v4568 = vmax.f32 %v4566, %v4567
  %v4569 = vrot.slane %v4568, 4
  %v4570 = vmax.f32 %v4568, %v4569
  %v4571 = vrot.slane %v4570, 2
  %v4572 = vmax.f32 %v4570, %v4571
  %v4573 = vrot.slane %v4572, 1
  %v4574 = vmax.f32 %v4572, %v4573
  %v4575 = vsub.f32 %v4498, %v4574
  %v4576 = vsub.f32 %v4499, %v4574
  %v4577 = vsub.f32 %v4500, %v4574
  %v4578 = vsub.f32 %v4501, %v4574
  %v4579 = vsub.f32 %v4502, %v4574
  %v4580 = vsub.f32 %v4503, %v4574
  %v4581 = vsub.f32 %v4504, %v4574
  %v4582 = vsub.f32 %v4505, %v4574
  %v4583 = vsub.f32 %v4506, %v4574
  %v4584 = vsub.f32 %v4507, %v4574
  %v4585 = vsub.f32 %v4508, %v4574
  %v4586 = vsub.f32 %v4509, %v4574
  %v4587 = vsub.f32 %v4510, %v4574
  %v4588 = vsub.f32 %v4511, %v4574
  %v4589 = vsub.f32 %v4512, %v4574
  %v4590 = vsub.f32 %v4513, %v4574
  %v4591 = vsub.f32 %v4514, %v4574
  %v4592 = vsub.f32 %v4515, %v4574
  %v4593 = vsub.f32 %v4516, %v4574
  %v4594 = vsub.f32 %v4517, %v4574
  %v4595 = vsub.f32 %v4518, %v4574
  %v4596 = vsub.f32 %v4519, %v4574
  %v4597 = vsub.f32 %v4520, %v4574
  %v4598 = vsub.f32 %v4521, %v4574
  %v4599 = vmul.f32 %v4575, 1.442695
  %v4600 = vpow.pop %v4599
  %v4601 = vmul.f32 %v4576, 1.442695
  %v4602 = vpow.pop %v4601
  %v4603 = vmul.f32 %v4577, 1.442695
  %v4604 = vpow.pop %v4603
  %v4605 = vmul.f32 %v4578, 1.442695
  %v4606 = vpow.pop %v4605
  %v4607 = vmul.f32 %v4579, 1.442695
  %v4608 = vpow.pop %v4607
  %v4609 = vmul.f32 %v4580, 1.442695
  %v4610 = vpow.pop %v4609
  %v4611 = vmul.f32 %v4581, 1.442695
  %v4612 = vpow.pop %v4611
  %v4613 = vmul.f32 %v4582, 1.442695
  %v4614 = vpow.pop %v4613
  %v4615 = vmul.f32 %v4583, 1.442695
  %v4616 = vpow.pop %v4615
  %v4617 = vmul.f32 %v4584, 1.442695
  %v4618 = vpow.pop %v4617
  %v4619 = vmul.f32 %v4585, 1.442695
  %v4620 = vpow.pop %v4619
  %v4621 = vmul.f32 %v4586, 1.442695
  %v4622 = vpow.pop %v4621
  %v4623 = vmul.f32 %v4587, 1.442695
  %v4624 = vpow.pop %v4623
  %v4625 = vmul.f32 %v4588, 1.442695
  %v4626 = vpow.pop %v4625
  %v4627 = vmul.f32 %v4589, 1.442695
  %v4628 = vpow.pop %v4627
  %v4629 = vmul.f32 %v4590, 1.442695
  %v4630 = vpow.pop %v4629
  %v4631 = vmul.f32 %v4591, 1.442695
  %v4632 = vpow.pop %v4631
  %v4633 = vmul.f32 %v4592, 1.442695
  %v4634 = vpow.pop %v4633
  %v4635 = vmul.f32 %v4593, 1.442695
  %v4636 = vpow.pop %v4635
  %v4637 = vmul.f32 %v4594, 1.442695
  %v4638 = vpow.pop %v4637
  %v4639 = vmul.f32 %v4595, 1.442695
  %v4640 = vpow.pop %v4639
  %v4641 = vmul.f32 %v4596, 1.442695
  %v4642 = vpow.pop %v4641
  %v4643 = vmul.f32 %v4597, 1.442695
  %v4644 = vpow.pop %v4643
  %v4645 = vmul.f32 %v4598, 1.442695
  %v4646 = vpow.pop %v4645
  %v4647 = vsel %vm3301, %v4600, 0.0
  %v4648 = vsel %vm3301, %v4602, 0.0
  %v4649 = vadd.f32 %v4647, %v4648
  %v4650 = vsel %vm3301, %v4604, 0.0
  %v4651 = vadd.f32 %v4649, %v4650
  %v4652 = vsel %vm3301, %v4606, 0.0
  %v4653 = vadd.f32 %v4651, %v4652
  %v4654 = vsel %vm3301, %v4608, 0.0
  %v4655 = vadd.f32 %v4653, %v4654
  %v4656 = vsel %vm3301, %v4610, 0.0
  %v4657 = vadd.f32 %v4655, %v4656
  %v4658 = vsel %vm3301, %v4612, 0.0
  %v4659 = vadd.f32 %v4657, %v4658
  %v4660 = vsel %vm3301, %v4614, 0.0
  %v4661 = vadd.f32 %v4659, %v4660
  %v4662 = vsel %vm3301, %v4616, 0.0
  %v4663 = vadd.f32 %v4661, %v4662
  %v4664 = vsel %vm3301, %v4618, 0.0
  %v4665 = vadd.f32 %v4663, %v4664
  %v4666 = vsel %vm3301, %v4620, 0.0
  %v4667 = vadd.f32 %v4665, %v4666
  %v4668 = vsel %vm3301, %v4622, 0.0
  %v4669 = vadd.f32 %v4667, %v4668
  %v4670 = vsel %vm3301, %v4624, 0.0
  %v4671 = vadd.f32 %v4669, %v4670
  %v4672 = vsel %vm3301, %v4626, 0.0
  %v4673 = vadd.f32 %v4671, %v4672
  %v4674 = vsel %vm3301, %v4628, 0.0
  %v4675 = vadd.f32 %v4673, %v4674
  %v4676 = vsel %vm3301, %v4630, 0.0
  %v4677 = vadd.f32 %v4675, %v4676
  %v4678 = vsel %vm3301, %v4632, 0.0
  %v4679 = vadd.f32 %v4677, %v4678
  %v4680 = vsel %vm3301, %v4634, 0.0
  %v4681 = vadd.f32 %v4679, %v4680
  %v4682 = vsel %vm3301, %v4636, 0.0
  %v4683 = vadd.f32 %v4681, %v4682
  %v4684 = vsel %vm3301, %v4638, 0.0
  %v4685 = vadd.f32 %v4683, %v4684
  %v4686 = vsel %vm3301, %v4640, 0.0
  %v4687 = vadd.f32 %v4685, %v4686
  %v4688 = vsel %vm3301, %v4642, 0.0
  %v4689 = vadd.f32 %v4687, %v4688
  %v4690 = vsel %vm3301, %v4644, 0.0
  %v4691 = vadd.f32 %v4689, %v4690
  %v4692 = vsel %vm3301, %v4646, 0.0
  %v4693 = vadd.f32 %v4691, %v4692
  %v4694 = vrot.slane %v4693, 4
  %v4695 = vadd.f32 %v4693, %v4694
  %v4696 = vrot.slane %v4695, 2
  %v4697 = vadd.f32 %v4695, %v4696
  %v4698 = vrot.slane %v4697, 1
  %v4699 = vadd.f32 %v4697, %v4698
  %v4700 = vrcp.pop %v4699
  %v4701 = vmul.f32 %v4600, %v4700
  %v4702 = vmul.f32 %v4602, %v4700
  %v4703 = vmul.f32 %v4604, %v4700
  %v4704 = vmul.f32 %v4606, %v4700
  %v4705 = vmul.f32 %v4608, %v4700
  %v4706 = vmul.f32 %v4610, %v4700
  %v4707 = vmul.f32 %v4612, %v4700
  %v4708 = vmul.f32 %v4614, %v4700
  %v4709 = vmul.f32 %v4616, %v4700
  %v4710 = vmul.f32 %v4618, %v4700
  %v4711 = vmul.f32 %v4620, %v4700
  %v4712 = vmul.f32 %v4622, %v4700
  %v4713 = vmul.f32 %v4624, %v4700
  %v4714 = vmul.f32 %v4626, %v4700
  %v4715 = vmul.f32 %v4628, %v4700
  %v4716 = vmul.f32 %v4630, %v4700
  %v4717 = vmul.f32 %v4632, %v4700
  %v4718 = vmul.f32 %v4634, %v4700
  %v4719 = vmul.f32 %v4636, %v4700
  %v4720 = vmul.f32 %v4638, %v4700
  %v4721 = vmul.f32 %v4640, %v4700
  %v4722 = vmul.f32 %v4642, %v4700
  %v4723 = vmul.f32 %v4644, %v4700
  %v4724 = vmul.f32 %v4646, %v4700
  %4725 = vst.msk [vmem:[%s83] sm:$0xff] %vm3301, %v4701
  %4726 = vst.msk [vmem:[%s83 + $0x8] sm:$0xff] %vm3301, %v4702
  %4727 = vst.msk [vmem:[%s83 + $0x10] sm:$0xff] %vm3301, %v4703
  %4728 = vst.msk [vmem:[%s83 + $0x18] sm:$0xff] %vm3301, %v4704
  %4729 = vst.msk [vmem:[%s83 + $0x20] sm:$0xff] %vm3301, %v4705
  %4730 = vst.msk [vmem:[%s83 + $0x28] sm:$0xff] %vm3301, %v4706
  %4731 = vst.msk [vmem:[%s83 + $0x30] sm:$0xff] %vm3301, %v4707
  %4732 = vst.msk [vmem:[%s83 + $0x38] sm:$0xff] %vm3301, %v4708
  %4733 = vst.msk [vmem:[%s83 + $0x40] sm:$0xff] %vm3301, %v4709
  %4734 = vst.msk [vmem:[%s83 + $0x48] sm:$0xff] %vm3301, %v4710
  %4735 = vst.msk [vmem:[%s83 + $0x50] sm:$0xff] %vm3301, %v4711
  %4736 = vst.msk [vmem:[%s83 + $0x58] sm:$0xff] %vm3301, %v4712
  %4737 = vst.msk [vmem:[%s83 + $0x60] sm:$0xff] %vm3301, %v4713
  %4738 = vst.msk [vmem:[%s83 + $0x68] sm:$0xff] %vm3301, %v4714
  %4739 = vst.msk [vmem:[%s83 + $0x70] sm:$0xff] %vm3301, %v4715
  %4740 = vst.msk [vmem:[%s83 + $0x78] sm:$0xff] %vm3301, %v4716
  %4741 = vst.msk [vmem:[%s83 + $0x80] sm:$0xff] %vm3301, %v4717
  %4742 = vst.msk [vmem:[%s83 + $0x88] sm:$0xff] %vm3301, %v4718
  %4743 = vst.msk [vmem:[%s83 + $0x90] sm:$0xff] %vm3301, %v4719
  %4744 = vst.msk [vmem:[%s83 + $0x98] sm:$0xff] %vm3301, %v4720
  %4745 = vst.msk [vmem:[%s83 + $0xa0] sm:$0xff] %vm3301, %v4721
  %4746 = vst.msk [vmem:[%s83 + $0xa8] sm:$0xff] %vm3301, %v4722
  %4747 = vst.msk [vmem:[%s83 + $0xb0] sm:$0xff] %vm3301, %v4723
  %4748 = vst.msk [vmem:[%s83 + $0xb8] sm:$0xff] %vm3301, %v4724
  %v4749 = vld [vmem:[%s77] sm:$0xff]
  %v4750 = vld [vmem:[%s77 + $0x8] sm:$0xff]
  %v4751 = vld [vmem:[%s77 + $0x10] sm:$0xff]
  %v4752 = vld [vmem:[%s77 + $0x18] sm:$0xff]
  %v4753 = vld [vmem:[%s77 + $0x20] sm:$0xff]
  %v4754 = vld [vmem:[%s77 + $0x28] sm:$0xff]
  %v4755 = vld [vmem:[%s77 + $0x30] sm:$0xff]
  %v4756 = vld [vmem:[%s77 + $0x38] sm:$0xff]
  %v4757 = vld [vmem:[%s77 + $0x40] sm:$0xff]
  %v4758 = vld [vmem:[%s77 + $0x48] sm:$0xff]
  %v4759 = vld [vmem:[%s77 + $0x50] sm:$0xff]
  %v4760 = vld [vmem:[%s77 + $0x58] sm:$0xff]
  %v4761 = vld [vmem:[%s77 + $0x60] sm:$0xff]
  %v4762 = vld [vmem:[%s77 + $0x68] sm:$0xff]
  %v4763 = vld [vmem:[%s77 + $0x70] sm:$0xff]
  %v4764 = vld [vmem:[%s77 + $0x78] sm:$0xff]
  %v4765 = vld [vmem:[%s77 + $0x80] sm:$0xff]
  %v4766 = vld [vmem:[%s77 + $0x88] sm:$0xff]
  %v4767 = vld [vmem:[%s77 + $0x90] sm:$0xff]
  %v4768 = vld [vmem:[%s77 + $0x98] sm:$0xff]
  %v4769 = vld [vmem:[%s77 + $0xa0] sm:$0xff]
  %v4770 = vld [vmem:[%s77 + $0xa8] sm:$0xff]
  %v4771 = vld [vmem:[%s77 + $0xb0] sm:$0xff]
  %v4772 = vld [vmem:[%s77 + $0xb8] sm:$0xff]
  %v4774 = vsel %vm3301, %v4749, 0
  %v4777 = vsel %vm3301, %v4750, 0
  %v4780 = vsel %vm3301, %v4751, 0
  %v4783 = vsel %vm3301, %v4752, 0
  %v4786 = vsel %vm3301, %v4753, 0
  %v4789 = vsel %vm3301, %v4754, 0
  %v4792 = vsel %vm3301, %v4755, 0
  %v4795 = vsel %vm3301, %v4756, 0
  %v4798 = vsel %vm3301, %v4757, 0
  %v4801 = vsel %vm3301, %v4758, 0
  %v4804 = vsel %vm3301, %v4759, 0
  %v4807 = vsel %vm3301, %v4760, 0
  %v4810 = vsel %vm3301, %v4761, 0
  %v4813 = vsel %vm3301, %v4762, 0
  %v4816 = vsel %vm3301, %v4763, 0
  %v4819 = vsel %vm3301, %v4764, 0
  %v4822 = vsel %vm3301, %v4765, 0
  %v4825 = vsel %vm3301, %v4766, 0
  %v4828 = vsel %vm3301, %v4767, 0
  %v4831 = vsel %vm3301, %v4768, 0
  %v4834 = vsel %vm3301, %v4769, 0
  %v4837 = vsel %vm3301, %v4770, 0
  %v4840 = vsel %vm3301, %v4771, 0
  %v4843 = vsel %vm3301, %v4772, 0
  %4845 = vmatprep.subr.mxu0 0.0
  %4846 = vmatpush1.msra.mxu0 0.0
  %4847 = vmatprep.subr.mxu0 0.0
  %4848 = vmatpush1.msra.mxu0 0.0
  %4849 = vmatprep.subr.mxu0 0.0
  %4850 = vmatpush1.msra.mxu0 0.0
  %4851 = vmatprep.subr.mxu0 0.0
  %4852 = vmatpush1.msra.mxu0 0.0
  %4853 = vmatprep.subr.mxu0 0.0
  %4854 = vmatpush1.msra.mxu0 0.0
  %4855 = vmatprep.subr.mxu0 0.0
  %4856 = vmatpush1.msra.mxu0 0.0
  %4857 = vmatprep.subr.mxu0 0.0
  %4858 = vmatpush1.msra.mxu0 0.0
  %4859 = vmatprep.subr.mxu0 0.0
  %4860 = vmatpush1.msra.mxu0 0.0
  %4861 = vmatprep.subr.mxu0 0.0
  %4862 = vmatpush1.msra.mxu0 0.0
  %4863 = vmatprep.subr.mxu0 0.0
  %4864 = vmatpush1.msra.mxu0 0.0
  %4865 = vmatprep.subr.mxu0 0.0
  %4866 = vmatpush1.msra.mxu0 0.0
  %4867 = vmatprep.subr.mxu0 0.0
  %4868 = vmatpush1.msra.mxu0 0.0
  %4869 = vmatprep.subr.mxu0 0.0
  %4870 = vmatpush1.msra.mxu0 0.0
  %4871 = vmatprep.subr.mxu0 0.0
  %4872 = vmatpush1.msra.mxu0 0.0
  %4873 = vmatprep.subr.mxu0 0.0
  %4874 = vmatpush1.msra.mxu0 0.0
  %4875 = vmatprep.subr.mxu0 0.0
  %4876 = vmatpush1.msra.mxu0 %v3257
  %4877 = vmatprep.subr.mxu0 0.0
  %4878 = vmatpush2.msra.mxu0 0.0
  %4879 = vmatprep.subr.mxu0 0.0
  %4880 = vmatpush2.msra.mxu0 0.0
  %4881 = vmatprep.subr.mxu0 0.0
  %4882 = vmatpush2.msra.mxu0 0.0
  %4883 = vmatprep.subr.mxu0 0.0
  %4884 = vmatpush2.msra.mxu0 0.0
  %4885 = vmatprep.subr.mxu0 0.0
  %4886 = vmatpush2.msra.mxu0 0.0
  %4887 = vmatprep.subr.mxu0 0.0
  %4888 = vmatpush2.msra.mxu0 0.0
  %4889 = vmatprep.subr.mxu0 0.0
  %4890 = vmatpush2.msra.mxu0 0.0
  %4891 = vmatprep.subr.mxu0 0.0
  %4892 = vmatpush2.msra.mxu0 0.0
  %4893 = vmatprep.subr.mxu0 0.0
  %4894 = vmatpush2.msra.mxu0 0.0
  %4895 = vmatprep.subr.mxu0 0.0
  %4896 = vmatpush2.msra.mxu0 0.0
  %4897 = vmatprep.subr.mxu0 0.0
  %4898 = vmatpush2.msra.mxu0 0.0
  %4899 = vmatprep.subr.mxu0 0.0
  %4900 = vmatpush2.msra.mxu0 0.0
  %4901 = vmatprep.subr.mxu0 0.0
  %4902 = vmatpush2.msra.mxu0 0.0
  %4903 = vmatprep.subr.mxu0 0.0
  %4904 = vmatpush2.msra.mxu0 0.0
  %4905 = vmatprep.subr.mxu0 0.0
  %4906 = vmatpush2.msra.mxu0 0.0
  %4907 = vmatprep.subr.mxu0 0.0
  %4908 = vmatpush2.msra.mxu0 0.0
  %4909 = vmatprep.mubr.f32.mxu0 0.0
  %4910 = vmatmul.mubr.f32.gmra.mxu0 %v4774
  %v4911 = vpop.f32.mrf.mxu0
  %v4912 = vadd.f32 0.0, %v4911
  %v4913 = vpop.f32.mrf.mxu0
  %4914 = vmatprep.mubr.f32.mxu0 0.0
  %4915 = vmatmul.mubr.f32.gmra.mxu0 %v4777
  %v4916 = vpop.f32.mrf.mxu0
  %v4917 = vadd.f32 0.0, %v4916
  %v4918 = vpop.f32.mrf.mxu0
  %4919 = vmatprep.mubr.f32.mxu0 0.0
  %4920 = vmatmul.mubr.f32.gmra.mxu0 %v4780
  %v4921 = vpop.f32.mrf.mxu0
  %v4922 = vadd.f32 0.0, %v4921
  %v4923 = vpop.f32.mrf.mxu0
  %4924 = vmatprep.mubr.f32.mxu0 0.0
  %4925 = vmatmul.mubr.f32.gmra.mxu0 %v4783
  %v4926 = vpop.f32.mrf.mxu0
  %v4927 = vadd.f32 0.0, %v4926
  %v4928 = vpop.f32.mrf.mxu0
  %4929 = vmatprep.mubr.f32.mxu0 0.0
  %4930 = vmatmul.mubr.f32.gmra.mxu0 %v4786
  %v4931 = vpop.f32.mrf.mxu0
  %v4932 = vadd.f32 0.0, %v4931
  %v4933 = vpop.f32.mrf.mxu0
  %4934 = vmatprep.mubr.f32.mxu0 0.0
  %4935 = vmatmul.mubr.f32.gmra.mxu0 %v4789
  %v4936 = vpop.f32.mrf.mxu0
  %v4937 = vadd.f32 0.0, %v4936
  %v4938 = vpop.f32.mrf.mxu0
  %4939 = vmatprep.mubr.f32.mxu0 0.0
  %4940 = vmatmul.mubr.f32.gmra.mxu0 %v4792
  %v4941 = vpop.f32.mrf.mxu0
  %v4942 = vadd.f32 0.0, %v4941
  %v4943 = vpop.f32.mrf.mxu0
  %4944 = vmatprep.mubr.f32.mxu0 0.0
  %4945 = vmatmul.mubr.f32.gmra.mxu0 %v4795
  %v4946 = vpop.f32.mrf.mxu0
  %v4947 = vadd.f32 0.0, %v4946
  %v4948 = vpop.f32.mrf.mxu0
  %4949 = vmatprep.mubr.f32.mxu0 0.0
  %4950 = vmatmul.mubr.f32.gmra.mxu0 %v4798
  %v4951 = vpop.f32.mrf.mxu0
  %v4952 = vadd.f32 0.0, %v4951
  %v4953 = vpop.f32.mrf.mxu0
  %4954 = vmatprep.mubr.f32.mxu0 0.0
  %4955 = vmatmul.mubr.f32.gmra.mxu0 %v4801
  %v4956 = vpop.f32.mrf.mxu0
  %v4957 = vadd.f32 0.0, %v4956
  %v4958 = vpop.f32.mrf.mxu0
  %4959 = vmatprep.mubr.f32.mxu0 0.0
  %4960 = vmatmul.mubr.f32.gmra.mxu0 %v4804
  %v4961 = vpop.f32.mrf.mxu0
  %v4962 = vadd.f32 0.0, %v4961
  %v4963 = vpop.f32.mrf.mxu0
  %4964 = vmatprep.mubr.f32.mxu0 0.0
  %4965 = vmatmul.mubr.f32.gmra.mxu0 %v4807
  %v4966 = vpop.f32.mrf.mxu0
  %v4967 = vadd.f32 0.0, %v4966
  %v4968 = vpop.f32.mrf.mxu0
  %4969 = vmatprep.mubr.f32.mxu0 0.0
  %4970 = vmatmul.mubr.f32.gmra.mxu0 %v4810
  %v4971 = vpop.f32.mrf.mxu0
  %v4972 = vadd.f32 0.0, %v4971
  %v4973 = vpop.f32.mrf.mxu0
  %4974 = vmatprep.mubr.f32.mxu0 0.0
  %4975 = vmatmul.mubr.f32.gmra.mxu0 %v4813
  %v4976 = vpop.f32.mrf.mxu0
  %v4977 = vadd.f32 0.0, %v4976
  %v4978 = vpop.f32.mrf.mxu0
  %4979 = vmatprep.mubr.f32.mxu0 0.0
  %4980 = vmatmul.mubr.f32.gmra.mxu0 %v4816
  %v4981 = vpop.f32.mrf.mxu0
  %v4982 = vadd.f32 0.0, %v4981
  %v4983 = vpop.f32.mrf.mxu0
  %4984 = vmatprep.mubr.f32.mxu0 0.0
  %4985 = vmatmul.mubr.f32.gmra.mxu0 %v4819
  %v4986 = vpop.f32.mrf.mxu0
  %v4987 = vadd.f32 0.0, %v4986
  %v4988 = vpop.f32.mrf.mxu0
  %4989 = vmatprep.mubr.f32.mxu0 0.0
  %4990 = vmatmul.mubr.f32.gmra.mxu0 %v4822
  %v4991 = vpop.f32.mrf.mxu0
  %v4992 = vadd.f32 0.0, %v4991
  %v4993 = vpop.f32.mrf.mxu0
  %4994 = vmatprep.mubr.f32.mxu0 0.0
  %4995 = vmatmul.mubr.f32.gmra.mxu0 %v4825
  %v4996 = vpop.f32.mrf.mxu0
  %v4997 = vadd.f32 0.0, %v4996
  %v4998 = vpop.f32.mrf.mxu0
  %4999 = vmatprep.mubr.f32.mxu0 0.0
  %5000 = vmatmul.mubr.f32.gmra.mxu0 %v4828
  %v5001 = vpop.f32.mrf.mxu0
  %v5002 = vadd.f32 0.0, %v5001
  %v5003 = vpop.f32.mrf.mxu0
  %5004 = vmatprep.mubr.f32.mxu0 0.0
  %5005 = vmatmul.mubr.f32.gmra.mxu0 %v4831
  %v5006 = vpop.f32.mrf.mxu0
  %v5007 = vadd.f32 0.0, %v5006
  %v5008 = vpop.f32.mrf.mxu0
  %5009 = vmatprep.mubr.f32.mxu0 0.0
  %5010 = vmatmul.mubr.f32.gmra.mxu0 %v4834
  %v5011 = vpop.f32.mrf.mxu0
  %v5012 = vadd.f32 0.0, %v5011
  %v5013 = vpop.f32.mrf.mxu0
  %5014 = vmatprep.mubr.f32.mxu0 0.0
  %5015 = vmatmul.mubr.f32.gmra.mxu0 %v4837
  %v5016 = vpop.f32.mrf.mxu0
  %v5017 = vadd.f32 0.0, %v5016
  %v5018 = vpop.f32.mrf.mxu0
  %5019 = vmatprep.mubr.f32.mxu0 0.0
  %5020 = vmatmul.mubr.f32.gmra.mxu0 %v4840
  %v5021 = vpop.f32.mrf.mxu0
  %v5022 = vadd.f32 0.0, %v5021
  %v5023 = vpop.f32.mrf.mxu0
  %5024 = vmatprep.mubr.f32.mxu0 0.0
  %5025 = vmatmul.mubr.f32.gmra.mxu0 %v4843
  %v5026 = vpop.f32.mrf.mxu0
  %v5027 = vadd.f32 0.0, %v5026
  %v5028 = vpop.f32.mrf.mxu0
  %5029 = vdwg.mxu0
  %v5030 = vld [vmem:[%s79] sm:$0xff]
  %v5031 = vld [vmem:[%s79 + $0x8] sm:$0xff]
  %v5032 = vld [vmem:[%s79 + $0x10] sm:$0xff]
  %v5033 = vld [vmem:[%s79 + $0x18] sm:$0xff]
  %v5034 = vld [vmem:[%s79 + $0x20] sm:$0xff]
  %v5035 = vld [vmem:[%s79 + $0x28] sm:$0xff]
  %v5036 = vld [vmem:[%s79 + $0x30] sm:$0xff]
  %v5037 = vld [vmem:[%s79 + $0x38] sm:$0xff]
  %v5038 = vld [vmem:[%s79 + $0x40] sm:$0xff]
  %v5039 = vld [vmem:[%s79 + $0x48] sm:$0xff]
  %v5040 = vld [vmem:[%s79 + $0x50] sm:$0xff]
  %v5041 = vld [vmem:[%s79 + $0x58] sm:$0xff]
  %v5042 = vld [vmem:[%s79 + $0x60] sm:$0xff]
  %v5043 = vld [vmem:[%s79 + $0x68] sm:$0xff]
  %v5044 = vld [vmem:[%s79 + $0x70] sm:$0xff]
  %v5045 = vld [vmem:[%s79 + $0x78] sm:$0xff]
  %v5046 = vld [vmem:[%s79 + $0x80] sm:$0xff]
  %v5047 = vld [vmem:[%s79 + $0x88] sm:$0xff]
  %v5048 = vld [vmem:[%s79 + $0x90] sm:$0xff]
  %v5049 = vld [vmem:[%s79 + $0x98] sm:$0xff]
  %v5050 = vld [vmem:[%s79 + $0xa0] sm:$0xff]
  %v5051 = vld [vmem:[%s79 + $0xa8] sm:$0xff]
  %v5052 = vld [vmem:[%s79 + $0xb0] sm:$0xff]
  %v5053 = vld [vmem:[%s79 + $0xb8] sm:$0xff]
  %v5055 = vsel %vm3301, %v5030, 0
  %v5058 = vsel %vm3301, %v5031, 0
  %v5061 = vsel %vm3301, %v5032, 0
  %v5064 = vsel %vm3301, %v5033, 0
  %v5067 = vsel %vm3301, %v5034, 0
  %v5070 = vsel %vm3301, %v5035, 0
  %v5073 = vsel %vm3301, %v5036, 0
  %v5076 = vsel %vm3301, %v5037, 0
  %v5079 = vsel %vm3301, %v5038, 0
  %v5082 = vsel %vm3301, %v5039, 0
  %v5085 = vsel %vm3301, %v5040, 0
  %v5088 = vsel %vm3301, %v5041, 0
  %v5091 = vsel %vm3301, %v5042, 0
  %v5094 = vsel %vm3301, %v5043, 0
  %v5097 = vsel %vm3301, %v5044, 0
  %v5100 = vsel %vm3301, %v5045, 0
  %v5103 = vsel %vm3301, %v5046, 0
  %v5106 = vsel %vm3301, %v5047, 0
  %v5109 = vsel %vm3301, %v5048, 0
  %v5112 = vsel %vm3301, %v5049, 0
  %v5115 = vsel %vm3301, %v5050, 0
  %v5118 = vsel %vm3301, %v5051, 0
  %v5121 = vsel %vm3301, %v5052, 0
  %v5124 = vsel %vm3301, %v5053, 0
  %5126 = vmatprep.subr.mxu0 0.0
  %5127 = vmatpush1.msra.mxu0 0.0
  %5128 = vmatprep.subr.mxu0 0.0
  %5129 = vmatpush1.msra.mxu0 0.0
  %5130 = vmatprep.subr.mxu0 0.0
  %5131 = vmatpush1.msra.mxu0 0.0
  %5132 = vmatprep.subr.mxu0 0.0
  %5133 = vmatpush1.msra.mxu0 0.0
  %5134 = vmatprep.subr.mxu0 0.0
  %5135 = vmatpush1.msra.mxu0 0.0
  %5136 = vmatprep.subr.mxu0 0.0
  %5137 = vmatpush1.msra.mxu0 0.0
  %5138 = vmatprep.subr.mxu0 0.0
  %5139 = vmatpush1.msra.mxu0 0.0
  %5140 = vmatprep.subr.mxu0 0.0
  %5141 = vmatpush1.msra.mxu0 0.0
  %5142 = vmatprep.subr.mxu0 0.0
  %5143 = vmatpush1.msra.mxu0 0.0
  %5144 = vmatprep.subr.mxu0 0.0
  %5145 = vmatpush1.msra.mxu0 0.0
  %5146 = vmatprep.subr.mxu0 0.0
  %5147 = vmatpush1.msra.mxu0 0.0
  %5148 = vmatprep.subr.mxu0 0.0
  %5149 = vmatpush1.msra.mxu0 0.0
  %5150 = vmatprep.subr.mxu0 0.0
  %5151 = vmatpush1.msra.mxu0 0.0
  %5152 = vmatprep.subr.mxu0 0.0
  %5153 = vmatpush1.msra.mxu0 0.0
  %5154 = vmatprep.subr.mxu0 0.0
  %5155 = vmatpush1.msra.mxu0 0.0
  %5156 = vmatprep.subr.mxu0 0.0
  %5157 = vmatpush1.msra.mxu0 %v3257
  %5158 = vmatprep.subr.mxu0 0.0
  %5159 = vmatpush2.msra.mxu0 0.0
  %5160 = vmatprep.subr.mxu0 0.0
  %5161 = vmatpush2.msra.mxu0 0.0
  %5162 = vmatprep.subr.mxu0 0.0
  %5163 = vmatpush2.msra.mxu0 0.0
  %5164 = vmatprep.subr.mxu0 0.0
  %5165 = vmatpush2.msra.mxu0 0.0
  %5166 = vmatprep.subr.mxu0 0.0
  %5167 = vmatpush2.msra.mxu0 0.0
  %5168 = vmatprep.subr.mxu0 0.0
  %5169 = vmatpush2.msra.mxu0 0.0
  %5170 = vmatprep.subr.mxu0 0.0
  %5171 = vmatpush2.msra.mxu0 0.0
  %5172 = vmatprep.subr.mxu0 0.0
  %5173 = vmatpush2.msra.mxu0 0.0
  %5174 = vmatprep.subr.mxu0 0.0
  %5175 = vmatpush2.msra.mxu0 0.0
  %5176 = vmatprep.subr.mxu0 0.0
  %5177 = vmatpush2.msra.mxu0 0.0
  %5178 = vmatprep.subr.mxu0 0.0
  %5179 = vmatpush2.msra.mxu0 0.0
  %5180 = vmatprep.subr.mxu0 0.0
  %5181 = vmatpush2.msra.mxu0 0.0
  %5182 = vmatprep.subr.mxu0 0.0
  %5183 = vmatpush2.msra.mxu0 0.0
  %5184 = vmatprep.subr.mxu0 0.0
  %5185 = vmatpush2.msra.mxu0 0.0
  %5186 = vmatprep.subr.mxu0 0.0
  %5187 = vmatpush2.msra.mxu0 0.0
  %5188 = vmatprep.subr.mxu0 0.0
  %5189 = vmatpush2.msra.mxu0 0.0
  %5190 = vmatprep.mubr.f32.mxu0 0.0
  %5191 = vmatmul.mubr.f32.gmra.mxu0 %v5055
  %v5192 = vpop.f32.mrf.mxu0
  %v5193 = vadd.f32 0.0, %v5192
  %v5194 = vpop.f32.mrf.mxu0
  %5195 = vmatprep.mubr.f32.mxu0 0.0
  %5196 = vmatmul.mubr.f32.gmra.mxu0 %v5058
  %v5197 = vpop.f32.mrf.mxu0
  %v5198 = vadd.f32 0.0, %v5197
  %v5199 = vpop.f32.mrf.mxu0
  %5200 = vmatprep.mubr.f32.mxu0 0.0
  %5201 = vmatmul.mubr.f32.gmra.mxu0 %v5061
  %v5202 = vpop.f32.mrf.mxu0
  %v5203 = vadd.f32 0.0, %v5202
  %v5204 = vpop.f32.mrf.mxu0
  %5205 = vmatprep.mubr.f32.mxu0 0.0
  %5206 = vmatmul.mubr.f32.gmra.mxu0 %v5064
  %v5207 = vpop.f32.mrf.mxu0
  %v5208 = vadd.f32 0.0, %v5207
  %v5209 = vpop.f32.mrf.mxu0
  %5210 = vmatprep.mubr.f32.mxu0 0.0
  %5211 = vmatmul.mubr.f32.gmra.mxu0 %v5067
  %v5212 = vpop.f32.mrf.mxu0
  %v5213 = vadd.f32 0.0, %v5212
  %v5214 = vpop.f32.mrf.mxu0
  %5215 = vmatprep.mubr.f32.mxu0 0.0
  %5216 = vmatmul.mubr.f32.gmra.mxu0 %v5070
  %v5217 = vpop.f32.mrf.mxu0
  %v5218 = vadd.f32 0.0, %v5217
  %v5219 = vpop.f32.mrf.mxu0
  %5220 = vmatprep.mubr.f32.mxu0 0.0
  %5221 = vmatmul.mubr.f32.gmra.mxu0 %v5073
  %v5222 = vpop.f32.mrf.mxu0
  %v5223 = vadd.f32 0.0, %v5222
  %v5224 = vpop.f32.mrf.mxu0
  %5225 = vmatprep.mubr.f32.mxu0 0.0
  %5226 = vmatmul.mubr.f32.gmra.mxu0 %v5076
  %v5227 = vpop.f32.mrf.mxu0
  %v5228 = vadd.f32 0.0, %v5227
  %v5229 = vpop.f32.mrf.mxu0
  %5230 = vmatprep.mubr.f32.mxu0 0.0
  %5231 = vmatmul.mubr.f32.gmra.mxu0 %v5079
  %v5232 = vpop.f32.mrf.mxu0
  %v5233 = vadd.f32 0.0, %v5232
  %v5234 = vpop.f32.mrf.mxu0
  %5235 = vmatprep.mubr.f32.mxu0 0.0
  %5236 = vmatmul.mubr.f32.gmra.mxu0 %v5082
  %v5237 = vpop.f32.mrf.mxu0
  %v5238 = vadd.f32 0.0, %v5237
  %v5239 = vpop.f32.mrf.mxu0
  %5240 = vmatprep.mubr.f32.mxu0 0.0
  %5241 = vmatmul.mubr.f32.gmra.mxu0 %v5085
  %v5242 = vpop.f32.mrf.mxu0
  %v5243 = vadd.f32 0.0, %v5242
  %v5244 = vpop.f32.mrf.mxu0
  %5245 = vmatprep.mubr.f32.mxu0 0.0
  %5246 = vmatmul.mubr.f32.gmra.mxu0 %v5088
  %v5247 = vpop.f32.mrf.mxu0
  %v5248 = vadd.f32 0.0, %v5247
  %v5249 = vpop.f32.mrf.mxu0
  %5250 = vmatprep.mubr.f32.mxu0 0.0
  %5251 = vmatmul.mubr.f32.gmra.mxu0 %v5091
  %v5252 = vpop.f32.mrf.mxu0
  %v5253 = vadd.f32 0.0, %v5252
  %v5254 = vpop.f32.mrf.mxu0
  %5255 = vmatprep.mubr.f32.mxu0 0.0
  %5256 = vmatmul.mubr.f32.gmra.mxu0 %v5094
  %v5257 = vpop.f32.mrf.mxu0
  %v5258 = vadd.f32 0.0, %v5257
  %v5259 = vpop.f32.mrf.mxu0
  %5260 = vmatprep.mubr.f32.mxu0 0.0
  %5261 = vmatmul.mubr.f32.gmra.mxu0 %v5097
  %v5262 = vpop.f32.mrf.mxu0
  %v5263 = vadd.f32 0.0, %v5262
  %v5264 = vpop.f32.mrf.mxu0
  %5265 = vmatprep.mubr.f32.mxu0 0.0
  %5266 = vmatmul.mubr.f32.gmra.mxu0 %v5100
  %v5267 = vpop.f32.mrf.mxu0
  %v5268 = vadd.f32 0.0, %v5267
  %v5269 = vpop.f32.mrf.mxu0
  %5270 = vmatprep.mubr.f32.mxu0 0.0
  %5271 = vmatmul.mubr.f32.gmra.mxu0 %v5103
  %v5272 = vpop.f32.mrf.mxu0
  %v5273 = vadd.f32 0.0, %v5272
  %v5274 = vpop.f32.mrf.mxu0
  %5275 = vmatprep.mubr.f32.mxu0 0.0
  %5276 = vmatmul.mubr.f32.gmra.mxu0 %v5106
  %v5277 = vpop.f32.mrf.mxu0
  %v5278 = vadd.f32 0.0, %v5277
  %v5279 = vpop.f32.mrf.mxu0
  %5280 = vmatprep.mubr.f32.mxu0 0.0
  %5281 = vmatmul.mubr.f32.gmra.mxu0 %v5109
  %v5282 = vpop.f32.mrf.mxu0
  %v5283 = vadd.f32 0.0, %v5282
  %v5284 = vpop.f32.mrf.mxu0
  %5285 = vmatprep.mubr.f32.mxu0 0.0
  %5286 = vmatmul.mubr.f32.gmra.mxu0 %v5112
  %v5287 = vpop.f32.mrf.mxu0
  %v5288 = vadd.f32 0.0, %v5287
  %v5289 = vpop.f32.mrf.mxu0
  %5290 = vmatprep.mubr.f32.mxu0 0.0
  %5291 = vmatmul.mubr.f32.gmra.mxu0 %v5115
  %v5292 = vpop.f32.mrf.mxu0
  %v5293 = vadd.f32 0.0, %v5292
  %v5294 = vpop.f32.mrf.mxu0
  %5295 = vmatprep.mubr.f32.mxu0 0.0
  %5296 = vmatmul.mubr.f32.gmra.mxu0 %v5118
  %v5297 = vpop.f32.mrf.mxu0
  %v5298 = vadd.f32 0.0, %v5297
  %v5299 = vpop.f32.mrf.mxu0
  %5300 = vmatprep.mubr.f32.mxu0 0.0
  %5301 = vmatmul.mubr.f32.gmra.mxu0 %v5121
  %v5302 = vpop.f32.mrf.mxu0
  %v5303 = vadd.f32 0.0, %v5302
  %v5304 = vpop.f32.mrf.mxu0
  %5305 = vmatprep.mubr.f32.mxu0 0.0
  %5306 = vmatmul.mubr.f32.gmra.mxu0 %v5124
  %v5307 = vpop.f32.mrf.mxu0
  %v5308 = vadd.f32 0.0, %v5307
  %v5309 = vpop.f32.mrf.mxu0
  %5310 = vdwg.mxu0
  %v5312 = vsel %vm176, %v5193, 0
  %v5315 = vsel %vm176, %v5198, 0
  %v5318 = vsel %vm176, %v5203, 0
  %v5321 = vsel %vm176, %v5208, 0
  %v5324 = vsel %vm176, %v5213, 0
  %v5327 = vsel %vm176, %v5218, 0
  %v5330 = vsel %vm176, %v5223, 0
  %v5333 = vsel %vm176, %v5228, 0
  %v5336 = vsel %vm176, %v5233, 0
  %v5339 = vsel %vm176, %v5238, 0
  %v5342 = vsel %vm176, %v5243, 0
  %v5345 = vsel %vm176, %v5248, 0
  %v5348 = vsel %vm176, %v5253, 0
  %v5351 = vsel %vm176, %v5258, 0
  %v5354 = vsel %vm176, %v5263, 0
  %v5357 = vsel %vm176, %v5268, 0
  %v5360 = vsel %vm176, %v5273, 0
  %v5363 = vsel %vm176, %v5278, 0
  %v5366 = vsel %vm176, %v5283, 0
  %v5369 = vsel %vm176, %v5288, 0
  %v5372 = vsel %vm176, %v5293, 0
  %v5375 = vsel %vm176, %v5298, 0
  %v5378 = vsel %vm176, %v5303, 0
  %v5381 = vsel %vm176, %v5308, 0
  %5383 = vmatprep.subr.mxu0 0.0
  %5384 = vmatpush1.msra.mxu0 0.0
  %5385 = vmatprep.subr.mxu0 0.0
  %5386 = vmatpush1.msra.mxu0 0.0
  %5387 = vmatprep.subr.mxu0 0.0
  %5388 = vmatpush1.msra.mxu0 0.0
  %5389 = vmatprep.subr.mxu0 0.0
  %5390 = vmatpush1.msra.mxu0 0.0
  %5391 = vmatprep.subr.mxu0 0.0
  %5392 = vmatpush1.msra.mxu0 0.0
  %5393 = vmatprep.subr.mxu0 0.0
  %5394 = vmatpush1.msra.mxu0 0.0
  %5395 = vmatprep.subr.mxu0 0.0
  %5396 = vmatpush1.msra.mxu0 0.0
  %5397 = vmatprep.subr.mxu0 0.0
  %5398 = vmatpush1.msra.mxu0 0.0
  %5399 = vmatprep.subr.mxu0 0.0
  %5400 = vmatpush1.msra.mxu0 0.0
  %5401 = vmatprep.subr.mxu0 0.0
  %5402 = vmatpush1.msra.mxu0 0.0
  %5403 = vmatprep.subr.mxu0 0.0
  %5404 = vmatpush1.msra.mxu0 0.0
  %5405 = vmatprep.subr.mxu0 0.0
  %5406 = vmatpush1.msra.mxu0 0.0
  %5407 = vmatprep.subr.mxu0 0.0
  %5408 = vmatpush1.msra.mxu0 0.0
  %5409 = vmatprep.subr.mxu0 0.0
  %5410 = vmatpush1.msra.mxu0 0.0
  %5411 = vmatprep.subr.mxu0 0.0
  %5412 = vmatpush1.msra.mxu0 %v3276
  %5413 = vmatprep.subr.mxu0 0.0
  %5414 = vmatpush1.msra.mxu0 %v3275
  %5415 = vmatprep.subr.mxu0 0.0
  %5416 = vmatpush2.msra.mxu0 0.0
  %5417 = vmatprep.subr.mxu0 0.0
  %5418 = vmatpush2.msra.mxu0 0.0
  %5419 = vmatprep.subr.mxu0 0.0
  %5420 = vmatpush2.msra.mxu0 0.0
  %5421 = vmatprep.subr.mxu0 0.0
  %5422 = vmatpush2.msra.mxu0 0.0
  %5423 = vmatprep.subr.mxu0 0.0
  %5424 = vmatpush2.msra.mxu0 0.0
  %5425 = vmatprep.subr.mxu0 0.0
  %5426 = vmatpush2.msra.mxu0 0.0
  %5427 = vmatprep.subr.mxu0 0.0
  %5428 = vmatpush2.msra.mxu0 0.0
  %5429 = vmatprep.subr.mxu0 0.0
  %5430 = vmatpush2.msra.mxu0 0.0
  %5431 = vmatprep.subr.mxu0 0.0
  %5432 = vmatpush2.msra.mxu0 0.0
  %5433 = vmatprep.subr.mxu0 0.0
  %5434 = vmatpush2.msra.mxu0 0.0
  %5435 = vmatprep.subr.mxu0 0.0
  %5436 = vmatpush2.msra.mxu0 0.0
  %5437 = vmatprep.subr.mxu0 0.0
  %5438 = vmatpush2.msra.mxu0 0.0
  %5439 = vmatprep.subr.mxu0 0.0
  %5440 = vmatpush2.msra.mxu0 0.0
  %5441 = vmatprep.subr.mxu0 0.0
  %5442 = vmatpush2.msra.mxu0 0.0
  %5443 = vmatprep.subr.mxu0 0.0
  %5444 = vmatpush2.msra.mxu0 0.0
  %5445 = vmatprep.subr.mxu0 0.0
  %5446 = vmatpush2.msra.mxu0 0.0
  %5447 = vmatprep.mubr.f32.mxu0 0.0
  %5448 = vmatmul.mubr.f32.gmra.mxu0 %v5312
  %v5449 = vpop.f32.mrf.mxu0
  %v5450 = vadd.f32 0.0, %v5449
  %v5451 = vpop.f32.mrf.mxu0
  %5452 = vmatprep.mubr.f32.mxu0 0.0
  %5453 = vmatmul.mubr.f32.gmra.mxu0 %v5315
  %v5454 = vpop.f32.mrf.mxu0
  %v5455 = vadd.f32 0.0, %v5454
  %v5456 = vpop.f32.mrf.mxu0
  %5457 = vmatprep.mubr.f32.mxu0 0.0
  %5458 = vmatmul.mubr.f32.gmra.mxu0 %v5318
  %v5459 = vpop.f32.mrf.mxu0
  %v5460 = vadd.f32 0.0, %v5459
  %v5461 = vpop.f32.mrf.mxu0
  %5462 = vmatprep.mubr.f32.mxu0 0.0
  %5463 = vmatmul.mubr.f32.gmra.mxu0 %v5321
  %v5464 = vpop.f32.mrf.mxu0
  %v5465 = vadd.f32 0.0, %v5464
  %v5466 = vpop.f32.mrf.mxu0
  %5467 = vmatprep.mubr.f32.mxu0 0.0
  %5468 = vmatmul.mubr.f32.gmra.mxu0 %v5324
  %v5469 = vpop.f32.mrf.mxu0
  %v5470 = vadd.f32 0.0, %v5469
  %v5471 = vpop.f32.mrf.mxu0
  %5472 = vmatprep.mubr.f32.mxu0 0.0
  %5473 = vmatmul.mubr.f32.gmra.mxu0 %v5327
  %v5474 = vpop.f32.mrf.mxu0
  %v5475 = vadd.f32 0.0, %v5474
  %v5476 = vpop.f32.mrf.mxu0
  %5477 = vmatprep.mubr.f32.mxu0 0.0
  %5478 = vmatmul.mubr.f32.gmra.mxu0 %v5330
  %v5479 = vpop.f32.mrf.mxu0
  %v5480 = vadd.f32 0.0, %v5479
  %v5481 = vpop.f32.mrf.mxu0
  %5482 = vmatprep.mubr.f32.mxu0 0.0
  %5483 = vmatmul.mubr.f32.gmra.mxu0 %v5333
  %v5484 = vpop.f32.mrf.mxu0
  %v5485 = vadd.f32 0.0, %v5484
  %v5486 = vpop.f32.mrf.mxu0
  %5487 = vmatprep.mubr.f32.mxu0 0.0
  %5488 = vmatmul.mubr.f32.gmra.mxu0 %v5336
  %v5489 = vpop.f32.mrf.mxu0
  %v5490 = vadd.f32 0.0, %v5489
  %v5491 = vpop.f32.mrf.mxu0
  %5492 = vmatprep.mubr.f32.mxu0 0.0
  %5493 = vmatmul.mubr.f32.gmra.mxu0 %v5339
  %v5494 = vpop.f32.mrf.mxu0
  %v5495 = vadd.f32 0.0, %v5494
  %v5496 = vpop.f32.mrf.mxu0
  %5497 = vmatprep.mubr.f32.mxu0 0.0
  %5498 = vmatmul.mubr.f32.gmra.mxu0 %v5342
  %v5499 = vpop.f32.mrf.mxu0
  %v5500 = vadd.f32 0.0, %v5499
  %v5501 = vpop.f32.mrf.mxu0
  %5502 = vmatprep.mubr.f32.mxu0 0.0
  %5503 = vmatmul.mubr.f32.gmra.mxu0 %v5345
  %v5504 = vpop.f32.mrf.mxu0
  %v5505 = vadd.f32 0.0, %v5504
  %v5506 = vpop.f32.mrf.mxu0
  %5507 = vmatprep.mubr.f32.mxu0 0.0
  %5508 = vmatmul.mubr.f32.gmra.mxu0 %v5348
  %v5509 = vpop.f32.mrf.mxu0
  %v5510 = vadd.f32 0.0, %v5509
  %v5511 = vpop.f32.mrf.mxu0
  %5512 = vmatprep.mubr.f32.mxu0 0.0
  %5513 = vmatmul.mubr.f32.gmra.mxu0 %v5351
  %v5514 = vpop.f32.mrf.mxu0
  %v5515 = vadd.f32 0.0, %v5514
  %v5516 = vpop.f32.mrf.mxu0
  %5517 = vmatprep.mubr.f32.mxu0 0.0
  %5518 = vmatmul.mubr.f32.gmra.mxu0 %v5354
  %v5519 = vpop.f32.mrf.mxu0
  %v5520 = vadd.f32 0.0, %v5519
  %v5521 = vpop.f32.mrf.mxu0
  %5522 = vmatprep.mubr.f32.mxu0 0.0
  %5523 = vmatmul.mubr.f32.gmra.mxu0 %v5357
  %v5524 = vpop.f32.mrf.mxu0
  %v5525 = vadd.f32 0.0, %v5524
  %v5526 = vpop.f32.mrf.mxu0
  %5527 = vmatprep.mubr.f32.mxu0 0.0
  %5528 = vmatmul.mubr.f32.gmra.mxu0 %v5360
  %v5529 = vpop.f32.mrf.mxu0
  %v5530 = vadd.f32 0.0, %v5529
  %v5531 = vpop.f32.mrf.mxu0
  %5532 = vmatprep.mubr.f32.mxu0 0.0
  %5533 = vmatmul.mubr.f32.gmra.mxu0 %v5363
  %v5534 = vpop.f32.mrf.mxu0
  %v5535 = vadd.f32 0.0, %v5534
  %v5536 = vpop.f32.mrf.mxu0
  %5537 = vmatprep.mubr.f32.mxu0 0.0
  %5538 = vmatmul.mubr.f32.gmra.mxu0 %v5366
  %v5539 = vpop.f32.mrf.mxu0
  %v5540 = vadd.f32 0.0, %v5539
  %v5541 = vpop.f32.mrf.mxu0
  %5542 = vmatprep.mubr.f32.mxu0 0.0
  %5543 = vmatmul.mubr.f32.gmra.mxu0 %v5369
  %v5544 = vpop.f32.mrf.mxu0
  %v5545 = vadd.f32 0.0, %v5544
  %v5546 = vpop.f32.mrf.mxu0
  %5547 = vmatprep.mubr.f32.mxu0 0.0
  %5548 = vmatmul.mubr.f32.gmra.mxu0 %v5372
  %v5549 = vpop.f32.mrf.mxu0
  %v5550 = vadd.f32 0.0, %v5549
  %v5551 = vpop.f32.mrf.mxu0
  %5552 = vmatprep.mubr.f32.mxu0 0.0
  %5553 = vmatmul.mubr.f32.gmra.mxu0 %v5375
  %v5554 = vpop.f32.mrf.mxu0
  %v5555 = vadd.f32 0.0, %v5554
  %v5556 = vpop.f32.mrf.mxu0
  %5557 = vmatprep.mubr.f32.mxu0 0.0
  %5558 = vmatmul.mubr.f32.gmra.mxu0 %v5378
  %v5559 = vpop.f32.mrf.mxu0
  %v5560 = vadd.f32 0.0, %v5559
  %v5561 = vpop.f32.mrf.mxu0
  %5562 = vmatprep.mubr.f32.mxu0 0.0
  %5563 = vmatmul.mubr.f32.gmra.mxu0 %v5381
  %v5564 = vpop.f32.mrf.mxu0
  %v5565 = vadd.f32 0.0, %v5564
  %v5566 = vpop.f32.mrf.mxu0
  %5567 = vdwg.mxu0
  %v5569 = vsel %vm176, %v4912, 0
  %v5572 = vsel %vm176, %v4917, 0
  %v5575 = vsel %vm176, %v4922, 0
  %v5578 = vsel %vm176, %v4927, 0
  %v5581 = vsel %vm176, %v4932, 0
  %v5584 = vsel %vm176, %v4937, 0
  %v5587 = vsel %vm176, %v4942, 0
  %v5590 = vsel %vm176, %v4947, 0
  %v5593 = vsel %vm176, %v4952, 0
  %v5596 = vsel %vm176, %v4957, 0
  %v5599 = vsel %vm176, %v4962, 0
  %v5602 = vsel %vm176, %v4967, 0
  %v5605 = vsel %vm176, %v4972, 0
  %v5608 = vsel %vm176, %v4977, 0
  %v5611 = vsel %vm176, %v4982, 0
  %v5614 = vsel %vm176, %v4987, 0
  %v5617 = vsel %vm176, %v4992, 0
  %v5620 = vsel %vm176, %v4997, 0
  %v5623 = vsel %vm176, %v5002, 0
  %v5626 = vsel %vm176, %v5007, 0
  %v5629 = vsel %vm176, %v5012, 0
  %v5632 = vsel %vm176, %v5017, 0
  %v5635 = vsel %vm176, %v5022, 0
  %v5638 = vsel %vm176, %v5027, 0
  %5640 = vmatprep.subr.mxu0 0.0
  %5641 = vmatpush1.msra.mxu0 0.0
  %5642 = vmatprep.subr.mxu0 0.0
  %5643 = vmatpush1.msra.mxu0 0.0
  %5644 = vmatprep.subr.mxu0 0.0
  %5645 = vmatpush1.msra.mxu0 0.0
  %5646 = vmatprep.subr.mxu0 0.0
  %5647 = vmatpush1.msra.mxu0 0.0
  %5648 = vmatprep.subr.mxu0 0.0
  %5649 = vmatpush1.msra.mxu0 0.0
  %5650 = vmatprep.subr.mxu0 0.0
  %5651 = vmatpush1.msra.mxu0 0.0
  %5652 = vmatprep.subr.mxu0 0.0
  %5653 = vmatpush1.msra.mxu0 0.0
  %5654 = vmatprep.subr.mxu0 0.0
  %5655 = vmatpush1.msra.mxu0 0.0
  %5656 = vmatprep.subr.mxu0 0.0
  %5657 = vmatpush1.msra.mxu0 0.0
  %5658 = vmatprep.subr.mxu0 0.0
  %5659 = vmatpush1.msra.mxu0 0.0
  %5660 = vmatprep.subr.mxu0 0.0
  %5661 = vmatpush1.msra.mxu0 0.0
  %5662 = vmatprep.subr.mxu0 0.0
  %5663 = vmatpush1.msra.mxu0 0.0
  %5664 = vmatprep.subr.mxu0 0.0
  %5665 = vmatpush1.msra.mxu0 0.0
  %5666 = vmatprep.subr.mxu0 0.0
  %5667 = vmatpush1.msra.mxu0 0.0
  %5668 = vmatprep.subr.mxu0 0.0
  %5669 = vmatpush1.msra.mxu0 %v3269
  %5670 = vmatprep.subr.mxu0 0.0
  %5671 = vmatpush1.msra.mxu0 %v3268
  %5672 = vmatprep.subr.mxu0 0.0
  %5673 = vmatpush2.msra.mxu0 0.0
  %5674 = vmatprep.subr.mxu0 0.0
  %5675 = vmatpush2.msra.mxu0 0.0
  %5676 = vmatprep.subr.mxu0 0.0
  %5677 = vmatpush2.msra.mxu0 0.0
  %5678 = vmatprep.subr.mxu0 0.0
  %5679 = vmatpush2.msra.mxu0 0.0
  %5680 = vmatprep.subr.mxu0 0.0
  %5681 = vmatpush2.msra.mxu0 0.0
  %5682 = vmatprep.subr.mxu0 0.0
  %5683 = vmatpush2.msra.mxu0 0.0
  %5684 = vmatprep.subr.mxu0 0.0
  %5685 = vmatpush2.msra.mxu0 0.0
  %5686 = vmatprep.subr.mxu0 0.0
  %5687 = vmatpush2.msra.mxu0 0.0
  %5688 = vmatprep.subr.mxu0 0.0
  %5689 = vmatpush2.msra.mxu0 0.0
  %5690 = vmatprep.subr.mxu0 0.0
  %5691 = vmatpush2.msra.mxu0 0.0
  %5692 = vmatprep.subr.mxu0 0.0
  %5693 = vmatpush2.msra.mxu0 0.0
  %5694 = vmatprep.subr.mxu0 0.0
  %5695 = vmatpush2.msra.mxu0 0.0
  %5696 = vmatprep.subr.mxu0 0.0
  %5697 = vmatpush2.msra.mxu0 0.0
  %5698 = vmatprep.subr.mxu0 0.0
  %5699 = vmatpush2.msra.mxu0 0.0
  %5700 = vmatprep.subr.mxu0 0.0
  %5701 = vmatpush2.msra.mxu0 0.0
  %5702 = vmatprep.subr.mxu0 0.0
  %5703 = vmatpush2.msra.mxu0 0.0
  %5704 = vmatprep.mubr.f32.mxu0 0.0
  %5705 = vmatmul.mubr.f32.gmra.mxu0 %v5569
  %v5706 = vpop.f32.mrf.mxu0
  %v5707 = vadd.f32 %v5450, %v5706
  %v5708 = vpop.f32.mrf.mxu0
  %5709 = vmatprep.mubr.f32.mxu0 0.0
  %5710 = vmatmul.mubr.f32.gmra.mxu0 %v5572
  %v5711 = vpop.f32.mrf.mxu0
  %v5712 = vadd.f32 %v5455, %v5711
  %v5713 = vpop.f32.mrf.mxu0
  %5714 = vmatprep.mubr.f32.mxu0 0.0
  %5715 = vmatmul.mubr.f32.gmra.mxu0 %v5575
  %v5716 = vpop.f32.mrf.mxu0
  %v5717 = vadd.f32 %v5460, %v5716
  %v5718 = vpop.f32.mrf.mxu0
  %5719 = vmatprep.mubr.f32.mxu0 0.0
  %5720 = vmatmul.mubr.f32.gmra.mxu0 %v5578
  %v5721 = vpop.f32.mrf.mxu0
  %v5722 = vadd.f32 %v5465, %v5721
  %v5723 = vpop.f32.mrf.mxu0
  %5724 = vmatprep.mubr.f32.mxu0 0.0
  %5725 = vmatmul.mubr.f32.gmra.mxu0 %v5581
  %v5726 = vpop.f32.mrf.mxu0
  %v5727 = vadd.f32 %v5470, %v5726
  %v5728 = vpop.f32.mrf.mxu0
  %5729 = vmatprep.mubr.f32.mxu0 0.0
  %5730 = vmatmul.mubr.f32.gmra.mxu0 %v5584
  %v5731 = vpop.f32.mrf.mxu0
  %v5732 = vadd.f32 %v5475, %v5731
  %v5733 = vpop.f32.mrf.mxu0
  %5734 = vmatprep.mubr.f32.mxu0 0.0
  %5735 = vmatmul.mubr.f32.gmra.mxu0 %v5587
  %v5736 = vpop.f32.mrf.mxu0
  %v5737 = vadd.f32 %v5480, %v5736
  %v5738 = vpop.f32.mrf.mxu0
  %5739 = vmatprep.mubr.f32.mxu0 0.0
  %5740 = vmatmul.mubr.f32.gmra.mxu0 %v5590
  %v5741 = vpop.f32.mrf.mxu0
  %v5742 = vadd.f32 %v5485, %v5741
  %v5743 = vpop.f32.mrf.mxu0
  %5744 = vmatprep.mubr.f32.mxu0 0.0
  %5745 = vmatmul.mubr.f32.gmra.mxu0 %v5593
  %v5746 = vpop.f32.mrf.mxu0
  %v5747 = vadd.f32 %v5490, %v5746
  %v5748 = vpop.f32.mrf.mxu0
  %5749 = vmatprep.mubr.f32.mxu0 0.0
  %5750 = vmatmul.mubr.f32.gmra.mxu0 %v5596
  %v5751 = vpop.f32.mrf.mxu0
  %v5752 = vadd.f32 %v5495, %v5751
  %v5753 = vpop.f32.mrf.mxu0
  %5754 = vmatprep.mubr.f32.mxu0 0.0
  %5755 = vmatmul.mubr.f32.gmra.mxu0 %v5599
  %v5756 = vpop.f32.mrf.mxu0
  %v5757 = vadd.f32 %v5500, %v5756
  %v5758 = vpop.f32.mrf.mxu0
  %5759 = vmatprep.mubr.f32.mxu0 0.0
  %5760 = vmatmul.mubr.f32.gmra.mxu0 %v5602
  %v5761 = vpop.f32.mrf.mxu0
  %v5762 = vadd.f32 %v5505, %v5761
  %v5763 = vpop.f32.mrf.mxu0
  %5764 = vmatprep.mubr.f32.mxu0 0.0
  %5765 = vmatmul.mubr.f32.gmra.mxu0 %v5605
  %v5766 = vpop.f32.mrf.mxu0
  %v5767 = vadd.f32 %v5510, %v5766
  %v5768 = vpop.f32.mrf.mxu0
  %5769 = vmatprep.mubr.f32.mxu0 0.0
  %5770 = vmatmul.mubr.f32.gmra.mxu0 %v5608
  %v5771 = vpop.f32.mrf.mxu0
  %v5772 = vadd.f32 %v5515, %v5771
  %v5773 = vpop.f32.mrf.mxu0
  %5774 = vmatprep.mubr.f32.mxu0 0.0
  %5775 = vmatmul.mubr.f32.gmra.mxu0 %v5611
  %v5776 = vpop.f32.mrf.mxu0
  %v5777 = vadd.f32 %v5520, %v5776
  %v5778 = vpop.f32.mrf.mxu0
  %5779 = vmatprep.mubr.f32.mxu0 0.0
  %5780 = vmatmul.mubr.f32.gmra.mxu0 %v5614
  %v5781 = vpop.f32.mrf.mxu0
  %v5782 = vadd.f32 %v5525, %v5781
  %v5783 = vpop.f32.mrf.mxu0
  %5784 = vmatprep.mubr.f32.mxu0 0.0
  %5785 = vmatmul.mubr.f32.gmra.mxu0 %v5617
  %v5786 = vpop.f32.mrf.mxu0
  %v5787 = vadd.f32 %v5530, %v5786
  %v5788 = vpop.f32.mrf.mxu0
  %5789 = vmatprep.mubr.f32.mxu0 0.0
  %5790 = vmatmul.mubr.f32.gmra.mxu0 %v5620
  %v5791 = vpop.f32.mrf.mxu0
  %v5792 = vadd.f32 %v5535, %v5791
  %v5793 = vpop.f32.mrf.mxu0
  %5794 = vmatprep.mubr.f32.mxu0 0.0
  %5795 = vmatmul.mubr.f32.gmra.mxu0 %v5623
  %v5796 = vpop.f32.mrf.mxu0
  %v5797 = vadd.f32 %v5540, %v5796
  %v5798 = vpop.f32.mrf.mxu0
  %5799 = vmatprep.mubr.f32.mxu0 0.0
  %5800 = vmatmul.mubr.f32.gmra.mxu0 %v5626
  %v5801 = vpop.f32.mrf.mxu0
  %v5802 = vadd.f32 %v5545, %v5801
  %v5803 = vpop.f32.mrf.mxu0
  %5804 = vmatprep.mubr.f32.mxu0 0.0
  %5805 = vmatmul.mubr.f32.gmra.mxu0 %v5629
  %v5806 = vpop.f32.mrf.mxu0
  %v5807 = vadd.f32 %v5550, %v5806
  %v5808 = vpop.f32.mrf.mxu0
  %5809 = vmatprep.mubr.f32.mxu0 0.0
  %5810 = vmatmul.mubr.f32.gmra.mxu0 %v5632
  %v5811 = vpop.f32.mrf.mxu0
  %v5812 = vadd.f32 %v5555, %v5811
  %v5813 = vpop.f32.mrf.mxu0
  %5814 = vmatprep.mubr.f32.mxu0 0.0
  %5815 = vmatmul.mubr.f32.gmra.mxu0 %v5635
  %v5816 = vpop.f32.mrf.mxu0
  %v5817 = vadd.f32 %v5560, %v5816
  %v5818 = vpop.f32.mrf.mxu0
  %5819 = vmatprep.mubr.f32.mxu0 0.0
  %5820 = vmatmul.mubr.f32.gmra.mxu0 %v5638
  %v5821 = vpop.f32.mrf.mxu0
  %v5822 = vadd.f32 %v5565, %v5821
  %v5823 = vpop.f32.mrf.mxu0
  %5824 = vdwg.mxu0
  %v5825 = vld [vmem:[%s81] sm:$0xff]
  %v5826 = vld [vmem:[%s81 + $0x8] sm:$0xff]
  %v5827 = vld [vmem:[%s81 + $0x10] sm:$0xff]
  %v5828 = vld [vmem:[%s81 + $0x18] sm:$0xff]
  %v5829 = vld [vmem:[%s81 + $0x20] sm:$0xff]
  %v5830 = vld [vmem:[%s81 + $0x28] sm:$0xff]
  %v5831 = vld [vmem:[%s81 + $0x30] sm:$0xff]
  %v5832 = vld [vmem:[%s81 + $0x38] sm:$0xff]
  %v5833 = vld [vmem:[%s81 + $0x40] sm:$0xff]
  %v5834 = vld [vmem:[%s81 + $0x48] sm:$0xff]
  %v5835 = vld [vmem:[%s81 + $0x50] sm:$0xff]
  %v5836 = vld [vmem:[%s81 + $0x58] sm:$0xff]
  %v5837 = vld [vmem:[%s81 + $0x60] sm:$0xff]
  %v5838 = vld [vmem:[%s81 + $0x68] sm:$0xff]
  %v5839 = vld [vmem:[%s81 + $0x70] sm:$0xff]
  %v5840 = vld [vmem:[%s81 + $0x78] sm:$0xff]
  %v5841 = vld [vmem:[%s81 + $0x80] sm:$0xff]
  %v5842 = vld [vmem:[%s81 + $0x88] sm:$0xff]
  %v5843 = vld [vmem:[%s81 + $0x90] sm:$0xff]
  %v5844 = vld [vmem:[%s81 + $0x98] sm:$0xff]
  %v5845 = vld [vmem:[%s81 + $0xa0] sm:$0xff]
  %v5846 = vld [vmem:[%s81 + $0xa8] sm:$0xff]
  %v5847 = vld [vmem:[%s81 + $0xb0] sm:$0xff]
  %v5848 = vld [vmem:[%s81 + $0xb8] sm:$0xff]
  %5850 = vset.pattern.permute.xlu0 0
  %5851 = vperm.xlu0 %5850, %v5825
  %v5852 = vpop.permute.xlu0 %5851
  %5855 = vset.pattern.permute.xlu0 0
  %5856 = vperm.xlu0 %5855, %v5826
  %v5857 = vpop.permute.xlu0 %5856
  %5860 = vset.pattern.permute.xlu0 0
  %5861 = vperm.xlu0 %5860, %v5827
  %v5862 = vpop.permute.xlu0 %5861
  %5865 = vset.pattern.permute.xlu0 0
  %5866 = vperm.xlu0 %5865, %v5828
  %v5867 = vpop.permute.xlu0 %5866
  %5870 = vset.pattern.permute.xlu0 0
  %5871 = vperm.xlu0 %5870, %v5829
  %v5872 = vpop.permute.xlu0 %5871
  %5875 = vset.pattern.permute.xlu0 0
  %5876 = vperm.xlu0 %5875, %v5830
  %v5877 = vpop.permute.xlu0 %5876
  %5880 = vset.pattern.permute.xlu0 0
  %5881 = vperm.xlu0 %5880, %v5831
  %v5882 = vpop.permute.xlu0 %5881
  %5885 = vset.pattern.permute.xlu0 0
  %5886 = vperm.xlu0 %5885, %v5832
  %v5887 = vpop.permute.xlu0 %5886
  %5890 = vset.pattern.permute.xlu0 0
  %5891 = vperm.xlu0 %5890, %v5833
  %v5892 = vpop.permute.xlu0 %5891
  %5895 = vset.pattern.permute.xlu0 0
  %5896 = vperm.xlu0 %5895, %v5834
  %v5897 = vpop.permute.xlu0 %5896
  %5900 = vset.pattern.permute.xlu0 0
  %5901 = vperm.xlu0 %5900, %v5835
  %v5902 = vpop.permute.xlu0 %5901
  %5905 = vset.pattern.permute.xlu0 0
  %5906 = vperm.xlu0 %5905, %v5836
  %v5907 = vpop.permute.xlu0 %5906
  %5910 = vset.pattern.permute.xlu0 0
  %5911 = vperm.xlu0 %5910, %v5837
  %v5912 = vpop.permute.xlu0 %5911
  %5915 = vset.pattern.permute.xlu0 0
  %5916 = vperm.xlu0 %5915, %v5838
  %v5917 = vpop.permute.xlu0 %5916
  %5920 = vset.pattern.permute.xlu0 0
  %5921 = vperm.xlu0 %5920, %v5839
  %v5922 = vpop.permute.xlu0 %5921
  %5925 = vset.pattern.permute.xlu0 0
  %5926 = vperm.xlu0 %5925, %v5840
  %v5927 = vpop.permute.xlu0 %5926
  %5930 = vset.pattern.permute.xlu0 0
  %5931 = vperm.xlu0 %5930, %v5841
  %v5932 = vpop.permute.xlu0 %5931
  %5935 = vset.pattern.permute.xlu0 0
  %5936 = vperm.xlu0 %5935, %v5842
  %v5937 = vpop.permute.xlu0 %5936
  %5940 = vset.pattern.permute.xlu0 0
  %5941 = vperm.xlu0 %5940, %v5843
  %v5942 = vpop.permute.xlu0 %5941
  %5945 = vset.pattern.permute.xlu0 0
  %5946 = vperm.xlu0 %5945, %v5844
  %v5947 = vpop.permute.xlu0 %5946
  %5950 = vset.pattern.permute.xlu0 0
  %5951 = vperm.xlu0 %5950, %v5845
  %v5952 = vpop.permute.xlu0 %5951
  %5955 = vset.pattern.permute.xlu0 0
  %5956 = vperm.xlu0 %5955, %v5846
  %v5957 = vpop.permute.xlu0 %5956
  %5960 = vset.pattern.permute.xlu0 0
  %5961 = vperm.xlu0 %5960, %v5847
  %v5962 = vpop.permute.xlu0 %5961
  %5965 = vset.pattern.permute.xlu0 0
  %5966 = vperm.xlu0 %5965, %v5848
  %v5967 = vpop.permute.xlu0 %5966
  %v5969 = vadd.f32 %v5707, %v5852
  %v5970 = vadd.f32 %v5712, %v5857
  %v5971 = vadd.f32 %v5717, %v5862
  %v5972 = vadd.f32 %v5722, %v5867
  %v5973 = vadd.f32 %v5727, %v5872
  %v5974 = vadd.f32 %v5732, %v5877
  %v5975 = vadd.f32 %v5737, %v5882
  %v5976 = vadd.f32 %v5742, %v5887
  %v5977 = vadd.f32 %v5747, %v5892
  %v5978 = vadd.f32 %v5752, %v5897
  %v5979 = vadd.f32 %v5757, %v5902
  %v5980 = vadd.f32 %v5762, %v5907
  %v5981 = vadd.f32 %v5767, %v5912
  %v5982 = vadd.f32 %v5772, %v5917
  %v5983 = vadd.f32 %v5777, %v5922
  %v5984 = vadd.f32 %v5782, %v5927
  %v5985 = vadd.f32 %v5787, %v5932
  %v5986 = vadd.f32 %v5792, %v5937
  %v5987 = vadd.f32 %v5797, %v5942
  %v5988 = vadd.f32 %v5802, %v5947
  %v5989 = vadd.f32 %v5807, %v5952
  %v5990 = vadd.f32 %v5812, %v5957
  %v5991 = vadd.f32 %v5817, %v5962
  %v5992 = vadd.f32 %v5822, %v5967
  %v5993 = vsel %vm3301, %v5969, -inf
  %v5994 = vsel %vm3301, %v5970, -inf
  %v5995 = vsel %vm3301, %v5971, -inf
  %v5996 = vsel %vm3301, %v5972, -inf
  %v5997 = vsel %vm3301, %v5973, -inf
  %v5998 = vmax.f32 %v5993, %v5997
  %v5999 = vsel %vm3301, %v5974, -inf
  %v6000 = vmax.f32 %v5994, %v5999
  %v6001 = vsel %vm3301, %v5975, -inf
  %v6002 = vmax.f32 %v5995, %v6001
  %v6003 = vsel %vm3301, %v5976, -inf
  %v6004 = vmax.f32 %v5996, %v6003
  %v6005 = vsel %vm3301, %v5977, -inf
  %v6006 = vmax.f32 %v5998, %v6005
  %v6007 = vsel %vm3301, %v5978, -inf
  %v6008 = vmax.f32 %v6000, %v6007
  %v6009 = vsel %vm3301, %v5979, -inf
  %v6010 = vmax.f32 %v6002, %v6009
  %v6011 = vsel %vm3301, %v5980, -inf
  %v6012 = vmax.f32 %v6004, %v6011
  %v6013 = vsel %vm3301, %v5981, -inf
  %v6014 = vmax.f32 %v6006, %v6013
  %v6015 = vsel %vm3301, %v5982, -inf
  %v6016 = vmax.f32 %v6008, %v6015
  %v6017 = vsel %vm3301, %v5983, -inf
  %v6018 = vmax.f32 %v6010, %v6017
  %v6019 = vsel %vm3301, %v5984, -inf
  %v6020 = vmax.f32 %v6012, %v6019
  %v6021 = vsel %vm3301, %v5985, -inf
  %v6022 = vmax.f32 %v6014, %v6021
  %v6023 = vsel %vm3301, %v5986, -inf
  %v6024 = vmax.f32 %v6016, %v6023
  %v6025 = vsel %vm3301, %v5987, -inf
  %v6026 = vmax.f32 %v6018, %v6025
  %v6027 = vsel %vm3301, %v5988, -inf
  %v6028 = vmax.f32 %v6020, %v6027
  %v6029 = vsel %vm3301, %v5989, -inf
  %v6030 = vmax.f32 %v6022, %v6029
  %v6031 = vsel %vm3301, %v5990, -inf
  %v6032 = vmax.f32 %v6024, %v6031
  %v6033 = vsel %vm3301, %v5991, -inf
  %v6034 = vmax.f32 %v6026, %v6033
  %v6035 = vsel %vm3301, %v5992, -inf
  %v6036 = vmax.f32 %v6028, %v6035
  %v6037 = vmax.f32 %v6030, %v6032
  %v6038 = vmax.f32 %v6034, %v6036
  %v6039 = vmax.f32 %v6037, %v6038
  %v6040 = vrot.slane %v6039, 4
  %v6041 = vmax.f32 %v6039, %v6040
  %v6042 = vrot.slane %v6041, 2
  %v6043 = vmax.f32 %v6041, %v6042
  %v6044 = vrot.slane %v6043, 1
  %v6045 = vmax.f32 %v6043, %v6044
  %v6046 = vsub.f32 %v5969, %v6045
  %v6047 = vsub.f32 %v5970, %v6045
  %v6048 = vsub.f32 %v5971, %v6045
  %v6049 = vsub.f32 %v5972, %v6045
  %v6050 = vsub.f32 %v5973, %v6045
  %v6051 = vsub.f32 %v5974, %v6045
  %v6052 = vsub.f32 %v5975, %v6045
  %v6053 = vsub.f32 %v5976, %v6045
  %v6054 = vsub.f32 %v5977, %v6045
  %v6055 = vsub.f32 %v5978, %v6045
  %v6056 = vsub.f32 %v5979, %v6045
  %v6057 = vsub.f32 %v5980, %v6045
  %v6058 = vsub.f32 %v5981, %v6045
  %v6059 = vsub.f32 %v5982, %v6045
  %v6060 = vsub.f32 %v5983, %v6045
  %v6061 = vsub.f32 %v5984, %v6045
  %v6062 = vsub.f32 %v5985, %v6045
  %v6063 = vsub.f32 %v5986, %v6045
  %v6064 = vsub.f32 %v5987, %v6045
  %v6065 = vsub.f32 %v5988, %v6045
  %v6066 = vsub.f32 %v5989, %v6045
  %v6067 = vsub.f32 %v5990, %v6045
  %v6068 = vsub.f32 %v5991, %v6045
  %v6069 = vsub.f32 %v5992, %v6045
  %v6070 = vmul.f32 %v6046, 1.442695
  %v6071 = vpow.pop %v6070
  %v6072 = vmul.f32 %v6047, 1.442695
  %v6073 = vpow.pop %v6072
  %v6074 = vmul.f32 %v6048, 1.442695
  %v6075 = vpow.pop %v6074
  %v6076 = vmul.f32 %v6049, 1.442695
  %v6077 = vpow.pop %v6076
  %v6078 = vmul.f32 %v6050, 1.442695
  %v6079 = vpow.pop %v6078
  %v6080 = vmul.f32 %v6051, 1.442695
  %v6081 = vpow.pop %v6080
  %v6082 = vmul.f32 %v6052, 1.442695
  %v6083 = vpow.pop %v6082
  %v6084 = vmul.f32 %v6053, 1.442695
  %v6085 = vpow.pop %v6084
  %v6086 = vmul.f32 %v6054, 1.442695
  %v6087 = vpow.pop %v6086
  %v6088 = vmul.f32 %v6055, 1.442695
  %v6089 = vpow.pop %v6088
  %v6090 = vmul.f32 %v6056, 1.442695
  %v6091 = vpow.pop %v6090
  %v6092 = vmul.f32 %v6057, 1.442695
  %v6093 = vpow.pop %v6092
  %v6094 = vmul.f32 %v6058, 1.442695
  %v6095 = vpow.pop %v6094
  %v6096 = vmul.f32 %v6059, 1.442695
  %v6097 = vpow.pop %v6096
  %v6098 = vmul.f32 %v6060, 1.442695
  %v6099 = vpow.pop %v6098
  %v6100 = vmul.f32 %v6061, 1.442695
  %v6101 = vpow.pop %v6100
  %v6102 = vmul.f32 %v6062, 1.442695
  %v6103 = vpow.pop %v6102
  %v6104 = vmul.f32 %v6063, 1.442695
  %v6105 = vpow.pop %v6104
  %v6106 = vmul.f32 %v6064, 1.442695
  %v6107 = vpow.pop %v6106
  %v6108 = vmul.f32 %v6065, 1.442695
  %v6109 = vpow.pop %v6108
  %v6110 = vmul.f32 %v6066, 1.442695
  %v6111 = vpow.pop %v6110
  %v6112 = vmul.f32 %v6067, 1.442695
  %v6113 = vpow.pop %v6112
  %v6114 = vmul.f32 %v6068, 1.442695
  %v6115 = vpow.pop %v6114
  %v6116 = vmul.f32 %v6069, 1.442695
  %v6117 = vpow.pop %v6116
  %v6118 = vsel %vm3301, %v6071, 0.0
  %v6119 = vsel %vm3301, %v6073, 0.0
  %v6120 = vadd.f32 %v6118, %v6119
  %v6121 = vsel %vm3301, %v6075, 0.0
  %v6122 = vadd.f32 %v6120, %v6121
  %v6123 = vsel %vm3301, %v6077, 0.0
  %v6124 = vadd.f32 %v6122, %v6123
  %v6125 = vsel %vm3301, %v6079, 0.0
  %v6126 = vadd.f32 %v6124, %v6125
  %v6127 = vsel %vm3301, %v6081, 0.0
  %v6128 = vadd.f32 %v6126, %v6127
  %v6129 = vsel %vm3301, %v6083, 0.0
  %v6130 = vadd.f32 %v6128, %v6129
  %v6131 = vsel %vm3301, %v6085, 0.0
  %v6132 = vadd.f32 %v6130, %v6131
  %v6133 = vsel %vm3301, %v6087, 0.0
  %v6134 = vadd.f32 %v6132, %v6133
  %v6135 = vsel %vm3301, %v6089, 0.0
  %v6136 = vadd.f32 %v6134, %v6135
  %v6137 = vsel %vm3301, %v6091, 0.0
  %v6138 = vadd.f32 %v6136, %v6137
  %v6139 = vsel %vm3301, %v6093, 0.0
  %v6140 = vadd.f32 %v6138, %v6139
  %v6141 = vsel %vm3301, %v6095, 0.0
  %v6142 = vadd.f32 %v6140, %v6141
  %v6143 = vsel %vm3301, %v6097, 0.0
  %v6144 = vadd.f32 %v6142, %v6143
  %v6145 = vsel %vm3301, %v6099, 0.0
  %v6146 = vadd.f32 %v6144, %v6145
  %v6147 = vsel %vm3301, %v6101, 0.0
  %v6148 = vadd.f32 %v6146, %v6147
  %v6149 = vsel %vm3301, %v6103, 0.0
  %v6150 = vadd.f32 %v6148, %v6149
  %v6151 = vsel %vm3301, %v6105, 0.0
  %v6152 = vadd.f32 %v6150, %v6151
  %v6153 = vsel %vm3301, %v6107, 0.0
  %v6154 = vadd.f32 %v6152, %v6153
  %v6155 = vsel %vm3301, %v6109, 0.0
  %v6156 = vadd.f32 %v6154, %v6155
  %v6157 = vsel %vm3301, %v6111, 0.0
  %v6158 = vadd.f32 %v6156, %v6157
  %v6159 = vsel %vm3301, %v6113, 0.0
  %v6160 = vadd.f32 %v6158, %v6159
  %v6161 = vsel %vm3301, %v6115, 0.0
  %v6162 = vadd.f32 %v6160, %v6161
  %v6163 = vsel %vm3301, %v6117, 0.0
  %v6164 = vadd.f32 %v6162, %v6163
  %v6165 = vrot.slane %v6164, 4
  %v6166 = vadd.f32 %v6164, %v6165
  %v6167 = vrot.slane %v6166, 2
  %v6168 = vadd.f32 %v6166, %v6167
  %v6169 = vrot.slane %v6168, 1
  %v6170 = vadd.f32 %v6168, %v6169
  %v6171 = vrcp.pop %v6170
  %v6172 = vmul.f32 %v6071, %v6171
  %v6173 = vmul.f32 %v6073, %v6171
  %v6174 = vmul.f32 %v6075, %v6171
  %v6175 = vmul.f32 %v6077, %v6171
  %v6176 = vmul.f32 %v6079, %v6171
  %v6177 = vmul.f32 %v6081, %v6171
  %v6178 = vmul.f32 %v6083, %v6171
  %v6179 = vmul.f32 %v6085, %v6171
  %v6180 = vmul.f32 %v6087, %v6171
  %v6181 = vmul.f32 %v6089, %v6171
  %v6182 = vmul.f32 %v6091, %v6171
  %v6183 = vmul.f32 %v6093, %v6171
  %v6184 = vmul.f32 %v6095, %v6171
  %v6185 = vmul.f32 %v6097, %v6171
  %v6186 = vmul.f32 %v6099, %v6171
  %v6187 = vmul.f32 %v6101, %v6171
  %v6188 = vmul.f32 %v6103, %v6171
  %v6189 = vmul.f32 %v6105, %v6171
  %v6190 = vmul.f32 %v6107, %v6171
  %v6191 = vmul.f32 %v6109, %v6171
  %v6192 = vmul.f32 %v6111, %v6171
  %v6193 = vmul.f32 %v6113, %v6171
  %v6194 = vmul.f32 %v6115, %v6171
  %v6195 = vmul.f32 %v6117, %v6171
  %s6196 = scalar_lea.vmem %s83, 192
  %6197 = vst.msk [vmem:[%s6196] sm:$0xff] %vm3301, %v6172
  %6198 = vst.msk [vmem:[%s6196 + $0x8] sm:$0xff] %vm3301, %v6173
  %6199 = vst.msk [vmem:[%s6196 + $0x10] sm:$0xff] %vm3301, %v6174
  %6200 = vst.msk [vmem:[%s6196 + $0x18] sm:$0xff] %vm3301, %v6175
  %6201 = vst.msk [vmem:[%s6196 + $0x20] sm:$0xff] %vm3301, %v6176
  %6202 = vst.msk [vmem:[%s6196 + $0x28] sm:$0xff] %vm3301, %v6177
  %6203 = vst.msk [vmem:[%s6196 + $0x30] sm:$0xff] %vm3301, %v6178
  %6204 = vst.msk [vmem:[%s6196 + $0x38] sm:$0xff] %vm3301, %v6179
  %6205 = vst.msk [vmem:[%s6196 + $0x40] sm:$0xff] %vm3301, %v6180
  %6206 = vst.msk [vmem:[%s6196 + $0x48] sm:$0xff] %vm3301, %v6181
  %6207 = vst.msk [vmem:[%s6196 + $0x50] sm:$0xff] %vm3301, %v6182
  %6208 = vst.msk [vmem:[%s6196 + $0x58] sm:$0xff] %vm3301, %v6183
  %6209 = vst.msk [vmem:[%s6196 + $0x60] sm:$0xff] %vm3301, %v6184
  %6210 = vst.msk [vmem:[%s6196 + $0x68] sm:$0xff] %vm3301, %v6185
  %6211 = vst.msk [vmem:[%s6196 + $0x70] sm:$0xff] %vm3301, %v6186
  %6212 = vst.msk [vmem:[%s6196 + $0x78] sm:$0xff] %vm3301, %v6187
  %6213 = vst.msk [vmem:[%s6196 + $0x80] sm:$0xff] %vm3301, %v6188
  %6214 = vst.msk [vmem:[%s6196 + $0x88] sm:$0xff] %vm3301, %v6189
  %6215 = vst.msk [vmem:[%s6196 + $0x90] sm:$0xff] %vm3301, %v6190
  %6216 = vst.msk [vmem:[%s6196 + $0x98] sm:$0xff] %vm3301, %v6191
  %6217 = vst.msk [vmem:[%s6196 + $0xa0] sm:$0xff] %vm3301, %v6192
  %6218 = vst.msk [vmem:[%s6196 + $0xa8] sm:$0xff] %vm3301, %v6193
  %6219 = vst.msk [vmem:[%s6196 + $0xb0] sm:$0xff] %vm3301, %v6194
  %6220 = vst.msk [vmem:[%s6196 + $0xb8] sm:$0xff] %vm3301, %v6195
  // Predicated region
  $region166: #{tpu_custom_call.1} parent=0 // pred_check
    _
  $region167: #{tpu_custom_call.1} parent=0 // pred_check_branch
    %6222 = sbr.rel (0) target = $region169
  $region168: #{tpu_custom_call.1} parent=0 // pred_region
    _
  $region169: #{tpu_custom_call.1} parent=0 // pred_fallthru
    _
  // Predicated region
  $region170: #{tpu_custom_call.1} parent=0 // pred_check
    _
  $region171: #{tpu_custom_call.1} parent=0 // pred_check_branch
    %6224 = sbr.rel (0) target = $region173
  $region172: #{tpu_custom_call.1} parent=0 // pred_region
    _
  $region173: #{tpu_custom_call.1} parent=0 // pred_fallthru
    _

</llo_original>
